<compile_context>
chip_gen: v6e
topology: v6e:2x2x1
jax: 0.10.0
libtpu: 0.0.40
codegen_flags: <defaults>
</compile_context>

<pallas_src>
import numpy as np
import jax
import jax.numpy as jnp
from jax.experimental import pallas as pl
from jax.experimental.pallas import tpu as pltpu

# ----------------------------- hyper-parameters ------------------------------
INPUT_SIZE  = 3        # 3D joint coordinates
OUTPUT_SIZE = 16       # synthetic SMPLX parameter vector size
D_MODEL     = 32
NHEAD       = 4
HEAD_DIM    = D_MODEL // NHEAD
NUM_LAYERS  = 2
DROPOUT     = 0.0      # TODO(synk): dropout implemented as identity (inference / p=0)
SEQ_LEN     = 25       # fixed by the module: fc = nn.Linear(d_model * 25, output_size)
DIM_FF      = 2048     # PyTorch TransformerEncoderLayer default dim_feedforward
BATCH       = 2
LN_EPS      = 1e-5
NEG_BIAS    = -1e9     # additive mask for cross-batch attention scores
FF_CHUNK    = 512      # FFN chunk width (divides DIM_FF)


# ------------------------------ fused Pallas kernel ---------------------------
def _layernorm(x, w, b):
    mu = jnp.mean(x, axis=-1, keepdims=True)
    xc = x - mu
    var = jnp.mean(xc * xc, axis=-1, keepdims=True)
    return xc * jax.lax.rsqrt(var + LN_EPS) * w + b


def _encoder_kernel(x_ref, bias_ref, sel_ref, in_w_ref, in_b_ref,
                    wqkv_ref, bqkv_ref, wo_ref, bo_ref,
                    ln1w_ref, ln1b_ref, w1_ref, b1_ref, w2_ref, b2_ref,
                    ln2w_ref, ln2b_ref, fcw_ref, fcb_ref,
                    o_ref, h_scr):
    l = pl.program_id(0)
    scale = 1.0 / float(np.sqrt(HEAD_DIM))

    # ---- layer 0 only: input projection (K=3 -> broadcast MACs on the VPU) ----
    @pl.when(l == 0)
    def _():
        x = x_ref[...]                                  # (B*S, INPUT_SIZE)
        w_in = in_w_ref[...]                            # (INPUT_SIZE, D)
        h0 = x[:, 0:1] * w_in[0:1, :]
        for i in range(1, INPUT_SIZE):
            h0 = h0 + x[:, i:i + 1] * w_in[i:i + 1, :]
        h_scr[...] = h0 + in_b_ref[...]                 # (B*S, D)

    h = h_scr[...]                                      # (B*S, D)
    bias = bias_ref[...]                                # (B*S, B*S) block-diag 0 / -1e9

    # ---- fused QKV projection: one (B*S,D)x(D,3D) MXU matmul ----
    qkv = jnp.dot(h, wqkv_ref[...],
                  preferred_element_type=jnp.float32) + bqkv_ref[...]   # (B*S, 3D)
    wo = wo_ref[...]                                    # (H, hd, D)

    # ---- per-head attention; head-sum folded into the output projection ----
    attn = None
    for hh in range(NHEAD):
        q = qkv[:, hh * HEAD_DIM:(hh + 1) * HEAD_DIM] * scale                       # (B*S, hd)
        k = qkv[:, D_MODEL + hh * HEAD_DIM:D_MODEL + (hh + 1) * HEAD_DIM]           # (B*S, hd)
        v = qkv[:, 2 * D_MODEL + hh * HEAD_DIM:2 * D_MODEL + (hh + 1) * HEAD_DIM]   # (B*S, hd)
        s = jnp.einsum('me,ne->mn', q, k,
                       preferred_element_type=jnp.float32) + bias                   # (B*S, B*S)
        s = s - jnp.max(s, axis=-1, keepdims=True)
        p = jnp.exp(s)
        p = p * pl.reciprocal(jnp.sum(p, axis=-1, keepdims=True), approx=True)
        ctx = jnp.dot(p, v, preferred_element_type=jnp.float32)                     # (B*S, hd)
        contrib = jnp.dot(ctx, wo[hh], preferred_element_type=jnp.float32)          # (B*S, D)
        attn = contrib if attn is None else attn + contrib
    attn = attn + bo_ref[...]

    # ---- residual + LayerNorm1 ----
    h1 = _layernorm(h + attn, ln1w_ref[...], ln1b_ref[...])

    # ---- feed-forward, chunked over DIM_FF (no (B*S, 2048) intermediate) ----
    f = None
    for c in range(0, DIM_FF, FF_CHUNK):
        t = jnp.dot(h1, w1_ref[:, c:c + FF_CHUNK],
                    preferred_element_type=jnp.float32) + b1_ref[:, c:c + FF_CHUNK]
        t = jnp.maximum(t, 0.0)
        part = jnp.dot(t, w2_ref[c:c + FF_CHUNK, :],
                       preferred_element_type=jnp.float32)
        f = part if f is None else f + part
    f = f + b2_ref[...]

    # ---- residual + LayerNorm2; carry h across grid iterations ----
    h_new = _layernorm(h1 + f, ln2w_ref[...], ln2b_ref[...])
    h_scr[...] = h_new

    # ---- last layer only: flattened fc without in-kernel relayout ----
    @pl.when(l == pl.num_programs(0) - 1)
    def _():
        # fcw is fc_w repacked to (OUT, B*S, D):
        #   out[b, o] = sum_m sel[b, m] * sum_d h[m, d] * fcw[o, m, d]
        red = jnp.sum(h_new[None, :, :] * fcw_ref[...], axis=-1)        # (OUT, B*S)
        out = jnp.einsum('bm,om->bo', sel_ref[...], red,
                         preferred_element_type=jnp.float32)            # (B, OUT)
        o_ref[...] = out + fcb_ref[...]


# --------------------- one-time weight packing (init time) --------------------
def pack_params(params, batch=BATCH, seq=SEQ_LEN):
    """Repack PyTorch-style params once; the per-call forward does no repacking."""
    L = params["layers"]
    pk = {}
    pk["in_w"] = params["in_w"]                                          # (3, D)
    pk["in_b"] = params["in_b"]                                          # (1, D)
    pk["wqkv"] = jnp.stack([jnp.concatenate([p["wq"], p["wk"], p["wv"]], axis=1)
                            for p in L])                                 # (L, D, 3D)
    pk["bqkv"] = jnp.stack([jnp.concatenate([p["bq"], p["bk"], p["bv"]], axis=1)
                            for p in L])                                 # (L, 1, 3D)
    pk["wo"]   = jnp.stack([p["wo"].reshape(NHEAD, HEAD_DIM, D_MODEL)
                            for p in L])                                 # (L, H, hd, D)
    pk["bo"]   = jnp.stack([p["bo"] for p in L])                         # (L, 1, D)
    pk["ln1w"] = jnp.stack([p["ln1w"] for p in L])
    pk["ln1b"] = jnp.stack([p["ln1b"] for p in L])
    pk["w1"]   = jnp.stack([p["w1"] for p in L])                         # (L, D, FF)
    pk["b1"]   = jnp.stack([p["b1"] for p in L])                         # (L, 1, FF)
    pk["w2"]   = jnp.stack([p["w2"] for p in L])                         # (L, FF, D)
    pk["b2"]   = jnp.stack([p["b2"] for p in L])                         # (L, 1, D)
    pk["ln2w"] = jnp.stack([p["ln2w"] for p in L])
    pk["ln2b"] = jnp.stack([p["ln2b"] for p in L])

    # fc weight: (S*D, OUT) -> (OUT, S, D) -> tile over batch -> (OUT, B*S, D)
    fc_wr = params["fc_w"].reshape(seq, D_MODEL, OUTPUT_SIZE).transpose(2, 0, 1)
    pk["fcw"] = jnp.tile(fc_wr, (1, batch, 1))
    pk["fcb"] = params["fc_b"]                                           # (1, OUT)

    # block-diagonal additive attention bias + per-batch selector for the fc reduction
    bids = jnp.repeat(jnp.arange(batch, dtype=jnp.int32), seq)           # (B*S,)
    pk["attn_bias"] = jnp.where(bids[None, :] == bids[:, None],
                                0.0, NEG_BIAS).astype(jnp.float32)       # (B*S, B*S)
    pk["sel"] = (bids[None, :] == jnp.arange(batch, dtype=jnp.int32)[:, None]
                 ).astype(jnp.float32)                                   # (B, B*S)
    return pk


# ------------------------------ model forward --------------------------------
@jax.jit
def transformer_forward(x, pk):
    B, S, _ = x.shape
    BS = B * S
    x2 = x.reshape(BS, INPUT_SIZE)

    def const_spec(shape):
        nd = len(shape)
        return pl.BlockSpec(tuple(shape), lambda l, _n=nd: (0,) * _n)

    def layer_spec(shape):
        nd = len(shape)
        return pl.BlockSpec((None,) + tuple(shape[1:]),
                            lambda l, _n=nd: (l,) + (0,) * (_n - 1))

    in_specs = [
        const_spec(x2.shape),
        const_spec(pk["attn_bias"].shape),
        const_spec(pk["sel"].shape),
        const_spec(pk["in_w"].shape),
        const_spec(pk["in_b"].shape),
        layer_spec(pk["wqkv"].shape),
        layer_spec(pk["bqkv"].shape),
        layer_spec(pk["wo"].shape),
        layer_spec(pk["bo"].shape),
        layer_spec(pk["ln1w"].shape),
        layer_spec(pk["ln1b"].shape),
        layer_spec(pk["w1"].shape),
        layer_spec(pk["b1"].shape),
        layer_spec(pk["w2"].shape),
        layer_spec(pk["b2"].shape),
        layer_spec(pk["ln2w"].shape),
        layer_spec(pk["ln2b"].shape),
        const_spec(pk["fcw"].shape),
        const_spec(pk["fcb"].shape),
    ]

    grid_spec = pltpu.PrefetchScalarGridSpec(
        num_scalar_prefetch=0,
        grid=(NUM_LAYERS,),
        in_specs=in_specs,
        out_specs=pl.BlockSpec((B, OUTPUT_SIZE), lambda l: (0, 0)),
        scratch_shapes=[pltpu.VMEM((BS, D_MODEL), jnp.float32)],
    )

    return pl.pallas_call(
        _encoder_kernel,
        out_shape=jax.ShapeDtypeStruct((B, OUTPUT_SIZE), jnp.float32),
        grid_spec=grid_spec,
        compiler_params=pltpu.CompilerParams(dimension_semantics=("arbitrary",)),
    )(x2, pk["attn_bias"], pk["sel"], pk["in_w"], pk["in_b"],
      pk["wqkv"], pk["bqkv"], pk["wo"], pk["bo"],
      pk["ln1w"], pk["ln1b"], pk["w1"], pk["b1"], pk["w2"], pk["b2"],
      pk["ln2w"], pk["ln2b"], pk["fcw"], pk["fcb"])


# ------------------------------ parameter init -------------------------------
def _linear_params(key, fan_in, fan_out):
    kw, kb = jax.random.split(key)
    bound = 1.0 / np.sqrt(fan_in)
    w = jax.random.uniform(kw, (fan_in, fan_out), jnp.float32, -bound, bound)
    b = jax.random.uniform(kb, (1, fan_out), jnp.float32, -bound, bound)
    return w, b


def init_params(key):
    keys = jax.random.split(key, 2 + NUM_LAYERS)
    params = {}
    params["in_w"], params["in_b"] = _linear_params(keys[0], INPUT_SIZE, D_MODEL)
    params["fc_w"], params["fc_b"] = _linear_params(keys[1], D_MODEL * SEQ_LEN, OUTPUT_SIZE)
    layers = []
    for l in range(NUM_LAYERS):
        lk = jax.random.split(keys[2 + l], 6)
        lp = {}
        lp["wq"], lp["bq"] = _linear_params(lk[0], D_MODEL, D_MODEL)
        lp["wk"], lp["bk"] = _linear_params(lk[1], D_MODEL, D_MODEL)
        lp["wv"], lp["bv"] = _linear_params(lk[2], D_MODEL, D_MODEL)
        lp["wo"], lp["bo"] = _linear_params(lk[3], D_MODEL, D_MODEL)
        lp["w1"], lp["b1"] = _linear_params(lk[4], D_MODEL, DIM_FF)
        lp["w2"], lp["b2"] = _linear_params(lk[5], DIM_FF, D_MODEL)
        lp["ln1w"] = jnp.ones((1, D_MODEL), jnp.float32)
        lp["ln1b"] = jnp.zeros((1, D_MODEL), jnp.float32)
        lp["ln2w"] = jnp.ones((1, D_MODEL), jnp.float32)
        lp["ln2b"] = jnp.zeros((1, D_MODEL), jnp.float32)
        layers.append(lp)
    params["layers"] = layers
    return params


# ------------------------------ pure-JAX reference ---------------------------
def reference_forward(x, params):
    B, S, _ = x.shape
    h = x.reshape(B * S, INPUT_SIZE) @ params["in_w"] + params["in_b"][0]
    h = h.reshape(B, S, D_MODEL)
    hd = D_MODEL // NHEAD
    for p in params["layers"]:
        q = h @ p["wq"] + p["bq"][0]
        k = h @ p["wk"] + p["bk"][0]
        v = h @ p["wv"] + p["bv"][0]
        qh = q.reshape(B, S, NHEAD, hd).transpose(0, 2, 1, 3)
        kh = k.reshape(B, S, NHEAD, hd).transpose(0, 2, 1, 3)
        vh = v.reshape(B, S, NHEAD, hd).transpose(0, 2, 1, 3)
        s = jnp.einsum("bhqd,bhkd->bhqk", qh, kh) / jnp.sqrt(hd).astype(jnp.float32)
        a = jax.nn.softmax(s, axis=-1)
        ctx = jnp.einsum("bhqk,bhkd->bhqd", a, vh).transpose(0, 2, 1, 3).reshape(B, S, D_MODEL)
        attn = ctx @ p["wo"] + p["bo"][0]

        def ln(y, w, b):
            mu = jnp.mean(y, axis=-1, keepdims=True)
            yc = y - mu
            var = jnp.mean(yc * yc, axis=-1, keepdims=True)
            return yc * jax.lax.rsqrt(var + LN_EPS) * w + b

        h1 = ln(h + attn, p["ln1w"][0], p["ln1b"][0])
        f = jnp.maximum(h1 @ p["w1"] + p["b1"][0], 0.0)
        f = f @ p["w2"] + p["b2"][0]
        h = ln(h1 + f, p["ln2w"][0], p["ln2b"][0])
    flat = h.reshape(B, S * D_MODEL)
    return flat @ params["fc_w"] + params["fc_b"][0]


# ------------------------------------ main ------------------------------------
if __name__ == "__main__":
    key = jax.random.PRNGKey(0)
    kx, kp = jax.random.split(key)
    x = jax.random.normal(kx, (BATCH, SEQ_LEN, INPUT_SIZE), dtype=jnp.float32)
    params = init_params(kp)
    packed = pack_params(params)            # one-time repack (not on the forward path)

    out = jax.block_until_ready(transformer_forward(x, packed))
    ref = jax.block_until_ready(reference_forward(x, params))

    assert out.shape == (BATCH, OUTPUT_SIZE), out.shape
    np.testing.assert_allclose(np.asarray(out), np.asarray(ref), rtol=2e-3, atol=2e-3)

    print("KERNEL_OK")
</pallas_src>

<mosaic_0001>
module attributes {stable_mosaic.version = 11 : i64} {
  func.func @_encoder_kernel(%arg0: i32, %arg1: memref<50x3xf32, #tpu.memory_space<vmem>>, %arg2: memref<50x50xf32, #tpu.memory_space<vmem>>, %arg3: memref<2x50xf32, #tpu.memory_space<vmem>>, %arg4: memref<3x32xf32, #tpu.memory_space<vmem>>, %arg5: memref<1x32xf32, #tpu.memory_space<vmem>>, %arg6: memref<1x32x96xf32, #tpu.memory_space<vmem>>, %arg7: memref<1x1x96xf32, #tpu.memory_space<vmem>>, %arg8: memref<1x4x8x32xf32, #tpu.memory_space<vmem>>, %arg9: memref<1x1x32xf32, #tpu.memory_space<vmem>>, %arg10: memref<1x1x32xf32, #tpu.memory_space<vmem>>, %arg11: memref<1x1x32xf32, #tpu.memory_space<vmem>>, %arg12: memref<1x32x2048xf32, #tpu.memory_space<vmem>>, %arg13: memref<1x1x2048xf32, #tpu.memory_space<vmem>>, %arg14: memref<1x2048x32xf32, #tpu.memory_space<vmem>>, %arg15: memref<1x1x32xf32, #tpu.memory_space<vmem>>, %arg16: memref<1x1x32xf32, #tpu.memory_space<vmem>>, %arg17: memref<1x1x32xf32, #tpu.memory_space<vmem>>, %arg18: memref<16x50x32xf32, #tpu.memory_space<vmem>>, %arg19: memref<1x16xf32, #tpu.memory_space<vmem>>, %arg20: memref<2x16xf32, #tpu.memory_space<vmem>>, %arg21: memref<50x32xf32, #tpu.memory_space<vmem>>) attributes {dimension_semantics = [#tpu.dimension_semantics<arbitrary>], iteration_bounds = array<i64: 2>, scalar_prefetch = 0 : i64, scratch_operands = 1 : i64, tpu.core_type = #tpu.core_type<tc>, window_params = [{pipeline_mode = #tpu.pipeline_mode<synchronous>, transform_indices = @transform_0, window_bounds = array<i64: 50, 3>}, {pipeline_mode = #tpu.pipeline_mode<synchronous>, transform_indices = @transform_1, window_bounds = array<i64: 50, 50>}, {pipeline_mode = #tpu.pipeline_mode<synchronous>, transform_indices = @transform_2, window_bounds = array<i64: 2, 50>}, {pipeline_mode = #tpu.pipeline_mode<synchronous>, transform_indices = @transform_3, window_bounds = array<i64: 3, 32>}, {pipeline_mode = #tpu.pipeline_mode<synchronous>, transform_indices = @transform_4, window_bounds = array<i64: 1, 32>}, {transform_indices = @transform_5, window_bounds = array<i64: 1, 32, 96>}, {transform_indices = @transform_6, window_bounds = array<i64: 1, 1, 96>}, {transform_indices = @transform_7, window_bounds = array<i64: 1, 4, 8, 32>}, {transform_indices = @transform_8, window_bounds = array<i64: 1, 1, 32>}, {transform_indices = @transform_9, window_bounds = array<i64: 1, 1, 32>}, {transform_indices = @transform_10, window_bounds = array<i64: 1, 1, 32>}, {transform_indices = @transform_11, window_bounds = array<i64: 1, 32, 2048>}, {transform_indices = @transform_12, window_bounds = array<i64: 1, 1, 2048>}, {transform_indices = @transform_13, window_bounds = array<i64: 1, 2048, 32>}, {transform_indices = @transform_14, window_bounds = array<i64: 1, 1, 32>}, {transform_indices = @transform_15, window_bounds = array<i64: 1, 1, 32>}, {transform_indices = @transform_16, window_bounds = array<i64: 1, 1, 32>}, {pipeline_mode = #tpu.pipeline_mode<synchronous>, transform_indices = @transform_17, window_bounds = array<i64: 16, 50, 32>}, {pipeline_mode = #tpu.pipeline_mode<synchronous>, transform_indices = @transform_18, window_bounds = array<i64: 1, 16>}, {pipeline_mode = #tpu.pipeline_mode<synchronous>, transform_indices = @transform_19, window_bounds = array<i64: 2, 16>}]} {
    %c0_i32 = arith.constant 0 : i32
    %0 = arith.cmpi eq, %arg0, %c0_i32 : i32
    %1 = arith.extui %0 : i1 to i32
    %c0_i32_0 = arith.constant 0 : i32
    %2 = arith.cmpi ne, %1, %c0_i32_0 : i32
    scf.if %2 {
      %c0_114 = arith.constant 0 : index
      %c0_115 = arith.constant 0 : index
      %214 = vector.load %arg1[%c0_114, %c0_115] : memref<50x3xf32, #tpu.memory_space<vmem>>, vector<50x3xf32>
      %c0_116 = arith.constant 0 : index
      %c0_117 = arith.constant 0 : index
      %215 = vector.load %arg4[%c0_116, %c0_117] : memref<3x32xf32, #tpu.memory_space<vmem>>, vector<3x32xf32>
      %216 = vector.extract_strided_slice %214 {offsets = [0, 0], sizes = [50, 1], strides = [1, 1]} : vector<50x3xf32> to vector<50x1xf32>
      %217 = vector.extract_strided_slice %215 {offsets = [0, 0], sizes = [1, 32], strides = [1, 1]} : vector<3x32xf32> to vector<1x32xf32>
      %218 = vector.broadcast %216 : vector<50x1xf32> to vector<50x32xf32>
      %219 = vector.broadcast %217 : vector<1x32xf32> to vector<50x32xf32>
      %220 = arith.mulf %218, %219 : vector<50x32xf32>
      %221 = vector.extract_strided_slice %214 {offsets = [0, 1], sizes = [50, 1], strides = [1, 1]} : vector<50x3xf32> to vector<50x1xf32>
      %222 = vector.extract_strided_slice %215 {offsets = [1, 0], sizes = [1, 32], strides = [1, 1]} : vector<3x32xf32> to vector<1x32xf32>
      %223 = vector.broadcast %221 : vector<50x1xf32> to vector<50x32xf32>
      %224 = vector.broadcast %222 : vector<1x32xf32> to vector<50x32xf32>
      %225 = arith.mulf %223, %224 : vector<50x32xf32>
      %226 = arith.addf %220, %225 : vector<50x32xf32>
      %227 = vector.extract_strided_slice %214 {offsets = [0, 2], sizes = [50, 1], strides = [1, 1]} : vector<50x3xf32> to vector<50x1xf32>
      %228 = vector.extract_strided_slice %215 {offsets = [2, 0], sizes = [1, 32], strides = [1, 1]} : vector<3x32xf32> to vector<1x32xf32>
      %229 = vector.broadcast %227 : vector<50x1xf32> to vector<50x32xf32>
      %230 = vector.broadcast %228 : vector<1x32xf32> to vector<50x32xf32>
      %231 = arith.mulf %229, %230 : vector<50x32xf32>
      %232 = arith.addf %226, %231 : vector<50x32xf32>
      %c0_118 = arith.constant 0 : index
      %c0_119 = arith.constant 0 : index
      %233 = vector.load %arg5[%c0_118, %c0_119] : memref<1x32xf32, #tpu.memory_space<vmem>>, vector<1x32xf32>
      %234 = vector.broadcast %233 : vector<1x32xf32> to vector<50x32xf32>
      %235 = arith.addf %232, %234 : vector<50x32xf32>
      %c0_120 = arith.constant 0 : index
      %c0_121 = arith.constant 0 : index
      %236 = vector.load %arg21[%c0_120, %c0_121] : memref<50x32xf32, #tpu.memory_space<vmem>>, vector<50x32xf32>
      tpu.vector_store %arg21[%c0_120, %c0_121], %235 {strides = array<i32>} : memref<50x32xf32, #tpu.memory_space<vmem>>, vector<50x32xf32>,
    } else {
    }
    %c0 = arith.constant 0 : index
    %c0_1 = arith.constant 0 : index
    %3 = vector.load %arg21[%c0, %c0_1] : memref<50x32xf32, #tpu.memory_space<vmem>>, vector<50x32xf32>
    %c0_2 = arith.constant 0 : index
    %c0_3 = arith.constant 0 : index
    %4 = vector.load %arg2[%c0_2, %c0_3] : memref<50x50xf32, #tpu.memory_space<vmem>>, vector<50x50xf32>
    %c0_4 = arith.constant 0 : index
    %c0_5 = arith.constant 0 : index
    %c0_6 = arith.constant 0 : index
    %5 = vector.load %arg6[%c0_4, %c0_5, %c0_6] : memref<1x32x96xf32, #tpu.memory_space<vmem>>, vector<1x32x96xf32>
    %6 = vector.shape_cast %5 : vector<1x32x96xf32> to vector<32x96xf32>
    %cst = arith.constant dense<0.000000e+00> : vector<50x96xf32>
    %7 = tpu.matmul %3, %6, %cst {dimension_numbers = #tpu.dot_dimension_numbers<[1], [0], [0], [1], [0, 0, 1, 1], [], []>} : vector<50x32xf32>, vector<32x96xf32>, vector<50x96xf32> -> vector<50x96xf32>
    %c0_7 = arith.constant 0 : index
    %c0_8 = arith.constant 0 : index
    %c0_9 = arith.constant 0 : index
    %8 = vector.load %arg7[%c0_7, %c0_8, %c0_9] : memref<1x1x96xf32, #tpu.memory_space<vmem>>, vector<1x1x96xf32>
    %9 = vector.shape_cast %8 : vector<1x1x96xf32> to vector<1x96xf32>
    %10 = vector.broadcast %9 : vector<1x96xf32> to vector<50x96xf32>
    %11 = arith.addf %7, %10 : vector<50x96xf32>
    %c0_10 = arith.constant 0 : index
    %c0_11 = arith.constant 0 : index
    %c0_12 = arith.constant 0 : index
    %c0_13 = arith.constant 0 : index
    %12 = vector.load %arg8[%c0_10, %c0_11, %c0_12, %c0_13] : memref<1x4x8x32xf32, #tpu.memory_space<vmem>>, vector<1x4x8x32xf32>
    %13 = vector.shape_cast %12 : vector<1x4x8x32xf32> to vector<4x8x32xf32>
    %14 = vector.extract_strided_slice %11 {offsets = [0, 0], sizes = [50, 8], strides = [1, 1]} : vector<50x96xf32> to vector<50x8xf32>
    %cst_14 = arith.constant 0.353553385 : f32
    %15 = vector.broadcast %cst_14 : f32 to vector<50x8xf32>
    %16 = arith.mulf %14, %15 : vector<50x8xf32>
    %17 = vector.extract_strided_slice %11 {offsets = [0, 32], sizes = [50, 8], strides = [1, 1]} : vector<50x96xf32> to vector<50x8xf32>
    %18 = vector.extract_strided_slice %11 {offsets = [0, 64], sizes = [50, 8], strides = [1, 1]} : vector<50x96xf32> to vector<50x8xf32>
    "tpu.trace_start"() <{level = 10 : i32, message = "me,ne->mn"}> : () -> ()
    %cst_15 = arith.constant dense<0.000000e+00> : vector<50x50xf32>
    %19 = tpu.matmul %16, %17, %cst_15 {dimension_numbers = #tpu.dot_dimension_numbers<[1], [1], [0], [0], [0, 0, 1, 0], [], []>} : vector<50x8xf32>, vector<50x8xf32>, vector<50x50xf32> -> vector<50x50xf32>
    "tpu.trace_stop"() : () -> ()
    %20 = arith.addf %19, %4 : vector<50x50xf32>
    %cst_16 = arith.constant dense<0xFF800000> : vector<50xf32>
    %21 = vector.multi_reduction <maximumf>, %20, %cst_16 [1] : vector<50x50xf32> to vector<50xf32>
    %22 = vector.shape_cast %21 : vector<50xf32> to vector<50x1xf32>
    %23 = vector.broadcast %22 : vector<50x1xf32> to vector<50x50xf32>
    %24 = arith.subf %20, %23 : vector<50x50xf32>
    %25 = math.exp %24 : vector<50x50xf32>
    %cst_17 = arith.constant dense<0.000000e+00> : vector<50xf32>
    %26 = vector.multi_reduction <add>, %25, %cst_17 [1] : vector<50x50xf32> to vector<50xf32>
    %27 = vector.shape_cast %26 : vector<50xf32> to vector<50x1xf32>
    %28 = tpu.reciprocal %27 {approx = true} : vector<50x1xf32> -> vector<50x1xf32>
    %29 = vector.broadcast %28 : vector<50x1xf32> to vector<50x50xf32>
    %30 = arith.mulf %25, %29 : vector<50x50xf32>
    %cst_18 = arith.constant dense<0.000000e+00> : vector<50x8xf32>
    %31 = tpu.matmul %30, %18, %cst_18 {dimension_numbers = #tpu.dot_dimension_numbers<[1], [0], [0], [1], [0, 0, 1, 1], [], []>} : vector<50x50xf32>, vector<50x8xf32>, vector<50x8xf32> -> vector<50x8xf32>
    %32 = vector.extract_strided_slice %13 {offsets = [0, 0, 0], sizes = [1, 8, 32], strides = [1, 1, 1]} : vector<4x8x32xf32> to vector<1x8x32xf32>
    %33 = vector.shape_cast %32 : vector<1x8x32xf32> to vector<8x32xf32>
    %cst_19 = arith.constant dense<0.000000e+00> : vector<50x32xf32>
    %34 = tpu.matmul %31, %33, %cst_19 {dimension_numbers = #tpu.dot_dimension_numbers<[1], [0], [0], [1], [0, 0, 1, 1], [], []>} : vector<50x8xf32>, vector<8x32xf32>, vector<50x32xf32> -> vector<50x32xf32>
    %35 = vector.extract_strided_slice %11 {offsets = [0, 8], sizes = [50, 8], strides = [1, 1]} : vector<50x96xf32> to vector<50x8xf32>
    %cst_20 = arith.constant 0.353553385 : f32
    %36 = vector.broadcast %cst_20 : f32 to vector<50x8xf32>
    %37 = arith.mulf %35, %36 : vector<50x8xf32>
    %38 = vector.extract_strided_slice %11 {offsets = [0, 40], sizes = [50, 8], strides = [1, 1]} : vector<50x96xf32> to vector<50x8xf32>
    %39 = vector.extract_strided_slice %11 {offsets = [0, 72], sizes = [50, 8], strides = [1, 1]} : vector<50x96xf32> to vector<50x8xf32>
    "tpu.trace_start"() <{level = 10 : i32, message = "me,ne->mn"}> : () -> ()
    %cst_21 = arith.constant dense<0.000000e+00> : vector<50x50xf32>
    %40 = tpu.matmul %37, %38, %cst_21 {dimension_numbers = #tpu.dot_dimension_numbers<[1], [1], [0], [0], [0, 0, 1, 0], [], []>} : vector<50x8xf32>, vector<50x8xf32>, vector<50x50xf32> -> vector<50x50xf32>
    "tpu.trace_stop"() : () -> ()
    %41 = arith.addf %40, %4 : vector<50x50xf32>
    %cst_22 = arith.constant dense<0xFF800000> : vector<50xf32>
    %42 = vector.multi_reduction <maximumf>, %41, %cst_22 [1] : vector<50x50xf32> to vector<50xf32>
    %43 = vector.shape_cast %42 : vector<50xf32> to vector<50x1xf32>
    %44 = vector.broadcast %43 : vector<50x1xf32> to vector<50x50xf32>
    %45 = arith.subf %41, %44 : vector<50x50xf32>
    %46 = math.exp %45 : vector<50x50xf32>
    %cst_23 = arith.constant dense<0.000000e+00> : vector<50xf32>
    %47 = vector.multi_reduction <add>, %46, %cst_23 [1] : vector<50x50xf32> to vector<50xf32>
    %48 = vector.shape_cast %47 : vector<50xf32> to vector<50x1xf32>
    %49 = tpu.reciprocal %48 {approx = true} : vector<50x1xf32> -> vector<50x1xf32>
    %50 = vector.broadcast %49 : vector<50x1xf32> to vector<50x50xf32>
    %51 = arith.mulf %46, %50 : vector<50x50xf32>
    %cst_24 = arith.constant dense<0.000000e+00> : vector<50x8xf32>
    %52 = tpu.matmul %51, %39, %cst_24 {dimension_numbers = #tpu.dot_dimension_numbers<[1], [0], [0], [1], [0, 0, 1, 1], [], []>} : vector<50x50xf32>, vector<50x8xf32>, vector<50x8xf32> -> vector<50x8xf32>
    %53 = vector.extract_strided_slice %13 {offsets = [1, 0, 0], sizes = [1, 8, 32], strides = [1, 1, 1]} : vector<4x8x32xf32> to vector<1x8x32xf32>
    %54 = vector.shape_cast %53 : vector<1x8x32xf32> to vector<8x32xf32>
    %cst_25 = arith.constant dense<0.000000e+00> : vector<50x32xf32>
    %55 = tpu.matmul %52, %54, %cst_25 {dimension_numbers = #tpu.dot_dimension_numbers<[1], [0], [0], [1], [0, 0, 1, 1], [], []>} : vector<50x8xf32>, vector<8x32xf32>, vector<50x32xf32> -> vector<50x32xf32>
    %56 = arith.addf %34, %55 : vector<50x32xf32>
    %57 = vector.extract_strided_slice %11 {offsets = [0, 16], sizes = [50, 8], strides = [1, 1]} : vector<50x96xf32> to vector<50x8xf32>
    %cst_26 = arith.constant 0.353553385 : f32
    %58 = vector.broadcast %cst_26 : f32 to vector<50x8xf32>
    %59 = arith.mulf %57, %58 : vector<50x8xf32>
    %60 = vector.extract_strided_slice %11 {offsets = [0, 48], sizes = [50, 8], strides = [1, 1]} : vector<50x96xf32> to vector<50x8xf32>
    %61 = vector.extract_strided_slice %11 {offsets = [0, 80], sizes = [50, 8], strides = [1, 1]} : vector<50x96xf32> to vector<50x8xf32>
    "tpu.trace_start"() <{level = 10 : i32, message = "me,ne->mn"}> : () -> ()
    %cst_27 = arith.constant dense<0.000000e+00> : vector<50x50xf32>
    %62 = tpu.matmul %59, %60, %cst_27 {dimension_numbers = #tpu.dot_dimension_numbers<[1], [1], [0], [0], [0, 0, 1, 0], [], []>} : vector<50x8xf32>, vector<50x8xf32>, vector<50x50xf32> -> vector<50x50xf32>
    "tpu.trace_stop"() : () -> ()
    %63 = arith.addf %62, %4 : vector<50x50xf32>
    %cst_28 = arith.constant dense<0xFF800000> : vector<50xf32>
    %64 = vector.multi_reduction <maximumf>, %63, %cst_28 [1] : vector<50x50xf32> to vector<50xf32>
    %65 = vector.shape_cast %64 : vector<50xf32> to vector<50x1xf32>
    %66 = vector.broadcast %65 : vector<50x1xf32> to vector<50x50xf32>
    %67 = arith.subf %63, %66 : vector<50x50xf32>
    %68 = math.exp %67 : vector<50x50xf32>
    %cst_29 = arith.constant dense<0.000000e+00> : vector<50xf32>
    %69 = vector.multi_reduction <add>, %68, %cst_29 [1] : vector<50x50xf32> to vector<50xf32>
    %70 = vector.shape_cast %69 : vector<50xf32> to vector<50x1xf32>
    %71 = tpu.reciprocal %70 {approx = true} : vector<50x1xf32> -> vector<50x1xf32>
    %72 = vector.broadcast %71 : vector<50x1xf32> to vector<50x50xf32>
    %73 = arith.mulf %68, %72 : vector<50x50xf32>
    %cst_30 = arith.constant dense<0.000000e+00> : vector<50x8xf32>
    %74 = tpu.matmul %73, %61, %cst_30 {dimension_numbers = #tpu.dot_dimension_numbers<[1], [0], [0], [1], [0, 0, 1, 1], [], []>} : vector<50x50xf32>, vector<50x8xf32>, vector<50x8xf32> -> vector<50x8xf32>
    %75 = vector.extract_strided_slice %13 {offsets = [2, 0, 0], sizes = [1, 8, 32], strides = [1, 1, 1]} : vector<4x8x32xf32> to vector<1x8x32xf32>
    %76 = vector.shape_cast %75 : vector<1x8x32xf32> to vector<8x32xf32>
    %cst_31 = arith.constant dense<0.000000e+00> : vector<50x32xf32>
    %77 = tpu.matmul %74, %76, %cst_31 {dimension_numbers = #tpu.dot_dimension_numbers<[1], [0], [0], [1], [0, 0, 1, 1], [], []>} : vector<50x8xf32>, vector<8x32xf32>, vector<50x32xf32> -> vector<50x32xf32>
    %78 = arith.addf %56, %77 : vector<50x32xf32>
    %79 = vector.extract_strided_slice %11 {offsets = [0, 24], sizes = [50, 8], strides = [1, 1]} : vector<50x96xf32> to vector<50x8xf32>
    %cst_32 = arith.constant 0.353553385 : f32
    %80 = vector.broadcast %cst_32 : f32 to vector<50x8xf32>
    %81 = arith.mulf %79, %80 : vector<50x8xf32>
    %82 = vector.extract_strided_slice %11 {offsets = [0, 56], sizes = [50, 8], strides = [1, 1]} : vector<50x96xf32> to vector<50x8xf32>
    %83 = vector.extract_strided_slice %11 {offsets = [0, 88], sizes = [50, 8], strides = [1, 1]} : vector<50x96xf32> to vector<50x8xf32>
    "tpu.trace_start"() <{level = 10 : i32, message = "me,ne->mn"}> : () -> ()
    %cst_33 = arith.constant dense<0.000000e+00> : vector<50x50xf32>
    %84 = tpu.matmul %81, %82, %cst_33 {dimension_numbers = #tpu.dot_dimension_numbers<[1], [1], [0], [0], [0, 0, 1, 0], [], []>} : vector<50x8xf32>, vector<50x8xf32>, vector<50x50xf32> -> vector<50x50xf32>
    "tpu.trace_stop"() : () -> ()
    %85 = arith.addf %84, %4 : vector<50x50xf32>
    %cst_34 = arith.constant dense<0xFF800000> : vector<50xf32>
    %86 = vector.multi_reduction <maximumf>, %85, %cst_34 [1] : vector<50x50xf32> to vector<50xf32>
    %87 = vector.shape_cast %86 : vector<50xf32> to vector<50x1xf32>
    %88 = vector.broadcast %87 : vector<50x1xf32> to vector<50x50xf32>
    %89 = arith.subf %85, %88 : vector<50x50xf32>
    %90 = math.exp %89 : vector<50x50xf32>
    %cst_35 = arith.constant dense<0.000000e+00> : vector<50xf32>
    %91 = vector.multi_reduction <add>, %90, %cst_35 [1] : vector<50x50xf32> to vector<50xf32>
    %92 = vector.shape_cast %91 : vector<50xf32> to vector<50x1xf32>
    %93 = tpu.reciprocal %92 {approx = true} : vector<50x1xf32> -> vector<50x1xf32>
    %94 = vector.broadcast %93 : vector<50x1xf32> to vector<50x50xf32>
    %95 = arith.mulf %90, %94 : vector<50x50xf32>
    %cst_36 = arith.constant dense<0.000000e+00> : vector<50x8xf32>
    %96 = tpu.matmul %95, %83, %cst_36 {dimension_numbers = #tpu.dot_dimension_numbers<[1], [0], [0], [1], [0, 0, 1, 1], [], []>} : vector<50x50xf32>, vector<50x8xf32>, vector<50x8xf32> -> vector<50x8xf32>
    %97 = vector.extract_strided_slice %13 {offsets = [3, 0, 0], sizes = [1, 8, 32], strides = [1, 1, 1]} : vector<4x8x32xf32> to vector<1x8x32xf32>
    %98 = vector.shape_cast %97 : vector<1x8x32xf32> to vector<8x32xf32>
    %cst_37 = arith.constant dense<0.000000e+00> : vector<50x32xf32>
    %99 = tpu.matmul %96, %98, %cst_37 {dimension_numbers = #tpu.dot_dimension_numbers<[1], [0], [0], [1], [0, 0, 1, 1], [], []>} : vector<50x8xf32>, vector<8x32xf32>, vector<50x32xf32> -> vector<50x32xf32>
    %100 = arith.addf %78, %99 : vector<50x32xf32>
    %c0_38 = arith.constant 0 : index
    %c0_39 = arith.constant 0 : index
    %c0_40 = arith.constant 0 : index
    %101 = vector.load %arg9[%c0_38, %c0_39, %c0_40] : memref<1x1x32xf32, #tpu.memory_space<vmem>>, vector<1x1x32xf32>
    %102 = vector.shape_cast %101 : vector<1x1x32xf32> to vector<1x32xf32>
    %103 = vector.broadcast %102 : vector<1x32xf32> to vector<50x32xf32>
    %104 = arith.addf %100, %103 : vector<50x32xf32>
    %105 = arith.addf %3, %104 : vector<50x32xf32>
    %c0_41 = arith.constant 0 : index
    %c0_42 = arith.constant 0 : index
    %c0_43 = arith.constant 0 : index
    %106 = vector.load %arg10[%c0_41, %c0_42, %c0_43] : memref<1x1x32xf32, #tpu.memory_space<vmem>>, vector<1x1x32xf32>
    %107 = vector.shape_cast %106 : vector<1x1x32xf32> to vector<1x32xf32>
    %c0_44 = arith.constant 0 : index
    %c0_45 = arith.constant 0 : index
    %c0_46 = arith.constant 0 : index
    %108 = vector.load %arg11[%c0_44, %c0_45, %c0_46] : memref<1x1x32xf32, #tpu.memory_space<vmem>>, vector<1x1x32xf32>
    %109 = vector.shape_cast %108 : vector<1x1x32xf32> to vector<1x32xf32>
    %cst_47 = arith.constant dense<0.000000e+00> : vector<50xf32>
    %110 = vector.multi_reduction <add>, %105, %cst_47 [1] : vector<50x32xf32> to vector<50xf32>
    %111 = vector.shape_cast %110 : vector<50xf32> to vector<50x1xf32>
    %cst_48 = arith.constant 3.200000e+01 : f32
    %112 = vector.broadcast %cst_48 : f32 to vector<50x1xf32>
    %113 = arith.divf %111, %112 : vector<50x1xf32>
    %114 = vector.broadcast %113 : vector<50x1xf32> to vector<50x32xf32>
    %115 = arith.subf %105, %114 : vector<50x32xf32>
    %116 = arith.mulf %115, %115 : vector<50x32xf32>
    %cst_49 = arith.constant dense<0.000000e+00> : vector<50xf32>
    %117 = vector.multi_reduction <add>, %116, %cst_49 [1] : vector<50x32xf32> to vector<50xf32>
    %118 = vector.shape_cast %117 : vector<50xf32> to vector<50x1xf32>
    %cst_50 = arith.constant 3.200000e+01 : f32
    %119 = vector.broadcast %cst_50 : f32 to vector<50x1xf32>
    %120 = arith.divf %118, %119 : vector<50x1xf32>
    %cst_51 = arith.constant 9.99999974E-6 : f32
    %121 = vector.broadcast %cst_51 : f32 to vector<50x1xf32>
    %122 = arith.addf %120, %121 : vector<50x1xf32>
    %123 = math.rsqrt %122 : vector<50x1xf32>
    %124 = vector.broadcast %123 : vector<50x1xf32> to vector<50x32xf32>
    %125 = arith.mulf %115, %124 : vector<50x32xf32>
    %126 = vector.broadcast %107 : vector<1x32xf32> to vector<50x32xf32>
    %127 = arith.mulf %125, %126 : vector<50x32xf32>
    %128 = vector.broadcast %109 : vector<1x32xf32> to vector<50x32xf32>
    %129 = arith.addf %127, %128 : vector<50x32xf32>
    %c0_52 = arith.constant 0 : index
    %c0_53 = arith.constant 0 : index
    %c0_54 = arith.constant 0 : index
    %130 = vector.load %arg12[%c0_52, %c0_53, %c0_54] : memref<1x32x2048xf32, #tpu.memory_space<vmem>>, vector<1x32x512xf32>
    %131 = vector.shape_cast %130 : vector<1x32x512xf32> to vector<32x512xf32>
    %cst_55 = arith.constant dense<0.000000e+00> : vector<50x512xf32>
    %132 = tpu.matmul %129, %131, %cst_55 {dimension_numbers = #tpu.dot_dimension_numbers<[1], [0], [0], [1], [0, 0, 1, 1], [], []>} : vector<50x32xf32>, vector<32x512xf32>, vector<50x512xf32> -> vector<50x512xf32>
    %c0_56 = arith.constant 0 : index
    %c0_57 = arith.constant 0 : index
    %c0_58 = arith.constant 0 : index
    %133 = vector.load %arg13[%c0_56, %c0_57, %c0_58] : memref<1x1x2048xf32, #tpu.memory_space<vmem>>, vector<1x1x512xf32>
    %134 = vector.shape_cast %133 : vector<1x1x512xf32> to vector<1x512xf32>
    %135 = vector.broadcast %134 : vector<1x512xf32> to vector<50x512xf32>
    %136 = arith.addf %132, %135 : vector<50x512xf32>
    %cst_59 = arith.constant 0.000000e+00 : f32
    %137 = vector.broadcast %cst_59 : f32 to vector<50x512xf32>
    %138 = arith.maximumf %136, %137 : vector<50x512xf32>
    %c0_60 = arith.constant 0 : index
    %c0_61 = arith.constant 0 : index
    %c0_62 = arith.constant 0 : index
    %139 = vector.load %arg14[%c0_60, %c0_61, %c0_62] : memref<1x2048x32xf32, #tpu.memory_space<vmem>>, vector<1x512x32xf32>
    %140 = vector.shape_cast %139 : vector<1x512x32xf32> to vector<512x32xf32>
    %cst_63 = arith.constant dense<0.000000e+00> : vector<50x32xf32>
    %141 = tpu.matmul %138, %140, %cst_63 {dimension_numbers = #tpu.dot_dimension_numbers<[1], [0], [0], [1], [0, 0, 1, 1], [], []>} : vector<50x512xf32>, vector<512x32xf32>, vector<50x32xf32> -> vector<50x32xf32>
    %c0_64 = arith.constant 0 : index
    %c0_65 = arith.constant 0 : index
    %c512 = arith.constant 512 : index
    %142 = vector.load %arg12[%c0_64, %c0_65, %c512] : memref<1x32x2048xf32, #tpu.memory_space<vmem>>, vector<1x32x512xf32>
    %143 = vector.shape_cast %142 : vector<1x32x512xf32> to vector<32x512xf32>
    %cst_66 = arith.constant dense<0.000000e+00> : vector<50x512xf32>
    %144 = tpu.matmul %129, %143, %cst_66 {dimension_numbers = #tpu.dot_dimension_numbers<[1], [0], [0], [1], [0, 0, 1, 1], [], []>} : vector<50x32xf32>, vector<32x512xf32>, vector<50x512xf32> -> vector<50x512xf32>
    %c0_67 = arith.constant 0 : index
    %c0_68 = arith.constant 0 : index
    %c512_69 = arith.constant 512 : index
    %145 = vector.load %arg13[%c0_67, %c0_68, %c512_69] : memref<1x1x2048xf32, #tpu.memory_space<vmem>>, vector<1x1x512xf32>
    %146 = vector.shape_cast %145 : vector<1x1x512xf32> to vector<1x512xf32>
    %147 = vector.broadcast %146 : vector<1x512xf32> to vector<50x512xf32>
    %148 = arith.addf %144, %147 : vector<50x512xf32>
    %cst_70 = arith.constant 0.000000e+00 : f32
    %149 = vector.broadcast %cst_70 : f32 to vector<50x512xf32>
    %150 = arith.maximumf %148, %149 : vector<50x512xf32>
    %c0_71 = arith.constant 0 : index
    %c512_72 = arith.constant 512 : index
    %c0_73 = arith.constant 0 : index
    %151 = vector.load %arg14[%c0_71, %c512_72, %c0_73] : memref<1x2048x32xf32, #tpu.memory_space<vmem>>, vector<1x512x32xf32>
    %152 = vector.shape_cast %151 : vector<1x512x32xf32> to vector<512x32xf32>
    %cst_74 = arith.constant dense<0.000000e+00> : vector<50x32xf32>
    %153 = tpu.matmul %150, %152, %cst_74 {dimension_numbers = #tpu.dot_dimension_numbers<[1], [0], [0], [1], [0, 0, 1, 1], [], []>} : vector<50x512xf32>, vector<512x32xf32>, vector<50x32xf32> -> vector<50x32xf32>
    %154 = arith.addf %141, %153 : vector<50x32xf32>
    %c0_75 = arith.constant 0 : index
    %c0_76 = arith.constant 0 : index
    %c1024 = arith.constant 1024 : index
    %155 = vector.load %arg12[%c0_75, %c0_76, %c1024] : memref<1x32x2048xf32, #tpu.memory_space<vmem>>, vector<1x32x512xf32>
    %156 = vector.shape_cast %155 : vector<1x32x512xf32> to vector<32x512xf32>
    %cst_77 = arith.constant dense<0.000000e+00> : vector<50x512xf32>
    %157 = tpu.matmul %129, %156, %cst_77 {dimension_numbers = #tpu.dot_dimension_numbers<[1], [0], [0], [1], [0, 0, 1, 1], [], []>} : vector<50x32xf32>, vector<32x512xf32>, vector<50x512xf32> -> vector<50x512xf32>
    %c0_78 = arith.constant 0 : index
    %c0_79 = arith.constant 0 : index
    %c1024_80 = arith.constant 1024 : index
    %158 = vector.load %arg13[%c0_78, %c0_79, %c1024_80] : memref<1x1x2048xf32, #tpu.memory_space<vmem>>, vector<1x1x512xf32>
    %159 = vector.shape_cast %158 : vector<1x1x512xf32> to vector<1x512xf32>
    %160 = vector.broadcast %159 : vector<1x512xf32> to vector<50x512xf32>
    %161 = arith.addf %157, %160 : vector<50x512xf32>
    %cst_81 = arith.constant 0.000000e+00 : f32
    %162 = vector.broadcast %cst_81 : f32 to vector<50x512xf32>
    %163 = arith.maximumf %161, %162 : vector<50x512xf32>
    %c0_82 = arith.constant 0 : index
    %c1024_83 = arith.constant 1024 : index
    %c0_84 = arith.constant 0 : index
    %164 = vector.load %arg14[%c0_82, %c1024_83, %c0_84] : memref<1x2048x32xf32, #tpu.memory_space<vmem>>, vector<1x512x32xf32>
    %165 = vector.shape_cast %164 : vector<1x512x32xf32> to vector<512x32xf32>
    %cst_85 = arith.constant dense<0.000000e+00> : vector<50x32xf32>
    %166 = tpu.matmul %163, %165, %cst_85 {dimension_numbers = #tpu.dot_dimension_numbers<[1], [0], [0], [1], [0, 0, 1, 1], [], []>} : vector<50x512xf32>, vector<512x32xf32>, vector<50x32xf32> -> vector<50x32xf32>
    %167 = arith.addf %154, %166 : vector<50x32xf32>
    %c0_86 = arith.constant 0 : index
    %c0_87 = arith.constant 0 : index
    %c1536 = arith.constant 1536 : index
    %168 = vector.load %arg12[%c0_86, %c0_87, %c1536] : memref<1x32x2048xf32, #tpu.memory_space<vmem>>, vector<1x32x512xf32>
    %169 = vector.shape_cast %168 : vector<1x32x512xf32> to vector<32x512xf32>
    %cst_88 = arith.constant dense<0.000000e+00> : vector<50x512xf32>
    %170 = tpu.matmul %129, %169, %cst_88 {dimension_numbers = #tpu.dot_dimension_numbers<[1], [0], [0], [1], [0, 0, 1, 1], [], []>} : vector<50x32xf32>, vector<32x512xf32>, vector<50x512xf32> -> vector<50x512xf32>
    %c0_89 = arith.constant 0 : index
    %c0_90 = arith.constant 0 : index
    %c1536_91 = arith.constant 1536 : index
    %171 = vector.load %arg13[%c0_89, %c0_90, %c1536_91] : memref<1x1x2048xf32, #tpu.memory_space<vmem>>, vector<1x1x512xf32>
    %172 = vector.shape_cast %171 : vector<1x1x512xf32> to vector<1x512xf32>
    %173 = vector.broadcast %172 : vector<1x512xf32> to vector<50x512xf32>
    %174 = arith.addf %170, %173 : vector<50x512xf32>
    %cst_92 = arith.constant 0.000000e+00 : f32
    %175 = vector.broadcast %cst_92 : f32 to vector<50x512xf32>
    %176 = arith.maximumf %174, %175 : vector<50x512xf32>
    %c0_93 = arith.constant 0 : index
    %c1536_94 = arith.constant 1536 : index
    %c0_95 = arith.constant 0 : index
    %177 = vector.load %arg14[%c0_93, %c1536_94, %c0_95] : memref<1x2048x32xf32, #tpu.memory_space<vmem>>, vector<1x512x32xf32>
    %178 = vector.shape_cast %177 : vector<1x512x32xf32> to vector<512x32xf32>
    %cst_96 = arith.constant dense<0.000000e+00> : vector<50x32xf32>
    %179 = tpu.matmul %176, %178, %cst_96 {dimension_numbers = #tpu.dot_dimension_numbers<[1], [0], [0], [1], [0, 0, 1, 1], [], []>} : vector<50x512xf32>, vector<512x32xf32>, vector<50x32xf32> -> vector<50x32xf32>
    %180 = arith.addf %167, %179 : vector<50x32xf32>
    %c0_97 = arith.constant 0 : index
    %c0_98 = arith.constant 0 : index
    %c0_99 = arith.constant 0 : index
    %181 = vector.load %arg15[%c0_97, %c0_98, %c0_99] : memref<1x1x32xf32, #tpu.memory_space<vmem>>, vector<1x1x32xf32>
    %182 = vector.shape_cast %181 : vector<1x1x32xf32> to vector<1x32xf32>
    %183 = vector.broadcast %182 : vector<1x32xf32> to vector<50x32xf32>
    %184 = arith.addf %180, %183 : vector<50x32xf32>
    %185 = arith.addf %129, %184 : vector<50x32xf32>
    %c0_100 = arith.constant 0 : index
    %c0_101 = arith.constant 0 : index
    %c0_102 = arith.constant 0 : index
    %186 = vector.load %arg16[%c0_100, %c0_101, %c0_102] : memref<1x1x32xf32, #tpu.memory_space<vmem>>, vector<1x1x32xf32>
    %187 = vector.shape_cast %186 : vector<1x1x32xf32> to vector<1x32xf32>
    %c0_103 = arith.constant 0 : index
    %c0_104 = arith.constant 0 : index
    %c0_105 = arith.constant 0 : index
    %188 = vector.load %arg17[%c0_103, %c0_104, %c0_105] : memref<1x1x32xf32, #tpu.memory_space<vmem>>, vector<1x1x32xf32>
    %189 = vector.shape_cast %188 : vector<1x1x32xf32> to vector<1x32xf32>
    %cst_106 = arith.constant dense<0.000000e+00> : vector<50xf32>
    %190 = vector.multi_reduction <add>, %185, %cst_106 [1] : vector<50x32xf32> to vector<50xf32>
    %191 = vector.shape_cast %190 : vector<50xf32> to vector<50x1xf32>
    %cst_107 = arith.constant 3.200000e+01 : f32
    %192 = vector.broadcast %cst_107 : f32 to vector<50x1xf32>
    %193 = arith.divf %191, %192 : vector<50x1xf32>
    %194 = vector.broadcast %193 : vector<50x1xf32> to vector<50x32xf32>
    %195 = arith.subf %185, %194 : vector<50x32xf32>
    %196 = arith.mulf %195, %195 : vector<50x32xf32>
    %cst_108 = arith.constant dense<0.000000e+00> : vector<50xf32>
    %197 = vector.multi_reduction <add>, %196, %cst_108 [1] : vector<50x32xf32> to vector<50xf32>
    %198 = vector.shape_cast %197 : vector<50xf32> to vector<50x1xf32>
    %cst_109 = arith.constant 3.200000e+01 : f32
    %199 = vector.broadcast %cst_109 : f32 to vector<50x1xf32>
    %200 = arith.divf %198, %199 : vector<50x1xf32>
    %cst_110 = arith.constant 9.99999974E-6 : f32
    %201 = vector.broadcast %cst_110 : f32 to vector<50x1xf32>
    %202 = arith.addf %200, %201 : vector<50x1xf32>
    %203 = math.rsqrt %202 : vector<50x1xf32>
    %204 = vector.broadcast %203 : vector<50x1xf32> to vector<50x32xf32>
    %205 = arith.mulf %195, %204 : vector<50x32xf32>
    %206 = vector.broadcast %187 : vector<1x32xf32> to vector<50x32xf32>
    %207 = arith.mulf %205, %206 : vector<50x32xf32>
    %208 = vector.broadcast %189 : vector<1x32xf32> to vector<50x32xf32>
    %209 = arith.addf %207, %208 : vector<50x32xf32>
    %c0_111 = arith.constant 0 : index
    %c0_112 = arith.constant 0 : index
    %210 = vector.load %arg21[%c0_111, %c0_112] : memref<50x32xf32, #tpu.memory_space<vmem>>, vector<50x32xf32>
    tpu.vector_store %arg21[%c0_111, %c0_112], %209 {strides = array<i32>} : memref<50x32xf32, #tpu.memory_space<vmem>>, vector<50x32xf32>,
    %c1_i32 = arith.constant 1 : i32
    %211 = arith.cmpi eq, %arg0, %c1_i32 : i32
    %212 = arith.extui %211 : i1 to i32
    %c0_i32_113 = arith.constant 0 : i32
    %213 = arith.cmpi ne, %212, %c0_i32_113 : i32
    scf.if %213 {
      %214 = vector.shape_cast %209 : vector<50x32xf32> to vector<1x50x32xf32>
      %c0_114 = arith.constant 0 : index
      %c0_115 = arith.constant 0 : index
      %c0_116 = arith.constant 0 : index
      %215 = vector.load %arg18[%c0_114, %c0_115, %c0_116] : memref<16x50x32xf32, #tpu.memory_space<vmem>>, vector<16x50x32xf32>
      %216 = vector.broadcast %214 : vector<1x50x32xf32> to vector<16x50x32xf32>
      %217 = arith.mulf %216, %215 : vector<16x50x32xf32>
      %cst_117 = arith.constant dense<0.000000e+00> : vector<16x50xf32>
      %218 = vector.multi_reduction <add>, %217, %cst_117 [2] : vector<16x50x32xf32> to vector<16x50xf32>
      %c0_118 = arith.constant 0 : index
      %c0_119 = arith.constant 0 : index
      %219 = vector.load %arg3[%c0_118, %c0_119] : memref<2x50xf32, #tpu.memory_space<vmem>>, vector<2x50xf32>
      "tpu.trace_start"() <{level = 10 : i32, message = "bm,om->bo"}> : () -> ()
      %cst_120 = arith.constant dense<0.000000e+00> : vector<2x16xf32>
      %220 = tpu.matmul %219, %218, %cst_120 {dimension_numbers = #tpu.dot_dimension_numbers<[1], [1], [0], [0], [0, 0, 1, 0], [], []>} : vector<2x50xf32>, vector<16x50xf32>, vector<2x16xf32> -> vector<2x16xf32>
      "tpu.trace_stop"() : () -> ()
      %c0_121 = arith.constant 0 : index
      %c0_122 = arith.constant 0 : index
      %221 = vector.load %arg19[%c0_121, %c0_122] : memref<1x16xf32, #tpu.memory_space<vmem>>, vector<1x16xf32>
      %222 = vector.broadcast %221 : vector<1x16xf32> to vector<2x16xf32>
      %223 = arith.addf %220, %222 : vector<2x16xf32>
      %c0_123 = arith.constant 0 : index
      %c0_124 = arith.constant 0 : index
      %224 = vector.load %arg20[%c0_123, %c0_124] : memref<2x16xf32, #tpu.memory_space<vmem>>, vector<2x16xf32>
      tpu.vector_store %arg20[%c0_123, %c0_124], %223 {strides = array<i32>} : memref<2x16xf32, #tpu.memory_space<vmem>>, vector<2x16xf32>,
    } else {
    }
    return
  }
  func.func @transform_0(%arg0: i32) -> (i32, i32) {
    %c0_i32 = arith.constant 0 : i32
    %c0_i32_0 = arith.constant 0 : i32
    %c0_i32_1 = arith.constant 0 : i32
    return %c0_i32, %c0_i32_0 : i32, i32
  }
  func.func @transform_1(%arg0: i32) -> (i32, i32) {
    %c0_i32 = arith.constant 0 : i32
    %c0_i32_0 = arith.constant 0 : i32
    %c0_i32_1 = arith.constant 0 : i32
    return %c0_i32, %c0_i32_0 : i32, i32
  }
  func.func @transform_2(%arg0: i32) -> (i32, i32) {
    %c0_i32 = arith.constant 0 : i32
    %c0_i32_0 = arith.constant 0 : i32
    %c0_i32_1 = arith.constant 0 : i32
    return %c0_i32, %c0_i32_0 : i32, i32
  }
  func.func @transform_3(%arg0: i32) -> (i32, i32) {
    %c0_i32 = arith.constant 0 : i32
    %c0_i32_0 = arith.constant 0 : i32
    %c0_i32_1 = arith.constant 0 : i32
    return %c0_i32, %c0_i32_0 : i32, i32
  }
  func.func @transform_4(%arg0: i32) -> (i32, i32) {
    %c0_i32 = arith.constant 0 : i32
    %c0_i32_0 = arith.constant 0 : i32
    %c0_i32_1 = arith.constant 0 : i32
    return %c0_i32, %c0_i32_0 : i32, i32
  }
  func.func @transform_5(%arg0: i32) -> (i32, i32, i32) {
    %c0_i32 = arith.constant 0 : i32
    %c0_i32_0 = arith.constant 0 : i32
    %c0_i32_1 = arith.constant 0 : i32
    return %arg0, %c0_i32, %c0_i32_0 : i32, i32, i32
  }
  func.func @transform_6(%arg0: i32) -> (i32, i32, i32) {
    %c0_i32 = arith.constant 0 : i32
    %c0_i32_0 = arith.constant 0 : i32
    %c0_i32_1 = arith.constant 0 : i32
    return %arg0, %c0_i32, %c0_i32_0 : i32, i32, i32
  }
  func.func @transform_7(%arg0: i32) -> (i32, i32, i32, i32) {
    %c0_i32 = arith.constant 0 : i32
    %c0_i32_0 = arith.constant 0 : i32
    %c0_i32_1 = arith.constant 0 : i32
    %c0_i32_2 = arith.constant 0 : i32
    return %arg0, %c0_i32, %c0_i32_0, %c0_i32_1 : i32, i32, i32, i32
  }
  func.func @transform_8(%arg0: i32) -> (i32, i32, i32) {
    %c0_i32 = arith.constant 0 : i32
    %c0_i32_0 = arith.constant 0 : i32
    %c0_i32_1 = arith.constant 0 : i32
    return %arg0, %c0_i32, %c0_i32_0 : i32, i32, i32
  }
  func.func @transform_9(%arg0: i32) -> (i32, i32, i32) {
    %c0_i32 = arith.constant 0 : i32
    %c0_i32_0 = arith.constant 0 : i32
    %c0_i32_1 = arith.constant 0 : i32
    return %arg0, %c0_i32, %c0_i32_0 : i32, i32, i32
  }
  func.func @transform_10(%arg0: i32) -> (i32, i32, i32) {
    %c0_i32 = arith.constant 0 : i32
    %c0_i32_0 = arith.constant 0 : i32
    %c0_i32_1 = arith.constant 0 : i32
    return %arg0, %c0_i32, %c0_i32_0 : i32, i32, i32
  }
  func.func @transform_11(%arg0: i32) -> (i32, i32, i32) {
    %c0_i32 = arith.constant 0 : i32
    %c0_i32_0 = arith.constant 0 : i32
    %c0_i32_1 = arith.constant 0 : i32
    return %arg0, %c0_i32, %c0_i32_0 : i32, i32, i32
  }
  func.func @transform_12(%arg0: i32) -> (i32, i32, i32) {
    %c0_i32 = arith.constant 0 : i32
    %c0_i32_0 = arith.constant 0 : i32
    %c0_i32_1 = arith.constant 0 : i32
    return %arg0, %c0_i32, %c0_i32_0 : i32, i32, i32
  }
  func.func @transform_13(%arg0: i32) -> (i32, i32, i32) {
    %c0_i32 = arith.constant 0 : i32
    %c0_i32_0 = arith.constant 0 : i32
    %c0_i32_1 = arith.constant 0 : i32
    return %arg0, %c0_i32, %c0_i32_0 : i32, i32, i32
  }
  func.func @transform_14(%arg0: i32) -> (i32, i32, i32) {
    %c0_i32 = arith.constant 0 : i32
    %c0_i32_0 = arith.constant 0 : i32
    %c0_i32_1 = arith.constant 0 : i32
    return %arg0, %c0_i32, %c0_i32_0 : i32, i32, i32
  }
  func.func @transform_15(%arg0: i32) -> (i32, i32, i32) {
    %c0_i32 = arith.constant 0 : i32
    %c0_i32_0 = arith.constant 0 : i32
    %c0_i32_1 = arith.constant 0 : i32
    return %arg0, %c0_i32, %c0_i32_0 : i32, i32, i32
  }
  func.func @transform_16(%arg0: i32) -> (i32, i32, i32) {
    %c0_i32 = arith.constant 0 : i32
    %c0_i32_0 = arith.constant 0 : i32
    %c0_i32_1 = arith.constant 0 : i32
    return %arg0, %c0_i32, %c0_i32_0 : i32, i32, i32
  }
  func.func @transform_17(%arg0: i32) -> (i32, i32, i32) {
    %c0_i32 = arith.constant 0 : i32
    %c0_i32_0 = arith.constant 0 : i32
    %c0_i32_1 = arith.constant 0 : i32
    %c0_i32_2 = arith.constant 0 : i32
    return %c0_i32, %c0_i32_0, %c0_i32_1 : i32, i32, i32
  }
  func.func @transform_18(%arg0: i32) -> (i32, i32) {
    %c0_i32 = arith.constant 0 : i32
    %c0_i32_0 = arith.constant 0 : i32
    %c0_i32_1 = arith.constant 0 : i32
    return %c0_i32, %c0_i32_0 : i32, i32
  }
  func.func @transform_19(%arg0: i32) -> (i32, i32) {
    %c0_i32 = arith.constant 0 : i32
    %c0_i32_0 = arith.constant 0 : i32
    %c0_i32_1 = arith.constant 0 : i32
    return %c0_i32, %c0_i32_0 : i32, i32
  }
}

</mosaic_0001>

<llo_original>
// kernel: transformer_forward.1
$region0: #{transformer_forward.1}
  #allocation0 [shape = 'u32[]', space=smem, size = 0x4, offset = 0x4, fixed_abs, tag = 'smem constant byte address 0x4 - core index']
  #allocation1 [shape = 'u32[144,128]{1,0:T(1,128)}', space=vmem, size = 0x12000, scoped, tag = 'internal scratch']
  #allocation2 [shape = 'f32[50,32]{1,0:T(8,128)}', space=vmem, size = 0x7000, scoped, tag = 'scratch operand']
  %s0 = inlined_call_operand.vmem [shape: f32[50,3], index: 0, kind: input, shape index: {}]
  %s1 = inlined_call_operand.vmem [shape: f32[50,50], index: 1, kind: input, shape index: {}]
  %s2 = inlined_call_operand.vmem [shape: f32[2,50], index: 2, kind: input, shape index: {}]
  %s3 = inlined_call_operand.vmem [shape: f32[3,32], index: 3, kind: input, shape index: {}]
  %s4 = inlined_call_operand.vmem [shape: f32[1,32], index: 4, kind: input, shape index: {}]
  %s5 = inlined_call_operand.vmem [shape: f32[2,32,96], index: 5, kind: input, shape index: {}]
  %s6 = inlined_call_operand.vmem [shape: f32[2,1,96], index: 6, kind: input, shape index: {}]
  %s7 = inlined_call_operand.vmem [shape: f32[2,4,8,32], index: 7, kind: input, shape index: {}]
  %s8 = inlined_call_operand.vmem [shape: f32[2,1,32], index: 8, kind: input, shape index: {}]
  %s9 = inlined_call_operand.vmem [shape: f32[2,1,32], index: 9, kind: input, shape index: {}]
  %s10 = inlined_call_operand.vmem [shape: f32[2,1,32], index: 10, kind: input, shape index: {}]
  %s11 = inlined_call_operand.vmem [shape: f32[2,32,2048], index: 11, kind: input, shape index: {}]
  %s12 = inlined_call_operand.vmem [shape: f32[2,1,2048], index: 12, kind: input, shape index: {}]
  %s13 = inlined_call_operand.vmem [shape: f32[2,2048,32], index: 13, kind: input, shape index: {}]
  %s14 = inlined_call_operand.vmem [shape: f32[2,1,32], index: 14, kind: input, shape index: {}]
  %s15 = inlined_call_operand.vmem [shape: f32[2,1,32], index: 15, kind: input, shape index: {}]
  %s16 = inlined_call_operand.vmem [shape: f32[2,1,32], index: 16, kind: input, shape index: {}]
  %s17 = inlined_call_operand.vmem [shape: f32[16,50,32], index: 17, kind: input, shape index: {}]
  %s18 = inlined_call_operand.vmem [shape: f32[1,16], index: 18, kind: input, shape index: {}]
  %s19 = inlined_call_operand.hbm [shape: f32[2,16], index: 19, kind: output, shape index: {}]
  %s20 = sld [smem:[#allocation0]]
  $region117: #{transformer_forward.1} parent=0
    _
  %s22 = ssub.s32 1, %s20
  %s23 = scalar_select 0, %s22, %s20
  $region1: #{transformer_forward.1} parent=0
    #allocation3 [shape = 'u8[1024]{0}', space=vmem, size = 0x400, scoped, tag = 'output window, operand 0, single buffered']
    #allocation4 [shape = 's32[2]{0}', space=sflag, size = 0x8, scoped, tag = 'scoped memory for transformer_forward.1']
    %24 = vsyncpa [#allocation4], 0
    loop: start=0, step=1, limit=4
    $region2: #{transformer_forward.1} parent=1 // loop_pre_header
      _
    $region3: #{transformer_forward.1} parent=1 // loop_header
      %s26 = sphi 0, %s30
      %p27 = scmp.ge.s32.totalorder %s26, 4
      %s34 = sphi 0, %s34
      %s36 = sphi 0, %s34
      %s37 = sphi 0, %s36
      %s51 = sphi 0, %s37
      %s55 = sphi 0, %s55
      %s57 = sphi 0, %s55
      %s58 = sphi 0, %s57
      %s72 = sphi 0, %s58
      %s76 = sphi 0, %s76
      %s78 = sphi 0, %s76
      %s79 = sphi 0, %s78
      %s93 = sphi 0, %s79
      %s97 = sphi 0, %s97
      %s99 = sphi 0, %s97
      %s100 = sphi 0, %s99
      %s114 = sphi 0, %s100
      %s118 = sphi 0, %s118
      %s120 = sphi 0, %s118
      %s121 = sphi 0, %s120
      %s135 = sphi 0, %s121
      %s141 = sphi 0, %s143
      %s144 = sphi 0, %s141
      %s145 = sphi 0, %s144
      %s161 = sphi 0, %s145
      %s167 = sphi 0, %s169
      %s170 = sphi 0, %s167
      %s171 = sphi 0, %s170
      %s187 = sphi 0, %s171
      %s193 = sphi 0, %s195
      %s196 = sphi 0, %s193
      %s197 = sphi 0, %s196
      %s213 = sphi 0, %s197
      %s219 = sphi 0, %s221
      %s222 = sphi 0, %s219
      %s223 = sphi 0, %s222
      %s239 = sphi 0, %s223
      %s245 = sphi 0, %s247
      %s248 = sphi 0, %s245
      %s249 = sphi 0, %s248
      %s265 = sphi 0, %s249
      %s271 = sphi 0, %s273
      %s274 = sphi 0, %s271
      %s275 = sphi 0, %s274
      %s291 = sphi 0, %s275
      %s297 = sphi 0, %s299
      %s300 = sphi 0, %s297
      %s301 = sphi 0, %s300
      %s317 = sphi 0, %s301
      %s323 = sphi 0, %s325
      %s326 = sphi 0, %s323
      %s327 = sphi 0, %s326
      %s343 = sphi 0, %s327
      %s349 = sphi 0, %s351
      %s352 = sphi 0, %s349
      %s353 = sphi 0, %s352
      %s369 = sphi 0, %s353
      %s375 = sphi 0, %s377
      %s378 = sphi 0, %s375
      %s379 = sphi 0, %s378
      %s395 = sphi 0, %s379
      %s401 = sphi 0, %s403
      %s404 = sphi 0, %s401
      %s405 = sphi 0, %s404
      %s421 = sphi 0, %s405
      %s427 = sphi 0, %s429
      %s430 = sphi 0, %s427
      %s431 = sphi 0, %s430
      %s447 = sphi 0, %s431
      %s451 = sphi 0, %s451
      %s453 = sphi 0, %s451
      %s454 = sphi 0, %s453
      %s468 = sphi 0, %s454
      %s472 = sphi 0, %s472
      %s474 = sphi 0, %s472
      %s475 = sphi 0, %s474
      %s489 = sphi 0, %s475
      %s493 = sphi 0, %s493
      %s495 = sphi 0, %s493
      %s496 = sphi 0, %s495
      %s510 = sphi 0, %s496
    $region4: #{transformer_forward.1} parent=1 // loop_header_branch
      %29 = sbr.rel (%p27) target = $region8
    $region5: #{transformer_forward.1} parent=1 // loop_body
      %s31 = ssub.s32 %s26, 1
      %s32 = ssub.s32 %s26, 2
      %s33 = sadd.s32 %s26, 1
      %s35 = sadd.s32 %s34, 1
      %p38 = scmp.eq.s32.totalorder %s26, 1
      %p39 = scmp.ne.s32.totalorder %s34, %s36
      %p40 = scmp.eq.s32.totalorder %s26, 0
      %p41 = por %p39, %p40
      %p42 = scmp.ne.s32.totalorder %s34, %s36
      %p43 = scmp.eq.s32.totalorder %s31, 1
      %p44 = por %p42, %p43
      %p45 = scmp.ne.s32.totalorder %s36, %s37
      %p46 = scmp.eq.s32.totalorder %s31, 0
      %p47 = por %p45, %p46
      %p48 = scmp.ne.s32.totalorder %s36, %s37
      %p49 = scmp.eq.s32.totalorder %s32, 1
      %p50 = por %p48, %p49
      %p52 = scmp.ne.s32.totalorder %s37, %s51
      %p53 = scmp.eq.s32.totalorder %s32, 0
      %p54 = por %p52, %p53
      %s56 = sadd.s32 %s55, 1
      %p59 = scmp.eq.s32.totalorder %s26, 1
      %p60 = scmp.ne.s32.totalorder %s55, %s57
      %p61 = scmp.eq.s32.totalorder %s26, 0
      %p62 = por %p60, %p61
      %p63 = scmp.ne.s32.totalorder %s55, %s57
      %p64 = scmp.eq.s32.totalorder %s31, 1
      %p65 = por %p63, %p64
      %p66 = scmp.ne.s32.totalorder %s57, %s58
      %p67 = scmp.eq.s32.totalorder %s31, 0
      %p68 = por %p66, %p67
      %p69 = scmp.ne.s32.totalorder %s57, %s58
      %p70 = scmp.eq.s32.totalorder %s32, 1
      %p71 = por %p69, %p70
      %p73 = scmp.ne.s32.totalorder %s58, %s72
      %p74 = scmp.eq.s32.totalorder %s32, 0
      %p75 = por %p73, %p74
      %s77 = sadd.s32 %s76, 1
      %p80 = scmp.eq.s32.totalorder %s26, 1
      %p81 = scmp.ne.s32.totalorder %s76, %s78
      %p82 = scmp.eq.s32.totalorder %s26, 0
      %p83 = por %p81, %p82
      %p84 = scmp.ne.s32.totalorder %s76, %s78
      %p85 = scmp.eq.s32.totalorder %s31, 1
      %p86 = por %p84, %p85
      %p87 = scmp.ne.s32.totalorder %s78, %s79
      %p88 = scmp.eq.s32.totalorder %s31, 0
      %p89 = por %p87, %p88
      %p90 = scmp.ne.s32.totalorder %s78, %s79
      %p91 = scmp.eq.s32.totalorder %s32, 1
      %p92 = por %p90, %p91
      %p94 = scmp.ne.s32.totalorder %s79, %s93
      %p95 = scmp.eq.s32.totalorder %s32, 0
      %p96 = por %p94, %p95
      %s98 = sadd.s32 %s97, 1
      %p101 = scmp.eq.s32.totalorder %s26, 1
      %p102 = scmp.ne.s32.totalorder %s97, %s99
      %p103 = scmp.eq.s32.totalorder %s26, 0
      %p104 = por %p102, %p103
      %p105 = scmp.ne.s32.totalorder %s97, %s99
      %p106 = scmp.eq.s32.totalorder %s31, 1
      %p107 = por %p105, %p106
      %p108 = scmp.ne.s32.totalorder %s99, %s100
      %p109 = scmp.eq.s32.totalorder %s31, 0
      %p110 = por %p108, %p109
      %p111 = scmp.ne.s32.totalorder %s99, %s100
      %p112 = scmp.eq.s32.totalorder %s32, 1
      %p113 = por %p111, %p112
      %p115 = scmp.ne.s32.totalorder %s100, %s114
      %p116 = scmp.eq.s32.totalorder %s32, 0
      %p117 = por %p115, %p116
      %s119 = sadd.s32 %s118, 1
      %p122 = scmp.eq.s32.totalorder %s26, 1
      %p123 = scmp.ne.s32.totalorder %s118, %s120
      %p124 = scmp.eq.s32.totalorder %s26, 0
      %p125 = por %p123, %p124
      %p126 = scmp.ne.s32.totalorder %s118, %s120
      %p127 = scmp.eq.s32.totalorder %s31, 1
      %p128 = por %p126, %p127
      %p129 = scmp.ne.s32.totalorder %s120, %s121
      %p130 = scmp.eq.s32.totalorder %s31, 0
      %p131 = por %p129, %p130
      %p132 = scmp.ne.s32.totalorder %s120, %s121
      %p133 = scmp.eq.s32.totalorder %s32, 1
      %p134 = por %p132, %p133
      %p136 = scmp.ne.s32.totalorder %s121, %s135
      %p137 = scmp.eq.s32.totalorder %s32, 0
      %p138 = por %p136, %p137
      %s139 = ssub.s32 %s26, %s33
      %p140 = scmp.eq.s32.totalorder %s139, 0
      %s142 = sadd.s32 %s141, 1
      %s143 = scalar_select %p140, %s141, %s142
      %p146 = pneg %p140
      %p147 = scmp.eq.s32.totalorder %s26, 1
      %p148 = por %p146, %p147
      %p149 = scmp.ne.s32.totalorder %s141, %s144
      %p150 = scmp.eq.s32.totalorder %s26, 0
      %p151 = por %p149, %p150
      %p152 = scmp.ne.s32.totalorder %s141, %s144
      %p153 = scmp.eq.s32.totalorder %s31, 1
      %p154 = por %p152, %p153
      %p155 = scmp.ne.s32.totalorder %s144, %s145
      %p156 = scmp.eq.s32.totalorder %s31, 0
      %p157 = por %p155, %p156
      %p158 = scmp.ne.s32.totalorder %s144, %s145
      %p159 = scmp.eq.s32.totalorder %s32, 1
      %p160 = por %p158, %p159
      %p162 = scmp.ne.s32.totalorder %s145, %s161
      %p163 = scmp.eq.s32.totalorder %s32, 0
      %p164 = por %p162, %p163
      %s165 = ssub.s32 %s26, %s33
      %p166 = scmp.eq.s32.totalorder %s165, 0
      %s168 = sadd.s32 %s167, 1
      %s169 = scalar_select %p166, %s167, %s168
      %p172 = pneg %p166
      %p173 = scmp.eq.s32.totalorder %s26, 1
      %p174 = por %p172, %p173
      %p175 = scmp.ne.s32.totalorder %s167, %s170
      %p176 = scmp.eq.s32.totalorder %s26, 0
      %p177 = por %p175, %p176
      %p178 = scmp.ne.s32.totalorder %s167, %s170
      %p179 = scmp.eq.s32.totalorder %s31, 1
      %p180 = por %p178, %p179
      %p181 = scmp.ne.s32.totalorder %s170, %s171
      %p182 = scmp.eq.s32.totalorder %s31, 0
      %p183 = por %p181, %p182
      %p184 = scmp.ne.s32.totalorder %s170, %s171
      %p185 = scmp.eq.s32.totalorder %s32, 1
      %p186 = por %p184, %p185
      %p188 = scmp.ne.s32.totalorder %s171, %s187
      %p189 = scmp.eq.s32.totalorder %s32, 0
      %p190 = por %p188, %p189
      %s191 = ssub.s32 %s26, %s33
      %p192 = scmp.eq.s32.totalorder %s191, 0
      %s194 = sadd.s32 %s193, 1
      %s195 = scalar_select %p192, %s193, %s194
      %p198 = pneg %p192
      %p199 = scmp.eq.s32.totalorder %s26, 1
      %p200 = por %p198, %p199
      %p201 = scmp.ne.s32.totalorder %s193, %s196
      %p202 = scmp.eq.s32.totalorder %s26, 0
      %p203 = por %p201, %p202
      %p204 = scmp.ne.s32.totalorder %s193, %s196
      %p205 = scmp.eq.s32.totalorder %s31, 1
      %p206 = por %p204, %p205
      %p207 = scmp.ne.s32.totalorder %s196, %s197
      %p208 = scmp.eq.s32.totalorder %s31, 0
      %p209 = por %p207, %p208
      %p210 = scmp.ne.s32.totalorder %s196, %s197
      %p211 = scmp.eq.s32.totalorder %s32, 1
      %p212 = por %p210, %p211
      %p214 = scmp.ne.s32.totalorder %s197, %s213
      %p215 = scmp.eq.s32.totalorder %s32, 0
      %p216 = por %p214, %p215
      %s217 = ssub.s32 %s26, %s33
      %p218 = scmp.eq.s32.totalorder %s217, 0
      %s220 = sadd.s32 %s219, 1
      %s221 = scalar_select %p218, %s219, %s220
      %p224 = pneg %p218
      %p225 = scmp.eq.s32.totalorder %s26, 1
      %p226 = por %p224, %p225
      %p227 = scmp.ne.s32.totalorder %s219, %s222
      %p228 = scmp.eq.s32.totalorder %s26, 0
      %p229 = por %p227, %p228
      %p230 = scmp.ne.s32.totalorder %s219, %s222
      %p231 = scmp.eq.s32.totalorder %s31, 1
      %p232 = por %p230, %p231
      %p233 = scmp.ne.s32.totalorder %s222, %s223
      %p234 = scmp.eq.s32.totalorder %s31, 0
      %p235 = por %p233, %p234
      %p236 = scmp.ne.s32.totalorder %s222, %s223
      %p237 = scmp.eq.s32.totalorder %s32, 1
      %p238 = por %p236, %p237
      %p240 = scmp.ne.s32.totalorder %s223, %s239
      %p241 = scmp.eq.s32.totalorder %s32, 0
      %p242 = por %p240, %p241
      %s243 = ssub.s32 %s26, %s33
      %p244 = scmp.eq.s32.totalorder %s243, 0
      %s246 = sadd.s32 %s245, 1
      %s247 = scalar_select %p244, %s245, %s246
      %p250 = pneg %p244
      %p251 = scmp.eq.s32.totalorder %s26, 1
      %p252 = por %p250, %p251
      %p253 = scmp.ne.s32.totalorder %s245, %s248
      %p254 = scmp.eq.s32.totalorder %s26, 0
      %p255 = por %p253, %p254
      %p256 = scmp.ne.s32.totalorder %s245, %s248
      %p257 = scmp.eq.s32.totalorder %s31, 1
      %p258 = por %p256, %p257
      %p259 = scmp.ne.s32.totalorder %s248, %s249
      %p260 = scmp.eq.s32.totalorder %s31, 0
      %p261 = por %p259, %p260
      %p262 = scmp.ne.s32.totalorder %s248, %s249
      %p263 = scmp.eq.s32.totalorder %s32, 1
      %p264 = por %p262, %p263
      %p266 = scmp.ne.s32.totalorder %s249, %s265
      %p267 = scmp.eq.s32.totalorder %s32, 0
      %p268 = por %p266, %p267
      %s269 = ssub.s32 %s26, %s33
      %p270 = scmp.eq.s32.totalorder %s269, 0
      %s272 = sadd.s32 %s271, 1
      %s273 = scalar_select %p270, %s271, %s272
      %p276 = pneg %p270
      %p277 = scmp.eq.s32.totalorder %s26, 1
      %p278 = por %p276, %p277
      %p279 = scmp.ne.s32.totalorder %s271, %s274
      %p280 = scmp.eq.s32.totalorder %s26, 0
      %p281 = por %p279, %p280
      %p282 = scmp.ne.s32.totalorder %s271, %s274
      %p283 = scmp.eq.s32.totalorder %s31, 1
      %p284 = por %p282, %p283
      %p285 = scmp.ne.s32.totalorder %s274, %s275
      %p286 = scmp.eq.s32.totalorder %s31, 0
      %p287 = por %p285, %p286
      %p288 = scmp.ne.s32.totalorder %s274, %s275
      %p289 = scmp.eq.s32.totalorder %s32, 1
      %p290 = por %p288, %p289
      %p292 = scmp.ne.s32.totalorder %s275, %s291
      %p293 = scmp.eq.s32.totalorder %s32, 0
      %p294 = por %p292, %p293
      %s295 = ssub.s32 %s26, %s33
      %p296 = scmp.eq.s32.totalorder %s295, 0
      %s298 = sadd.s32 %s297, 1
      %s299 = scalar_select %p296, %s297, %s298
      %p302 = pneg %p296
      %p303 = scmp.eq.s32.totalorder %s26, 1
      %p304 = por %p302, %p303
      %p305 = scmp.ne.s32.totalorder %s297, %s300
      %p306 = scmp.eq.s32.totalorder %s26, 0
      %p307 = por %p305, %p306
      %p308 = scmp.ne.s32.totalorder %s297, %s300
      %p309 = scmp.eq.s32.totalorder %s31, 1
      %p310 = por %p308, %p309
      %p311 = scmp.ne.s32.totalorder %s300, %s301
      %p312 = scmp.eq.s32.totalorder %s31, 0
      %p313 = por %p311, %p312
      %p314 = scmp.ne.s32.totalorder %s300, %s301
      %p315 = scmp.eq.s32.totalorder %s32, 1
      %p316 = por %p314, %p315
      %p318 = scmp.ne.s32.totalorder %s301, %s317
      %p319 = scmp.eq.s32.totalorder %s32, 0
      %p320 = por %p318, %p319
      %s321 = ssub.s32 %s26, %s33
      %p322 = scmp.eq.s32.totalorder %s321, 0
      %s324 = sadd.s32 %s323, 1
      %s325 = scalar_select %p322, %s323, %s324
      %p328 = pneg %p322
      %p329 = scmp.eq.s32.totalorder %s26, 1
      %p330 = por %p328, %p329
      %p331 = scmp.ne.s32.totalorder %s323, %s326
      %p332 = scmp.eq.s32.totalorder %s26, 0
      %p333 = por %p331, %p332
      %p334 = scmp.ne.s32.totalorder %s323, %s326
      %p335 = scmp.eq.s32.totalorder %s31, 1
      %p336 = por %p334, %p335
      %p337 = scmp.ne.s32.totalorder %s326, %s327
      %p338 = scmp.eq.s32.totalorder %s31, 0
      %p339 = por %p337, %p338
      %p340 = scmp.ne.s32.totalorder %s326, %s327
      %p341 = scmp.eq.s32.totalorder %s32, 1
      %p342 = por %p340, %p341
      %p344 = scmp.ne.s32.totalorder %s327, %s343
      %p345 = scmp.eq.s32.totalorder %s32, 0
      %p346 = por %p344, %p345
      %s347 = ssub.s32 %s26, %s33
      %p348 = scmp.eq.s32.totalorder %s347, 0
      %s350 = sadd.s32 %s349, 1
      %s351 = scalar_select %p348, %s349, %s350
      %p354 = pneg %p348
      %p355 = scmp.eq.s32.totalorder %s26, 1
      %p356 = por %p354, %p355
      %p357 = scmp.ne.s32.totalorder %s349, %s352
      %p358 = scmp.eq.s32.totalorder %s26, 0
      %p359 = por %p357, %p358
      %p360 = scmp.ne.s32.totalorder %s349, %s352
      %p361 = scmp.eq.s32.totalorder %s31, 1
      %p362 = por %p360, %p361
      %p363 = scmp.ne.s32.totalorder %s352, %s353
      %p364 = scmp.eq.s32.totalorder %s31, 0
      %p365 = por %p363, %p364
      %p366 = scmp.ne.s32.totalorder %s352, %s353
      %p367 = scmp.eq.s32.totalorder %s32, 1
      %p368 = por %p366, %p367
      %p370 = scmp.ne.s32.totalorder %s353, %s369
      %p371 = scmp.eq.s32.totalorder %s32, 0
      %p372 = por %p370, %p371
      %s373 = ssub.s32 %s26, %s33
      %p374 = scmp.eq.s32.totalorder %s373, 0
      %s376 = sadd.s32 %s375, 1
      %s377 = scalar_select %p374, %s375, %s376
      %p380 = pneg %p374
      %p381 = scmp.eq.s32.totalorder %s26, 1
      %p382 = por %p380, %p381
      %p383 = scmp.ne.s32.totalorder %s375, %s378
      %p384 = scmp.eq.s32.totalorder %s26, 0
      %p385 = por %p383, %p384
      %p386 = scmp.ne.s32.totalorder %s375, %s378
      %p387 = scmp.eq.s32.totalorder %s31, 1
      %p388 = por %p386, %p387
      %p389 = scmp.ne.s32.totalorder %s378, %s379
      %p390 = scmp.eq.s32.totalorder %s31, 0
      %p391 = por %p389, %p390
      %p392 = scmp.ne.s32.totalorder %s378, %s379
      %p393 = scmp.eq.s32.totalorder %s32, 1
      %p394 = por %p392, %p393
      %p396 = scmp.ne.s32.totalorder %s379, %s395
      %p397 = scmp.eq.s32.totalorder %s32, 0
      %p398 = por %p396, %p397
      %s399 = ssub.s32 %s26, %s33
      %p400 = scmp.eq.s32.totalorder %s399, 0
      %s402 = sadd.s32 %s401, 1
      %s403 = scalar_select %p400, %s401, %s402
      %p406 = pneg %p400
      %p407 = scmp.eq.s32.totalorder %s26, 1
      %p408 = por %p406, %p407
      %p409 = scmp.ne.s32.totalorder %s401, %s404
      %p410 = scmp.eq.s32.totalorder %s26, 0
      %p411 = por %p409, %p410
      %p412 = scmp.ne.s32.totalorder %s401, %s404
      %p413 = scmp.eq.s32.totalorder %s31, 1
      %p414 = por %p412, %p413
      %p415 = scmp.ne.s32.totalorder %s404, %s405
      %p416 = scmp.eq.s32.totalorder %s31, 0
      %p417 = por %p415, %p416
      %p418 = scmp.ne.s32.totalorder %s404, %s405
      %p419 = scmp.eq.s32.totalorder %s32, 1
      %p420 = por %p418, %p419
      %p422 = scmp.ne.s32.totalorder %s405, %s421
      %p423 = scmp.eq.s32.totalorder %s32, 0
      %p424 = por %p422, %p423
      %s425 = ssub.s32 %s26, %s33
      %p426 = scmp.eq.s32.totalorder %s425, 0
      %s428 = sadd.s32 %s427, 1
      %s429 = scalar_select %p426, %s427, %s428
      %p432 = pneg %p426
      %p433 = scmp.eq.s32.totalorder %s26, 1
      %p434 = por %p432, %p433
      %p435 = scmp.ne.s32.totalorder %s427, %s430
      %p436 = scmp.eq.s32.totalorder %s26, 0
      %p437 = por %p435, %p436
      %p438 = scmp.ne.s32.totalorder %s427, %s430
      %p439 = scmp.eq.s32.totalorder %s31, 1
      %p440 = por %p438, %p439
      %p441 = scmp.ne.s32.totalorder %s430, %s431
      %p442 = scmp.eq.s32.totalorder %s31, 0
      %p443 = por %p441, %p442
      %p444 = scmp.ne.s32.totalorder %s430, %s431
      %p445 = scmp.eq.s32.totalorder %s32, 1
      %p446 = por %p444, %p445
      %p448 = scmp.ne.s32.totalorder %s431, %s447
      %p449 = scmp.eq.s32.totalorder %s32, 0
      %p450 = por %p448, %p449
      %s452 = sadd.s32 %s451, 1
      %p455 = scmp.eq.s32.totalorder %s26, 1
      %p456 = scmp.ne.s32.totalorder %s451, %s453
      %p457 = scmp.eq.s32.totalorder %s26, 0
      %p458 = por %p456, %p457
      %p459 = scmp.ne.s32.totalorder %s451, %s453
      %p460 = scmp.eq.s32.totalorder %s31, 1
      %p461 = por %p459, %p460
      %p462 = scmp.ne.s32.totalorder %s453, %s454
      %p463 = scmp.eq.s32.totalorder %s31, 0
      %p464 = por %p462, %p463
      %p465 = scmp.ne.s32.totalorder %s453, %s454
      %p466 = scmp.eq.s32.totalorder %s32, 1
      %p467 = por %p465, %p466
      %p469 = scmp.ne.s32.totalorder %s454, %s468
      %p470 = scmp.eq.s32.totalorder %s32, 0
      %p471 = por %p469, %p470
      %s473 = sadd.s32 %s472, 1
      %p476 = scmp.eq.s32.totalorder %s26, 1
      %p477 = scmp.ne.s32.totalorder %s472, %s474
      %p478 = scmp.eq.s32.totalorder %s26, 0
      %p479 = por %p477, %p478
      %p480 = scmp.ne.s32.totalorder %s472, %s474
      %p481 = scmp.eq.s32.totalorder %s31, 1
      %p482 = por %p480, %p481
      %p483 = scmp.ne.s32.totalorder %s474, %s475
      %p484 = scmp.eq.s32.totalorder %s31, 0
      %p485 = por %p483, %p484
      %p486 = scmp.ne.s32.totalorder %s474, %s475
      %p487 = scmp.eq.s32.totalorder %s32, 1
      %p488 = por %p486, %p487
      %p490 = scmp.ne.s32.totalorder %s475, %s489
      %p491 = scmp.eq.s32.totalorder %s32, 0
      %p492 = por %p490, %p491
      %s494 = sadd.s32 %s493, 1
      %p497 = scmp.eq.s32.totalorder %s26, 1
      %p498 = scmp.ne.s32.totalorder %s493, %s495
      %p499 = scmp.eq.s32.totalorder %s26, 0
      %p500 = por %p498, %p499
      %p501 = scmp.ne.s32.totalorder %s493, %s495
      %p502 = scmp.eq.s32.totalorder %s31, 1
      %p503 = por %p501, %p502
      %p504 = scmp.ne.s32.totalorder %s495, %s496
      %p505 = scmp.eq.s32.totalorder %s31, 0
      %p506 = por %p504, %p505
      %p507 = scmp.ne.s32.totalorder %s495, %s496
      %p508 = scmp.eq.s32.totalorder %s32, 1
      %p509 = por %p507, %p508
      %p511 = scmp.ne.s32.totalorder %s496, %s510
      %p512 = scmp.eq.s32.totalorder %s32, 0
      %p513 = por %p511, %p512
      %p514 = scmp.le.s32.totalorder 1, %s26
      %p515 = scmp.lt.s32.totalorder %s26, 3
      %p516 = pnand %p514, %p515
      %p517 = pneg %p516
      // Predicated region
      $region9: #{transformer_forward.1} parent=5 // pred_check
        _
      $region10: #{transformer_forward.1} parent=5 // pred_check_branch
        %519 = sbr.rel (%p516) target = $region12
      $region11: #{transformer_forward.1} parent=5 // pred_region
        %s520 = ssub.s32 %s26, 1
        // Predicated region
        $region13: #{transformer_forward.1} parent=11 // pred_check
          %p521 = pneg %p47
        $region14: #{transformer_forward.1} parent=11 // pred_check_branch
          %523 = sbr.rel (%p521) target = $region16
        $region15: #{transformer_forward.1} parent=11 // pred_region
          _
        $region16: #{transformer_forward.1} parent=11 // pred_fallthru
          _
        // Predicated region
        $region17: #{transformer_forward.1} parent=11 // pred_check
          %p524 = pneg %p68
        $region18: #{transformer_forward.1} parent=11 // pred_check_branch
          %526 = sbr.rel (%p524) target = $region20
        $region19: #{transformer_forward.1} parent=11 // pred_region
          _
        $region20: #{transformer_forward.1} parent=11 // pred_fallthru
          _
        // Predicated region
        $region21: #{transformer_forward.1} parent=11 // pred_check
          %p527 = pneg %p89
        $region22: #{transformer_forward.1} parent=11 // pred_check_branch
          %529 = sbr.rel (%p527) target = $region24
        $region23: #{transformer_forward.1} parent=11 // pred_region
          _
        $region24: #{transformer_forward.1} parent=11 // pred_fallthru
          _
        // Predicated region
        $region25: #{transformer_forward.1} parent=11 // pred_check
          %p530 = pneg %p110
        $region26: #{transformer_forward.1} parent=11 // pred_check_branch
          %532 = sbr.rel (%p530) target = $region28
        $region27: #{transformer_forward.1} parent=11 // pred_region
          _
        $region28: #{transformer_forward.1} parent=11 // pred_fallthru
          _
        // Predicated region
        $region29: #{transformer_forward.1} parent=11 // pred_check
          %p533 = pneg %p131
        $region30: #{transformer_forward.1} parent=11 // pred_check_branch
          %535 = sbr.rel (%p533) target = $region32
        $region31: #{transformer_forward.1} parent=11 // pred_region
          _
        $region32: #{transformer_forward.1} parent=11 // pred_fallthru
          _
        // Predicated region
        $region33: #{transformer_forward.1} parent=11 // pred_check
          %p536 = pneg %p464
        $region34: #{transformer_forward.1} parent=11 // pred_check_branch
          %538 = sbr.rel (%p536) target = $region36
        $region35: #{transformer_forward.1} parent=11 // pred_region
          _
        $region36: #{transformer_forward.1} parent=11 // pred_fallthru
          _
        // Predicated region
        $region37: #{transformer_forward.1} parent=11 // pred_check
          %p539 = pneg %p485
        $region38: #{transformer_forward.1} parent=11 // pred_check_branch
          %541 = sbr.rel (%p539) target = $region40
        $region39: #{transformer_forward.1} parent=11 // pred_region
          _
        $region40: #{transformer_forward.1} parent=11 // pred_fallthru
          _
      $region12: #{transformer_forward.1} parent=5 // pred_fallthru
        _
      %p542 = scmp.lt.s32.totalorder %s26, 2
      // Predicated region
      $region41: #{transformer_forward.1} parent=5 // pred_check
        %p543 = pneg %p542
      $region42: #{transformer_forward.1} parent=5 // pred_check_branch
        %545 = sbr.rel (%p543) target = $region44
      $region43: #{transformer_forward.1} parent=5 // pred_region
        // Predicated region
        $region45: #{transformer_forward.1} parent=43 // pred_check
          %p546 = pneg %p151
        $region46: #{transformer_forward.1} parent=43 // pred_check_branch
          %548 = sbr.rel (%p546) target = $region48
        $region47: #{transformer_forward.1} parent=43 // pred_region
          %p549 = scmp.lt.s32.totalorder %s26, 1
          %s550 = scalar_select %p549, %s26, 1
          %s551 = smul.addr %s550, 4
          %s552 = smul.addr %s551, 8
          %s553 = scalar_lea.vmem %s5, %s552
        $region48: #{transformer_forward.1} parent=43 // pred_fallthru
          _
        // Predicated region
        $region49: #{transformer_forward.1} parent=43 // pred_check
          %p554 = pneg %p177
        $region50: #{transformer_forward.1} parent=43 // pred_check_branch
          %556 = sbr.rel (%p554) target = $region52
        $region51: #{transformer_forward.1} parent=43 // pred_region
          %p557 = scmp.lt.s32.totalorder %s26, 1
          %s558 = scalar_select %p557, %s26, 1
          %s559 = scalar_lea.vmem %s6, %s558
        $region52: #{transformer_forward.1} parent=43 // pred_fallthru
          _
        // Predicated region
        $region53: #{transformer_forward.1} parent=43 // pred_check
          %p560 = pneg %p203
        $region54: #{transformer_forward.1} parent=43 // pred_check_branch
          %562 = sbr.rel (%p560) target = $region56
        $region55: #{transformer_forward.1} parent=43 // pred_region
          %p563 = scmp.lt.s32.totalorder %s26, 1
          %s564 = scalar_select %p563, %s26, 1
          %s565 = smul.addr %s564, 4
          %s566 = smul.addr %s565, 8
          %s567 = scalar_lea.vmem %s7, %s566
        $region56: #{transformer_forward.1} parent=43 // pred_fallthru
          _
        // Predicated region
        $region57: #{transformer_forward.1} parent=43 // pred_check
          %p568 = pneg %p229
        $region58: #{transformer_forward.1} parent=43 // pred_check_branch
          %570 = sbr.rel (%p568) target = $region60
        $region59: #{transformer_forward.1} parent=43 // pred_region
          %p571 = scmp.lt.s32.totalorder %s26, 1
          %s572 = scalar_select %p571, %s26, 1
          %s573 = scalar_lea.vmem %s8, %s572
        $region60: #{transformer_forward.1} parent=43 // pred_fallthru
          _
        // Predicated region
        $region61: #{transformer_forward.1} parent=43 // pred_check
          %p574 = pneg %p255
        $region62: #{transformer_forward.1} parent=43 // pred_check_branch
          %576 = sbr.rel (%p574) target = $region64
        $region63: #{transformer_forward.1} parent=43 // pred_region
          %p577 = scmp.lt.s32.totalorder %s26, 1
          %s578 = scalar_select %p577, %s26, 1
          %s579 = scalar_lea.vmem %s9, %s578
        $region64: #{transformer_forward.1} parent=43 // pred_fallthru
          _
        // Predicated region
        $region65: #{transformer_forward.1} parent=43 // pred_check
          %p580 = pneg %p281
        $region66: #{transformer_forward.1} parent=43 // pred_check_branch
          %582 = sbr.rel (%p580) target = $region68
        $region67: #{transformer_forward.1} parent=43 // pred_region
          %p583 = scmp.lt.s32.totalorder %s26, 1
          %s584 = scalar_select %p583, %s26, 1
          %s585 = scalar_lea.vmem %s10, %s584
        $region68: #{transformer_forward.1} parent=43 // pred_fallthru
          _
        // Predicated region
        $region69: #{transformer_forward.1} parent=43 // pred_check
          %p586 = pneg %p307
        $region70: #{transformer_forward.1} parent=43 // pred_check_branch
          %588 = sbr.rel (%p586) target = $region72
        $region71: #{transformer_forward.1} parent=43 // pred_region
          %p589 = scmp.lt.s32.totalorder %s26, 1
          %s590 = scalar_select %p589, %s26, 1
          %s591 = smul.addr %s590, 64
          %s592 = smul.addr %s591, 8
          %s593 = scalar_lea.vmem %s11, %s592
        $region72: #{transformer_forward.1} parent=43 // pred_fallthru
          _
        // Predicated region
        $region73: #{transformer_forward.1} parent=43 // pred_check
          %p594 = pneg %p333
        $region74: #{transformer_forward.1} parent=43 // pred_check_branch
          %596 = sbr.rel (%p594) target = $region76
        $region75: #{transformer_forward.1} parent=43 // pred_region
          %p597 = scmp.lt.s32.totalorder %s26, 1
          %s598 = scalar_select %p597, %s26, 1
          %s599 = smul.addr %s598, 16
          %s600 = scalar_lea.vmem %s12, %s599
        $region76: #{transformer_forward.1} parent=43 // pred_fallthru
          _
        // Predicated region
        $region77: #{transformer_forward.1} parent=43 // pred_check
          %p601 = pneg %p359
        $region78: #{transformer_forward.1} parent=43 // pred_check_branch
          %603 = sbr.rel (%p601) target = $region80
        $region79: #{transformer_forward.1} parent=43 // pred_region
          %p604 = scmp.lt.s32.totalorder %s26, 1
          %s605 = scalar_select %p604, %s26, 1
          %s606 = smul.addr %s605, 256
          %s607 = smul.addr %s606, 8
          %s608 = scalar_lea.vmem %s13, %s607
        $region80: #{transformer_forward.1} parent=43 // pred_fallthru
          _
        // Predicated region
        $region81: #{transformer_forward.1} parent=43 // pred_check
          %p609 = pneg %p385
        $region82: #{transformer_forward.1} parent=43 // pred_check_branch
          %611 = sbr.rel (%p609) target = $region84
        $region83: #{transformer_forward.1} parent=43 // pred_region
          %p612 = scmp.lt.s32.totalorder %s26, 1
          %s613 = scalar_select %p612, %s26, 1
          %s614 = scalar_lea.vmem %s14, %s613
        $region84: #{transformer_forward.1} parent=43 // pred_fallthru
          _
        // Predicated region
        $region85: #{transformer_forward.1} parent=43 // pred_check
          %p615 = pneg %p411
        $region86: #{transformer_forward.1} parent=43 // pred_check_branch
          %617 = sbr.rel (%p615) target = $region88
        $region87: #{transformer_forward.1} parent=43 // pred_region
          %p618 = scmp.lt.s32.totalorder %s26, 1
          %s619 = scalar_select %p618, %s26, 1
          %s620 = scalar_lea.vmem %s15, %s619
        $region88: #{transformer_forward.1} parent=43 // pred_fallthru
          _
        // Predicated region
        $region89: #{transformer_forward.1} parent=43 // pred_check
          %p621 = pneg %p437
        $region90: #{transformer_forward.1} parent=43 // pred_check_branch
          %623 = sbr.rel (%p621) target = $region92
        $region91: #{transformer_forward.1} parent=43 // pred_region
          %p624 = scmp.lt.s32.totalorder %s26, 1
          %s625 = scalar_select %p624, %s26, 1
          %s626 = scalar_lea.vmem %s16, %s625
        $region92: #{transformer_forward.1} parent=43 // pred_fallthru
          _
      $region44: #{transformer_forward.1} parent=5 // pred_fallthru
        _
      %p627 = scmp.le.s32.totalorder 1, %s26
      %p628 = scmp.lt.s32.totalorder %s26, 3
      %p629 = pnand %p627, %p628
      %p630 = pneg %p629
      // Predicated region
      $region93: #{transformer_forward.1} parent=5 // pred_check
        _
      $region94: #{transformer_forward.1} parent=5 // pred_check_branch
        %632 = sbr.rel (%p629) target = $region96
      $region95: #{transformer_forward.1} parent=5 // pred_region
        %s633 = ssub.s32 %s26, 1
        %p634 = pneg %p47
        %p635 = pneg %p44
        %p636 = pneg %p68
        %p637 = pneg %p65
        %p638 = pneg %p89
        %p639 = pneg %p86
        %p640 = pneg %p110
        %p641 = pneg %p107
        %p642 = pneg %p131
        %p643 = pneg %p128
        %p644 = scmp.lt.s32.totalorder %s31, 1
        %s645 = scalar_select %p644, %s31, 1
        %s646 = smul.addr %s645, 4
        %s647 = smul.addr %s646, 8
        %s648 = scalar_lea.vmem %s5, %s647
        %p649 = pneg %p157
        %p650 = pneg %p154
        %p651 = scmp.lt.s32.totalorder %s31, 1
        %s652 = scalar_select %p651, %s31, 1
        %s653 = scalar_lea.vmem %s6, %s652
        %p654 = pneg %p183
        %p655 = pneg %p180
        %p656 = scmp.lt.s32.totalorder %s31, 1
        %s657 = scalar_select %p656, %s31, 1
        %s658 = smul.addr %s657, 4
        %s659 = smul.addr %s658, 8
        %s660 = scalar_lea.vmem %s7, %s659
        %p661 = pneg %p209
        %p662 = pneg %p206
        %p663 = scmp.lt.s32.totalorder %s31, 1
        %s664 = scalar_select %p663, %s31, 1
        %s665 = scalar_lea.vmem %s8, %s664
        %p666 = pneg %p235
        %p667 = pneg %p232
        %p668 = scmp.lt.s32.totalorder %s31, 1
        %s669 = scalar_select %p668, %s31, 1
        %s670 = scalar_lea.vmem %s9, %s669
        %p671 = pneg %p261
        %p672 = pneg %p258
        %p673 = scmp.lt.s32.totalorder %s31, 1
        %s674 = scalar_select %p673, %s31, 1
        %s675 = scalar_lea.vmem %s10, %s674
        %p676 = pneg %p287
        %p677 = pneg %p284
        %p678 = scmp.lt.s32.totalorder %s31, 1
        %s679 = scalar_select %p678, %s31, 1
        %s680 = smul.addr %s679, 64
        %s681 = smul.addr %s680, 8
        %s682 = scalar_lea.vmem %s11, %s681
        %p683 = pneg %p313
        %p684 = pneg %p310
        %p685 = scmp.lt.s32.totalorder %s31, 1
        %s686 = scalar_select %p685, %s31, 1
        %s687 = smul.addr %s686, 16
        %s688 = scalar_lea.vmem %s12, %s687
        %p689 = pneg %p339
        %p690 = pneg %p336
        %p691 = scmp.lt.s32.totalorder %s31, 1
        %s692 = scalar_select %p691, %s31, 1
        %s693 = smul.addr %s692, 256
        %s694 = smul.addr %s693, 8
        %s695 = scalar_lea.vmem %s13, %s694
        %p696 = pneg %p365
        %p697 = pneg %p362
        %p698 = scmp.lt.s32.totalorder %s31, 1
        %s699 = scalar_select %p698, %s31, 1
        %s700 = scalar_lea.vmem %s14, %s699
        %p701 = pneg %p391
        %p702 = pneg %p388
        %p703 = scmp.lt.s32.totalorder %s31, 1
        %s704 = scalar_select %p703, %s31, 1
        %s705 = scalar_lea.vmem %s15, %s704
        %p706 = pneg %p417
        %p707 = pneg %p414
        %p708 = scmp.lt.s32.totalorder %s31, 1
        %s709 = scalar_select %p708, %s31, 1
        %s710 = scalar_lea.vmem %s16, %s709
        %p711 = pneg %p443
        %p712 = pneg %p440
        %p713 = pneg %p464
        %p714 = pneg %p461
        %p715 = pneg %p485
        %p716 = pneg %p482
        %p717 = pneg %p506
        %p718 = pneg %p503
        %p719 = scmp.lt.s32.totalorder %s31, 1
        %s720 = scalar_select %p719, %s31, 1
        %s721 = smul.addr %s720, 4
        %s722 = smul.addr %s721, 8
        %s723 = scalar_lea.vmem %s5, %s722
        %p724 = scmp.lt.s32.totalorder %s31, 1
        %s725 = scalar_select %p724, %s31, 1
        %s726 = scalar_lea.vmem %s6, %s725
        %p727 = scmp.lt.s32.totalorder %s31, 1
        %s728 = scalar_select %p727, %s31, 1
        %s729 = smul.addr %s728, 4
        %s730 = smul.addr %s729, 8
        %s731 = scalar_lea.vmem %s7, %s730
        %p732 = scmp.lt.s32.totalorder %s31, 1
        %s733 = scalar_select %p732, %s31, 1
        %s734 = scalar_lea.vmem %s8, %s733
        %p735 = scmp.lt.s32.totalorder %s31, 1
        %s736 = scalar_select %p735, %s31, 1
        %s737 = scalar_lea.vmem %s9, %s736
        %p738 = scmp.lt.s32.totalorder %s31, 1
        %s739 = scalar_select %p738, %s31, 1
        %s740 = scalar_lea.vmem %s10, %s739
        %p741 = scmp.lt.s32.totalorder %s31, 1
        %s742 = scalar_select %p741, %s31, 1
        %s743 = smul.addr %s742, 64
        %s744 = smul.addr %s743, 8
        %s745 = scalar_lea.vmem %s11, %s744
        %p746 = scmp.lt.s32.totalorder %s31, 1
        %s747 = scalar_select %p746, %s31, 1
        %s748 = smul.addr %s747, 16
        %s749 = scalar_lea.vmem %s12, %s748
        %p750 = scmp.lt.s32.totalorder %s31, 1
        %s751 = scalar_select %p750, %s31, 1
        %s752 = smul.addr %s751, 256
        %s753 = smul.addr %s752, 8
        %s754 = scalar_lea.vmem %s13, %s753
        %p755 = scmp.lt.s32.totalorder %s31, 1
        %s756 = scalar_select %p755, %s31, 1
        %s757 = scalar_lea.vmem %s14, %s756
        %p758 = scmp.lt.s32.totalorder %s31, 1
        %s759 = scalar_select %p758, %s31, 1
        %s760 = scalar_lea.vmem %s15, %s759
        %p761 = scmp.lt.s32.totalorder %s31, 1
        %s762 = scalar_select %p761, %s31, 1
        %s763 = scalar_lea.vmem %s16, %s762
        %p764 = scmp.eq.s32.totalorder %s31, 0
        // Predicated region
        $region97: #{transformer_forward.1} parent=95 // pred_check
          %p765 = pneg %p764
        $region98: #{transformer_forward.1} parent=95 // pred_check_branch
          %767 = sbr.rel (%p765) target = $region100
        $region99: #{transformer_forward.1} parent=95 // pred_region
          %v768 = vld [vmem:[%s0] sm:$0xff]
          %v769 = vld [vmem:[%s0 + $0x8] sm:$0xff]
          %v770 = vld [vmem:[%s0 + $0x10] sm:$0xff]
          %v771 = vld [vmem:[%s0 + $0x18] sm:$0xff]
          %v772 = vld [vmem:[%s0 + $0x20] sm:$0xff]
          %v773 = vld [vmem:[%s0 + $0x28] sm:$0xff]
          %v774 = vld [vmem:[%s0 + $0x30] sm:$0x3]
          %v775 = vld [vmem:[%s3] sm:$0x7]
          %777 = vset.pattern.permute.xlu0 0
          %778 = vperm.xlu0 %777, %v768
          %v779 = vpop.permute.xlu0 %778
          %782 = vset.pattern.permute.xlu0 0
          %783 = vperm.xlu0 %782, %v769
          %v784 = vpop.permute.xlu0 %783
          %787 = vset.pattern.permute.xlu0 0
          %788 = vperm.xlu0 %787, %v770
          %v789 = vpop.permute.xlu0 %788
          %792 = vset.pattern.permute.xlu0 0
          %793 = vperm.xlu0 %792, %v771
          %v794 = vpop.permute.xlu0 %793
          %797 = vset.pattern.permute.xlu0 0
          %798 = vperm.xlu0 %797, %v772
          %v799 = vpop.permute.xlu0 %798
          %802 = vset.pattern.permute.xlu0 0
          %803 = vperm.xlu0 %802, %v773
          %v804 = vpop.permute.xlu0 %803
          %807 = vset.pattern.permute.xlu0 0
          %808 = vperm.xlu0 %807, %v774
          %v809 = vpop.permute.xlu0 %808
          %v811 = vlaneseq
          %v812 = vshrl.u32 %v811, 7
          %v813 = vsub.s32 0, %v812
          %v814 = vrot.slane %v775, %v813
          %v815 = vmul.f32 %v779, %v814
          %v816 = vmul.f32 %v784, %v814
          %v817 = vmul.f32 %v789, %v814
          %v818 = vmul.f32 %v794, %v814
          %v819 = vmul.f32 %v799, %v814
          %v820 = vmul.f32 %v804, %v814
          %v821 = vmul.f32 %v809, %v814
          %822 = vset.pattern.permute.xlu0 1
          %823 = vperm.xlu0 %822, %v768
          %v824 = vpop.permute.xlu0 %823
          %826 = vset.pattern.permute.xlu0 1
          %827 = vperm.xlu0 %826, %v769
          %v828 = vpop.permute.xlu0 %827
          %830 = vset.pattern.permute.xlu0 1
          %831 = vperm.xlu0 %830, %v770
          %v832 = vpop.permute.xlu0 %831
          %834 = vset.pattern.permute.xlu0 1
          %835 = vperm.xlu0 %834, %v771
          %v836 = vpop.permute.xlu0 %835
          %838 = vset.pattern.permute.xlu0 1
          %839 = vperm.xlu0 %838, %v772
          %v840 = vpop.permute.xlu0 %839
          %842 = vset.pattern.permute.xlu0 1
          %843 = vperm.xlu0 %842, %v773
          %v844 = vpop.permute.xlu0 %843
          %846 = vset.pattern.permute.xlu0 1
          %847 = vperm.xlu0 %846, %v774
          %v848 = vpop.permute.xlu0 %847
          %v850 = vlaneseq
          %v851 = vshrl.u32 %v850, 7
          %v852 = vsub.s32 1, %v851
          %v853 = vrot.slane %v775, %v852
          %v854 = vmul.f32 %v824, %v853
          %v855 = vmul.f32 %v828, %v853
          %v856 = vmul.f32 %v832, %v853
          %v857 = vmul.f32 %v836, %v853
          %v858 = vmul.f32 %v840, %v853
          %v859 = vmul.f32 %v844, %v853
          %v860 = vmul.f32 %v848, %v853
          %v861 = vadd.f32 %v815, %v854
          %v862 = vadd.f32 %v816, %v855
          %v863 = vadd.f32 %v817, %v856
          %v864 = vadd.f32 %v818, %v857
          %v865 = vadd.f32 %v819, %v858
          %v866 = vadd.f32 %v820, %v859
          %v867 = vadd.f32 %v821, %v860
          %868 = vset.pattern.permute.xlu0 2
          %869 = vperm.xlu0 %868, %v768
          %v870 = vpop.permute.xlu0 %869
          %872 = vset.pattern.permute.xlu0 2
          %873 = vperm.xlu0 %872, %v769
          %v874 = vpop.permute.xlu0 %873
          %876 = vset.pattern.permute.xlu0 2
          %877 = vperm.xlu0 %876, %v770
          %v878 = vpop.permute.xlu0 %877
          %880 = vset.pattern.permute.xlu0 2
          %881 = vperm.xlu0 %880, %v771
          %v882 = vpop.permute.xlu0 %881
          %884 = vset.pattern.permute.xlu0 2
          %885 = vperm.xlu0 %884, %v772
          %v886 = vpop.permute.xlu0 %885
          %888 = vset.pattern.permute.xlu0 2
          %889 = vperm.xlu0 %888, %v773
          %v890 = vpop.permute.xlu0 %889
          %892 = vset.pattern.permute.xlu0 2
          %893 = vperm.xlu0 %892, %v774
          %v894 = vpop.permute.xlu0 %893
          %v896 = vlaneseq
          %v897 = vshrl.u32 %v896, 7
          %v898 = vsub.s32 2, %v897
          %v899 = vrot.slane %v775, %v898
          %v900 = vmul.f32 %v870, %v899
          %v901 = vmul.f32 %v874, %v899
          %v902 = vmul.f32 %v878, %v899
          %v903 = vmul.f32 %v882, %v899
          %v904 = vmul.f32 %v886, %v899
          %v905 = vmul.f32 %v890, %v899
          %v906 = vmul.f32 %v894, %v899
          %v907 = vadd.f32 %v861, %v900
          %v908 = vadd.f32 %v862, %v901
          %v909 = vadd.f32 %v863, %v902
          %v910 = vadd.f32 %v864, %v903
          %v911 = vadd.f32 %v865, %v904
          %v912 = vadd.f32 %v866, %v905
          %v913 = vadd.f32 %v867, %v906
          %v914 = vld [vmem:[%s4] sm:$0x1]
          %v916 = vlaneseq
          %v917 = vshrl.u32 %v916, 7
          %v918 = vsub.s32 0, %v917
          %v919 = vrot.slane %v914, %v918
          %v921 = vadd.f32 %v907, %v919
          %v922 = vadd.f32 %v908, %v919
          %v923 = vadd.f32 %v909, %v919
          %v924 = vadd.f32 %v910, %v919
          %v925 = vadd.f32 %v911, %v919
          %v926 = vadd.f32 %v912, %v919
          %v927 = vadd.f32 %v913, %v919
          %vm928 = vcmask 261120
          %929 = vst.msk [vmem:[#allocation2] sm:$0xff] %vm928, %v921
          %930 = vst.msk [vmem:[#allocation2 + $0x8] sm:$0xff] %vm928, %v922
          %931 = vst.msk [vmem:[#allocation2 + $0x10] sm:$0xff] %vm928, %v923
          %932 = vst.msk [vmem:[#allocation2 + $0x18] sm:$0xff] %vm928, %v924
          %933 = vst.msk [vmem:[#allocation2 + $0x20] sm:$0xff] %vm928, %v925
          %934 = vst.msk [vmem:[#allocation2 + $0x28] sm:$0xff] %vm928, %v926
          %vm935 = vcmask 254976
          %936 = vst.msk [vmem:[#allocation2 + $0x30] sm:$0x3] %vm935, %v927
        $region100: #{transformer_forward.1} parent=95 // pred_fallthru
          _
        %v937 = vld [vmem:[#allocation2] sm:$0xff]
        %v938 = vld [vmem:[#allocation2 + $0x8] sm:$0xff]
        %v939 = vld [vmem:[#allocation2 + $0x10] sm:$0xff]
        %v940 = vld [vmem:[#allocation2 + $0x18] sm:$0xff]
        %v941 = vld [vmem:[#allocation2 + $0x20] sm:$0xff]
        %v942 = vld [vmem:[#allocation2 + $0x28] sm:$0xff]
        %v943 = vld [vmem:[#allocation2 + $0x30] sm:$0x3]
        %v944 = vld [vmem:[%s1] sm:$0xff]
        %v945 = vld [vmem:[%s1 + $0x8] sm:$0xff]
        %v946 = vld [vmem:[%s1 + $0x10] sm:$0xff]
        %v947 = vld [vmem:[%s1 + $0x18] sm:$0xff]
        %v948 = vld [vmem:[%s1 + $0x20] sm:$0xff]
        %v949 = vld [vmem:[%s1 + $0x28] sm:$0xff]
        %v950 = vld [vmem:[%s1 + $0x30] sm:$0x3]
        %v951 = vld [vmem:[%s723] sm:$0xff]
        %v952 = vld [vmem:[%s723 + $0x8] sm:$0xff]
        %v953 = vld [vmem:[%s723 + $0x10] sm:$0xff]
        %v954 = vld [vmem:[%s723 + $0x18] sm:$0xff]
        %v955 = vld [vmem:[%s726] sm:$0x1]
        %v957 = vlaneseq
        %v958 = vshrl.u32 %v957, 7
        %v959 = vsub.s32 0, %v958
        %v960 = vrot.slane %v955, %v959
        %vm962 = vcmask 261120
        %v964 = vsel %vm962, %v937, 0
        %v967 = vsel %vm962, %v938, 0
        %v970 = vsel %vm962, %v939, 0
        %v973 = vsel %vm962, %v940, 0
        %v976 = vsel %vm962, %v941, 0
        %v979 = vsel %vm962, %v942, 0
        %v982 = vsel %vm962, %v943, 0
        %984 = vmatprep.subr.mxu0 0.0
        %985 = vmatpush1.msra.mxu0 0.0
        %986 = vmatprep.subr.mxu0 0.0
        %987 = vmatpush1.msra.mxu0 0.0
        %988 = vmatprep.subr.mxu0 0.0
        %989 = vmatpush1.msra.mxu0 0.0
        %990 = vmatprep.subr.mxu0 0.0
        %991 = vmatpush1.msra.mxu0 0.0
        %992 = vmatprep.subr.mxu0 0.0
        %993 = vmatpush1.msra.mxu0 0.0
        %994 = vmatprep.subr.mxu0 0.0
        %995 = vmatpush1.msra.mxu0 0.0
        %996 = vmatprep.subr.mxu0 0.0
        %997 = vmatpush1.msra.mxu0 0.0
        %998 = vmatprep.subr.mxu0 0.0
        %999 = vmatpush1.msra.mxu0 0.0
        %1000 = vmatprep.subr.mxu0 0.0
        %1001 = vmatpush1.msra.mxu0 0.0
        %1002 = vmatprep.subr.mxu0 0.0
        %1003 = vmatpush1.msra.mxu0 0.0
        %1004 = vmatprep.subr.mxu0 0.0
        %1005 = vmatpush1.msra.mxu0 0.0
        %1006 = vmatprep.subr.mxu0 0.0
        %1007 = vmatpush1.msra.mxu0 0.0
        %1008 = vmatprep.subr.mxu0 0.0
        %1009 = vmatpush1.msra.mxu0 %v954
        %1010 = vmatprep.subr.mxu0 0.0
        %1011 = vmatpush1.msra.mxu0 %v953
        %1012 = vmatprep.subr.mxu0 0.0
        %1013 = vmatpush1.msra.mxu0 %v952
        %1014 = vmatprep.subr.mxu0 0.0
        %1015 = vmatpush1.msra.mxu0 %v951
        %1016 = vmatprep.subr.mxu0 0.0
        %1017 = vmatpush2.msra.mxu0 0.0
        %1018 = vmatprep.subr.mxu0 0.0
        %1019 = vmatpush2.msra.mxu0 0.0
        %1020 = vmatprep.subr.mxu0 0.0
        %1021 = vmatpush2.msra.mxu0 0.0
        %1022 = vmatprep.subr.mxu0 0.0
        %1023 = vmatpush2.msra.mxu0 0.0
        %1024 = vmatprep.subr.mxu0 0.0
        %1025 = vmatpush2.msra.mxu0 0.0
        %1026 = vmatprep.subr.mxu0 0.0
        %1027 = vmatpush2.msra.mxu0 0.0
        %1028 = vmatprep.subr.mxu0 0.0
        %1029 = vmatpush2.msra.mxu0 0.0
        %1030 = vmatprep.subr.mxu0 0.0
        %1031 = vmatpush2.msra.mxu0 0.0
        %1032 = vmatprep.subr.mxu0 0.0
        %1033 = vmatpush2.msra.mxu0 0.0
        %1034 = vmatprep.subr.mxu0 0.0
        %1035 = vmatpush2.msra.mxu0 0.0
        %1036 = vmatprep.subr.mxu0 0.0
        %1037 = vmatpush2.msra.mxu0 0.0
        %1038 = vmatprep.subr.mxu0 0.0
        %1039 = vmatpush2.msra.mxu0 0.0
        %1040 = vmatprep.subr.mxu0 0.0
        %1041 = vmatpush2.msra.mxu0 0.0
        %1042 = vmatprep.subr.mxu0 0.0
        %1043 = vmatpush2.msra.mxu0 0.0
        %1044 = vmatprep.subr.mxu0 0.0
        %1045 = vmatpush2.msra.mxu0 0.0
        %1046 = vmatprep.subr.mxu0 0.0
        %1047 = vmatpush2.msra.mxu0 0.0
        %1048 = vmatprep.mubr.f32.mxu0 0.0
        %1049 = vmatmul.mubr.f32.gmra.mxu0 %v964
        %v1050 = vpop.f32.mrf.mxu0
        %v1051 = vadd.f32 %v960, %v1050
        %v1052 = vpop.f32.mrf.mxu0
        %1053 = vmatprep.mubr.f32.mxu0 0.0
        %1054 = vmatmul.mubr.f32.gmra.mxu0 %v967
        %v1055 = vpop.f32.mrf.mxu0
        %v1056 = vadd.f32 %v960, %v1055
        %v1057 = vpop.f32.mrf.mxu0
        %1058 = vmatprep.mubr.f32.mxu0 0.0
        %1059 = vmatmul.mubr.f32.gmra.mxu0 %v970
        %v1060 = vpop.f32.mrf.mxu0
        %v1061 = vadd.f32 %v960, %v1060
        %v1062 = vpop.f32.mrf.mxu0
        %1063 = vmatprep.mubr.f32.mxu0 0.0
        %1064 = vmatmul.mubr.f32.gmra.mxu0 %v973
        %v1065 = vpop.f32.mrf.mxu0
        %v1066 = vadd.f32 %v960, %v1065
        %v1067 = vpop.f32.mrf.mxu0
        %1068 = vmatprep.mubr.f32.mxu0 0.0
        %1069 = vmatmul.mubr.f32.gmra.mxu0 %v976
        %v1070 = vpop.f32.mrf.mxu0
        %v1071 = vadd.f32 %v960, %v1070
        %v1072 = vpop.f32.mrf.mxu0
        %1073 = vmatprep.mubr.f32.mxu0 0.0
        %1074 = vmatmul.mubr.f32.gmra.mxu0 %v979
        %v1075 = vpop.f32.mrf.mxu0
        %v1076 = vadd.f32 %v960, %v1075
        %v1077 = vpop.f32.mrf.mxu0
        %1078 = vmatprep.mubr.f32.mxu0 0.0
        %1079 = vmatmul.mubr.f32.gmra.mxu0 %v982
        %v1080 = vpop.f32.mrf.mxu0
        %v1081 = vadd.f32 %v960, %v1080
        %v1082 = vpop.f32.mrf.mxu0
        %1083 = vdwg.mxu0
        %v1084 = vld [vmem:[%s731] sm:$0xff]
        %v1085 = vld [vmem:[%s731 + $0x8] sm:$0xff]
        %v1086 = vld [vmem:[%s731 + $0x10] sm:$0xff]
        %v1087 = vld [vmem:[%s731 + $0x18] sm:$0xff]
        %v1088 = vmul.f32 %v1051, 0.35355338
        %v1089 = vmul.f32 %v1056, 0.35355338
        %v1090 = vmul.f32 %v1061, 0.35355338
        %v1091 = vmul.f32 %v1066, 0.35355338
        %v1092 = vmul.f32 %v1071, 0.35355338
        %v1093 = vmul.f32 %v1076, 0.35355338
        %v1094 = vmul.f32 %v1081, 0.35355338
        %1102 = vrot.lane.b32.xlu0 %v1051, 96
        %v1103 = vpop.permute.xlu0 %1102
        %1104 = vrot.lane.b32.xlu0 %v1056, 96
        %v1105 = vpop.permute.xlu0 %1104
        %1106 = vrot.lane.b32.xlu0 %v1061, 96
        %v1107 = vpop.permute.xlu0 %1106
        %1108 = vrot.lane.b32.xlu0 %v1066, 96
        %v1109 = vpop.permute.xlu0 %1108
        %1110 = vrot.lane.b32.xlu0 %v1071, 96
        %v1111 = vpop.permute.xlu0 %1110
        %1112 = vrot.lane.b32.xlu0 %v1076, 96
        %v1113 = vpop.permute.xlu0 %1112
        %1114 = vrot.lane.b32.xlu0 %v1081, 96
        %v1115 = vpop.permute.xlu0 %1114
        %vm1116 = vcmask 64512
        %v1118 = vsel %vm1116, %v1088, 0
        %v1121 = vsel %vm1116, %v1089, 0
        %v1124 = vsel %vm1116, %v1090, 0
        %v1127 = vsel %vm1116, %v1091, 0
        %v1130 = vsel %vm1116, %v1092, 0
        %v1133 = vsel %vm1116, %v1093, 0
        %v1136 = vsel %vm1116, %v1094, 0
        %v1138 = vsel %vm1116, %v1103, 0
        %v1140 = vsel %vm1116, %v1105, 0
        %v1142 = vsel %vm1116, %v1107, 0
        %v1144 = vsel %vm1116, %v1109, 0
        %v1146 = vsel %vm1116, %v1111, 0
        %v1148 = vsel %vm1116, %v1113, 0
        %v1150 = vsel %vm1116, %v1115, 0
        %1152 = vmatprep.subr.mxu0 0.0
        %1153 = vmatpush1.xpose.msra.mxu0 0.0
        %1154 = vmatprep.subr.mxu0 0.0
        %1155 = vmatpush1.xpose.msra.mxu0 0.0
        %1156 = vmatprep.subr.mxu0 0.0
        %1157 = vmatpush1.xpose.msra.mxu0 0.0
        %1158 = vmatprep.subr.mxu0 0.0
        %1159 = vmatpush1.xpose.msra.mxu0 0.0
        %1160 = vmatprep.subr.mxu0 0.0
        %1161 = vmatpush1.xpose.msra.mxu0 0.0
        %1162 = vmatprep.subr.mxu0 0.0
        %1163 = vmatpush1.xpose.msra.mxu0 0.0
        %1164 = vmatprep.subr.mxu0 0.0
        %1165 = vmatpush1.xpose.msra.mxu0 0.0
        %1166 = vmatprep.subr.mxu0 0.0
        %1167 = vmatpush1.xpose.msra.mxu0 0.0
        %1168 = vmatprep.subr.mxu0 0.0
        %1169 = vmatpush1.xpose.msra.mxu0 0.0
        %1170 = vmatprep.subr.mxu0 0.0
        %1171 = vmatpush1.xpose.msra.mxu0 %v1150
        %1172 = vmatprep.subr.mxu0 0.0
        %1173 = vmatpush1.xpose.msra.mxu0 %v1148
        %1174 = vmatprep.subr.mxu0 0.0
        %1175 = vmatpush1.xpose.msra.mxu0 %v1146
        %1176 = vmatprep.subr.mxu0 0.0
        %1177 = vmatpush1.xpose.msra.mxu0 %v1144
        %1178 = vmatprep.subr.mxu0 0.0
        %1179 = vmatpush1.xpose.msra.mxu0 %v1142
        %1180 = vmatprep.subr.mxu0 0.0
        %1181 = vmatpush1.xpose.msra.mxu0 %v1140
        %1182 = vmatprep.subr.mxu0 0.0
        %1183 = vmatpush1.xpose.msra.mxu0 %v1138
        %1184 = vmatprep.subr.mxu0 0.0
        %1185 = vmatpush2.xpose.msra.mxu0 0.0
        %1186 = vmatprep.subr.mxu0 0.0
        %1187 = vmatpush2.xpose.msra.mxu0 0.0
        %1188 = vmatprep.subr.mxu0 0.0
        %1189 = vmatpush2.xpose.msra.mxu0 0.0
        %1190 = vmatprep.subr.mxu0 0.0
        %1191 = vmatpush2.xpose.msra.mxu0 0.0
        %1192 = vmatprep.subr.mxu0 0.0
        %1193 = vmatpush2.xpose.msra.mxu0 0.0
        %1194 = vmatprep.subr.mxu0 0.0
        %1195 = vmatpush2.xpose.msra.mxu0 0.0
        %1196 = vmatprep.subr.mxu0 0.0
        %1197 = vmatpush2.xpose.msra.mxu0 0.0
        %1198 = vmatprep.subr.mxu0 0.0
        %1199 = vmatpush2.xpose.msra.mxu0 0.0
        %1200 = vmatprep.subr.mxu0 0.0
        %1201 = vmatpush2.xpose.msra.mxu0 0.0
        %1202 = vmatprep.subr.mxu0 0.0
        %1203 = vmatpush2.xpose.msra.mxu0 0.0
        %1204 = vmatprep.subr.mxu0 0.0
        %1205 = vmatpush2.xpose.msra.mxu0 0.0
        %1206 = vmatprep.subr.mxu0 0.0
        %1207 = vmatpush2.xpose.msra.mxu0 0.0
        %1208 = vmatprep.subr.mxu0 0.0
        %1209 = vmatpush2.xpose.msra.mxu0 0.0
        %1210 = vmatprep.subr.mxu0 0.0
        %1211 = vmatpush2.xpose.msra.mxu0 0.0
        %1212 = vmatprep.subr.mxu0 0.0
        %1213 = vmatpush2.xpose.msra.mxu0 0.0
        %1214 = vmatprep.subr.mxu0 0.0
        %1215 = vmatpush2.xpose.msra.mxu0 0.0
        %1216 = vmatprep.mubr.f32.mxu0 0.0
        %1217 = vmatmul.mubr.f32.gmra.mxu0 %v1118
        %v1218 = vpop.f32.mrf.mxu0
        %v1219 = vadd.f32 %v944, %v1218
        %v1220 = vpop.f32.mrf.mxu0
        %1221 = vmatprep.mubr.f32.mxu0 0.0
        %1222 = vmatmul.mubr.f32.gmra.mxu0 %v1121
        %v1223 = vpop.f32.mrf.mxu0
        %v1224 = vadd.f32 %v945, %v1223
        %v1225 = vpop.f32.mrf.mxu0
        %1226 = vmatprep.mubr.f32.mxu0 0.0
        %1227 = vmatmul.mubr.f32.gmra.mxu0 %v1124
        %v1228 = vpop.f32.mrf.mxu0
        %v1229 = vadd.f32 %v946, %v1228
        %v1230 = vpop.f32.mrf.mxu0
        %1231 = vmatprep.mubr.f32.mxu0 0.0
        %1232 = vmatmul.mubr.f32.gmra.mxu0 %v1127
        %v1233 = vpop.f32.mrf.mxu0
        %v1234 = vadd.f32 %v947, %v1233
        %v1235 = vpop.f32.mrf.mxu0
        %1236 = vmatprep.mubr.f32.mxu0 0.0
        %1237 = vmatmul.mubr.f32.gmra.mxu0 %v1130
        %v1238 = vpop.f32.mrf.mxu0
        %v1239 = vadd.f32 %v948, %v1238
        %v1240 = vpop.f32.mrf.mxu0
        %1241 = vmatprep.mubr.f32.mxu0 0.0
        %1242 = vmatmul.mubr.f32.gmra.mxu0 %v1133
        %v1243 = vpop.f32.mrf.mxu0
        %v1244 = vadd.f32 %v949, %v1243
        %v1245 = vpop.f32.mrf.mxu0
        %1246 = vmatprep.mubr.f32.mxu0 0.0
        %1247 = vmatmul.mubr.f32.gmra.mxu0 %v1136
        %v1248 = vpop.f32.mrf.mxu0
        %v1249 = vadd.f32 %v950, %v1248
        %v1250 = vpop.f32.mrf.mxu0
        %1251 = vdwg.mxu0
        %vm1252 = vcmask 408576
        %v1253 = vsel %vm1252, %v1219, -inf
        %1254 = vmax.xlane.f32.xlu0 %v1253
        %v1255 = vpop.xlane.xlu0 %1254
        %v1256 = vsel %vm1252, %v1224, -inf
        %1257 = vmax.xlane.f32.xlu0 %v1256
        %v1258 = vpop.xlane.xlu0 %1257
        %v1259 = vsel %vm1252, %v1229, -inf
        %1260 = vmax.xlane.f32.xlu0 %v1259
        %v1261 = vpop.xlane.xlu0 %1260
        %v1262 = vsel %vm1252, %v1234, -inf
        %1263 = vmax.xlane.f32.xlu0 %v1262
        %v1264 = vpop.xlane.xlu0 %1263
        %v1265 = vsel %vm1252, %v1239, -inf
        %1266 = vmax.xlane.f32.xlu0 %v1265
        %v1267 = vpop.xlane.xlu0 %1266
        %v1268 = vsel %vm1252, %v1244, -inf
        %1269 = vmax.xlane.f32.xlu0 %v1268
        %v1270 = vpop.xlane.xlu0 %1269
        %vm1271 = vcmask 402432
        %v1272 = vsel %vm1271, %v1249, -inf
        %1273 = vmax.xlane.f32.xlu0 %v1272
        %v1274 = vpop.xlane.xlu0 %1273
        %v1275 = vsub.f32 %v1219, %v1255
        %v1276 = vsub.f32 %v1224, %v1258
        %v1277 = vsub.f32 %v1229, %v1261
        %v1278 = vsub.f32 %v1234, %v1264
        %v1279 = vsub.f32 %v1239, %v1267
        %v1280 = vsub.f32 %v1244, %v1270
        %v1281 = vsub.f32 %v1249, %v1274
        %v1282 = vmul.f32 %v1275, 1.442695
        %v1283 = vpow.pop %v1282
        %v1284 = vmul.f32 %v1276, 1.442695
        %v1285 = vpow.pop %v1284
        %v1286 = vmul.f32 %v1277, 1.442695
        %v1287 = vpow.pop %v1286
        %v1288 = vmul.f32 %v1278, 1.442695
        %v1289 = vpow.pop %v1288
        %v1290 = vmul.f32 %v1279, 1.442695
        %v1291 = vpow.pop %v1290
        %v1292 = vmul.f32 %v1280, 1.442695
        %v1293 = vpow.pop %v1292
        %v1294 = vmul.f32 %v1281, 1.442695
        %v1295 = vpow.pop %v1294
        %v1296 = vsel %vm1252, %v1283, 0.0
        %1297 = vadd.xlane.f32.xlu0 %v1296
        %v1298 = vpop.xlane.xlu0 %1297
        %v1299 = vsel %vm1252, %v1285, 0.0
        %1300 = vadd.xlane.f32.xlu0 %v1299
        %v1301 = vpop.xlane.xlu0 %1300
        %v1302 = vsel %vm1252, %v1287, 0.0
        %1303 = vadd.xlane.f32.xlu0 %v1302
        %v1304 = vpop.xlane.xlu0 %1303
        %v1305 = vsel %vm1252, %v1289, 0.0
        %1306 = vadd.xlane.f32.xlu0 %v1305
        %v1307 = vpop.xlane.xlu0 %1306
        %v1308 = vsel %vm1252, %v1291, 0.0
        %1309 = vadd.xlane.f32.xlu0 %v1308
        %v1310 = vpop.xlane.xlu0 %1309
        %v1311 = vsel %vm1252, %v1293, 0.0
        %1312 = vadd.xlane.f32.xlu0 %v1311
        %v1313 = vpop.xlane.xlu0 %1312
        %v1314 = vsel %vm1271, %v1295, 0.0
        %1315 = vadd.xlane.f32.xlu0 %v1314
        %v1316 = vpop.xlane.xlu0 %1315
        %v1317 = vrcp.pop %v1298
        %v1318 = vrcp.pop %v1301
        %v1319 = vrcp.pop %v1304
        %v1320 = vrcp.pop %v1307
        %v1321 = vrcp.pop %v1310
        %v1322 = vrcp.pop %v1313
        %v1323 = vrcp.pop %v1316
        %v1324 = vmul.f32 %v1283, %v1317
        %v1325 = vmul.f32 %v1285, %v1318
        %v1326 = vmul.f32 %v1287, %v1319
        %v1327 = vmul.f32 %v1289, %v1320
        %v1328 = vmul.f32 %v1291, %v1321
        %v1329 = vmul.f32 %v1293, %v1322
        %v1330 = vmul.f32 %v1295, %v1323
        %1331 = vrot.lane.b32.xlu0 %v1051, 64
        %v1332 = vpop.permute.xlu0 %1331
        %1333 = vrot.lane.b32.xlu0 %v1056, 64
        %v1334 = vpop.permute.xlu0 %1333
        %1335 = vrot.lane.b32.xlu0 %v1061, 64
        %v1336 = vpop.permute.xlu0 %1335
        %1337 = vrot.lane.b32.xlu0 %v1066, 64
        %v1338 = vpop.permute.xlu0 %1337
        %1339 = vrot.lane.b32.xlu0 %v1071, 64
        %v1340 = vpop.permute.xlu0 %1339
        %1341 = vrot.lane.b32.xlu0 %v1076, 64
        %v1342 = vpop.permute.xlu0 %1341
        %1343 = vrot.lane.b32.xlu0 %v1081, 64
        %v1344 = vpop.permute.xlu0 %1343
        %v1352 = vsel %vm1252, %v1324, 0
        %v1355 = vsel %vm1252, %v1325, 0
        %v1358 = vsel %vm1252, %v1326, 0
        %v1361 = vsel %vm1252, %v1327, 0
        %v1364 = vsel %vm1252, %v1328, 0
        %v1367 = vsel %vm1252, %v1329, 0
        %v1370 = vsel %vm1252, %v1330, 0
        %vm1372 = vcmask 1041408
        %v1373 = vsel %vm1372, %v1344, 0
        %1375 = vmatprep.subr.mxu0 0.0
        %1376 = vmatpush1.msra.mxu0 0.0
        %1377 = vmatprep.subr.mxu0 0.0
        %1378 = vmatpush1.msra.mxu0 0.0
        %1379 = vmatprep.subr.mxu0 0.0
        %1380 = vmatpush1.msra.mxu0 0.0
        %1381 = vmatprep.subr.mxu0 0.0
        %1382 = vmatpush1.msra.mxu0 0.0
        %1383 = vmatprep.subr.mxu0 0.0
        %1384 = vmatpush1.msra.mxu0 0.0
        %1385 = vmatprep.subr.mxu0 0.0
        %1386 = vmatpush1.msra.mxu0 0.0
        %1387 = vmatprep.subr.mxu0 0.0
        %1388 = vmatpush1.msra.mxu0 0.0
        %1389 = vmatprep.subr.mxu0 0.0
        %1390 = vmatpush1.msra.mxu0 0.0
        %1391 = vmatprep.subr.mxu0 0.0
        %1392 = vmatpush1.msra.mxu0 0.0
        %1393 = vmatprep.subr.mxu0 0.0
        %1394 = vmatpush1.msra.mxu0 %v1373
        %1395 = vmatprep.subr.mxu0 0.0
        %1396 = vmatpush1.msra.mxu0 %v1342
        %1397 = vmatprep.subr.mxu0 0.0
        %1398 = vmatpush1.msra.mxu0 %v1340
        %1399 = vmatprep.subr.mxu0 0.0
        %1400 = vmatpush1.msra.mxu0 %v1338
        %1401 = vmatprep.subr.mxu0 0.0
        %1402 = vmatpush1.msra.mxu0 %v1336
        %1403 = vmatprep.subr.mxu0 0.0
        %1404 = vmatpush1.msra.mxu0 %v1334
        %1405 = vmatprep.subr.mxu0 0.0
        %1406 = vmatpush1.msra.mxu0 %v1332
        %1407 = vmatprep.subr.mxu0 0.0
        %1408 = vmatpush2.msra.mxu0 0.0
        %1409 = vmatprep.subr.mxu0 0.0
        %1410 = vmatpush2.msra.mxu0 0.0
        %1411 = vmatprep.subr.mxu0 0.0
        %1412 = vmatpush2.msra.mxu0 0.0
        %1413 = vmatprep.subr.mxu0 0.0
        %1414 = vmatpush2.msra.mxu0 0.0
        %1415 = vmatprep.subr.mxu0 0.0
        %1416 = vmatpush2.msra.mxu0 0.0
        %1417 = vmatprep.subr.mxu0 0.0
        %1418 = vmatpush2.msra.mxu0 0.0
        %1419 = vmatprep.subr.mxu0 0.0
        %1420 = vmatpush2.msra.mxu0 0.0
        %1421 = vmatprep.subr.mxu0 0.0
        %1422 = vmatpush2.msra.mxu0 0.0
        %1423 = vmatprep.subr.mxu0 0.0
        %1424 = vmatpush2.msra.mxu0 0.0
        %1425 = vmatprep.subr.mxu0 0.0
        %1426 = vmatpush2.msra.mxu0 0.0
        %1427 = vmatprep.subr.mxu0 0.0
        %1428 = vmatpush2.msra.mxu0 0.0
        %1429 = vmatprep.subr.mxu0 0.0
        %1430 = vmatpush2.msra.mxu0 0.0
        %1431 = vmatprep.subr.mxu0 0.0
        %1432 = vmatpush2.msra.mxu0 0.0
        %1433 = vmatprep.subr.mxu0 0.0
        %1434 = vmatpush2.msra.mxu0 0.0
        %1435 = vmatprep.subr.mxu0 0.0
        %1436 = vmatpush2.msra.mxu0 0.0
        %1437 = vmatprep.subr.mxu0 0.0
        %1438 = vmatpush2.msra.mxu0 0.0
        %1439 = vmatprep.mubr.f32.mxu0 0.0
        %1440 = vmatmul.mubr.f32.gmra.mxu0 %v1352
        %v1441 = vpop.f32.mrf.mxu0
        %v1442 = vadd.f32 0.0, %v1441
        %v1443 = vpop.f32.mrf.mxu0
        %1444 = vmatprep.mubr.f32.mxu0 0.0
        %1445 = vmatmul.mubr.f32.gmra.mxu0 %v1355
        %v1446 = vpop.f32.mrf.mxu0
        %v1447 = vadd.f32 0.0, %v1446
        %v1448 = vpop.f32.mrf.mxu0
        %1449 = vmatprep.mubr.f32.mxu0 0.0
        %1450 = vmatmul.mubr.f32.gmra.mxu0 %v1358
        %v1451 = vpop.f32.mrf.mxu0
        %v1452 = vadd.f32 0.0, %v1451
        %v1453 = vpop.f32.mrf.mxu0
        %1454 = vmatprep.mubr.f32.mxu0 0.0
        %1455 = vmatmul.mubr.f32.gmra.mxu0 %v1361
        %v1456 = vpop.f32.mrf.mxu0
        %v1457 = vadd.f32 0.0, %v1456
        %v1458 = vpop.f32.mrf.mxu0
        %1459 = vmatprep.mubr.f32.mxu0 0.0
        %1460 = vmatmul.mubr.f32.gmra.mxu0 %v1364
        %v1461 = vpop.f32.mrf.mxu0
        %v1462 = vadd.f32 0.0, %v1461
        %v1463 = vpop.f32.mrf.mxu0
        %1464 = vmatprep.mubr.f32.mxu0 0.0
        %1465 = vmatmul.mubr.f32.gmra.mxu0 %v1367
        %v1466 = vpop.f32.mrf.mxu0
        %v1467 = vadd.f32 0.0, %v1466
        %v1468 = vpop.f32.mrf.mxu0
        %1469 = vmatprep.mubr.f32.mxu0 0.0
        %1470 = vmatmul.mubr.f32.gmra.mxu0 %v1370
        %v1471 = vpop.f32.mrf.mxu0
        %v1472 = vadd.f32 0.0, %v1471
        %v1473 = vpop.f32.mrf.mxu0
        %1474 = vdwg.mxu0
        %1475 = vrot.lane.b32.xlu0 %v1088, 120
        %v1476 = vpop.permute.xlu0 %1475
        %1477 = vrot.lane.b32.xlu0 %v1089, 120
        %v1478 = vpop.permute.xlu0 %1477
        %1479 = vrot.lane.b32.xlu0 %v1090, 120
        %v1480 = vpop.permute.xlu0 %1479
        %1481 = vrot.lane.b32.xlu0 %v1091, 120
        %v1482 = vpop.permute.xlu0 %1481
        %1483 = vrot.lane.b32.xlu0 %v1092, 120
        %v1484 = vpop.permute.xlu0 %1483
        %1485 = vrot.lane.b32.xlu0 %v1093, 120
        %v1486 = vpop.permute.xlu0 %1485
        %1487 = vrot.lane.b32.xlu0 %v1094, 120
        %v1488 = vpop.permute.xlu0 %1487
        %1489 = vrot.lane.b32.xlu0 %v1051, 88
        %v1490 = vpop.permute.xlu0 %1489
        %1491 = vrot.lane.b32.xlu0 %v1056, 88
        %v1492 = vpop.permute.xlu0 %1491
        %1493 = vrot.lane.b32.xlu0 %v1061, 88
        %v1494 = vpop.permute.xlu0 %1493
        %1495 = vrot.lane.b32.xlu0 %v1066, 88
        %v1496 = vpop.permute.xlu0 %1495
        %1497 = vrot.lane.b32.xlu0 %v1071, 88
        %v1498 = vpop.permute.xlu0 %1497
        %1499 = vrot.lane.b32.xlu0 %v1076, 88
        %v1500 = vpop.permute.xlu0 %1499
        %1501 = vrot.lane.b32.xlu0 %v1081, 88
        %v1502 = vpop.permute.xlu0 %1501
        %v1503 = vsel %vm1116, %v1476, 0
        %v1505 = vsel %vm1116, %v1478, 0
        %v1507 = vsel %vm1116, %v1480, 0
        %v1509 = vsel %vm1116, %v1482, 0
        %v1511 = vsel %vm1116, %v1484, 0
        %v1513 = vsel %vm1116, %v1486, 0
        %v1515 = vsel %vm1116, %v1488, 0
        %v1517 = vsel %vm1116, %v1490, 0
        %v1519 = vsel %vm1116, %v1492, 0
        %v1521 = vsel %vm1116, %v1494, 0
        %v1523 = vsel %vm1116, %v1496, 0
        %v1525 = vsel %vm1116, %v1498, 0
        %v1527 = vsel %vm1116, %v1500, 0
        %v1529 = vsel %vm1116, %v1502, 0
        %1531 = vmatprep.subr.mxu0 0.0
        %1532 = vmatpush1.xpose.msra.mxu0 0.0
        %1533 = vmatprep.subr.mxu0 0.0
        %1534 = vmatpush1.xpose.msra.mxu0 0.0
        %1535 = vmatprep.subr.mxu0 0.0
        %1536 = vmatpush1.xpose.msra.mxu0 0.0
        %1537 = vmatprep.subr.mxu0 0.0
        %1538 = vmatpush1.xpose.msra.mxu0 0.0
        %1539 = vmatprep.subr.mxu0 0.0
        %1540 = vmatpush1.xpose.msra.mxu0 0.0
        %1541 = vmatprep.subr.mxu0 0.0
        %1542 = vmatpush1.xpose.msra.mxu0 0.0
        %1543 = vmatprep.subr.mxu0 0.0
        %1544 = vmatpush1.xpose.msra.mxu0 0.0
        %1545 = vmatprep.subr.mxu0 0.0
        %1546 = vmatpush1.xpose.msra.mxu0 0.0
        %1547 = vmatprep.subr.mxu0 0.0
        %1548 = vmatpush1.xpose.msra.mxu0 0.0
        %1549 = vmatprep.subr.mxu0 0.0
        %1550 = vmatpush1.xpose.msra.mxu0 %v1529
        %1551 = vmatprep.subr.mxu0 0.0
        %1552 = vmatpush1.xpose.msra.mxu0 %v1527
        %1553 = vmatprep.subr.mxu0 0.0
        %1554 = vmatpush1.xpose.msra.mxu0 %v1525
        %1555 = vmatprep.subr.mxu0 0.0
        %1556 = vmatpush1.xpose.msra.mxu0 %v1523
        %1557 = vmatprep.subr.mxu0 0.0
        %1558 = vmatpush1.xpose.msra.mxu0 %v1521
        %1559 = vmatprep.subr.mxu0 0.0
        %1560 = vmatpush1.xpose.msra.mxu0 %v1519
        %1561 = vmatprep.subr.mxu0 0.0
        %1562 = vmatpush1.xpose.msra.mxu0 %v1517
        %1563 = vmatprep.subr.mxu0 0.0
        %1564 = vmatpush2.xpose.msra.mxu0 0.0
        %1565 = vmatprep.subr.mxu0 0.0
        %1566 = vmatpush2.xpose.msra.mxu0 0.0
        %1567 = vmatprep.subr.mxu0 0.0
        %1568 = vmatpush2.xpose.msra.mxu0 0.0
        %1569 = vmatprep.subr.mxu0 0.0
        %1570 = vmatpush2.xpose.msra.mxu0 0.0
        %1571 = vmatprep.subr.mxu0 0.0
        %1572 = vmatpush2.xpose.msra.mxu0 0.0
        %1573 = vmatprep.subr.mxu0 0.0
        %1574 = vmatpush2.xpose.msra.mxu0 0.0
        %1575 = vmatprep.subr.mxu0 0.0
        %1576 = vmatpush2.xpose.msra.mxu0 0.0
        %1577 = vmatprep.subr.mxu0 0.0
        %1578 = vmatpush2.xpose.msra.mxu0 0.0
        %1579 = vmatprep.subr.mxu0 0.0
        %1580 = vmatpush2.xpose.msra.mxu0 0.0
        %1581 = vmatprep.subr.mxu0 0.0
        %1582 = vmatpush2.xpose.msra.mxu0 0.0
        %1583 = vmatprep.subr.mxu0 0.0
        %1584 = vmatpush2.xpose.msra.mxu0 0.0
        %1585 = vmatprep.subr.mxu0 0.0
        %1586 = vmatpush2.xpose.msra.mxu0 0.0
        %1587 = vmatprep.subr.mxu0 0.0
        %1588 = vmatpush2.xpose.msra.mxu0 0.0
        %1589 = vmatprep.subr.mxu0 0.0
        %1590 = vmatpush2.xpose.msra.mxu0 0.0
        %1591 = vmatprep.subr.mxu0 0.0
        %1592 = vmatpush2.xpose.msra.mxu0 0.0
        %1593 = vmatprep.subr.mxu0 0.0
        %1594 = vmatpush2.xpose.msra.mxu0 0.0
        %1595 = vmatprep.mubr.f32.mxu0 0.0
        %1596 = vmatmul.mubr.f32.gmra.mxu0 %v1503
        %v1597 = vpop.f32.mrf.mxu0
        %v1598 = vadd.f32 %v944, %v1597
        %v1599 = vpop.f32.mrf.mxu0
        %1600 = vmatprep.mubr.f32.mxu0 0.0
        %1601 = vmatmul.mubr.f32.gmra.mxu0 %v1505
        %v1602 = vpop.f32.mrf.mxu0
        %v1603 = vadd.f32 %v945, %v1602
        %v1604 = vpop.f32.mrf.mxu0
        %1605 = vmatprep.mubr.f32.mxu0 0.0
        %1606 = vmatmul.mubr.f32.gmra.mxu0 %v1507
        %v1607 = vpop.f32.mrf.mxu0
        %v1608 = vadd.f32 %v946, %v1607
        %v1609 = vpop.f32.mrf.mxu0
        %1610 = vmatprep.mubr.f32.mxu0 0.0
        %1611 = vmatmul.mubr.f32.gmra.mxu0 %v1509
        %v1612 = vpop.f32.mrf.mxu0
        %v1613 = vadd.f32 %v947, %v1612
        %v1614 = vpop.f32.mrf.mxu0
        %1615 = vmatprep.mubr.f32.mxu0 0.0
        %1616 = vmatmul.mubr.f32.gmra.mxu0 %v1511
        %v1617 = vpop.f32.mrf.mxu0
        %v1618 = vadd.f32 %v948, %v1617
        %v1619 = vpop.f32.mrf.mxu0
        %1620 = vmatprep.mubr.f32.mxu0 0.0
        %1621 = vmatmul.mubr.f32.gmra.mxu0 %v1513
        %v1622 = vpop.f32.mrf.mxu0
        %v1623 = vadd.f32 %v949, %v1622
        %v1624 = vpop.f32.mrf.mxu0
        %1625 = vmatprep.mubr.f32.mxu0 0.0
        %1626 = vmatmul.mubr.f32.gmra.mxu0 %v1515
        %v1627 = vpop.f32.mrf.mxu0
        %v1628 = vadd.f32 %v950, %v1627
        %v1629 = vpop.f32.mrf.mxu0
        %1630 = vdwg.mxu0
        %v1631 = vsel %vm1252, %v1598, -inf
        %1632 = vmax.xlane.f32.xlu0 %v1631
        %v1633 = vpop.xlane.xlu0 %1632
        %v1634 = vsel %vm1252, %v1603, -inf
        %1635 = vmax.xlane.f32.xlu0 %v1634
        %v1636 = vpop.xlane.xlu0 %1635
        %v1637 = vsel %vm1252, %v1608, -inf
        %1638 = vmax.xlane.f32.xlu0 %v1637
        %v1639 = vpop.xlane.xlu0 %1638
        %v1640 = vsel %vm1252, %v1613, -inf
        %1641 = vmax.xlane.f32.xlu0 %v1640
        %v1642 = vpop.xlane.xlu0 %1641
        %v1643 = vsel %vm1252, %v1618, -inf
        %1644 = vmax.xlane.f32.xlu0 %v1643
        %v1645 = vpop.xlane.xlu0 %1644
        %v1646 = vsel %vm1252, %v1623, -inf
        %1647 = vmax.xlane.f32.xlu0 %v1646
        %v1648 = vpop.xlane.xlu0 %1647
        %v1649 = vsel %vm1271, %v1628, -inf
        %1650 = vmax.xlane.f32.xlu0 %v1649
        %v1651 = vpop.xlane.xlu0 %1650
        %v1652 = vsub.f32 %v1598, %v1633
        %v1653 = vsub.f32 %v1603, %v1636
        %v1654 = vsub.f32 %v1608, %v1639
        %v1655 = vsub.f32 %v1613, %v1642
        %v1656 = vsub.f32 %v1618, %v1645
        %v1657 = vsub.f32 %v1623, %v1648
        %v1658 = vsub.f32 %v1628, %v1651
        %v1659 = vmul.f32 %v1652, 1.442695
        %v1660 = vpow.pop %v1659
        %v1661 = vmul.f32 %v1653, 1.442695
        %v1662 = vpow.pop %v1661
        %v1663 = vmul.f32 %v1654, 1.442695
        %v1664 = vpow.pop %v1663
        %v1665 = vmul.f32 %v1655, 1.442695
        %v1666 = vpow.pop %v1665
        %v1667 = vmul.f32 %v1656, 1.442695
        %v1668 = vpow.pop %v1667
        %v1669 = vmul.f32 %v1657, 1.442695
        %v1670 = vpow.pop %v1669
        %v1671 = vmul.f32 %v1658, 1.442695
        %v1672 = vpow.pop %v1671
        %v1673 = vsel %vm1252, %v1660, 0.0
        %1674 = vadd.xlane.f32.xlu0 %v1673
        %v1675 = vpop.xlane.xlu0 %1674
        %v1676 = vsel %vm1252, %v1662, 0.0
        %1677 = vadd.xlane.f32.xlu0 %v1676
        %v1678 = vpop.xlane.xlu0 %1677
        %v1679 = vsel %vm1252, %v1664, 0.0
        %1680 = vadd.xlane.f32.xlu0 %v1679
        %v1681 = vpop.xlane.xlu0 %1680
        %v1682 = vsel %vm1252, %v1666, 0.0
        %1683 = vadd.xlane.f32.xlu0 %v1682
        %v1684 = vpop.xlane.xlu0 %1683
        %v1685 = vsel %vm1252, %v1668, 0.0
        %1686 = vadd.xlane.f32.xlu0 %v1685
        %v1687 = vpop.xlane.xlu0 %1686
        %v1688 = vsel %vm1252, %v1670, 0.0
        %1689 = vadd.xlane.f32.xlu0 %v1688
        %v1690 = vpop.xlane.xlu0 %1689
        %v1691 = vsel %vm1271, %v1672, 0.0
        %1692 = vadd.xlane.f32.xlu0 %v1691
        %v1693 = vpop.xlane.xlu0 %1692
        %v1694 = vrcp.pop %v1675
        %v1695 = vrcp.pop %v1678
        %v1696 = vrcp.pop %v1681
        %v1697 = vrcp.pop %v1684
        %v1698 = vrcp.pop %v1687
        %v1699 = vrcp.pop %v1690
        %v1700 = vrcp.pop %v1693
        %v1701 = vmul.f32 %v1660, %v1694
        %v1702 = vmul.f32 %v1662, %v1695
        %v1703 = vmul.f32 %v1664, %v1696
        %v1704 = vmul.f32 %v1666, %v1697
        %v1705 = vmul.f32 %v1668, %v1698
        %v1706 = vmul.f32 %v1670, %v1699
        %v1707 = vmul.f32 %v1672, %v1700
        %1708 = vrot.lane.b32.xlu0 %v1051, 56
        %v1709 = vpop.permute.xlu0 %1708
        %1710 = vrot.lane.b32.xlu0 %v1056, 56
        %v1711 = vpop.permute.xlu0 %1710
        %1712 = vrot.lane.b32.xlu0 %v1061, 56
        %v1713 = vpop.permute.xlu0 %1712
        %1714 = vrot.lane.b32.xlu0 %v1066, 56
        %v1715 = vpop.permute.xlu0 %1714
        %1716 = vrot.lane.b32.xlu0 %v1071, 56
        %v1717 = vpop.permute.xlu0 %1716
        %1718 = vrot.lane.b32.xlu0 %v1076, 56
        %v1719 = vpop.permute.xlu0 %1718
        %1720 = vrot.lane.b32.xlu0 %v1081, 56
        %v1721 = vpop.permute.xlu0 %1720
        %v1729 = vsel %vm1252, %v1701, 0
        %v1732 = vsel %vm1252, %v1702, 0
        %v1735 = vsel %vm1252, %v1703, 0
        %v1738 = vsel %vm1252, %v1704, 0
        %v1741 = vsel %vm1252, %v1705, 0
        %v1744 = vsel %vm1252, %v1706, 0
        %v1747 = vsel %vm1252, %v1707, 0
        %v1749 = vsel %vm1372, %v1721, 0
        %1751 = vmatprep.subr.mxu0 0.0
        %1752 = vmatpush1.msra.mxu0 0.0
        %1753 = vmatprep.subr.mxu0 0.0
        %1754 = vmatpush1.msra.mxu0 0.0
        %1755 = vmatprep.subr.mxu0 0.0
        %1756 = vmatpush1.msra.mxu0 0.0
        %1757 = vmatprep.subr.mxu0 0.0
        %1758 = vmatpush1.msra.mxu0 0.0
        %1759 = vmatprep.subr.mxu0 0.0
        %1760 = vmatpush1.msra.mxu0 0.0
        %1761 = vmatprep.subr.mxu0 0.0
        %1762 = vmatpush1.msra.mxu0 0.0
        %1763 = vmatprep.subr.mxu0 0.0
        %1764 = vmatpush1.msra.mxu0 0.0
        %1765 = vmatprep.subr.mxu0 0.0
        %1766 = vmatpush1.msra.mxu0 0.0
        %1767 = vmatprep.subr.mxu0 0.0
        %1768 = vmatpush1.msra.mxu0 0.0
        %1769 = vmatprep.subr.mxu0 0.0
        %1770 = vmatpush1.msra.mxu0 %v1749
        %1771 = vmatprep.subr.mxu0 0.0
        %1772 = vmatpush1.msra.mxu0 %v1719
        %1773 = vmatprep.subr.mxu0 0.0
        %1774 = vmatpush1.msra.mxu0 %v1717
        %1775 = vmatprep.subr.mxu0 0.0
        %1776 = vmatpush1.msra.mxu0 %v1715
        %1777 = vmatprep.subr.mxu0 0.0
        %1778 = vmatpush1.msra.mxu0 %v1713
        %1779 = vmatprep.subr.mxu0 0.0
        %1780 = vmatpush1.msra.mxu0 %v1711
        %1781 = vmatprep.subr.mxu0 0.0
        %1782 = vmatpush1.msra.mxu0 %v1709
        %1783 = vmatprep.subr.mxu0 0.0
        %1784 = vmatpush2.msra.mxu0 0.0
        %1785 = vmatprep.subr.mxu0 0.0
        %1786 = vmatpush2.msra.mxu0 0.0
        %1787 = vmatprep.subr.mxu0 0.0
        %1788 = vmatpush2.msra.mxu0 0.0
        %1789 = vmatprep.subr.mxu0 0.0
        %1790 = vmatpush2.msra.mxu0 0.0
        %1791 = vmatprep.subr.mxu0 0.0
        %1792 = vmatpush2.msra.mxu0 0.0
        %1793 = vmatprep.subr.mxu0 0.0
        %1794 = vmatpush2.msra.mxu0 0.0
        %1795 = vmatprep.subr.mxu0 0.0
        %1796 = vmatpush2.msra.mxu0 0.0
        %1797 = vmatprep.subr.mxu0 0.0
        %1798 = vmatpush2.msra.mxu0 0.0
        %1799 = vmatprep.subr.mxu0 0.0
        %1800 = vmatpush2.msra.mxu0 0.0
        %1801 = vmatprep.subr.mxu0 0.0
        %1802 = vmatpush2.msra.mxu0 0.0
        %1803 = vmatprep.subr.mxu0 0.0
        %1804 = vmatpush2.msra.mxu0 0.0
        %1805 = vmatprep.subr.mxu0 0.0
        %1806 = vmatpush2.msra.mxu0 0.0
        %1807 = vmatprep.subr.mxu0 0.0
        %1808 = vmatpush2.msra.mxu0 0.0
        %1809 = vmatprep.subr.mxu0 0.0
        %1810 = vmatpush2.msra.mxu0 0.0
        %1811 = vmatprep.subr.mxu0 0.0
        %1812 = vmatpush2.msra.mxu0 0.0
        %1813 = vmatprep.subr.mxu0 0.0
        %1814 = vmatpush2.msra.mxu0 0.0
        %1815 = vmatprep.mubr.f32.mxu0 0.0
        %1816 = vmatmul.mubr.f32.gmra.mxu0 %v1729
        %v1817 = vpop.f32.mrf.mxu0
        %v1818 = vadd.f32 0.0, %v1817
        %v1819 = vpop.f32.mrf.mxu0
        %1820 = vmatprep.mubr.f32.mxu0 0.0
        %1821 = vmatmul.mubr.f32.gmra.mxu0 %v1732
        %v1822 = vpop.f32.mrf.mxu0
        %v1823 = vadd.f32 0.0, %v1822
        %v1824 = vpop.f32.mrf.mxu0
        %1825 = vmatprep.mubr.f32.mxu0 0.0
        %1826 = vmatmul.mubr.f32.gmra.mxu0 %v1735
        %v1827 = vpop.f32.mrf.mxu0
        %v1828 = vadd.f32 0.0, %v1827
        %v1829 = vpop.f32.mrf.mxu0
        %1830 = vmatprep.mubr.f32.mxu0 0.0
        %1831 = vmatmul.mubr.f32.gmra.mxu0 %v1738
        %v1832 = vpop.f32.mrf.mxu0
        %v1833 = vadd.f32 0.0, %v1832
        %v1834 = vpop.f32.mrf.mxu0
        %1835 = vmatprep.mubr.f32.mxu0 0.0
        %1836 = vmatmul.mubr.f32.gmra.mxu0 %v1741
        %v1837 = vpop.f32.mrf.mxu0
        %v1838 = vadd.f32 0.0, %v1837
        %v1839 = vpop.f32.mrf.mxu0
        %1840 = vmatprep.mubr.f32.mxu0 0.0
        %1841 = vmatmul.mubr.f32.gmra.mxu0 %v1744
        %v1842 = vpop.f32.mrf.mxu0
        %v1843 = vadd.f32 0.0, %v1842
        %v1844 = vpop.f32.mrf.mxu0
        %1845 = vmatprep.mubr.f32.mxu0 0.0
        %1846 = vmatmul.mubr.f32.gmra.mxu0 %v1747
        %v1847 = vpop.f32.mrf.mxu0
        %v1848 = vadd.f32 0.0, %v1847
        %v1849 = vpop.f32.mrf.mxu0
        %1850 = vdwg.mxu0
        %v1852 = vsel %vm1116, %v1818, 0
        %v1855 = vsel %vm1116, %v1823, 0
        %v1858 = vsel %vm1116, %v1828, 0
        %v1861 = vsel %vm1116, %v1833, 0
        %v1864 = vsel %vm1116, %v1838, 0
        %v1867 = vsel %vm1116, %v1843, 0
        %v1870 = vsel %vm1116, %v1848, 0
        %1872 = vmatprep.subr.mxu0 0.0
        %1873 = vmatpush1.msra.mxu0 0.0
        %1874 = vmatprep.subr.mxu0 0.0
        %1875 = vmatpush1.msra.mxu0 0.0
        %1876 = vmatprep.subr.mxu0 0.0
        %1877 = vmatpush1.msra.mxu0 0.0
        %1878 = vmatprep.subr.mxu0 0.0
        %1879 = vmatpush1.msra.mxu0 0.0
        %1880 = vmatprep.subr.mxu0 0.0
        %1881 = vmatpush1.msra.mxu0 0.0
        %1882 = vmatprep.subr.mxu0 0.0
        %1883 = vmatpush1.msra.mxu0 0.0
        %1884 = vmatprep.subr.mxu0 0.0
        %1885 = vmatpush1.msra.mxu0 0.0
        %1886 = vmatprep.subr.mxu0 0.0
        %1887 = vmatpush1.msra.mxu0 0.0
        %1888 = vmatprep.subr.mxu0 0.0
        %1889 = vmatpush1.msra.mxu0 0.0
        %1890 = vmatprep.subr.mxu0 0.0
        %1891 = vmatpush1.msra.mxu0 0.0
        %1892 = vmatprep.subr.mxu0 0.0
        %1893 = vmatpush1.msra.mxu0 0.0
        %1894 = vmatprep.subr.mxu0 0.0
        %1895 = vmatpush1.msra.mxu0 0.0
        %1896 = vmatprep.subr.mxu0 0.0
        %1897 = vmatpush1.msra.mxu0 0.0
        %1898 = vmatprep.subr.mxu0 0.0
        %1899 = vmatpush1.msra.mxu0 0.0
        %1900 = vmatprep.subr.mxu0 0.0
        %1901 = vmatpush1.msra.mxu0 0.0
        %1902 = vmatprep.subr.mxu0 0.0
        %1903 = vmatpush1.msra.mxu0 %v1085
        %1904 = vmatprep.subr.mxu0 0.0
        %1905 = vmatpush2.msra.mxu0 0.0
        %1906 = vmatprep.subr.mxu0 0.0
        %1907 = vmatpush2.msra.mxu0 0.0
        %1908 = vmatprep.subr.mxu0 0.0
        %1909 = vmatpush2.msra.mxu0 0.0
        %1910 = vmatprep.subr.mxu0 0.0
        %1911 = vmatpush2.msra.mxu0 0.0
        %1912 = vmatprep.subr.mxu0 0.0
        %1913 = vmatpush2.msra.mxu0 0.0
        %1914 = vmatprep.subr.mxu0 0.0
        %1915 = vmatpush2.msra.mxu0 0.0
        %1916 = vmatprep.subr.mxu0 0.0
        %1917 = vmatpush2.msra.mxu0 0.0
        %1918 = vmatprep.subr.mxu0 0.0
        %1919 = vmatpush2.msra.mxu0 0.0
        %1920 = vmatprep.subr.mxu0 0.0
        %1921 = vmatpush2.msra.mxu0 0.0
        %1922 = vmatprep.subr.mxu0 0.0
        %1923 = vmatpush2.msra.mxu0 0.0
        %1924 = vmatprep.subr.mxu0 0.0
        %1925 = vmatpush2.msra.mxu0 0.0
        %1926 = vmatprep.subr.mxu0 0.0
        %1927 = vmatpush2.msra.mxu0 0.0
        %1928 = vmatprep.subr.mxu0 0.0
        %1929 = vmatpush2.msra.mxu0 0.0
        %1930 = vmatprep.subr.mxu0 0.0
        %1931 = vmatpush2.msra.mxu0 0.0
        %1932 = vmatprep.subr.mxu0 0.0
        %1933 = vmatpush2.msra.mxu0 0.0
        %1934 = vmatprep.subr.mxu0 0.0
        %1935 = vmatpush2.msra.mxu0 0.0
        %1936 = vmatprep.mubr.f32.mxu0 0.0
        %1937 = vmatmul.mubr.f32.gmra.mxu0 %v1852
        %v1938 = vpop.f32.mrf.mxu0
        %v1939 = vadd.f32 0.0, %v1938
        %v1940 = vpop.f32.mrf.mxu0
        %1941 = vmatprep.mubr.f32.mxu0 0.0
        %1942 = vmatmul.mubr.f32.gmra.mxu0 %v1855
        %v1943 = vpop.f32.mrf.mxu0
        %v1944 = vadd.f32 0.0, %v1943
        %v1945 = vpop.f32.mrf.mxu0
        %1946 = vmatprep.mubr.f32.mxu0 0.0
        %1947 = vmatmul.mubr.f32.gmra.mxu0 %v1858
        %v1948 = vpop.f32.mrf.mxu0
        %v1949 = vadd.f32 0.0, %v1948
        %v1950 = vpop.f32.mrf.mxu0
        %1951 = vmatprep.mubr.f32.mxu0 0.0
        %1952 = vmatmul.mubr.f32.gmra.mxu0 %v1861
        %v1953 = vpop.f32.mrf.mxu0
        %v1954 = vadd.f32 0.0, %v1953
        %v1955 = vpop.f32.mrf.mxu0
        %1956 = vmatprep.mubr.f32.mxu0 0.0
        %1957 = vmatmul.mubr.f32.gmra.mxu0 %v1864
        %v1958 = vpop.f32.mrf.mxu0
        %v1959 = vadd.f32 0.0, %v1958
        %v1960 = vpop.f32.mrf.mxu0
        %1961 = vmatprep.mubr.f32.mxu0 0.0
        %1962 = vmatmul.mubr.f32.gmra.mxu0 %v1867
        %v1963 = vpop.f32.mrf.mxu0
        %v1964 = vadd.f32 0.0, %v1963
        %v1965 = vpop.f32.mrf.mxu0
        %1966 = vmatprep.mubr.f32.mxu0 0.0
        %1967 = vmatmul.mubr.f32.gmra.mxu0 %v1870
        %v1968 = vpop.f32.mrf.mxu0
        %v1969 = vadd.f32 0.0, %v1968
        %v1970 = vpop.f32.mrf.mxu0
        %1971 = vdwg.mxu0
        %v1973 = vsel %vm1116, %v1442, 0
        %v1976 = vsel %vm1116, %v1447, 0
        %v1979 = vsel %vm1116, %v1452, 0
        %v1982 = vsel %vm1116, %v1457, 0
        %v1985 = vsel %vm1116, %v1462, 0
        %v1988 = vsel %vm1116, %v1467, 0
        %v1991 = vsel %vm1116, %v1472, 0
        %1993 = vmatprep.subr.mxu0 0.0
        %1994 = vmatpush1.msra.mxu0 0.0
        %1995 = vmatprep.subr.mxu0 0.0
        %1996 = vmatpush1.msra.mxu0 0.0
        %1997 = vmatprep.subr.mxu0 0.0
        %1998 = vmatpush1.msra.mxu0 0.0
        %1999 = vmatprep.subr.mxu0 0.0
        %2000 = vmatpush1.msra.mxu0 0.0
        %2001 = vmatprep.subr.mxu0 0.0
        %2002 = vmatpush1.msra.mxu0 0.0
        %2003 = vmatprep.subr.mxu0 0.0
        %2004 = vmatpush1.msra.mxu0 0.0
        %2005 = vmatprep.subr.mxu0 0.0
        %2006 = vmatpush1.msra.mxu0 0.0
        %2007 = vmatprep.subr.mxu0 0.0
        %2008 = vmatpush1.msra.mxu0 0.0
        %2009 = vmatprep.subr.mxu0 0.0
        %2010 = vmatpush1.msra.mxu0 0.0
        %2011 = vmatprep.subr.mxu0 0.0
        %2012 = vmatpush1.msra.mxu0 0.0
        %2013 = vmatprep.subr.mxu0 0.0
        %2014 = vmatpush1.msra.mxu0 0.0
        %2015 = vmatprep.subr.mxu0 0.0
        %2016 = vmatpush1.msra.mxu0 0.0
        %2017 = vmatprep.subr.mxu0 0.0
        %2018 = vmatpush1.msra.mxu0 0.0
        %2019 = vmatprep.subr.mxu0 0.0
        %2020 = vmatpush1.msra.mxu0 0.0
        %2021 = vmatprep.subr.mxu0 0.0
        %2022 = vmatpush1.msra.mxu0 0.0
        %2023 = vmatprep.subr.mxu0 0.0
        %2024 = vmatpush1.msra.mxu0 %v1084
        %2025 = vmatprep.subr.mxu0 0.0
        %2026 = vmatpush2.msra.mxu0 0.0
        %2027 = vmatprep.subr.mxu0 0.0
        %2028 = vmatpush2.msra.mxu0 0.0
        %2029 = vmatprep.subr.mxu0 0.0
        %2030 = vmatpush2.msra.mxu0 0.0
        %2031 = vmatprep.subr.mxu0 0.0
        %2032 = vmatpush2.msra.mxu0 0.0
        %2033 = vmatprep.subr.mxu0 0.0
        %2034 = vmatpush2.msra.mxu0 0.0
        %2035 = vmatprep.subr.mxu0 0.0
        %2036 = vmatpush2.msra.mxu0 0.0
        %2037 = vmatprep.subr.mxu0 0.0
        %2038 = vmatpush2.msra.mxu0 0.0
        %2039 = vmatprep.subr.mxu0 0.0
        %2040 = vmatpush2.msra.mxu0 0.0
        %2041 = vmatprep.subr.mxu0 0.0
        %2042 = vmatpush2.msra.mxu0 0.0
        %2043 = vmatprep.subr.mxu0 0.0
        %2044 = vmatpush2.msra.mxu0 0.0
        %2045 = vmatprep.subr.mxu0 0.0
        %2046 = vmatpush2.msra.mxu0 0.0
        %2047 = vmatprep.subr.mxu0 0.0
        %2048 = vmatpush2.msra.mxu0 0.0
        %2049 = vmatprep.subr.mxu0 0.0
        %2050 = vmatpush2.msra.mxu0 0.0
        %2051 = vmatprep.subr.mxu0 0.0
        %2052 = vmatpush2.msra.mxu0 0.0
        %2053 = vmatprep.subr.mxu0 0.0
        %2054 = vmatpush2.msra.mxu0 0.0
        %2055 = vmatprep.subr.mxu0 0.0
        %2056 = vmatpush2.msra.mxu0 0.0
        %2057 = vmatprep.mubr.f32.mxu0 0.0
        %2058 = vmatmul.mubr.f32.gmra.mxu0 %v1973
        %v2059 = vpop.f32.mrf.mxu0
        %v2060 = vadd.f32 %v1939, %v2059
        %v2061 = vpop.f32.mrf.mxu0
        %2062 = vmatprep.mubr.f32.mxu0 0.0
        %2063 = vmatmul.mubr.f32.gmra.mxu0 %v1976
        %v2064 = vpop.f32.mrf.mxu0
        %v2065 = vadd.f32 %v1944, %v2064
        %v2066 = vpop.f32.mrf.mxu0
        %2067 = vmatprep.mubr.f32.mxu0 0.0
        %2068 = vmatmul.mubr.f32.gmra.mxu0 %v1979
        %v2069 = vpop.f32.mrf.mxu0
        %v2070 = vadd.f32 %v1949, %v2069
        %v2071 = vpop.f32.mrf.mxu0
        %2072 = vmatprep.mubr.f32.mxu0 0.0
        %2073 = vmatmul.mubr.f32.gmra.mxu0 %v1982
        %v2074 = vpop.f32.mrf.mxu0
        %v2075 = vadd.f32 %v1954, %v2074
        %v2076 = vpop.f32.mrf.mxu0
        %2077 = vmatprep.mubr.f32.mxu0 0.0
        %2078 = vmatmul.mubr.f32.gmra.mxu0 %v1985
        %v2079 = vpop.f32.mrf.mxu0
        %v2080 = vadd.f32 %v1959, %v2079
        %v2081 = vpop.f32.mrf.mxu0
        %2082 = vmatprep.mubr.f32.mxu0 0.0
        %2083 = vmatmul.mubr.f32.gmra.mxu0 %v1988
        %v2084 = vpop.f32.mrf.mxu0
        %v2085 = vadd.f32 %v1964, %v2084
        %v2086 = vpop.f32.mrf.mxu0
        %2087 = vmatprep.mubr.f32.mxu0 0.0
        %2088 = vmatmul.mubr.f32.gmra.mxu0 %v1991
        %v2089 = vpop.f32.mrf.mxu0
        %v2090 = vadd.f32 %v1969, %v2089
        %v2091 = vpop.f32.mrf.mxu0
        %2092 = vdwg.mxu0
        %2093 = vrot.lane.b32.xlu0 %v1088, 112
        %v2094 = vpop.permute.xlu0 %2093
        %2095 = vrot.lane.b32.xlu0 %v1089, 112
        %v2096 = vpop.permute.xlu0 %2095
        %2097 = vrot.lane.b32.xlu0 %v1090, 112
        %v2098 = vpop.permute.xlu0 %2097
        %2099 = vrot.lane.b32.xlu0 %v1091, 112
        %v2100 = vpop.permute.xlu0 %2099
        %2101 = vrot.lane.b32.xlu0 %v1092, 112
        %v2102 = vpop.permute.xlu0 %2101
        %2103 = vrot.lane.b32.xlu0 %v1093, 112
        %v2104 = vpop.permute.xlu0 %2103
        %2105 = vrot.lane.b32.xlu0 %v1094, 112
        %v2106 = vpop.permute.xlu0 %2105
        %2107 = vrot.lane.b32.xlu0 %v1051, 80
        %v2108 = vpop.permute.xlu0 %2107
        %2109 = vrot.lane.b32.xlu0 %v1056, 80
        %v2110 = vpop.permute.xlu0 %2109
        %2111 = vrot.lane.b32.xlu0 %v1061, 80
        %v2112 = vpop.permute.xlu0 %2111
        %2113 = vrot.lane.b32.xlu0 %v1066, 80
        %v2114 = vpop.permute.xlu0 %2113
        %2115 = vrot.lane.b32.xlu0 %v1071, 80
        %v2116 = vpop.permute.xlu0 %2115
        %2117 = vrot.lane.b32.xlu0 %v1076, 80
        %v2118 = vpop.permute.xlu0 %2117
        %2119 = vrot.lane.b32.xlu0 %v1081, 80
        %v2120 = vpop.permute.xlu0 %2119
        %v2121 = vsel %vm1116, %v2094, 0
        %v2123 = vsel %vm1116, %v2096, 0
        %v2125 = vsel %vm1116, %v2098, 0
        %v2127 = vsel %vm1116, %v2100, 0
        %v2129 = vsel %vm1116, %v2102, 0
        %v2131 = vsel %vm1116, %v2104, 0
        %v2133 = vsel %vm1116, %v2106, 0
        %v2135 = vsel %vm1116, %v2108, 0
        %v2137 = vsel %vm1116, %v2110, 0
        %v2139 = vsel %vm1116, %v2112, 0
        %v2141 = vsel %vm1116, %v2114, 0
        %v2143 = vsel %vm1116, %v2116, 0
        %v2145 = vsel %vm1116, %v2118, 0
        %v2147 = vsel %vm1116, %v2120, 0
        %2149 = vmatprep.subr.mxu0 0.0
        %2150 = vmatpush1.xpose.msra.mxu0 0.0
        %2151 = vmatprep.subr.mxu0 0.0
        %2152 = vmatpush1.xpose.msra.mxu0 0.0
        %2153 = vmatprep.subr.mxu0 0.0
        %2154 = vmatpush1.xpose.msra.mxu0 0.0
        %2155 = vmatprep.subr.mxu0 0.0
        %2156 = vmatpush1.xpose.msra.mxu0 0.0
        %2157 = vmatprep.subr.mxu0 0.0
        %2158 = vmatpush1.xpose.msra.mxu0 0.0
        %2159 = vmatprep.subr.mxu0 0.0
        %2160 = vmatpush1.xpose.msra.mxu0 0.0
        %2161 = vmatprep.subr.mxu0 0.0
        %2162 = vmatpush1.xpose.msra.mxu0 0.0
        %2163 = vmatprep.subr.mxu0 0.0
        %2164 = vmatpush1.xpose.msra.mxu0 0.0
        %2165 = vmatprep.subr.mxu0 0.0
        %2166 = vmatpush1.xpose.msra.mxu0 0.0
        %2167 = vmatprep.subr.mxu0 0.0
        %2168 = vmatpush1.xpose.msra.mxu0 %v2147
        %2169 = vmatprep.subr.mxu0 0.0
        %2170 = vmatpush1.xpose.msra.mxu0 %v2145
        %2171 = vmatprep.subr.mxu0 0.0
        %2172 = vmatpush1.xpose.msra.mxu0 %v2143
        %2173 = vmatprep.subr.mxu0 0.0
        %2174 = vmatpush1.xpose.msra.mxu0 %v2141
        %2175 = vmatprep.subr.mxu0 0.0
        %2176 = vmatpush1.xpose.msra.mxu0 %v2139
        %2177 = vmatprep.subr.mxu0 0.0
        %2178 = vmatpush1.xpose.msra.mxu0 %v2137
        %2179 = vmatprep.subr.mxu0 0.0
        %2180 = vmatpush1.xpose.msra.mxu0 %v2135
        %2181 = vmatprep.subr.mxu0 0.0
        %2182 = vmatpush2.xpose.msra.mxu0 0.0
        %2183 = vmatprep.subr.mxu0 0.0
        %2184 = vmatpush2.xpose.msra.mxu0 0.0
        %2185 = vmatprep.subr.mxu0 0.0
        %2186 = vmatpush2.xpose.msra.mxu0 0.0
        %2187 = vmatprep.subr.mxu0 0.0
        %2188 = vmatpush2.xpose.msra.mxu0 0.0
        %2189 = vmatprep.subr.mxu0 0.0
        %2190 = vmatpush2.xpose.msra.mxu0 0.0
        %2191 = vmatprep.subr.mxu0 0.0
        %2192 = vmatpush2.xpose.msra.mxu0 0.0
        %2193 = vmatprep.subr.mxu0 0.0
        %2194 = vmatpush2.xpose.msra.mxu0 0.0
        %2195 = vmatprep.subr.mxu0 0.0
        %2196 = vmatpush2.xpose.msra.mxu0 0.0
        %2197 = vmatprep.subr.mxu0 0.0
        %2198 = vmatpush2.xpose.msra.mxu0 0.0
        %2199 = vmatprep.subr.mxu0 0.0
        %2200 = vmatpush2.xpose.msra.mxu0 0.0
        %2201 = vmatprep.subr.mxu0 0.0
        %2202 = vmatpush2.xpose.msra.mxu0 0.0
        %2203 = vmatprep.subr.mxu0 0.0
        %2204 = vmatpush2.xpose.msra.mxu0 0.0
        %2205 = vmatprep.subr.mxu0 0.0
        %2206 = vmatpush2.xpose.msra.mxu0 0.0
        %2207 = vmatprep.subr.mxu0 0.0
        %2208 = vmatpush2.xpose.msra.mxu0 0.0
        %2209 = vmatprep.subr.mxu0 0.0
        %2210 = vmatpush2.xpose.msra.mxu0 0.0
        %2211 = vmatprep.subr.mxu0 0.0
        %2212 = vmatpush2.xpose.msra.mxu0 0.0
        %2213 = vmatprep.mubr.f32.mxu0 0.0
        %2214 = vmatmul.mubr.f32.gmra.mxu0 %v2121
        %v2215 = vpop.f32.mrf.mxu0
        %v2216 = vadd.f32 %v944, %v2215
        %v2217 = vpop.f32.mrf.mxu0
        %2218 = vmatprep.mubr.f32.mxu0 0.0
        %2219 = vmatmul.mubr.f32.gmra.mxu0 %v2123
        %v2220 = vpop.f32.mrf.mxu0
        %v2221 = vadd.f32 %v945, %v2220
        %v2222 = vpop.f32.mrf.mxu0
        %2223 = vmatprep.mubr.f32.mxu0 0.0
        %2224 = vmatmul.mubr.f32.gmra.mxu0 %v2125
        %v2225 = vpop.f32.mrf.mxu0
        %v2226 = vadd.f32 %v946, %v2225
        %v2227 = vpop.f32.mrf.mxu0
        %2228 = vmatprep.mubr.f32.mxu0 0.0
        %2229 = vmatmul.mubr.f32.gmra.mxu0 %v2127
        %v2230 = vpop.f32.mrf.mxu0
        %v2231 = vadd.f32 %v947, %v2230
        %v2232 = vpop.f32.mrf.mxu0
        %2233 = vmatprep.mubr.f32.mxu0 0.0
        %2234 = vmatmul.mubr.f32.gmra.mxu0 %v2129
        %v2235 = vpop.f32.mrf.mxu0
        %v2236 = vadd.f32 %v948, %v2235
        %v2237 = vpop.f32.mrf.mxu0
        %2238 = vmatprep.mubr.f32.mxu0 0.0
        %2239 = vmatmul.mubr.f32.gmra.mxu0 %v2131
        %v2240 = vpop.f32.mrf.mxu0
        %v2241 = vadd.f32 %v949, %v2240
        %v2242 = vpop.f32.mrf.mxu0
        %2243 = vmatprep.mubr.f32.mxu0 0.0
        %2244 = vmatmul.mubr.f32.gmra.mxu0 %v2133
        %v2245 = vpop.f32.mrf.mxu0
        %v2246 = vadd.f32 %v950, %v2245
        %v2247 = vpop.f32.mrf.mxu0
        %2248 = vdwg.mxu0
        %v2249 = vsel %vm1252, %v2216, -inf
        %2250 = vmax.xlane.f32.xlu0 %v2249
        %v2251 = vpop.xlane.xlu0 %2250
        %v2252 = vsel %vm1252, %v2221, -inf
        %2253 = vmax.xlane.f32.xlu0 %v2252
        %v2254 = vpop.xlane.xlu0 %2253
        %v2255 = vsel %vm1252, %v2226, -inf
        %2256 = vmax.xlane.f32.xlu0 %v2255
        %v2257 = vpop.xlane.xlu0 %2256
        %v2258 = vsel %vm1252, %v2231, -inf
        %2259 = vmax.xlane.f32.xlu0 %v2258
        %v2260 = vpop.xlane.xlu0 %2259
        %v2261 = vsel %vm1252, %v2236, -inf
        %2262 = vmax.xlane.f32.xlu0 %v2261
        %v2263 = vpop.xlane.xlu0 %2262
        %v2264 = vsel %vm1252, %v2241, -inf
        %2265 = vmax.xlane.f32.xlu0 %v2264
        %v2266 = vpop.xlane.xlu0 %2265
        %v2267 = vsel %vm1271, %v2246, -inf
        %2268 = vmax.xlane.f32.xlu0 %v2267
        %v2269 = vpop.xlane.xlu0 %2268
        %v2270 = vsub.f32 %v2216, %v2251
        %v2271 = vsub.f32 %v2221, %v2254
        %v2272 = vsub.f32 %v2226, %v2257
        %v2273 = vsub.f32 %v2231, %v2260
        %v2274 = vsub.f32 %v2236, %v2263
        %v2275 = vsub.f32 %v2241, %v2266
        %v2276 = vsub.f32 %v2246, %v2269
        %v2277 = vmul.f32 %v2270, 1.442695
        %v2278 = vpow.pop %v2277
        %v2279 = vmul.f32 %v2271, 1.442695
        %v2280 = vpow.pop %v2279
        %v2281 = vmul.f32 %v2272, 1.442695
        %v2282 = vpow.pop %v2281
        %v2283 = vmul.f32 %v2273, 1.442695
        %v2284 = vpow.pop %v2283
        %v2285 = vmul.f32 %v2274, 1.442695
        %v2286 = vpow.pop %v2285
        %v2287 = vmul.f32 %v2275, 1.442695
        %v2288 = vpow.pop %v2287
        %v2289 = vmul.f32 %v2276, 1.442695
        %v2290 = vpow.pop %v2289
        %v2291 = vsel %vm1252, %v2278, 0.0
        %2292 = vadd.xlane.f32.xlu0 %v2291
        %v2293 = vpop.xlane.xlu0 %2292
        %v2294 = vsel %vm1252, %v2280, 0.0
        %2295 = vadd.xlane.f32.xlu0 %v2294
        %v2296 = vpop.xlane.xlu0 %2295
        %v2297 = vsel %vm1252, %v2282, 0.0
        %2298 = vadd.xlane.f32.xlu0 %v2297
        %v2299 = vpop.xlane.xlu0 %2298
        %v2300 = vsel %vm1252, %v2284, 0.0
        %2301 = vadd.xlane.f32.xlu0 %v2300
        %v2302 = vpop.xlane.xlu0 %2301
        %v2303 = vsel %vm1252, %v2286, 0.0
        %2304 = vadd.xlane.f32.xlu0 %v2303
        %v2305 = vpop.xlane.xlu0 %2304
        %v2306 = vsel %vm1252, %v2288, 0.0
        %2307 = vadd.xlane.f32.xlu0 %v2306
        %v2308 = vpop.xlane.xlu0 %2307
        %v2309 = vsel %vm1271, %v2290, 0.0
        %2310 = vadd.xlane.f32.xlu0 %v2309
        %v2311 = vpop.xlane.xlu0 %2310
        %v2312 = vrcp.pop %v2293
        %v2313 = vrcp.pop %v2296
        %v2314 = vrcp.pop %v2299
        %v2315 = vrcp.pop %v2302
        %v2316 = vrcp.pop %v2305
        %v2317 = vrcp.pop %v2308
        %v2318 = vrcp.pop %v2311
        %v2319 = vmul.f32 %v2278, %v2312
        %v2320 = vmul.f32 %v2280, %v2313
        %v2321 = vmul.f32 %v2282, %v2314
        %v2322 = vmul.f32 %v2284, %v2315
        %v2323 = vmul.f32 %v2286, %v2316
        %v2324 = vmul.f32 %v2288, %v2317
        %v2325 = vmul.f32 %v2290, %v2318
        %2326 = vrot.lane.b32.xlu0 %v1051, 48
        %v2327 = vpop.permute.xlu0 %2326
        %2328 = vrot.lane.b32.xlu0 %v1056, 48
        %v2329 = vpop.permute.xlu0 %2328
        %2330 = vrot.lane.b32.xlu0 %v1061, 48
        %v2331 = vpop.permute.xlu0 %2330
        %2332 = vrot.lane.b32.xlu0 %v1066, 48
        %v2333 = vpop.permute.xlu0 %2332
        %2334 = vrot.lane.b32.xlu0 %v1071, 48
        %v2335 = vpop.permute.xlu0 %2334
        %2336 = vrot.lane.b32.xlu0 %v1076, 48
        %v2337 = vpop.permute.xlu0 %2336
        %2338 = vrot.lane.b32.xlu0 %v1081, 48
        %v2339 = vpop.permute.xlu0 %2338
        %v2347 = vsel %vm1252, %v2319, 0
        %v2350 = vsel %vm1252, %v2320, 0
        %v2353 = vsel %vm1252, %v2321, 0
        %v2356 = vsel %vm1252, %v2322, 0
        %v2359 = vsel %vm1252, %v2323, 0
        %v2362 = vsel %vm1252, %v2324, 0
        %v2365 = vsel %vm1252, %v2325, 0
        %v2367 = vsel %vm1372, %v2339, 0
        %2369 = vmatprep.subr.mxu0 0.0
        %2370 = vmatpush1.msra.mxu0 0.0
        %2371 = vmatprep.subr.mxu0 0.0
        %2372 = vmatpush1.msra.mxu0 0.0
        %2373 = vmatprep.subr.mxu0 0.0
        %2374 = vmatpush1.msra.mxu0 0.0
        %2375 = vmatprep.subr.mxu0 0.0
        %2376 = vmatpush1.msra.mxu0 0.0
        %2377 = vmatprep.subr.mxu0 0.0
        %2378 = vmatpush1.msra.mxu0 0.0
        %2379 = vmatprep.subr.mxu0 0.0
        %2380 = vmatpush1.msra.mxu0 0.0
        %2381 = vmatprep.subr.mxu0 0.0
        %2382 = vmatpush1.msra.mxu0 0.0
        %2383 = vmatprep.subr.mxu0 0.0
        %2384 = vmatpush1.msra.mxu0 0.0
        %2385 = vmatprep.subr.mxu0 0.0
        %2386 = vmatpush1.msra.mxu0 0.0
        %2387 = vmatprep.subr.mxu0 0.0
        %2388 = vmatpush1.msra.mxu0 %v2367
        %2389 = vmatprep.subr.mxu0 0.0
        %2390 = vmatpush1.msra.mxu0 %v2337
        %2391 = vmatprep.subr.mxu0 0.0
        %2392 = vmatpush1.msra.mxu0 %v2335
        %2393 = vmatprep.subr.mxu0 0.0
        %2394 = vmatpush1.msra.mxu0 %v2333
        %2395 = vmatprep.subr.mxu0 0.0
        %2396 = vmatpush1.msra.mxu0 %v2331
        %2397 = vmatprep.subr.mxu0 0.0
        %2398 = vmatpush1.msra.mxu0 %v2329
        %2399 = vmatprep.subr.mxu0 0.0
        %2400 = vmatpush1.msra.mxu0 %v2327
        %2401 = vmatprep.subr.mxu0 0.0
        %2402 = vmatpush2.msra.mxu0 0.0
        %2403 = vmatprep.subr.mxu0 0.0
        %2404 = vmatpush2.msra.mxu0 0.0
        %2405 = vmatprep.subr.mxu0 0.0
        %2406 = vmatpush2.msra.mxu0 0.0
        %2407 = vmatprep.subr.mxu0 0.0
        %2408 = vmatpush2.msra.mxu0 0.0
        %2409 = vmatprep.subr.mxu0 0.0
        %2410 = vmatpush2.msra.mxu0 0.0
        %2411 = vmatprep.subr.mxu0 0.0
        %2412 = vmatpush2.msra.mxu0 0.0
        %2413 = vmatprep.subr.mxu0 0.0
        %2414 = vmatpush2.msra.mxu0 0.0
        %2415 = vmatprep.subr.mxu0 0.0
        %2416 = vmatpush2.msra.mxu0 0.0
        %2417 = vmatprep.subr.mxu0 0.0
        %2418 = vmatpush2.msra.mxu0 0.0
        %2419 = vmatprep.subr.mxu0 0.0
        %2420 = vmatpush2.msra.mxu0 0.0
        %2421 = vmatprep.subr.mxu0 0.0
        %2422 = vmatpush2.msra.mxu0 0.0
        %2423 = vmatprep.subr.mxu0 0.0
        %2424 = vmatpush2.msra.mxu0 0.0
        %2425 = vmatprep.subr.mxu0 0.0
        %2426 = vmatpush2.msra.mxu0 0.0
        %2427 = vmatprep.subr.mxu0 0.0
        %2428 = vmatpush2.msra.mxu0 0.0
        %2429 = vmatprep.subr.mxu0 0.0
        %2430 = vmatpush2.msra.mxu0 0.0
        %2431 = vmatprep.subr.mxu0 0.0
        %2432 = vmatpush2.msra.mxu0 0.0
        %2433 = vmatprep.mubr.f32.mxu0 0.0
        %2434 = vmatmul.mubr.f32.gmra.mxu0 %v2347
        %v2435 = vpop.f32.mrf.mxu0
        %v2436 = vadd.f32 0.0, %v2435
        %v2437 = vpop.f32.mrf.mxu0
        %2438 = vmatprep.mubr.f32.mxu0 0.0
        %2439 = vmatmul.mubr.f32.gmra.mxu0 %v2350
        %v2440 = vpop.f32.mrf.mxu0
        %v2441 = vadd.f32 0.0, %v2440
        %v2442 = vpop.f32.mrf.mxu0
        %2443 = vmatprep.mubr.f32.mxu0 0.0
        %2444 = vmatmul.mubr.f32.gmra.mxu0 %v2353
        %v2445 = vpop.f32.mrf.mxu0
        %v2446 = vadd.f32 0.0, %v2445
        %v2447 = vpop.f32.mrf.mxu0
        %2448 = vmatprep.mubr.f32.mxu0 0.0
        %2449 = vmatmul.mubr.f32.gmra.mxu0 %v2356
        %v2450 = vpop.f32.mrf.mxu0
        %v2451 = vadd.f32 0.0, %v2450
        %v2452 = vpop.f32.mrf.mxu0
        %2453 = vmatprep.mubr.f32.mxu0 0.0
        %2454 = vmatmul.mubr.f32.gmra.mxu0 %v2359
        %v2455 = vpop.f32.mrf.mxu0
        %v2456 = vadd.f32 0.0, %v2455
        %v2457 = vpop.f32.mrf.mxu0
        %2458 = vmatprep.mubr.f32.mxu0 0.0
        %2459 = vmatmul.mubr.f32.gmra.mxu0 %v2362
        %v2460 = vpop.f32.mrf.mxu0
        %v2461 = vadd.f32 0.0, %v2460
        %v2462 = vpop.f32.mrf.mxu0
        %2463 = vmatprep.mubr.f32.mxu0 0.0
        %2464 = vmatmul.mubr.f32.gmra.mxu0 %v2365
        %v2465 = vpop.f32.mrf.mxu0
        %v2466 = vadd.f32 0.0, %v2465
        %v2467 = vpop.f32.mrf.mxu0
        %2468 = vdwg.mxu0
        %v2470 = vsel %vm1116, %v2436, 0
        %v2473 = vsel %vm1116, %v2441, 0
        %v2476 = vsel %vm1116, %v2446, 0
        %v2479 = vsel %vm1116, %v2451, 0
        %v2482 = vsel %vm1116, %v2456, 0
        %v2485 = vsel %vm1116, %v2461, 0
        %v2488 = vsel %vm1116, %v2466, 0
        %2490 = vmatprep.subr.mxu0 0.0
        %2491 = vmatpush1.msra.mxu0 0.0
        %2492 = vmatprep.subr.mxu0 0.0
        %2493 = vmatpush1.msra.mxu0 0.0
        %2494 = vmatprep.subr.mxu0 0.0
        %2495 = vmatpush1.msra.mxu0 0.0
        %2496 = vmatprep.subr.mxu0 0.0
        %2497 = vmatpush1.msra.mxu0 0.0
        %2498 = vmatprep.subr.mxu0 0.0
        %2499 = vmatpush1.msra.mxu0 0.0
        %2500 = vmatprep.subr.mxu0 0.0
        %2501 = vmatpush1.msra.mxu0 0.0
        %2502 = vmatprep.subr.mxu0 0.0
        %2503 = vmatpush1.msra.mxu0 0.0
        %2504 = vmatprep.subr.mxu0 0.0
        %2505 = vmatpush1.msra.mxu0 0.0
        %2506 = vmatprep.subr.mxu0 0.0
        %2507 = vmatpush1.msra.mxu0 0.0
        %2508 = vmatprep.subr.mxu0 0.0
        %2509 = vmatpush1.msra.mxu0 0.0
        %2510 = vmatprep.subr.mxu0 0.0
        %2511 = vmatpush1.msra.mxu0 0.0
        %2512 = vmatprep.subr.mxu0 0.0
        %2513 = vmatpush1.msra.mxu0 0.0
        %2514 = vmatprep.subr.mxu0 0.0
        %2515 = vmatpush1.msra.mxu0 0.0
        %2516 = vmatprep.subr.mxu0 0.0
        %2517 = vmatpush1.msra.mxu0 0.0
        %2518 = vmatprep.subr.mxu0 0.0
        %2519 = vmatpush1.msra.mxu0 0.0
        %2520 = vmatprep.subr.mxu0 0.0
        %2521 = vmatpush1.msra.mxu0 %v1086
        %2522 = vmatprep.subr.mxu0 0.0
        %2523 = vmatpush2.msra.mxu0 0.0
        %2524 = vmatprep.subr.mxu0 0.0
        %2525 = vmatpush2.msra.mxu0 0.0
        %2526 = vmatprep.subr.mxu0 0.0
        %2527 = vmatpush2.msra.mxu0 0.0
        %2528 = vmatprep.subr.mxu0 0.0
        %2529 = vmatpush2.msra.mxu0 0.0
        %2530 = vmatprep.subr.mxu0 0.0
        %2531 = vmatpush2.msra.mxu0 0.0
        %2532 = vmatprep.subr.mxu0 0.0
        %2533 = vmatpush2.msra.mxu0 0.0
        %2534 = vmatprep.subr.mxu0 0.0
        %2535 = vmatpush2.msra.mxu0 0.0
        %2536 = vmatprep.subr.mxu0 0.0
        %2537 = vmatpush2.msra.mxu0 0.0
        %2538 = vmatprep.subr.mxu0 0.0
        %2539 = vmatpush2.msra.mxu0 0.0
        %2540 = vmatprep.subr.mxu0 0.0
        %2541 = vmatpush2.msra.mxu0 0.0
        %2542 = vmatprep.subr.mxu0 0.0
        %2543 = vmatpush2.msra.mxu0 0.0
        %2544 = vmatprep.subr.mxu0 0.0
        %2545 = vmatpush2.msra.mxu0 0.0
        %2546 = vmatprep.subr.mxu0 0.0
        %2547 = vmatpush2.msra.mxu0 0.0
        %2548 = vmatprep.subr.mxu0 0.0
        %2549 = vmatpush2.msra.mxu0 0.0
        %2550 = vmatprep.subr.mxu0 0.0
        %2551 = vmatpush2.msra.mxu0 0.0
        %2552 = vmatprep.subr.mxu0 0.0
        %2553 = vmatpush2.msra.mxu0 0.0
        %2554 = vmatprep.mubr.f32.mxu0 0.0
        %2555 = vmatmul.mubr.f32.gmra.mxu0 %v2470
        %v2556 = vpop.f32.mrf.mxu0
        %v2557 = vadd.f32 0.0, %v2556
        %v2558 = vpop.f32.mrf.mxu0
        %2559 = vmatprep.mubr.f32.mxu0 0.0
        %2560 = vmatmul.mubr.f32.gmra.mxu0 %v2473
        %v2561 = vpop.f32.mrf.mxu0
        %v2562 = vadd.f32 0.0, %v2561
        %v2563 = vpop.f32.mrf.mxu0
        %2564 = vmatprep.mubr.f32.mxu0 0.0
        %2565 = vmatmul.mubr.f32.gmra.mxu0 %v2476
        %v2566 = vpop.f32.mrf.mxu0
        %v2567 = vadd.f32 0.0, %v2566
        %v2568 = vpop.f32.mrf.mxu0
        %2569 = vmatprep.mubr.f32.mxu0 0.0
        %2570 = vmatmul.mubr.f32.gmra.mxu0 %v2479
        %v2571 = vpop.f32.mrf.mxu0
        %v2572 = vadd.f32 0.0, %v2571
        %v2573 = vpop.f32.mrf.mxu0
        %2574 = vmatprep.mubr.f32.mxu0 0.0
        %2575 = vmatmul.mubr.f32.gmra.mxu0 %v2482
        %v2576 = vpop.f32.mrf.mxu0
        %v2577 = vadd.f32 0.0, %v2576
        %v2578 = vpop.f32.mrf.mxu0
        %2579 = vmatprep.mubr.f32.mxu0 0.0
        %2580 = vmatmul.mubr.f32.gmra.mxu0 %v2485
        %v2581 = vpop.f32.mrf.mxu0
        %v2582 = vadd.f32 0.0, %v2581
        %v2583 = vpop.f32.mrf.mxu0
        %2584 = vmatprep.mubr.f32.mxu0 0.0
        %2585 = vmatmul.mubr.f32.gmra.mxu0 %v2488
        %v2586 = vpop.f32.mrf.mxu0
        %v2587 = vadd.f32 0.0, %v2586
        %v2588 = vpop.f32.mrf.mxu0
        %2589 = vdwg.mxu0
        %v2590 = vadd.f32 %v2060, %v2557
        %v2591 = vadd.f32 %v2065, %v2562
        %v2592 = vadd.f32 %v2070, %v2567
        %v2593 = vadd.f32 %v2075, %v2572
        %v2594 = vadd.f32 %v2080, %v2577
        %v2595 = vadd.f32 %v2085, %v2582
        %v2596 = vadd.f32 %v2090, %v2587
        %2597 = vrot.lane.b32.xlu0 %v1088, 104
        %v2598 = vpop.permute.xlu0 %2597
        %2599 = vrot.lane.b32.xlu0 %v1089, 104
        %v2600 = vpop.permute.xlu0 %2599
        %2601 = vrot.lane.b32.xlu0 %v1090, 104
        %v2602 = vpop.permute.xlu0 %2601
        %2603 = vrot.lane.b32.xlu0 %v1091, 104
        %v2604 = vpop.permute.xlu0 %2603
        %2605 = vrot.lane.b32.xlu0 %v1092, 104
        %v2606 = vpop.permute.xlu0 %2605
        %2607 = vrot.lane.b32.xlu0 %v1093, 104
        %v2608 = vpop.permute.xlu0 %2607
        %2609 = vrot.lane.b32.xlu0 %v1094, 104
        %v2610 = vpop.permute.xlu0 %2609
        %2611 = vrot.lane.b32.xlu0 %v1051, 72
        %v2612 = vpop.permute.xlu0 %2611
        %2613 = vrot.lane.b32.xlu0 %v1056, 72
        %v2614 = vpop.permute.xlu0 %2613
        %2615 = vrot.lane.b32.xlu0 %v1061, 72
        %v2616 = vpop.permute.xlu0 %2615
        %2617 = vrot.lane.b32.xlu0 %v1066, 72
        %v2618 = vpop.permute.xlu0 %2617
        %2619 = vrot.lane.b32.xlu0 %v1071, 72
        %v2620 = vpop.permute.xlu0 %2619
        %2621 = vrot.lane.b32.xlu0 %v1076, 72
        %v2622 = vpop.permute.xlu0 %2621
        %2623 = vrot.lane.b32.xlu0 %v1081, 72
        %v2624 = vpop.permute.xlu0 %2623
        %v2625 = vsel %vm1116, %v2598, 0
        %v2627 = vsel %vm1116, %v2600, 0
        %v2629 = vsel %vm1116, %v2602, 0
        %v2631 = vsel %vm1116, %v2604, 0
        %v2633 = vsel %vm1116, %v2606, 0
        %v2635 = vsel %vm1116, %v2608, 0
        %v2637 = vsel %vm1116, %v2610, 0
        %v2639 = vsel %vm1116, %v2612, 0
        %v2641 = vsel %vm1116, %v2614, 0
        %v2643 = vsel %vm1116, %v2616, 0
        %v2645 = vsel %vm1116, %v2618, 0
        %v2647 = vsel %vm1116, %v2620, 0
        %v2649 = vsel %vm1116, %v2622, 0
        %v2651 = vsel %vm1116, %v2624, 0
        %2653 = vmatprep.subr.mxu0 0.0
        %2654 = vmatpush1.xpose.msra.mxu0 0.0
        %2655 = vmatprep.subr.mxu0 0.0
        %2656 = vmatpush1.xpose.msra.mxu0 0.0
        %2657 = vmatprep.subr.mxu0 0.0
        %2658 = vmatpush1.xpose.msra.mxu0 0.0
        %2659 = vmatprep.subr.mxu0 0.0
        %2660 = vmatpush1.xpose.msra.mxu0 0.0
        %2661 = vmatprep.subr.mxu0 0.0
        %2662 = vmatpush1.xpose.msra.mxu0 0.0
        %2663 = vmatprep.subr.mxu0 0.0
        %2664 = vmatpush1.xpose.msra.mxu0 0.0
        %2665 = vmatprep.subr.mxu0 0.0
        %2666 = vmatpush1.xpose.msra.mxu0 0.0
        %2667 = vmatprep.subr.mxu0 0.0
        %2668 = vmatpush1.xpose.msra.mxu0 0.0
        %2669 = vmatprep.subr.mxu0 0.0
        %2670 = vmatpush1.xpose.msra.mxu0 0.0
        %2671 = vmatprep.subr.mxu0 0.0
        %2672 = vmatpush1.xpose.msra.mxu0 %v2651
        %2673 = vmatprep.subr.mxu0 0.0
        %2674 = vmatpush1.xpose.msra.mxu0 %v2649
        %2675 = vmatprep.subr.mxu0 0.0
        %2676 = vmatpush1.xpose.msra.mxu0 %v2647
        %2677 = vmatprep.subr.mxu0 0.0
        %2678 = vmatpush1.xpose.msra.mxu0 %v2645
        %2679 = vmatprep.subr.mxu0 0.0
        %2680 = vmatpush1.xpose.msra.mxu0 %v2643
        %2681 = vmatprep.subr.mxu0 0.0
        %2682 = vmatpush1.xpose.msra.mxu0 %v2641
        %2683 = vmatprep.subr.mxu0 0.0
        %2684 = vmatpush1.xpose.msra.mxu0 %v2639
        %2685 = vmatprep.subr.mxu0 0.0
        %2686 = vmatpush2.xpose.msra.mxu0 0.0
        %2687 = vmatprep.subr.mxu0 0.0
        %2688 = vmatpush2.xpose.msra.mxu0 0.0
        %2689 = vmatprep.subr.mxu0 0.0
        %2690 = vmatpush2.xpose.msra.mxu0 0.0
        %2691 = vmatprep.subr.mxu0 0.0
        %2692 = vmatpush2.xpose.msra.mxu0 0.0
        %2693 = vmatprep.subr.mxu0 0.0
        %2694 = vmatpush2.xpose.msra.mxu0 0.0
        %2695 = vmatprep.subr.mxu0 0.0
        %2696 = vmatpush2.xpose.msra.mxu0 0.0
        %2697 = vmatprep.subr.mxu0 0.0
        %2698 = vmatpush2.xpose.msra.mxu0 0.0
        %2699 = vmatprep.subr.mxu0 0.0
        %2700 = vmatpush2.xpose.msra.mxu0 0.0
        %2701 = vmatprep.subr.mxu0 0.0
        %2702 = vmatpush2.xpose.msra.mxu0 0.0
        %2703 = vmatprep.subr.mxu0 0.0
        %2704 = vmatpush2.xpose.msra.mxu0 0.0
        %2705 = vmatprep.subr.mxu0 0.0
        %2706 = vmatpush2.xpose.msra.mxu0 0.0
        %2707 = vmatprep.subr.mxu0 0.0
        %2708 = vmatpush2.xpose.msra.mxu0 0.0
        %2709 = vmatprep.subr.mxu0 0.0
        %2710 = vmatpush2.xpose.msra.mxu0 0.0
        %2711 = vmatprep.subr.mxu0 0.0
        %2712 = vmatpush2.xpose.msra.mxu0 0.0
        %2713 = vmatprep.subr.mxu0 0.0
        %2714 = vmatpush2.xpose.msra.mxu0 0.0
        %2715 = vmatprep.subr.mxu0 0.0
        %2716 = vmatpush2.xpose.msra.mxu0 0.0
        %2717 = vmatprep.mubr.f32.mxu0 0.0
        %2718 = vmatmul.mubr.f32.gmra.mxu0 %v2625
        %v2719 = vpop.f32.mrf.mxu0
        %v2720 = vadd.f32 %v944, %v2719
        %v2721 = vpop.f32.mrf.mxu0
        %2722 = vmatprep.mubr.f32.mxu0 0.0
        %2723 = vmatmul.mubr.f32.gmra.mxu0 %v2627
        %v2724 = vpop.f32.mrf.mxu0
        %v2725 = vadd.f32 %v945, %v2724
        %v2726 = vpop.f32.mrf.mxu0
        %2727 = vmatprep.mubr.f32.mxu0 0.0
        %2728 = vmatmul.mubr.f32.gmra.mxu0 %v2629
        %v2729 = vpop.f32.mrf.mxu0
        %v2730 = vadd.f32 %v946, %v2729
        %v2731 = vpop.f32.mrf.mxu0
        %2732 = vmatprep.mubr.f32.mxu0 0.0
        %2733 = vmatmul.mubr.f32.gmra.mxu0 %v2631
        %v2734 = vpop.f32.mrf.mxu0
        %v2735 = vadd.f32 %v947, %v2734
        %v2736 = vpop.f32.mrf.mxu0
        %2737 = vmatprep.mubr.f32.mxu0 0.0
        %2738 = vmatmul.mubr.f32.gmra.mxu0 %v2633
        %v2739 = vpop.f32.mrf.mxu0
        %v2740 = vadd.f32 %v948, %v2739
        %v2741 = vpop.f32.mrf.mxu0
        %2742 = vmatprep.mubr.f32.mxu0 0.0
        %2743 = vmatmul.mubr.f32.gmra.mxu0 %v2635
        %v2744 = vpop.f32.mrf.mxu0
        %v2745 = vadd.f32 %v949, %v2744
        %v2746 = vpop.f32.mrf.mxu0
        %2747 = vmatprep.mubr.f32.mxu0 0.0
        %2748 = vmatmul.mubr.f32.gmra.mxu0 %v2637
        %v2749 = vpop.f32.mrf.mxu0
        %v2750 = vadd.f32 %v950, %v2749
        %v2751 = vpop.f32.mrf.mxu0
        %2752 = vdwg.mxu0
        %v2753 = vsel %vm1252, %v2720, -inf
        %2754 = vmax.xlane.f32.xlu0 %v2753
        %v2755 = vpop.xlane.xlu0 %2754
        %v2756 = vsel %vm1252, %v2725, -inf
        %2757 = vmax.xlane.f32.xlu0 %v2756
        %v2758 = vpop.xlane.xlu0 %2757
        %v2759 = vsel %vm1252, %v2730, -inf
        %2760 = vmax.xlane.f32.xlu0 %v2759
        %v2761 = vpop.xlane.xlu0 %2760
        %v2762 = vsel %vm1252, %v2735, -inf
        %2763 = vmax.xlane.f32.xlu0 %v2762
        %v2764 = vpop.xlane.xlu0 %2763
        %v2765 = vsel %vm1252, %v2740, -inf
        %2766 = vmax.xlane.f32.xlu0 %v2765
        %v2767 = vpop.xlane.xlu0 %2766
        %v2768 = vsel %vm1252, %v2745, -inf
        %2769 = vmax.xlane.f32.xlu0 %v2768
        %v2770 = vpop.xlane.xlu0 %2769
        %v2771 = vsel %vm1271, %v2750, -inf
        %2772 = vmax.xlane.f32.xlu0 %v2771
        %v2773 = vpop.xlane.xlu0 %2772
        %v2774 = vsub.f32 %v2720, %v2755
        %v2775 = vsub.f32 %v2725, %v2758
        %v2776 = vsub.f32 %v2730, %v2761
        %v2777 = vsub.f32 %v2735, %v2764
        %v2778 = vsub.f32 %v2740, %v2767
        %v2779 = vsub.f32 %v2745, %v2770
        %v2780 = vsub.f32 %v2750, %v2773
        %v2781 = vmul.f32 %v2774, 1.442695
        %v2782 = vpow.pop %v2781
        %v2783 = vmul.f32 %v2775, 1.442695
        %v2784 = vpow.pop %v2783
        %v2785 = vmul.f32 %v2776, 1.442695
        %v2786 = vpow.pop %v2785
        %v2787 = vmul.f32 %v2777, 1.442695
        %v2788 = vpow.pop %v2787
        %v2789 = vmul.f32 %v2778, 1.442695
        %v2790 = vpow.pop %v2789
        %v2791 = vmul.f32 %v2779, 1.442695
        %v2792 = vpow.pop %v2791
        %v2793 = vmul.f32 %v2780, 1.442695
        %v2794 = vpow.pop %v2793
        %v2795 = vsel %vm1252, %v2782, 0.0
        %2796 = vadd.xlane.f32.xlu0 %v2795
        %v2797 = vpop.xlane.xlu0 %2796
        %v2798 = vsel %vm1252, %v2784, 0.0
        %2799 = vadd.xlane.f32.xlu0 %v2798
        %v2800 = vpop.xlane.xlu0 %2799
        %v2801 = vsel %vm1252, %v2786, 0.0
        %2802 = vadd.xlane.f32.xlu0 %v2801
        %v2803 = vpop.xlane.xlu0 %2802
        %v2804 = vsel %vm1252, %v2788, 0.0
        %2805 = vadd.xlane.f32.xlu0 %v2804
        %v2806 = vpop.xlane.xlu0 %2805
        %v2807 = vsel %vm1252, %v2790, 0.0
        %2808 = vadd.xlane.f32.xlu0 %v2807
        %v2809 = vpop.xlane.xlu0 %2808
        %v2810 = vsel %vm1252, %v2792, 0.0
        %2811 = vadd.xlane.f32.xlu0 %v2810
        %v2812 = vpop.xlane.xlu0 %2811
        %v2813 = vsel %vm1271, %v2794, 0.0
        %2814 = vadd.xlane.f32.xlu0 %v2813
        %v2815 = vpop.xlane.xlu0 %2814
        %v2816 = vrcp.pop %v2797
        %v2817 = vrcp.pop %v2800
        %v2818 = vrcp.pop %v2803
        %v2819 = vrcp.pop %v2806
        %v2820 = vrcp.pop %v2809
        %v2821 = vrcp.pop %v2812
        %v2822 = vrcp.pop %v2815
        %v2823 = vmul.f32 %v2782, %v2816
        %v2824 = vmul.f32 %v2784, %v2817
        %v2825 = vmul.f32 %v2786, %v2818
        %v2826 = vmul.f32 %v2788, %v2819
        %v2827 = vmul.f32 %v2790, %v2820
        %v2828 = vmul.f32 %v2792, %v2821
        %v2829 = vmul.f32 %v2794, %v2822
        %2830 = vrot.lane.b32.xlu0 %v1051, 40
        %v2831 = vpop.permute.xlu0 %2830
        %2832 = vrot.lane.b32.xlu0 %v1056, 40
        %v2833 = vpop.permute.xlu0 %2832
        %2834 = vrot.lane.b32.xlu0 %v1061, 40
        %v2835 = vpop.permute.xlu0 %2834
        %2836 = vrot.lane.b32.xlu0 %v1066, 40
        %v2837 = vpop.permute.xlu0 %2836
        %2838 = vrot.lane.b32.xlu0 %v1071, 40
        %v2839 = vpop.permute.xlu0 %2838
        %2840 = vrot.lane.b32.xlu0 %v1076, 40
        %v2841 = vpop.permute.xlu0 %2840
        %2842 = vrot.lane.b32.xlu0 %v1081, 40
        %v2843 = vpop.permute.xlu0 %2842
        %v2851 = vsel %vm1252, %v2823, 0
        %v2854 = vsel %vm1252, %v2824, 0
        %v2857 = vsel %vm1252, %v2825, 0
        %v2860 = vsel %vm1252, %v2826, 0
        %v2863 = vsel %vm1252, %v2827, 0
        %v2866 = vsel %vm1252, %v2828, 0
        %v2869 = vsel %vm1252, %v2829, 0
        %v2871 = vsel %vm1372, %v2843, 0
        %2873 = vmatprep.subr.mxu0 0.0
        %2874 = vmatpush1.msra.mxu0 0.0
        %2875 = vmatprep.subr.mxu0 0.0
        %2876 = vmatpush1.msra.mxu0 0.0
        %2877 = vmatprep.subr.mxu0 0.0
        %2878 = vmatpush1.msra.mxu0 0.0
        %2879 = vmatprep.subr.mxu0 0.0
        %2880 = vmatpush1.msra.mxu0 0.0
        %2881 = vmatprep.subr.mxu0 0.0
        %2882 = vmatpush1.msra.mxu0 0.0
        %2883 = vmatprep.subr.mxu0 0.0
        %2884 = vmatpush1.msra.mxu0 0.0
        %2885 = vmatprep.subr.mxu0 0.0
        %2886 = vmatpush1.msra.mxu0 0.0
        %2887 = vmatprep.subr.mxu0 0.0
        %2888 = vmatpush1.msra.mxu0 0.0
        %2889 = vmatprep.subr.mxu0 0.0
        %2890 = vmatpush1.msra.mxu0 0.0
        %2891 = vmatprep.subr.mxu0 0.0
        %2892 = vmatpush1.msra.mxu0 %v2871
        %2893 = vmatprep.subr.mxu0 0.0
        %2894 = vmatpush1.msra.mxu0 %v2841
        %2895 = vmatprep.subr.mxu0 0.0
        %2896 = vmatpush1.msra.mxu0 %v2839
        %2897 = vmatprep.subr.mxu0 0.0
        %2898 = vmatpush1.msra.mxu0 %v2837
        %2899 = vmatprep.subr.mxu0 0.0
        %2900 = vmatpush1.msra.mxu0 %v2835
        %2901 = vmatprep.subr.mxu0 0.0
        %2902 = vmatpush1.msra.mxu0 %v2833
        %2903 = vmatprep.subr.mxu0 0.0
        %2904 = vmatpush1.msra.mxu0 %v2831
        %2905 = vmatprep.subr.mxu0 0.0
        %2906 = vmatpush2.msra.mxu0 0.0
        %2907 = vmatprep.subr.mxu0 0.0
        %2908 = vmatpush2.msra.mxu0 0.0
        %2909 = vmatprep.subr.mxu0 0.0
        %2910 = vmatpush2.msra.mxu0 0.0
        %2911 = vmatprep.subr.mxu0 0.0
        %2912 = vmatpush2.msra.mxu0 0.0
        %2913 = vmatprep.subr.mxu0 0.0
        %2914 = vmatpush2.msra.mxu0 0.0
        %2915 = vmatprep.subr.mxu0 0.0
        %2916 = vmatpush2.msra.mxu0 0.0
        %2917 = vmatprep.subr.mxu0 0.0
        %2918 = vmatpush2.msra.mxu0 0.0
        %2919 = vmatprep.subr.mxu0 0.0
        %2920 = vmatpush2.msra.mxu0 0.0
        %2921 = vmatprep.subr.mxu0 0.0
        %2922 = vmatpush2.msra.mxu0 0.0
        %2923 = vmatprep.subr.mxu0 0.0
        %2924 = vmatpush2.msra.mxu0 0.0
        %2925 = vmatprep.subr.mxu0 0.0
        %2926 = vmatpush2.msra.mxu0 0.0
        %2927 = vmatprep.subr.mxu0 0.0
        %2928 = vmatpush2.msra.mxu0 0.0
        %2929 = vmatprep.subr.mxu0 0.0
        %2930 = vmatpush2.msra.mxu0 0.0
        %2931 = vmatprep.subr.mxu0 0.0
        %2932 = vmatpush2.msra.mxu0 0.0
        %2933 = vmatprep.subr.mxu0 0.0
        %2934 = vmatpush2.msra.mxu0 0.0
        %2935 = vmatprep.subr.mxu0 0.0
        %2936 = vmatpush2.msra.mxu0 0.0
        %2937 = vmatprep.mubr.f32.mxu0 0.0
        %2938 = vmatmul.mubr.f32.gmra.mxu0 %v2851
        %v2939 = vpop.f32.mrf.mxu0
        %v2940 = vadd.f32 0.0, %v2939
        %v2941 = vpop.f32.mrf.mxu0
        %2942 = vmatprep.mubr.f32.mxu0 0.0
        %2943 = vmatmul.mubr.f32.gmra.mxu0 %v2854
        %v2944 = vpop.f32.mrf.mxu0
        %v2945 = vadd.f32 0.0, %v2944
        %v2946 = vpop.f32.mrf.mxu0
        %2947 = vmatprep.mubr.f32.mxu0 0.0
        %2948 = vmatmul.mubr.f32.gmra.mxu0 %v2857
        %v2949 = vpop.f32.mrf.mxu0
        %v2950 = vadd.f32 0.0, %v2949
        %v2951 = vpop.f32.mrf.mxu0
        %2952 = vmatprep.mubr.f32.mxu0 0.0
        %2953 = vmatmul.mubr.f32.gmra.mxu0 %v2860
        %v2954 = vpop.f32.mrf.mxu0
        %v2955 = vadd.f32 0.0, %v2954
        %v2956 = vpop.f32.mrf.mxu0
        %2957 = vmatprep.mubr.f32.mxu0 0.0
        %2958 = vmatmul.mubr.f32.gmra.mxu0 %v2863
        %v2959 = vpop.f32.mrf.mxu0
        %v2960 = vadd.f32 0.0, %v2959
        %v2961 = vpop.f32.mrf.mxu0
        %2962 = vmatprep.mubr.f32.mxu0 0.0
        %2963 = vmatmul.mubr.f32.gmra.mxu0 %v2866
        %v2964 = vpop.f32.mrf.mxu0
        %v2965 = vadd.f32 0.0, %v2964
        %v2966 = vpop.f32.mrf.mxu0
        %2967 = vmatprep.mubr.f32.mxu0 0.0
        %2968 = vmatmul.mubr.f32.gmra.mxu0 %v2869
        %v2969 = vpop.f32.mrf.mxu0
        %v2970 = vadd.f32 0.0, %v2969
        %v2971 = vpop.f32.mrf.mxu0
        %2972 = vdwg.mxu0
        %v2974 = vsel %vm1116, %v2940, 0
        %v2977 = vsel %vm1116, %v2945, 0
        %v2980 = vsel %vm1116, %v2950, 0
        %v2983 = vsel %vm1116, %v2955, 0
        %v2986 = vsel %vm1116, %v2960, 0
        %v2989 = vsel %vm1116, %v2965, 0
        %v2992 = vsel %vm1116, %v2970, 0
        %2994 = vmatprep.subr.mxu0 0.0
        %2995 = vmatpush1.msra.mxu0 0.0
        %2996 = vmatprep.subr.mxu0 0.0
        %2997 = vmatpush1.msra.mxu0 0.0
        %2998 = vmatprep.subr.mxu0 0.0
        %2999 = vmatpush1.msra.mxu0 0.0
        %3000 = vmatprep.subr.mxu0 0.0
        %3001 = vmatpush1.msra.mxu0 0.0
        %3002 = vmatprep.subr.mxu0 0.0
        %3003 = vmatpush1.msra.mxu0 0.0
        %3004 = vmatprep.subr.mxu0 0.0
        %3005 = vmatpush1.msra.mxu0 0.0
        %3006 = vmatprep.subr.mxu0 0.0
        %3007 = vmatpush1.msra.mxu0 0.0
        %3008 = vmatprep.subr.mxu0 0.0
        %3009 = vmatpush1.msra.mxu0 0.0
        %3010 = vmatprep.subr.mxu0 0.0
        %3011 = vmatpush1.msra.mxu0 0.0
        %3012 = vmatprep.subr.mxu0 0.0
        %3013 = vmatpush1.msra.mxu0 0.0
        %3014 = vmatprep.subr.mxu0 0.0
        %3015 = vmatpush1.msra.mxu0 0.0
        %3016 = vmatprep.subr.mxu0 0.0
        %3017 = vmatpush1.msra.mxu0 0.0
        %3018 = vmatprep.subr.mxu0 0.0
        %3019 = vmatpush1.msra.mxu0 0.0
        %3020 = vmatprep.subr.mxu0 0.0
        %3021 = vmatpush1.msra.mxu0 0.0
        %3022 = vmatprep.subr.mxu0 0.0
        %3023 = vmatpush1.msra.mxu0 0.0
        %3024 = vmatprep.subr.mxu0 0.0
        %3025 = vmatpush1.msra.mxu0 %v1087
        %3026 = vmatprep.subr.mxu0 0.0
        %3027 = vmatpush2.msra.mxu0 0.0
        %3028 = vmatprep.subr.mxu0 0.0
        %3029 = vmatpush2.msra.mxu0 0.0
        %3030 = vmatprep.subr.mxu0 0.0
        %3031 = vmatpush2.msra.mxu0 0.0
        %3032 = vmatprep.subr.mxu0 0.0
        %3033 = vmatpush2.msra.mxu0 0.0
        %3034 = vmatprep.subr.mxu0 0.0
        %3035 = vmatpush2.msra.mxu0 0.0
        %3036 = vmatprep.subr.mxu0 0.0
        %3037 = vmatpush2.msra.mxu0 0.0
        %3038 = vmatprep.subr.mxu0 0.0
        %3039 = vmatpush2.msra.mxu0 0.0
        %3040 = vmatprep.subr.mxu0 0.0
        %3041 = vmatpush2.msra.mxu0 0.0
        %3042 = vmatprep.subr.mxu0 0.0
        %3043 = vmatpush2.msra.mxu0 0.0
        %3044 = vmatprep.subr.mxu0 0.0
        %3045 = vmatpush2.msra.mxu0 0.0
        %3046 = vmatprep.subr.mxu0 0.0
        %3047 = vmatpush2.msra.mxu0 0.0
        %3048 = vmatprep.subr.mxu0 0.0
        %3049 = vmatpush2.msra.mxu0 0.0
        %3050 = vmatprep.subr.mxu0 0.0
        %3051 = vmatpush2.msra.mxu0 0.0
        %3052 = vmatprep.subr.mxu0 0.0
        %3053 = vmatpush2.msra.mxu0 0.0
        %3054 = vmatprep.subr.mxu0 0.0
        %3055 = vmatpush2.msra.mxu0 0.0
        %3056 = vmatprep.subr.mxu0 0.0
        %3057 = vmatpush2.msra.mxu0 0.0
        %3058 = vmatprep.mubr.f32.mxu0 0.0
        %3059 = vmatmul.mubr.f32.gmra.mxu0 %v2974
        %v3060 = vpop.f32.mrf.mxu0
        %v3061 = vadd.f32 0.0, %v3060
        %v3062 = vpop.f32.mrf.mxu0
        %3063 = vmatprep.mubr.f32.mxu0 0.0
        %3064 = vmatmul.mubr.f32.gmra.mxu0 %v2977
        %v3065 = vpop.f32.mrf.mxu0
        %v3066 = vadd.f32 0.0, %v3065
        %v3067 = vpop.f32.mrf.mxu0
        %3068 = vmatprep.mubr.f32.mxu0 0.0
        %3069 = vmatmul.mubr.f32.gmra.mxu0 %v2980
        %v3070 = vpop.f32.mrf.mxu0
        %v3071 = vadd.f32 0.0, %v3070
        %v3072 = vpop.f32.mrf.mxu0
        %3073 = vmatprep.mubr.f32.mxu0 0.0
        %3074 = vmatmul.mubr.f32.gmra.mxu0 %v2983
        %v3075 = vpop.f32.mrf.mxu0
        %v3076 = vadd.f32 0.0, %v3075
        %v3077 = vpop.f32.mrf.mxu0
        %3078 = vmatprep.mubr.f32.mxu0 0.0
        %3079 = vmatmul.mubr.f32.gmra.mxu0 %v2986
        %v3080 = vpop.f32.mrf.mxu0
        %v3081 = vadd.f32 0.0, %v3080
        %v3082 = vpop.f32.mrf.mxu0
        %3083 = vmatprep.mubr.f32.mxu0 0.0
        %3084 = vmatmul.mubr.f32.gmra.mxu0 %v2989
        %v3085 = vpop.f32.mrf.mxu0
        %v3086 = vadd.f32 0.0, %v3085
        %v3087 = vpop.f32.mrf.mxu0
        %3088 = vmatprep.mubr.f32.mxu0 0.0
        %3089 = vmatmul.mubr.f32.gmra.mxu0 %v2992
        %v3090 = vpop.f32.mrf.mxu0
        %v3091 = vadd.f32 0.0, %v3090
        %v3092 = vpop.f32.mrf.mxu0
        %3093 = vdwg.mxu0
        %v3094 = vadd.f32 %v2590, %v3061
        %v3095 = vadd.f32 %v2591, %v3066
        %v3096 = vadd.f32 %v2592, %v3071
        %v3097 = vadd.f32 %v2593, %v3076
        %v3098 = vadd.f32 %v2594, %v3081
        %v3099 = vadd.f32 %v2595, %v3086
        %v3100 = vadd.f32 %v2596, %v3091
        %v3101 = vld [vmem:[%s734] sm:$0x1]
        %v3103 = vlaneseq
        %v3104 = vshrl.u32 %v3103, 7
        %v3105 = vsub.s32 0, %v3104
        %v3106 = vrot.slane %v3101, %v3105
        %v3108 = vadd.f32 %v3094, %v3106
        %v3109 = vadd.f32 %v3095, %v3106
        %v3110 = vadd.f32 %v3096, %v3106
        %v3111 = vadd.f32 %v3097, %v3106
        %v3112 = vadd.f32 %v3098, %v3106
        %v3113 = vadd.f32 %v3099, %v3106
        %v3114 = vadd.f32 %v3100, %v3106
        %v3115 = vadd.f32 %v937, %v3108
        %v3116 = vadd.f32 %v938, %v3109
        %v3117 = vadd.f32 %v939, %v3110
        %v3118 = vadd.f32 %v940, %v3111
        %v3119 = vadd.f32 %v941, %v3112
        %v3120 = vadd.f32 %v942, %v3113
        %v3121 = vadd.f32 %v943, %v3114
        %v3122 = vld [vmem:[%s737] sm:$0x1]
        %v3123 = vld [vmem:[%s740] sm:$0x1]
        %v3124 = vsel %vm962, %v3115, 0.0
        %3125 = vadd.xlane.f32.xlu0 %v3124
        %v3126 = vpop.xlane.xlu0 %3125
        %v3127 = vsel %vm962, %v3116, 0.0
        %3128 = vadd.xlane.f32.xlu0 %v3127
        %v3129 = vpop.xlane.xlu0 %3128
        %v3130 = vsel %vm962, %v3117, 0.0
        %3131 = vadd.xlane.f32.xlu0 %v3130
        %v3132 = vpop.xlane.xlu0 %3131
        %v3133 = vsel %vm962, %v3118, 0.0
        %3134 = vadd.xlane.f32.xlu0 %v3133
        %v3135 = vpop.xlane.xlu0 %3134
        %v3136 = vsel %vm962, %v3119, 0.0
        %3137 = vadd.xlane.f32.xlu0 %v3136
        %v3138 = vpop.xlane.xlu0 %3137
        %v3139 = vsel %vm962, %v3120, 0.0
        %3140 = vadd.xlane.f32.xlu0 %v3139
        %v3141 = vpop.xlane.xlu0 %3140
        %vm3142 = vcmask 254976
        %v3143 = vsel %vm3142, %v3121, 0.0
        %3144 = vadd.xlane.f32.xlu0 %v3143
        %v3145 = vpop.xlane.xlu0 %3144
        %v3146 = vrcp.pop 32.0
        %v3147 = vmul.f32 %v3126, %v3146
        %v3148 = vmul.f32 %v3129, %v3146
        %v3149 = vmul.f32 %v3132, %v3146
        %v3150 = vmul.f32 %v3135, %v3146
        %v3151 = vmul.f32 %v3138, %v3146
        %v3152 = vmul.f32 %v3141, %v3146
        %v3153 = vmul.f32 %v3145, %v3146
        %v3154 = vsub.f32 %v3115, %v3147
        %v3155 = vsub.f32 %v3116, %v3148
        %v3156 = vsub.f32 %v3117, %v3149
        %v3157 = vsub.f32 %v3118, %v3150
        %v3158 = vsub.f32 %v3119, %v3151
        %v3159 = vsub.f32 %v3120, %v3152
        %v3160 = vsub.f32 %v3121, %v3153
        %v3161 = vmul.f32 %v3154, %v3154
        %v3162 = vmul.f32 %v3155, %v3155
        %v3163 = vmul.f32 %v3156, %v3156
        %v3164 = vmul.f32 %v3157, %v3157
        %v3165 = vmul.f32 %v3158, %v3158
        %v3166 = vmul.f32 %v3159, %v3159
        %v3167 = vmul.f32 %v3160, %v3160
        %v3168 = vsel %vm962, %v3161, 0.0
        %3169 = vadd.xlane.f32.xlu0 %v3168
        %v3170 = vpop.xlane.xlu0 %3169
        %v3171 = vsel %vm962, %v3162, 0.0
        %3172 = vadd.xlane.f32.xlu0 %v3171
        %v3173 = vpop.xlane.xlu0 %3172
        %v3174 = vsel %vm962, %v3163, 0.0
        %3175 = vadd.xlane.f32.xlu0 %v3174
        %v3176 = vpop.xlane.xlu0 %3175
        %v3177 = vsel %vm962, %v3164, 0.0
        %3178 = vadd.xlane.f32.xlu0 %v3177
        %v3179 = vpop.xlane.xlu0 %3178
        %v3180 = vsel %vm962, %v3165, 0.0
        %3181 = vadd.xlane.f32.xlu0 %v3180
        %v3182 = vpop.xlane.xlu0 %3181
        %v3183 = vsel %vm962, %v3166, 0.0
        %3184 = vadd.xlane.f32.xlu0 %v3183
        %v3185 = vpop.xlane.xlu0 %3184
        %v3186 = vsel %vm3142, %v3167, 0.0
        %3187 = vadd.xlane.f32.xlu0 %v3186
        %v3188 = vpop.xlane.xlu0 %3187
        %v3189 = vmul.f32 %v3170, %v3146
        %v3190 = vmul.f32 %v3173, %v3146
        %v3191 = vmul.f32 %v3176, %v3146
        %v3192 = vmul.f32 %v3179, %v3146
        %v3193 = vmul.f32 %v3182, %v3146
        %v3194 = vmul.f32 %v3185, %v3146
        %v3195 = vmul.f32 %v3188, %v3146
        %v3196 = vadd.f32 %v3189, 1e-05
        %v3197 = vadd.f32 %v3190, 1e-05
        %v3198 = vadd.f32 %v3191, 1e-05
        %v3199 = vadd.f32 %v3192, 1e-05
        %v3200 = vadd.f32 %v3193, 1e-05
        %v3201 = vadd.f32 %v3194, 1e-05
        %v3202 = vadd.f32 %v3195, 1e-05
        %v3203 = vrsqrt.pop %v3196
        %v3204 = vrsqrt.pop %v3197
        %v3205 = vrsqrt.pop %v3198
        %v3206 = vrsqrt.pop %v3199
        %v3207 = vrsqrt.pop %v3200
        %v3208 = vrsqrt.pop %v3201
        %v3209 = vrsqrt.pop %v3202
        %v3210 = vmul.f32 %v3154, %v3203
        %v3211 = vmul.f32 %v3155, %v3204
        %v3212 = vmul.f32 %v3156, %v3205
        %v3213 = vmul.f32 %v3157, %v3206
        %v3214 = vmul.f32 %v3158, %v3207
        %v3215 = vmul.f32 %v3159, %v3208
        %v3216 = vmul.f32 %v3160, %v3209
        %v3218 = vlaneseq
        %v3219 = vshrl.u32 %v3218, 7
        %v3220 = vsub.s32 0, %v3219
        %v3221 = vrot.slane %v3122, %v3220
        %v3223 = vmul.f32 %v3210, %v3221
        %v3224 = vmul.f32 %v3211, %v3221
        %v3225 = vmul.f32 %v3212, %v3221
        %v3226 = vmul.f32 %v3213, %v3221
        %v3227 = vmul.f32 %v3214, %v3221
        %v3228 = vmul.f32 %v3215, %v3221
        %v3229 = vmul.f32 %v3216, %v3221
        %v3231 = vlaneseq
        %v3232 = vshrl.u32 %v3231, 7
        %v3233 = vsub.s32 0, %v3232
        %v3234 = vrot.slane %v3123, %v3233
        %v3236 = vadd.f32 %v3223, %v3234
        %v3237 = vadd.f32 %v3224, %v3234
        %v3238 = vadd.f32 %v3225, %v3234
        %v3239 = vadd.f32 %v3226, %v3234
        %v3240 = vadd.f32 %v3227, %v3234
        %v3241 = vadd.f32 %v3228, %v3234
        %v3242 = vadd.f32 %v3229, %v3234
        %v3243 = vld [vmem:[%s745] sm:$0xff]
        %v3244 = vld [vmem:[%s745 + $0x8] sm:$0xff]
        %v3245 = vld [vmem:[%s745 + $0x10] sm:$0xff]
        %v3246 = vld [vmem:[%s745 + $0x18] sm:$0xff]
        %v3247 = vld [vmem:[%s745 + $0x80] sm:$0xff]
        %v3248 = vld [vmem:[%s745 + $0x88] sm:$0xff]
        %v3249 = vld [vmem:[%s745 + $0x90] sm:$0xff]
        %v3250 = vld [vmem:[%s745 + $0x98] sm:$0xff]
        %v3251 = vld [vmem:[%s745 + $0x100] sm:$0xff]
        %v3252 = vld [vmem:[%s745 + $0x108] sm:$0xff]
        %v3253 = vld [vmem:[%s745 + $0x110] sm:$0xff]
        %v3254 = vld [vmem:[%s745 + $0x118] sm:$0xff]
        %v3255 = vld [vmem:[%s745 + $0x180] sm:$0xff]
        %v3256 = vld [vmem:[%s745 + $0x188] sm:$0xff]
        %v3257 = vld [vmem:[%s745 + $0x190] sm:$0xff]
        %v3258 = vld [vmem:[%s745 + $0x198] sm:$0xff]
        %v3259 = vld [vmem:[%s749] sm:$0xf]
        %v3261 = vlaneseq
        %v3262 = vshrl.u32 %v3261, 7
        %v3263 = vsub.s32 0, %v3262
        %v3264 = vrot.slane %v3259, %v3263
        %v3265 = vlaneseq
        %v3266 = vshrl.u32 %v3265, 7
        %v3267 = vsub.s32 1, %v3266
        %v3268 = vrot.slane %v3259, %v3267
        %v3269 = vlaneseq
        %v3270 = vshrl.u32 %v3269, 7
        %v3271 = vsub.s32 2, %v3270
        %v3272 = vrot.slane %v3259, %v3271
        %v3273 = vlaneseq
        %v3274 = vshrl.u32 %v3273, 7
        %v3275 = vsub.s32 3, %v3274
        %v3276 = vrot.slane %v3259, %v3275
        %v3282 = vsel %vm962, %v3236, 0
        %v3285 = vsel %vm962, %v3237, 0
        %v3288 = vsel %vm962, %v3238, 0
        %v3291 = vsel %vm962, %v3239, 0
        %v3294 = vsel %vm962, %v3240, 0
        %v3297 = vsel %vm962, %v3241, 0
        %v3300 = vsel %vm962, %v3242, 0
        %3302 = vmatprep.subr.mxu0 0.0
        %3303 = vmatpush1.msra.mxu0 0.0
        %3304 = vmatprep.subr.mxu0 0.0
        %3305 = vmatpush1.msra.mxu0 0.0
        %3306 = vmatprep.subr.mxu0 0.0
        %3307 = vmatpush1.msra.mxu0 0.0
        %3308 = vmatprep.subr.mxu0 0.0
        %3309 = vmatpush1.msra.mxu0 0.0
        %3310 = vmatprep.subr.mxu0 0.0
        %3311 = vmatpush1.msra.mxu0 0.0
        %3312 = vmatprep.subr.mxu0 0.0
        %3313 = vmatpush1.msra.mxu0 0.0
        %3314 = vmatprep.subr.mxu0 0.0
        %3315 = vmatpush1.msra.mxu0 0.0
        %3316 = vmatprep.subr.mxu0 0.0
        %3317 = vmatpush1.msra.mxu0 0.0
        %3318 = vmatprep.subr.mxu0 0.0
        %3319 = vmatpush1.msra.mxu0 0.0
        %3320 = vmatprep.subr.mxu0 0.0
        %3321 = vmatpush1.msra.mxu0 0.0
        %3322 = vmatprep.subr.mxu0 0.0
        %3323 = vmatpush1.msra.mxu0 0.0
        %3324 = vmatprep.subr.mxu0 0.0
        %3325 = vmatpush1.msra.mxu0 0.0
        %3326 = vmatprep.subr.mxu0 %v3256
        %3327 = vmatpush1.msra.mxu0 %v3255
        %3328 = vmatprep.subr.mxu0 %v3252
        %3329 = vmatpush1.msra.mxu0 %v3251
        %3330 = vmatprep.subr.mxu0 %v3248
        %3331 = vmatpush1.msra.mxu0 %v3247
        %3332 = vmatprep.subr.mxu0 %v3244
        %3333 = vmatpush1.msra.mxu0 %v3243
        %3334 = vmatprep.subr.mxu0 0.0
        %3335 = vmatpush2.msra.mxu0 0.0
        %3336 = vmatprep.subr.mxu0 0.0
        %3337 = vmatpush2.msra.mxu0 0.0
        %3338 = vmatprep.subr.mxu0 0.0
        %3339 = vmatpush2.msra.mxu0 0.0
        %3340 = vmatprep.subr.mxu0 0.0
        %3341 = vmatpush2.msra.mxu0 0.0
        %3342 = vmatprep.subr.mxu0 0.0
        %3343 = vmatpush2.msra.mxu0 0.0
        %3344 = vmatprep.subr.mxu0 0.0
        %3345 = vmatpush2.msra.mxu0 0.0
        %3346 = vmatprep.subr.mxu0 0.0
        %3347 = vmatpush2.msra.mxu0 0.0
        %3348 = vmatprep.subr.mxu0 0.0
        %3349 = vmatpush2.msra.mxu0 0.0
        %3350 = vmatprep.subr.mxu0 0.0
        %3351 = vmatpush2.msra.mxu0 0.0
        %3352 = vmatprep.subr.mxu0 0.0
        %3353 = vmatpush2.msra.mxu0 0.0
        %3354 = vmatprep.subr.mxu0 0.0
        %3355 = vmatpush2.msra.mxu0 0.0
        %3356 = vmatprep.subr.mxu0 0.0
        %3357 = vmatpush2.msra.mxu0 0.0
        %3358 = vmatprep.subr.mxu0 0.0
        %3359 = vmatpush2.msra.mxu0 0.0
        %3360 = vmatprep.subr.mxu0 0.0
        %3361 = vmatpush2.msra.mxu0 0.0
        %3362 = vmatprep.subr.mxu0 0.0
        %3363 = vmatpush2.msra.mxu0 0.0
        %3364 = vmatprep.subr.mxu0 0.0
        %3365 = vmatpush2.msra.mxu0 0.0
        %3366 = vmatprep.mubr.f32.mxu0 0.0
        %3367 = vmatmul.mubr.f32.gmra.mxu0 %v3282
        %v3368 = vpop.f32.mrf.mxu0
        %v3369 = vadd.f32 %v3264, %v3368
        %v3370 = vpop.f32.mrf.mxu0
        %v3371 = vadd.f32 %v3268, %v3370
        %3372 = vmatprep.mubr.f32.mxu0 0.0
        %3373 = vmatmul.mubr.f32.gmra.mxu0 %v3285
        %v3374 = vpop.f32.mrf.mxu0
        %v3375 = vadd.f32 %v3264, %v3374
        %v3376 = vpop.f32.mrf.mxu0
        %v3377 = vadd.f32 %v3268, %v3376
        %3378 = vmatprep.mubr.f32.mxu0 0.0
        %3379 = vmatmul.mubr.f32.gmra.mxu0 %v3288
        %v3380 = vpop.f32.mrf.mxu0
        %v3381 = vadd.f32 %v3264, %v3380
        %v3382 = vpop.f32.mrf.mxu0
        %v3383 = vadd.f32 %v3268, %v3382
        %3384 = vmatprep.mubr.f32.mxu0 0.0
        %3385 = vmatmul.mubr.f32.gmra.mxu0 %v3291
        %v3386 = vpop.f32.mrf.mxu0
        %v3387 = vadd.f32 %v3264, %v3386
        %v3388 = vpop.f32.mrf.mxu0
        %v3389 = vadd.f32 %v3268, %v3388
        %3390 = vmatprep.mubr.f32.mxu0 0.0
        %3391 = vmatmul.mubr.f32.gmra.mxu0 %v3294
        %v3392 = vpop.f32.mrf.mxu0
        %v3393 = vadd.f32 %v3264, %v3392
        %v3394 = vpop.f32.mrf.mxu0
        %v3395 = vadd.f32 %v3268, %v3394
        %3396 = vmatprep.mubr.f32.mxu0 0.0
        %3397 = vmatmul.mubr.f32.gmra.mxu0 %v3297
        %v3398 = vpop.f32.mrf.mxu0
        %v3399 = vadd.f32 %v3264, %v3398
        %v3400 = vpop.f32.mrf.mxu0
        %v3401 = vadd.f32 %v3268, %v3400
        %3402 = vmatprep.mubr.f32.mxu0 0.0
        %3403 = vmatmul.mubr.f32.gmra.mxu0 %v3300
        %v3404 = vpop.f32.mrf.mxu0
        %v3405 = vadd.f32 %v3264, %v3404
        %v3406 = vpop.f32.mrf.mxu0
        %v3407 = vadd.f32 %v3268, %v3406
        %3408 = vdwg.mxu0
        %3409 = vmatprep.subr.mxu0 0.0
        %3410 = vmatpush1.msra.mxu0 0.0
        %3411 = vmatprep.subr.mxu0 0.0
        %3412 = vmatpush1.msra.mxu0 0.0
        %3413 = vmatprep.subr.mxu0 0.0
        %3414 = vmatpush1.msra.mxu0 0.0
        %3415 = vmatprep.subr.mxu0 0.0
        %3416 = vmatpush1.msra.mxu0 0.0
        %3417 = vmatprep.subr.mxu0 0.0
        %3418 = vmatpush1.msra.mxu0 0.0
        %3419 = vmatprep.subr.mxu0 0.0
        %3420 = vmatpush1.msra.mxu0 0.0
        %3421 = vmatprep.subr.mxu0 0.0
        %3422 = vmatpush1.msra.mxu0 0.0
        %3423 = vmatprep.subr.mxu0 0.0
        %3424 = vmatpush1.msra.mxu0 0.0
        %3425 = vmatprep.subr.mxu0 0.0
        %3426 = vmatpush1.msra.mxu0 0.0
        %3427 = vmatprep.subr.mxu0 0.0
        %3428 = vmatpush1.msra.mxu0 0.0
        %3429 = vmatprep.subr.mxu0 0.0
        %3430 = vmatpush1.msra.mxu0 0.0
        %3431 = vmatprep.subr.mxu0 0.0
        %3432 = vmatpush1.msra.mxu0 0.0
        %3433 = vmatprep.subr.mxu0 %v3258
        %3434 = vmatpush1.msra.mxu0 %v3257
        %3435 = vmatprep.subr.mxu0 %v3254
        %3436 = vmatpush1.msra.mxu0 %v3253
        %3437 = vmatprep.subr.mxu0 %v3250
        %3438 = vmatpush1.msra.mxu0 %v3249
        %3439 = vmatprep.subr.mxu0 %v3246
        %3440 = vmatpush1.msra.mxu0 %v3245
        %3441 = vmatprep.subr.mxu0 0.0
        %3442 = vmatpush2.msra.mxu0 0.0
        %3443 = vmatprep.subr.mxu0 0.0
        %3444 = vmatpush2.msra.mxu0 0.0
        %3445 = vmatprep.subr.mxu0 0.0
        %3446 = vmatpush2.msra.mxu0 0.0
        %3447 = vmatprep.subr.mxu0 0.0
        %3448 = vmatpush2.msra.mxu0 0.0
        %3449 = vmatprep.subr.mxu0 0.0
        %3450 = vmatpush2.msra.mxu0 0.0
        %3451 = vmatprep.subr.mxu0 0.0
        %3452 = vmatpush2.msra.mxu0 0.0
        %3453 = vmatprep.subr.mxu0 0.0
        %3454 = vmatpush2.msra.mxu0 0.0
        %3455 = vmatprep.subr.mxu0 0.0
        %3456 = vmatpush2.msra.mxu0 0.0
        %3457 = vmatprep.subr.mxu0 0.0
        %3458 = vmatpush2.msra.mxu0 0.0
        %3459 = vmatprep.subr.mxu0 0.0
        %3460 = vmatpush2.msra.mxu0 0.0
        %3461 = vmatprep.subr.mxu0 0.0
        %3462 = vmatpush2.msra.mxu0 0.0
        %3463 = vmatprep.subr.mxu0 0.0
        %3464 = vmatpush2.msra.mxu0 0.0
        %3465 = vmatprep.subr.mxu0 0.0
        %3466 = vmatpush2.msra.mxu0 0.0
        %3467 = vmatprep.subr.mxu0 0.0
        %3468 = vmatpush2.msra.mxu0 0.0
        %3469 = vmatprep.subr.mxu0 0.0
        %3470 = vmatpush2.msra.mxu0 0.0
        %3471 = vmatprep.subr.mxu0 0.0
        %3472 = vmatpush2.msra.mxu0 0.0
        %3473 = vmatprep.mubr.f32.mxu0 0.0
        %3474 = vmatmul.mubr.f32.gmra.mxu0 %v3282
        %v3475 = vpop.f32.mrf.mxu0
        %v3476 = vadd.f32 %v3272, %v3475
        %v3477 = vpop.f32.mrf.mxu0
        %v3478 = vadd.f32 %v3276, %v3477
        %3479 = vmatprep.mubr.f32.mxu0 0.0
        %3480 = vmatmul.mubr.f32.gmra.mxu0 %v3285
        %v3481 = vpop.f32.mrf.mxu0
        %v3482 = vadd.f32 %v3272, %v3481
        %v3483 = vpop.f32.mrf.mxu0
        %v3484 = vadd.f32 %v3276, %v3483
        %3485 = vmatprep.mubr.f32.mxu0 0.0
        %3486 = vmatmul.mubr.f32.gmra.mxu0 %v3288
        %v3487 = vpop.f32.mrf.mxu0
        %v3488 = vadd.f32 %v3272, %v3487
        %v3489 = vpop.f32.mrf.mxu0
        %v3490 = vadd.f32 %v3276, %v3489
        %3491 = vmatprep.mubr.f32.mxu0 0.0
        %3492 = vmatmul.mubr.f32.gmra.mxu0 %v3291
        %v3493 = vpop.f32.mrf.mxu0
        %v3494 = vadd.f32 %v3272, %v3493
        %v3495 = vpop.f32.mrf.mxu0
        %v3496 = vadd.f32 %v3276, %v3495
        %3497 = vmatprep.mubr.f32.mxu0 0.0
        %3498 = vmatmul.mubr.f32.gmra.mxu0 %v3294
        %v3499 = vpop.f32.mrf.mxu0
        %v3500 = vadd.f32 %v3272, %v3499
        %v3501 = vpop.f32.mrf.mxu0
        %v3502 = vadd.f32 %v3276, %v3501
        %3503 = vmatprep.mubr.f32.mxu0 0.0
        %3504 = vmatmul.mubr.f32.gmra.mxu0 %v3297
        %v3505 = vpop.f32.mrf.mxu0
        %v3506 = vadd.f32 %v3272, %v3505
        %v3507 = vpop.f32.mrf.mxu0
        %v3508 = vadd.f32 %v3276, %v3507
        %3509 = vmatprep.mubr.f32.mxu0 0.0
        %3510 = vmatmul.mubr.f32.gmra.mxu0 %v3300
        %v3511 = vpop.f32.mrf.mxu0
        %v3512 = vadd.f32 %v3272, %v3511
        %v3513 = vpop.f32.mrf.mxu0
        %v3514 = vadd.f32 %v3276, %v3513
        %3515 = vdwg.mxu0
        %v3516 = vmax.f32 %v3369, 0.0
        %v3517 = vmax.f32 %v3371, 0.0
        %v3518 = vmax.f32 %v3476, 0.0
        %v3519 = vmax.f32 %v3478, 0.0
        %v3520 = vmax.f32 %v3375, 0.0
        %v3521 = vmax.f32 %v3377, 0.0
        %v3522 = vmax.f32 %v3482, 0.0
        %v3523 = vmax.f32 %v3484, 0.0
        %v3524 = vmax.f32 %v3381, 0.0
        %v3525 = vmax.f32 %v3383, 0.0
        %v3526 = vmax.f32 %v3488, 0.0
        %v3527 = vmax.f32 %v3490, 0.0
        %v3528 = vmax.f32 %v3387, 0.0
        %v3529 = vmax.f32 %v3389, 0.0
        %v3530 = vmax.f32 %v3494, 0.0
        %v3531 = vmax.f32 %v3496, 0.0
        %v3532 = vmax.f32 %v3393, 0.0
        %v3533 = vmax.f32 %v3395, 0.0
        %v3534 = vmax.f32 %v3500, 0.0
        %v3535 = vmax.f32 %v3502, 0.0
        %v3536 = vmax.f32 %v3399, 0.0
        %v3537 = vmax.f32 %v3401, 0.0
        %v3538 = vmax.f32 %v3506, 0.0
        %v3539 = vmax.f32 %v3508, 0.0
        %v3540 = vmax.f32 %v3405, 0.0
        %v3541 = vmax.f32 %v3407, 0.0
        %v3542 = vmax.f32 %v3512, 0.0
        %v3543 = vmax.f32 %v3514, 0.0
        %v3544 = vld [vmem:[%s754] sm:$0xff]
        %v3545 = vld [vmem:[%s754 + $0x8] sm:$0xff]
        %v3546 = vld [vmem:[%s754 + $0x10] sm:$0xff]
        %v3547 = vld [vmem:[%s754 + $0x18] sm:$0xff]
        %v3548 = vld [vmem:[%s754 + $0x20] sm:$0xff]
        %v3549 = vld [vmem:[%s754 + $0x28] sm:$0xff]
        %v3550 = vld [vmem:[%s754 + $0x30] sm:$0xff]
        %v3551 = vld [vmem:[%s754 + $0x38] sm:$0xff]
        %v3552 = vld [vmem:[%s754 + $0x40] sm:$0xff]
        %v3553 = vld [vmem:[%s754 + $0x48] sm:$0xff]
        %v3554 = vld [vmem:[%s754 + $0x50] sm:$0xff]
        %v3555 = vld [vmem:[%s754 + $0x58] sm:$0xff]
        %v3556 = vld [vmem:[%s754 + $0x60] sm:$0xff]
        %v3557 = vld [vmem:[%s754 + $0x68] sm:$0xff]
        %v3558 = vld [vmem:[%s754 + $0x70] sm:$0xff]
        %v3559 = vld [vmem:[%s754 + $0x78] sm:$0xff]
        %v3560 = vld [vmem:[%s754 + $0x80] sm:$0xff]
        %v3561 = vld [vmem:[%s754 + $0x88] sm:$0xff]
        %v3562 = vld [vmem:[%s754 + $0x90] sm:$0xff]
        %v3563 = vld [vmem:[%s754 + $0x98] sm:$0xff]
        %v3564 = vld [vmem:[%s754 + $0xa0] sm:$0xff]
        %v3565 = vld [vmem:[%s754 + $0xa8] sm:$0xff]
        %v3566 = vld [vmem:[%s754 + $0xb0] sm:$0xff]
        %v3567 = vld [vmem:[%s754 + $0xb8] sm:$0xff]
        %v3568 = vld [vmem:[%s754 + $0xc0] sm:$0xff]
        %v3569 = vld [vmem:[%s754 + $0xc8] sm:$0xff]
        %v3570 = vld [vmem:[%s754 + $0xd0] sm:$0xff]
        %v3571 = vld [vmem:[%s754 + $0xd8] sm:$0xff]
        %v3572 = vld [vmem:[%s754 + $0xe0] sm:$0xff]
        %v3573 = vld [vmem:[%s754 + $0xe8] sm:$0xff]
        %v3574 = vld [vmem:[%s754 + $0xf0] sm:$0xff]
        %v3575 = vld [vmem:[%s754 + $0xf8] sm:$0xff]
        %v3576 = vld [vmem:[%s754 + $0x100] sm:$0xff]
        %v3577 = vld [vmem:[%s754 + $0x108] sm:$0xff]
        %v3578 = vld [vmem:[%s754 + $0x110] sm:$0xff]
        %v3579 = vld [vmem:[%s754 + $0x118] sm:$0xff]
        %v3580 = vld [vmem:[%s754 + $0x120] sm:$0xff]
        %v3581 = vld [vmem:[%s754 + $0x128] sm:$0xff]
        %v3582 = vld [vmem:[%s754 + $0x130] sm:$0xff]
        %v3583 = vld [vmem:[%s754 + $0x138] sm:$0xff]
        %v3584 = vld [vmem:[%s754 + $0x140] sm:$0xff]
        %v3585 = vld [vmem:[%s754 + $0x148] sm:$0xff]
        %v3586 = vld [vmem:[%s754 + $0x150] sm:$0xff]
        %v3587 = vld [vmem:[%s754 + $0x158] sm:$0xff]
        %v3588 = vld [vmem:[%s754 + $0x160] sm:$0xff]
        %v3589 = vld [vmem:[%s754 + $0x168] sm:$0xff]
        %v3590 = vld [vmem:[%s754 + $0x170] sm:$0xff]
        %v3591 = vld [vmem:[%s754 + $0x178] sm:$0xff]
        %v3592 = vld [vmem:[%s754 + $0x180] sm:$0xff]
        %v3593 = vld [vmem:[%s754 + $0x188] sm:$0xff]
        %v3594 = vld [vmem:[%s754 + $0x190] sm:$0xff]
        %v3595 = vld [vmem:[%s754 + $0x198] sm:$0xff]
        %v3596 = vld [vmem:[%s754 + $0x1a0] sm:$0xff]
        %v3597 = vld [vmem:[%s754 + $0x1a8] sm:$0xff]
        %v3598 = vld [vmem:[%s754 + $0x1b0] sm:$0xff]
        %v3599 = vld [vmem:[%s754 + $0x1b8] sm:$0xff]
        %v3600 = vld [vmem:[%s754 + $0x1c0] sm:$0xff]
        %v3601 = vld [vmem:[%s754 + $0x1c8] sm:$0xff]
        %v3602 = vld [vmem:[%s754 + $0x1d0] sm:$0xff]
        %v3603 = vld [vmem:[%s754 + $0x1d8] sm:$0xff]
        %v3604 = vld [vmem:[%s754 + $0x1e0] sm:$0xff]
        %v3605 = vld [vmem:[%s754 + $0x1e8] sm:$0xff]
        %v3606 = vld [vmem:[%s754 + $0x1f0] sm:$0xff]
        %v3607 = vld [vmem:[%s754 + $0x1f8] sm:$0xff]
        %v3608 = vld [vmem:[%s745 + $0x20] sm:$0xff]
        %v3609 = vld [vmem:[%s745 + $0x28] sm:$0xff]
        %v3610 = vld [vmem:[%s745 + $0x30] sm:$0xff]
        %v3611 = vld [vmem:[%s745 + $0x38] sm:$0xff]
        %v3612 = vld [vmem:[%s745 + $0xa0] sm:$0xff]
        %v3613 = vld [vmem:[%s745 + $0xa8] sm:$0xff]
        %v3614 = vld [vmem:[%s745 + $0xb0] sm:$0xff]
        %v3615 = vld [vmem:[%s745 + $0xb8] sm:$0xff]
        %v3616 = vld [vmem:[%s745 + $0x120] sm:$0xff]
        %v3617 = vld [vmem:[%s745 + $0x128] sm:$0xff]
        %v3618 = vld [vmem:[%s745 + $0x130] sm:$0xff]
        %v3619 = vld [vmem:[%s745 + $0x138] sm:$0xff]
        %v3620 = vld [vmem:[%s745 + $0x1a0] sm:$0xff]
        %v3621 = vld [vmem:[%s745 + $0x1a8] sm:$0xff]
        %v3622 = vld [vmem:[%s745 + $0x1b0] sm:$0xff]
        %v3623 = vld [vmem:[%s745 + $0x1b8] sm:$0xff]
        %v3624 = vld [vmem:[%s749 + $0x4] sm:$0xf]
        %v3626 = vlaneseq
        %v3627 = vshrl.u32 %v3626, 7
        %v3628 = vsub.s32 0, %v3627
        %v3629 = vrot.slane %v3624, %v3628
        %v3630 = vlaneseq
        %v3631 = vshrl.u32 %v3630, 7
        %v3632 = vsub.s32 1, %v3631
        %v3633 = vrot.slane %v3624, %v3632
        %v3634 = vlaneseq
        %v3635 = vshrl.u32 %v3634, 7
        %v3636 = vsub.s32 2, %v3635
        %v3637 = vrot.slane %v3624, %v3636
        %v3638 = vlaneseq
        %v3639 = vshrl.u32 %v3638, 7
        %v3640 = vsub.s32 3, %v3639
        %v3641 = vrot.slane %v3624, %v3640
        %3646 = vmatprep.subr.mxu0 0.0
        %3647 = vmatpush1.msra.mxu0 0.0
        %3648 = vmatprep.subr.mxu0 0.0
        %3649 = vmatpush1.msra.mxu0 0.0
        %3650 = vmatprep.subr.mxu0 0.0
        %3651 = vmatpush1.msra.mxu0 0.0
        %3652 = vmatprep.subr.mxu0 0.0
        %3653 = vmatpush1.msra.mxu0 0.0
        %3654 = vmatprep.subr.mxu0 0.0
        %3655 = vmatpush1.msra.mxu0 0.0
        %3656 = vmatprep.subr.mxu0 0.0
        %3657 = vmatpush1.msra.mxu0 0.0
        %3658 = vmatprep.subr.mxu0 0.0
        %3659 = vmatpush1.msra.mxu0 0.0
        %3660 = vmatprep.subr.mxu0 0.0
        %3661 = vmatpush1.msra.mxu0 0.0
        %3662 = vmatprep.subr.mxu0 0.0
        %3663 = vmatpush1.msra.mxu0 0.0
        %3664 = vmatprep.subr.mxu0 0.0
        %3665 = vmatpush1.msra.mxu0 0.0
        %3666 = vmatprep.subr.mxu0 0.0
        %3667 = vmatpush1.msra.mxu0 0.0
        %3668 = vmatprep.subr.mxu0 0.0
        %3669 = vmatpush1.msra.mxu0 0.0
        %3670 = vmatprep.subr.mxu0 %v3621
        %3671 = vmatpush1.msra.mxu0 %v3620
        %3672 = vmatprep.subr.mxu0 %v3617
        %3673 = vmatpush1.msra.mxu0 %v3616
        %3674 = vmatprep.subr.mxu0 %v3613
        %3675 = vmatpush1.msra.mxu0 %v3612
        %3676 = vmatprep.subr.mxu0 %v3609
        %3677 = vmatpush1.msra.mxu0 %v3608
        %3678 = vmatprep.subr.mxu0 0.0
        %3679 = vmatpush2.msra.mxu0 0.0
        %3680 = vmatprep.subr.mxu0 0.0
        %3681 = vmatpush2.msra.mxu0 0.0
        %3682 = vmatprep.subr.mxu0 0.0
        %3683 = vmatpush2.msra.mxu0 0.0
        %3684 = vmatprep.subr.mxu0 0.0
        %3685 = vmatpush2.msra.mxu0 0.0
        %3686 = vmatprep.subr.mxu0 0.0
        %3687 = vmatpush2.msra.mxu0 0.0
        %3688 = vmatprep.subr.mxu0 0.0
        %3689 = vmatpush2.msra.mxu0 0.0
        %3690 = vmatprep.subr.mxu0 0.0
        %3691 = vmatpush2.msra.mxu0 0.0
        %3692 = vmatprep.subr.mxu0 0.0
        %3693 = vmatpush2.msra.mxu0 0.0
        %3694 = vmatprep.subr.mxu0 0.0
        %3695 = vmatpush2.msra.mxu0 0.0
        %3696 = vmatprep.subr.mxu0 0.0
        %3697 = vmatpush2.msra.mxu0 0.0
        %3698 = vmatprep.subr.mxu0 0.0
        %3699 = vmatpush2.msra.mxu0 0.0
        %3700 = vmatprep.subr.mxu0 0.0
        %3701 = vmatpush2.msra.mxu0 0.0
        %3702 = vmatprep.subr.mxu0 0.0
        %3703 = vmatpush2.msra.mxu0 0.0
        %3704 = vmatprep.subr.mxu0 0.0
        %3705 = vmatpush2.msra.mxu0 0.0
        %3706 = vmatprep.subr.mxu0 0.0
        %3707 = vmatpush2.msra.mxu0 0.0
        %3708 = vmatprep.subr.mxu0 0.0
        %3709 = vmatpush2.msra.mxu0 0.0
        %3710 = vmatprep.mubr.f32.mxu0 0.0
        %3711 = vmatmul.mubr.f32.gmra.mxu0 %v3282
        %v3712 = vpop.f32.mrf.mxu0
        %v3713 = vadd.f32 %v3629, %v3712
        %v3714 = vpop.f32.mrf.mxu0
        %v3715 = vadd.f32 %v3633, %v3714
        %3716 = vmatprep.mubr.f32.mxu0 0.0
        %3717 = vmatmul.mubr.f32.gmra.mxu0 %v3285
        %v3718 = vpop.f32.mrf.mxu0
        %v3719 = vadd.f32 %v3629, %v3718
        %v3720 = vpop.f32.mrf.mxu0
        %v3721 = vadd.f32 %v3633, %v3720
        %3722 = vmatprep.mubr.f32.mxu0 0.0
        %3723 = vmatmul.mubr.f32.gmra.mxu0 %v3288
        %v3724 = vpop.f32.mrf.mxu0
        %v3725 = vadd.f32 %v3629, %v3724
        %v3726 = vpop.f32.mrf.mxu0
        %v3727 = vadd.f32 %v3633, %v3726
        %3728 = vmatprep.mubr.f32.mxu0 0.0
        %3729 = vmatmul.mubr.f32.gmra.mxu0 %v3291
        %v3730 = vpop.f32.mrf.mxu0
        %v3731 = vadd.f32 %v3629, %v3730
        %v3732 = vpop.f32.mrf.mxu0
        %v3733 = vadd.f32 %v3633, %v3732
        %3734 = vmatprep.mubr.f32.mxu0 0.0
        %3735 = vmatmul.mubr.f32.gmra.mxu0 %v3294
        %v3736 = vpop.f32.mrf.mxu0
        %v3737 = vadd.f32 %v3629, %v3736
        %v3738 = vpop.f32.mrf.mxu0
        %v3739 = vadd.f32 %v3633, %v3738
        %3740 = vmatprep.mubr.f32.mxu0 0.0
        %3741 = vmatmul.mubr.f32.gmra.mxu0 %v3297
        %v3742 = vpop.f32.mrf.mxu0
        %v3743 = vadd.f32 %v3629, %v3742
        %v3744 = vpop.f32.mrf.mxu0
        %v3745 = vadd.f32 %v3633, %v3744
        %3746 = vmatprep.mubr.f32.mxu0 0.0
        %3747 = vmatmul.mubr.f32.gmra.mxu0 %v3300
        %v3748 = vpop.f32.mrf.mxu0
        %v3749 = vadd.f32 %v3629, %v3748
        %v3750 = vpop.f32.mrf.mxu0
        %v3751 = vadd.f32 %v3633, %v3750
        %3752 = vdwg.mxu0
        %3753 = vmatprep.subr.mxu0 0.0
        %3754 = vmatpush1.msra.mxu0 0.0
        %3755 = vmatprep.subr.mxu0 0.0
        %3756 = vmatpush1.msra.mxu0 0.0
        %3757 = vmatprep.subr.mxu0 0.0
        %3758 = vmatpush1.msra.mxu0 0.0
        %3759 = vmatprep.subr.mxu0 0.0
        %3760 = vmatpush1.msra.mxu0 0.0
        %3761 = vmatprep.subr.mxu0 0.0
        %3762 = vmatpush1.msra.mxu0 0.0
        %3763 = vmatprep.subr.mxu0 0.0
        %3764 = vmatpush1.msra.mxu0 0.0
        %3765 = vmatprep.subr.mxu0 0.0
        %3766 = vmatpush1.msra.mxu0 0.0
        %3767 = vmatprep.subr.mxu0 0.0
        %3768 = vmatpush1.msra.mxu0 0.0
        %3769 = vmatprep.subr.mxu0 0.0
        %3770 = vmatpush1.msra.mxu0 0.0
        %3771 = vmatprep.subr.mxu0 0.0
        %3772 = vmatpush1.msra.mxu0 0.0
        %3773 = vmatprep.subr.mxu0 0.0
        %3774 = vmatpush1.msra.mxu0 0.0
        %3775 = vmatprep.subr.mxu0 0.0
        %3776 = vmatpush1.msra.mxu0 0.0
        %3777 = vmatprep.subr.mxu0 %v3623
        %3778 = vmatpush1.msra.mxu0 %v3622
        %3779 = vmatprep.subr.mxu0 %v3619
        %3780 = vmatpush1.msra.mxu0 %v3618
        %3781 = vmatprep.subr.mxu0 %v3615
        %3782 = vmatpush1.msra.mxu0 %v3614
        %3783 = vmatprep.subr.mxu0 %v3611
        %3784 = vmatpush1.msra.mxu0 %v3610
        %3785 = vmatprep.subr.mxu0 0.0
        %3786 = vmatpush2.msra.mxu0 0.0
        %3787 = vmatprep.subr.mxu0 0.0
        %3788 = vmatpush2.msra.mxu0 0.0
        %3789 = vmatprep.subr.mxu0 0.0
        %3790 = vmatpush2.msra.mxu0 0.0
        %3791 = vmatprep.subr.mxu0 0.0
        %3792 = vmatpush2.msra.mxu0 0.0
        %3793 = vmatprep.subr.mxu0 0.0
        %3794 = vmatpush2.msra.mxu0 0.0
        %3795 = vmatprep.subr.mxu0 0.0
        %3796 = vmatpush2.msra.mxu0 0.0
        %3797 = vmatprep.subr.mxu0 0.0
        %3798 = vmatpush2.msra.mxu0 0.0
        %3799 = vmatprep.subr.mxu0 0.0
        %3800 = vmatpush2.msra.mxu0 0.0
        %3801 = vmatprep.subr.mxu0 0.0
        %3802 = vmatpush2.msra.mxu0 0.0
        %3803 = vmatprep.subr.mxu0 0.0
        %3804 = vmatpush2.msra.mxu0 0.0
        %3805 = vmatprep.subr.mxu0 0.0
        %3806 = vmatpush2.msra.mxu0 0.0
        %3807 = vmatprep.subr.mxu0 0.0
        %3808 = vmatpush2.msra.mxu0 0.0
        %3809 = vmatprep.subr.mxu0 0.0
        %3810 = vmatpush2.msra.mxu0 0.0
        %3811 = vmatprep.subr.mxu0 0.0
        %3812 = vmatpush2.msra.mxu0 0.0
        %3813 = vmatprep.subr.mxu0 0.0
        %3814 = vmatpush2.msra.mxu0 0.0
        %3815 = vmatprep.subr.mxu0 0.0
        %3816 = vmatpush2.msra.mxu0 0.0
        %3817 = vmatprep.mubr.f32.mxu0 0.0
        %3818 = vmatmul.mubr.f32.gmra.mxu0 %v3282
        %v3819 = vpop.f32.mrf.mxu0
        %v3820 = vadd.f32 %v3637, %v3819
        %v3821 = vpop.f32.mrf.mxu0
        %v3822 = vadd.f32 %v3641, %v3821
        %3823 = vmatprep.mubr.f32.mxu0 0.0
        %3824 = vmatmul.mubr.f32.gmra.mxu0 %v3285
        %v3825 = vpop.f32.mrf.mxu0
        %v3826 = vadd.f32 %v3637, %v3825
        %v3827 = vpop.f32.mrf.mxu0
        %v3828 = vadd.f32 %v3641, %v3827
        %3829 = vmatprep.mubr.f32.mxu0 0.0
        %3830 = vmatmul.mubr.f32.gmra.mxu0 %v3288
        %v3831 = vpop.f32.mrf.mxu0
        %v3832 = vadd.f32 %v3637, %v3831
        %v3833 = vpop.f32.mrf.mxu0
        %v3834 = vadd.f32 %v3641, %v3833
        %3835 = vmatprep.mubr.f32.mxu0 0.0
        %3836 = vmatmul.mubr.f32.gmra.mxu0 %v3291
        %v3837 = vpop.f32.mrf.mxu0
        %v3838 = vadd.f32 %v3637, %v3837
        %v3839 = vpop.f32.mrf.mxu0
        %v3840 = vadd.f32 %v3641, %v3839
        %3841 = vmatprep.mubr.f32.mxu0 0.0
        %3842 = vmatmul.mubr.f32.gmra.mxu0 %v3294
        %v3843 = vpop.f32.mrf.mxu0
        %v3844 = vadd.f32 %v3637, %v3843
        %v3845 = vpop.f32.mrf.mxu0
        %v3846 = vadd.f32 %v3641, %v3845
        %3847 = vmatprep.mubr.f32.mxu0 0.0
        %3848 = vmatmul.mubr.f32.gmra.mxu0 %v3297
        %v3849 = vpop.f32.mrf.mxu0
        %v3850 = vadd.f32 %v3637, %v3849
        %v3851 = vpop.f32.mrf.mxu0
        %v3852 = vadd.f32 %v3641, %v3851
        %3853 = vmatprep.mubr.f32.mxu0 0.0
        %3854 = vmatmul.mubr.f32.gmra.mxu0 %v3300
        %v3855 = vpop.f32.mrf.mxu0
        %v3856 = vadd.f32 %v3637, %v3855
        %v3857 = vpop.f32.mrf.mxu0
        %v3858 = vadd.f32 %v3641, %v3857
        %3859 = vdwg.mxu0
        %v3860 = vmax.f32 %v3713, 0.0
        %v3861 = vmax.f32 %v3715, 0.0
        %v3862 = vmax.f32 %v3820, 0.0
        %v3863 = vmax.f32 %v3822, 0.0
        %v3864 = vmax.f32 %v3719, 0.0
        %v3865 = vmax.f32 %v3721, 0.0
        %v3866 = vmax.f32 %v3826, 0.0
        %v3867 = vmax.f32 %v3828, 0.0
        %v3868 = vmax.f32 %v3725, 0.0
        %v3869 = vmax.f32 %v3727, 0.0
        %v3870 = vmax.f32 %v3832, 0.0
        %v3871 = vmax.f32 %v3834, 0.0
        %v3872 = vmax.f32 %v3731, 0.0
        %v3873 = vmax.f32 %v3733, 0.0
        %v3874 = vmax.f32 %v3838, 0.0
        %v3875 = vmax.f32 %v3840, 0.0
        %v3876 = vmax.f32 %v3737, 0.0
        %v3877 = vmax.f32 %v3739, 0.0
        %v3878 = vmax.f32 %v3844, 0.0
        %v3879 = vmax.f32 %v3846, 0.0
        %v3880 = vmax.f32 %v3743, 0.0
        %v3881 = vmax.f32 %v3745, 0.0
        %v3882 = vmax.f32 %v3850, 0.0
        %v3883 = vmax.f32 %v3852, 0.0
        %v3884 = vmax.f32 %v3749, 0.0
        %v3885 = vmax.f32 %v3751, 0.0
        %v3886 = vmax.f32 %v3856, 0.0
        %v3887 = vmax.f32 %v3858, 0.0
        %v3888 = vld [vmem:[%s754 + $0x200] sm:$0xff]
        %v3889 = vld [vmem:[%s754 + $0x208] sm:$0xff]
        %v3890 = vld [vmem:[%s754 + $0x210] sm:$0xff]
        %v3891 = vld [vmem:[%s754 + $0x218] sm:$0xff]
        %v3892 = vld [vmem:[%s754 + $0x220] sm:$0xff]
        %v3893 = vld [vmem:[%s754 + $0x228] sm:$0xff]
        %v3894 = vld [vmem:[%s754 + $0x230] sm:$0xff]
        %v3895 = vld [vmem:[%s754 + $0x238] sm:$0xff]
        %v3896 = vld [vmem:[%s754 + $0x240] sm:$0xff]
        %v3897 = vld [vmem:[%s754 + $0x248] sm:$0xff]
        %v3898 = vld [vmem:[%s754 + $0x250] sm:$0xff]
        %v3899 = vld [vmem:[%s754 + $0x258] sm:$0xff]
        %v3900 = vld [vmem:[%s754 + $0x260] sm:$0xff]
        %v3901 = vld [vmem:[%s754 + $0x268] sm:$0xff]
        %v3902 = vld [vmem:[%s754 + $0x270] sm:$0xff]
        %v3903 = vld [vmem:[%s754 + $0x278] sm:$0xff]
        %v3904 = vld [vmem:[%s754 + $0x280] sm:$0xff]
        %v3905 = vld [vmem:[%s754 + $0x288] sm:$0xff]
        %v3906 = vld [vmem:[%s754 + $0x290] sm:$0xff]
        %v3907 = vld [vmem:[%s754 + $0x298] sm:$0xff]
        %v3908 = vld [vmem:[%s754 + $0x2a0] sm:$0xff]
        %v3909 = vld [vmem:[%s754 + $0x2a8] sm:$0xff]
        %v3910 = vld [vmem:[%s754 + $0x2b0] sm:$0xff]
        %v3911 = vld [vmem:[%s754 + $0x2b8] sm:$0xff]
        %v3912 = vld [vmem:[%s754 + $0x2c0] sm:$0xff]
        %v3913 = vld [vmem:[%s754 + $0x2c8] sm:$0xff]
        %v3914 = vld [vmem:[%s754 + $0x2d0] sm:$0xff]
        %v3915 = vld [vmem:[%s754 + $0x2d8] sm:$0xff]
        %v3916 = vld [vmem:[%s754 + $0x2e0] sm:$0xff]
        %v3917 = vld [vmem:[%s754 + $0x2e8] sm:$0xff]
        %v3918 = vld [vmem:[%s754 + $0x2f0] sm:$0xff]
        %v3919 = vld [vmem:[%s754 + $0x2f8] sm:$0xff]
        %v3920 = vld [vmem:[%s754 + $0x300] sm:$0xff]
        %v3921 = vld [vmem:[%s754 + $0x308] sm:$0xff]
        %v3922 = vld [vmem:[%s754 + $0x310] sm:$0xff]
        %v3923 = vld [vmem:[%s754 + $0x318] sm:$0xff]
        %v3924 = vld [vmem:[%s754 + $0x320] sm:$0xff]
        %v3925 = vld [vmem:[%s754 + $0x328] sm:$0xff]
        %v3926 = vld [vmem:[%s754 + $0x330] sm:$0xff]
        %v3927 = vld [vmem:[%s754 + $0x338] sm:$0xff]
        %v3928 = vld [vmem:[%s754 + $0x340] sm:$0xff]
        %v3929 = vld [vmem:[%s754 + $0x348] sm:$0xff]
        %v3930 = vld [vmem:[%s754 + $0x350] sm:$0xff]
        %v3931 = vld [vmem:[%s754 + $0x358] sm:$0xff]
        %v3932 = vld [vmem:[%s754 + $0x360] sm:$0xff]
        %v3933 = vld [vmem:[%s754 + $0x368] sm:$0xff]
        %v3934 = vld [vmem:[%s754 + $0x370] sm:$0xff]
        %v3935 = vld [vmem:[%s754 + $0x378] sm:$0xff]
        %v3936 = vld [vmem:[%s754 + $0x380] sm:$0xff]
        %v3937 = vld [vmem:[%s754 + $0x388] sm:$0xff]
        %v3938 = vld [vmem:[%s754 + $0x390] sm:$0xff]
        %v3939 = vld [vmem:[%s754 + $0x398] sm:$0xff]
        %v3940 = vld [vmem:[%s754 + $0x3a0] sm:$0xff]
        %v3941 = vld [vmem:[%s754 + $0x3a8] sm:$0xff]
        %v3942 = vld [vmem:[%s754 + $0x3b0] sm:$0xff]
        %v3943 = vld [vmem:[%s754 + $0x3b8] sm:$0xff]
        %v3944 = vld [vmem:[%s754 + $0x3c0] sm:$0xff]
        %v3945 = vld [vmem:[%s754 + $0x3c8] sm:$0xff]
        %v3946 = vld [vmem:[%s754 + $0x3d0] sm:$0xff]
        %v3947 = vld [vmem:[%s754 + $0x3d8] sm:$0xff]
        %v3948 = vld [vmem:[%s754 + $0x3e0] sm:$0xff]
        %v3949 = vld [vmem:[%s754 + $0x3e8] sm:$0xff]
        %v3950 = vld [vmem:[%s754 + $0x3f0] sm:$0xff]
        %v3951 = vld [vmem:[%s754 + $0x3f8] sm:$0xff]
        %3952 = vmatprep.subr.mxu0 0.0
        %3953 = vmatpush1.msra.mxu0 %v3903
        %3954 = vmatprep.subr.mxu0 0.0
        %3955 = vmatpush1.msra.mxu0 %v3902
        %3956 = vmatprep.subr.mxu0 0.0
        %3957 = vmatpush1.msra.mxu0 %v3901
        %3958 = vmatprep.subr.mxu0 0.0
        %3959 = vmatpush1.msra.mxu0 %v3900
        %3960 = vmatprep.subr.mxu0 0.0
        %3961 = vmatpush1.msra.mxu0 %v3899
        %3962 = vmatprep.subr.mxu0 0.0
        %3963 = vmatpush1.msra.mxu0 %v3898
        %3964 = vmatprep.subr.mxu0 0.0
        %3965 = vmatpush1.msra.mxu0 %v3897
        %3966 = vmatprep.subr.mxu0 0.0
        %3967 = vmatpush1.msra.mxu0 %v3896
        %3968 = vmatprep.subr.mxu0 0.0
        %3969 = vmatpush1.msra.mxu0 %v3895
        %3970 = vmatprep.subr.mxu0 0.0
        %3971 = vmatpush1.msra.mxu0 %v3894
        %3972 = vmatprep.subr.mxu0 0.0
        %3973 = vmatpush1.msra.mxu0 %v3893
        %3974 = vmatprep.subr.mxu0 0.0
        %3975 = vmatpush1.msra.mxu0 %v3892
        %3976 = vmatprep.subr.mxu0 0.0
        %3977 = vmatpush1.msra.mxu0 %v3891
        %3978 = vmatprep.subr.mxu0 0.0
        %3979 = vmatpush1.msra.mxu0 %v3890
        %3980 = vmatprep.subr.mxu0 0.0
        %3981 = vmatpush1.msra.mxu0 %v3889
        %3982 = vmatprep.subr.mxu0 0.0
        %3983 = vmatpush1.msra.mxu0 %v3888
        %3984 = vmatprep.subr.mxu0 0.0
        %3985 = vmatpush2.msra.mxu0 %v3919
        %3986 = vmatprep.subr.mxu0 0.0
        %3987 = vmatpush2.msra.mxu0 %v3918
        %3988 = vmatprep.subr.mxu0 0.0
        %3989 = vmatpush2.msra.mxu0 %v3917
        %3990 = vmatprep.subr.mxu0 0.0
        %3991 = vmatpush2.msra.mxu0 %v3916
        %3992 = vmatprep.subr.mxu0 0.0
        %3993 = vmatpush2.msra.mxu0 %v3915
        %3994 = vmatprep.subr.mxu0 0.0
        %3995 = vmatpush2.msra.mxu0 %v3914
        %3996 = vmatprep.subr.mxu0 0.0
        %3997 = vmatpush2.msra.mxu0 %v3913
        %3998 = vmatprep.subr.mxu0 0.0
        %3999 = vmatpush2.msra.mxu0 %v3912
        %4000 = vmatprep.subr.mxu0 0.0
        %4001 = vmatpush2.msra.mxu0 %v3911
        %4002 = vmatprep.subr.mxu0 0.0
        %4003 = vmatpush2.msra.mxu0 %v3910
        %4004 = vmatprep.subr.mxu0 0.0
        %4005 = vmatpush2.msra.mxu0 %v3909
        %4006 = vmatprep.subr.mxu0 0.0
        %4007 = vmatpush2.msra.mxu0 %v3908
        %4008 = vmatprep.subr.mxu0 0.0
        %4009 = vmatpush2.msra.mxu0 %v3907
        %4010 = vmatprep.subr.mxu0 0.0
        %4011 = vmatpush2.msra.mxu0 %v3906
        %4012 = vmatprep.subr.mxu0 0.0
        %4013 = vmatpush2.msra.mxu0 %v3905
        %4014 = vmatprep.subr.mxu0 0.0
        %4015 = vmatpush2.msra.mxu0 %v3904
        %4016 = vmatprep.mubr.f32.mxu0 %v3861
        %4017 = vmatmul.mubr.f32.gmra.mxu0 %v3860
        %v4018 = vpop.f32.mrf.mxu0
        %v4019 = vadd.f32 0.0, %v4018
        %v4020 = vpop.f32.mrf.mxu0
        %4021 = vmatprep.mubr.f32.mxu0 %v3865
        %4022 = vmatmul.mubr.f32.gmra.mxu0 %v3864
        %v4023 = vpop.f32.mrf.mxu0
        %v4024 = vadd.f32 0.0, %v4023
        %v4025 = vpop.f32.mrf.mxu0
        %4026 = vmatprep.mubr.f32.mxu0 %v3869
        %4027 = vmatmul.mubr.f32.gmra.mxu0 %v3868
        %v4028 = vpop.f32.mrf.mxu0
        %v4029 = vadd.f32 0.0, %v4028
        %v4030 = vpop.f32.mrf.mxu0
        %4031 = vmatprep.mubr.f32.mxu0 %v3873
        %4032 = vmatmul.mubr.f32.gmra.mxu0 %v3872
        %v4033 = vpop.f32.mrf.mxu0
        %v4034 = vadd.f32 0.0, %v4033
        %v4035 = vpop.f32.mrf.mxu0
        %4036 = vmatprep.mubr.f32.mxu0 %v3877
        %4037 = vmatmul.mubr.f32.gmra.mxu0 %v3876
        %v4038 = vpop.f32.mrf.mxu0
        %v4039 = vadd.f32 0.0, %v4038
        %v4040 = vpop.f32.mrf.mxu0
        %4041 = vmatprep.mubr.f32.mxu0 %v3881
        %4042 = vmatmul.mubr.f32.gmra.mxu0 %v3880
        %v4043 = vpop.f32.mrf.mxu0
        %v4044 = vadd.f32 0.0, %v4043
        %v4045 = vpop.f32.mrf.mxu0
        %4046 = vmatprep.mubr.f32.mxu0 %v3885
        %4047 = vmatmul.mubr.f32.gmra.mxu0 %v3884
        %v4048 = vpop.f32.mrf.mxu0
        %v4049 = vadd.f32 0.0, %v4048
        %v4050 = vpop.f32.mrf.mxu0
        %4051 = vdwg.mxu0
        %4052 = vmatprep.subr.mxu0 0.0
        %4053 = vmatpush1.msra.mxu0 %v3935
        %4054 = vmatprep.subr.mxu0 0.0
        %4055 = vmatpush1.msra.mxu0 %v3934
        %4056 = vmatprep.subr.mxu0 0.0
        %4057 = vmatpush1.msra.mxu0 %v3933
        %4058 = vmatprep.subr.mxu0 0.0
        %4059 = vmatpush1.msra.mxu0 %v3932
        %4060 = vmatprep.subr.mxu0 0.0
        %4061 = vmatpush1.msra.mxu0 %v3931
        %4062 = vmatprep.subr.mxu0 0.0
        %4063 = vmatpush1.msra.mxu0 %v3930
        %4064 = vmatprep.subr.mxu0 0.0
        %4065 = vmatpush1.msra.mxu0 %v3929
        %4066 = vmatprep.subr.mxu0 0.0
        %4067 = vmatpush1.msra.mxu0 %v3928
        %4068 = vmatprep.subr.mxu0 0.0
        %4069 = vmatpush1.msra.mxu0 %v3927
        %4070 = vmatprep.subr.mxu0 0.0
        %4071 = vmatpush1.msra.mxu0 %v3926
        %4072 = vmatprep.subr.mxu0 0.0
        %4073 = vmatpush1.msra.mxu0 %v3925
        %4074 = vmatprep.subr.mxu0 0.0
        %4075 = vmatpush1.msra.mxu0 %v3924
        %4076 = vmatprep.subr.mxu0 0.0
        %4077 = vmatpush1.msra.mxu0 %v3923
        %4078 = vmatprep.subr.mxu0 0.0
        %4079 = vmatpush1.msra.mxu0 %v3922
        %4080 = vmatprep.subr.mxu0 0.0
        %4081 = vmatpush1.msra.mxu0 %v3921
        %4082 = vmatprep.subr.mxu0 0.0
        %4083 = vmatpush1.msra.mxu0 %v3920
        %4084 = vmatprep.subr.mxu0 0.0
        %4085 = vmatpush2.msra.mxu0 %v3951
        %4086 = vmatprep.subr.mxu0 0.0
        %4087 = vmatpush2.msra.mxu0 %v3950
        %4088 = vmatprep.subr.mxu0 0.0
        %4089 = vmatpush2.msra.mxu0 %v3949
        %4090 = vmatprep.subr.mxu0 0.0
        %4091 = vmatpush2.msra.mxu0 %v3948
        %4092 = vmatprep.subr.mxu0 0.0
        %4093 = vmatpush2.msra.mxu0 %v3947
        %4094 = vmatprep.subr.mxu0 0.0
        %4095 = vmatpush2.msra.mxu0 %v3946
        %4096 = vmatprep.subr.mxu0 0.0
        %4097 = vmatpush2.msra.mxu0 %v3945
        %4098 = vmatprep.subr.mxu0 0.0
        %4099 = vmatpush2.msra.mxu0 %v3944
        %4100 = vmatprep.subr.mxu0 0.0
        %4101 = vmatpush2.msra.mxu0 %v3943
        %4102 = vmatprep.subr.mxu0 0.0
        %4103 = vmatpush2.msra.mxu0 %v3942
        %4104 = vmatprep.subr.mxu0 0.0
        %4105 = vmatpush2.msra.mxu0 %v3941
        %4106 = vmatprep.subr.mxu0 0.0
        %4107 = vmatpush2.msra.mxu0 %v3940
        %4108 = vmatprep.subr.mxu0 0.0
        %4109 = vmatpush2.msra.mxu0 %v3939
        %4110 = vmatprep.subr.mxu0 0.0
        %4111 = vmatpush2.msra.mxu0 %v3938
        %4112 = vmatprep.subr.mxu0 0.0
        %4113 = vmatpush2.msra.mxu0 %v3937
        %4114 = vmatprep.subr.mxu0 0.0
        %4115 = vmatpush2.msra.mxu0 %v3936
        %4116 = vmatprep.mubr.f32.mxu0 %v3863
        %4117 = vmatmul.mubr.f32.gmra.mxu0 %v3862
        %v4118 = vpop.f32.mrf.mxu0
        %v4119 = vadd.f32 %v4019, %v4118
        %v4120 = vpop.f32.mrf.mxu0
        %4121 = vmatprep.mubr.f32.mxu0 %v3867
        %4122 = vmatmul.mubr.f32.gmra.mxu0 %v3866
        %v4123 = vpop.f32.mrf.mxu0
        %v4124 = vadd.f32 %v4024, %v4123
        %v4125 = vpop.f32.mrf.mxu0
        %4126 = vmatprep.mubr.f32.mxu0 %v3871
        %4127 = vmatmul.mubr.f32.gmra.mxu0 %v3870
        %v4128 = vpop.f32.mrf.mxu0
        %v4129 = vadd.f32 %v4029, %v4128
        %v4130 = vpop.f32.mrf.mxu0
        %4131 = vmatprep.mubr.f32.mxu0 %v3875
        %4132 = vmatmul.mubr.f32.gmra.mxu0 %v3874
        %v4133 = vpop.f32.mrf.mxu0
        %v4134 = vadd.f32 %v4034, %v4133
        %v4135 = vpop.f32.mrf.mxu0
        %4136 = vmatprep.mubr.f32.mxu0 %v3879
        %4137 = vmatmul.mubr.f32.gmra.mxu0 %v3878
        %v4138 = vpop.f32.mrf.mxu0
        %v4139 = vadd.f32 %v4039, %v4138
        %v4140 = vpop.f32.mrf.mxu0
        %4141 = vmatprep.mubr.f32.mxu0 %v3883
        %4142 = vmatmul.mubr.f32.gmra.mxu0 %v3882
        %v4143 = vpop.f32.mrf.mxu0
        %v4144 = vadd.f32 %v4044, %v4143
        %v4145 = vpop.f32.mrf.mxu0
        %4146 = vmatprep.mubr.f32.mxu0 %v3887
        %4147 = vmatmul.mubr.f32.gmra.mxu0 %v3886
        %v4148 = vpop.f32.mrf.mxu0
        %v4149 = vadd.f32 %v4049, %v4148
        %v4150 = vpop.f32.mrf.mxu0
        %4151 = vdwg.mxu0
        %4152 = vmatprep.subr.mxu0 0.0
        %4153 = vmatpush1.msra.mxu0 %v3559
        %4154 = vmatprep.subr.mxu0 0.0
        %4155 = vmatpush1.msra.mxu0 %v3558
        %4156 = vmatprep.subr.mxu0 0.0
        %4157 = vmatpush1.msra.mxu0 %v3557
        %4158 = vmatprep.subr.mxu0 0.0
        %4159 = vmatpush1.msra.mxu0 %v3556
        %4160 = vmatprep.subr.mxu0 0.0
        %4161 = vmatpush1.msra.mxu0 %v3555
        %4162 = vmatprep.subr.mxu0 0.0
        %4163 = vmatpush1.msra.mxu0 %v3554
        %4164 = vmatprep.subr.mxu0 0.0
        %4165 = vmatpush1.msra.mxu0 %v3553
        %4166 = vmatprep.subr.mxu0 0.0
        %4167 = vmatpush1.msra.mxu0 %v3552
        %4168 = vmatprep.subr.mxu0 0.0
        %4169 = vmatpush1.msra.mxu0 %v3551
        %4170 = vmatprep.subr.mxu0 0.0
        %4171 = vmatpush1.msra.mxu0 %v3550
        %4172 = vmatprep.subr.mxu0 0.0
        %4173 = vmatpush1.msra.mxu0 %v3549
        %4174 = vmatprep.subr.mxu0 0.0
        %4175 = vmatpush1.msra.mxu0 %v3548
        %4176 = vmatprep.subr.mxu0 0.0
        %4177 = vmatpush1.msra.mxu0 %v3547
        %4178 = vmatprep.subr.mxu0 0.0
        %4179 = vmatpush1.msra.mxu0 %v3546
        %4180 = vmatprep.subr.mxu0 0.0
        %4181 = vmatpush1.msra.mxu0 %v3545
        %4182 = vmatprep.subr.mxu0 0.0
        %4183 = vmatpush1.msra.mxu0 %v3544
        %4184 = vmatprep.subr.mxu0 0.0
        %4185 = vmatpush2.msra.mxu0 %v3575
        %4186 = vmatprep.subr.mxu0 0.0
        %4187 = vmatpush2.msra.mxu0 %v3574
        %4188 = vmatprep.subr.mxu0 0.0
        %4189 = vmatpush2.msra.mxu0 %v3573
        %4190 = vmatprep.subr.mxu0 0.0
        %4191 = vmatpush2.msra.mxu0 %v3572
        %4192 = vmatprep.subr.mxu0 0.0
        %4193 = vmatpush2.msra.mxu0 %v3571
        %4194 = vmatprep.subr.mxu0 0.0
        %4195 = vmatpush2.msra.mxu0 %v3570
        %4196 = vmatprep.subr.mxu0 0.0
        %4197 = vmatpush2.msra.mxu0 %v3569
        %4198 = vmatprep.subr.mxu0 0.0
        %4199 = vmatpush2.msra.mxu0 %v3568
        %4200 = vmatprep.subr.mxu0 0.0
        %4201 = vmatpush2.msra.mxu0 %v3567
        %4202 = vmatprep.subr.mxu0 0.0
        %4203 = vmatpush2.msra.mxu0 %v3566
        %4204 = vmatprep.subr.mxu0 0.0
        %4205 = vmatpush2.msra.mxu0 %v3565
        %4206 = vmatprep.subr.mxu0 0.0
        %4207 = vmatpush2.msra.mxu0 %v3564
        %4208 = vmatprep.subr.mxu0 0.0
        %4209 = vmatpush2.msra.mxu0 %v3563
        %4210 = vmatprep.subr.mxu0 0.0
        %4211 = vmatpush2.msra.mxu0 %v3562
        %4212 = vmatprep.subr.mxu0 0.0
        %4213 = vmatpush2.msra.mxu0 %v3561
        %4214 = vmatprep.subr.mxu0 0.0
        %4215 = vmatpush2.msra.mxu0 %v3560
        %4216 = vmatprep.mubr.f32.mxu0 %v3517
        %4217 = vmatmul.mubr.f32.gmra.mxu0 %v3516
        %v4218 = vpop.f32.mrf.mxu0
        %v4219 = vadd.f32 %v4119, %v4218
        %v4220 = vpop.f32.mrf.mxu0
        %4221 = vmatprep.mubr.f32.mxu0 %v3521
        %4222 = vmatmul.mubr.f32.gmra.mxu0 %v3520
        %v4223 = vpop.f32.mrf.mxu0
        %v4224 = vadd.f32 %v4124, %v4223
        %v4225 = vpop.f32.mrf.mxu0
        %4226 = vmatprep.mubr.f32.mxu0 %v3525
        %4227 = vmatmul.mubr.f32.gmra.mxu0 %v3524
        %v4228 = vpop.f32.mrf.mxu0
        %v4229 = vadd.f32 %v4129, %v4228
        %v4230 = vpop.f32.mrf.mxu0
        %4231 = vmatprep.mubr.f32.mxu0 %v3529
        %4232 = vmatmul.mubr.f32.gmra.mxu0 %v3528
        %v4233 = vpop.f32.mrf.mxu0
        %v4234 = vadd.f32 %v4134, %v4233
        %v4235 = vpop.f32.mrf.mxu0
        %4236 = vmatprep.mubr.f32.mxu0 %v3533
        %4237 = vmatmul.mubr.f32.gmra.mxu0 %v3532
        %v4238 = vpop.f32.mrf.mxu0
        %v4239 = vadd.f32 %v4139, %v4238
        %v4240 = vpop.f32.mrf.mxu0
        %4241 = vmatprep.mubr.f32.mxu0 %v3537
        %4242 = vmatmul.mubr.f32.gmra.mxu0 %v3536
        %v4243 = vpop.f32.mrf.mxu0
        %v4244 = vadd.f32 %v4144, %v4243
        %v4245 = vpop.f32.mrf.mxu0
        %4246 = vmatprep.mubr.f32.mxu0 %v3541
        %4247 = vmatmul.mubr.f32.gmra.mxu0 %v3540
        %v4248 = vpop.f32.mrf.mxu0
        %v4249 = vadd.f32 %v4149, %v4248
        %v4250 = vpop.f32.mrf.mxu0
        %4251 = vdwg.mxu0
        %4252 = vmatprep.subr.mxu0 0.0
        %4253 = vmatpush1.msra.mxu0 %v3591
        %4254 = vmatprep.subr.mxu0 0.0
        %4255 = vmatpush1.msra.mxu0 %v3590
        %4256 = vmatprep.subr.mxu0 0.0
        %4257 = vmatpush1.msra.mxu0 %v3589
        %4258 = vmatprep.subr.mxu0 0.0
        %4259 = vmatpush1.msra.mxu0 %v3588
        %4260 = vmatprep.subr.mxu0 0.0
        %4261 = vmatpush1.msra.mxu0 %v3587
        %4262 = vmatprep.subr.mxu0 0.0
        %4263 = vmatpush1.msra.mxu0 %v3586
        %4264 = vmatprep.subr.mxu0 0.0
        %4265 = vmatpush1.msra.mxu0 %v3585
        %4266 = vmatprep.subr.mxu0 0.0
        %4267 = vmatpush1.msra.mxu0 %v3584
        %4268 = vmatprep.subr.mxu0 0.0
        %4269 = vmatpush1.msra.mxu0 %v3583
        %4270 = vmatprep.subr.mxu0 0.0
        %4271 = vmatpush1.msra.mxu0 %v3582
        %4272 = vmatprep.subr.mxu0 0.0
        %4273 = vmatpush1.msra.mxu0 %v3581
        %4274 = vmatprep.subr.mxu0 0.0
        %4275 = vmatpush1.msra.mxu0 %v3580
        %4276 = vmatprep.subr.mxu0 0.0
        %4277 = vmatpush1.msra.mxu0 %v3579
        %4278 = vmatprep.subr.mxu0 0.0
        %4279 = vmatpush1.msra.mxu0 %v3578
        %4280 = vmatprep.subr.mxu0 0.0
        %4281 = vmatpush1.msra.mxu0 %v3577
        %4282 = vmatprep.subr.mxu0 0.0
        %4283 = vmatpush1.msra.mxu0 %v3576
        %4284 = vmatprep.subr.mxu0 0.0
        %4285 = vmatpush2.msra.mxu0 %v3607
        %4286 = vmatprep.subr.mxu0 0.0
        %4287 = vmatpush2.msra.mxu0 %v3606
        %4288 = vmatprep.subr.mxu0 0.0
        %4289 = vmatpush2.msra.mxu0 %v3605
        %4290 = vmatprep.subr.mxu0 0.0
        %4291 = vmatpush2.msra.mxu0 %v3604
        %4292 = vmatprep.subr.mxu0 0.0
        %4293 = vmatpush2.msra.mxu0 %v3603
        %4294 = vmatprep.subr.mxu0 0.0
        %4295 = vmatpush2.msra.mxu0 %v3602
        %4296 = vmatprep.subr.mxu0 0.0
        %4297 = vmatpush2.msra.mxu0 %v3601
        %4298 = vmatprep.subr.mxu0 0.0
        %4299 = vmatpush2.msra.mxu0 %v3600
        %4300 = vmatprep.subr.mxu0 0.0
        %4301 = vmatpush2.msra.mxu0 %v3599
        %4302 = vmatprep.subr.mxu0 0.0
        %4303 = vmatpush2.msra.mxu0 %v3598
        %4304 = vmatprep.subr.mxu0 0.0
        %4305 = vmatpush2.msra.mxu0 %v3597
        %4306 = vmatprep.subr.mxu0 0.0
        %4307 = vmatpush2.msra.mxu0 %v3596
        %4308 = vmatprep.subr.mxu0 0.0
        %4309 = vmatpush2.msra.mxu0 %v3595
        %4310 = vmatprep.subr.mxu0 0.0
        %4311 = vmatpush2.msra.mxu0 %v3594
        %4312 = vmatprep.subr.mxu0 0.0
        %4313 = vmatpush2.msra.mxu0 %v3593
        %4314 = vmatprep.subr.mxu0 0.0
        %4315 = vmatpush2.msra.mxu0 %v3592
        %4316 = vmatprep.mubr.f32.mxu0 %v3519
        %4317 = vmatmul.mubr.f32.gmra.mxu0 %v3518
        %v4318 = vpop.f32.mrf.mxu0
        %v4319 = vadd.f32 %v4219, %v4318
        %v4320 = vpop.f32.mrf.mxu0
        %4321 = vmatprep.mubr.f32.mxu0 %v3523
        %4322 = vmatmul.mubr.f32.gmra.mxu0 %v3522
        %v4323 = vpop.f32.mrf.mxu0
        %v4324 = vadd.f32 %v4224, %v4323
        %v4325 = vpop.f32.mrf.mxu0
        %4326 = vmatprep.mubr.f32.mxu0 %v3527
        %4327 = vmatmul.mubr.f32.gmra.mxu0 %v3526
        %v4328 = vpop.f32.mrf.mxu0
        %v4329 = vadd.f32 %v4229, %v4328
        %v4330 = vpop.f32.mrf.mxu0
        %4331 = vmatprep.mubr.f32.mxu0 %v3531
        %4332 = vmatmul.mubr.f32.gmra.mxu0 %v3530
        %v4333 = vpop.f32.mrf.mxu0
        %v4334 = vadd.f32 %v4234, %v4333
        %v4335 = vpop.f32.mrf.mxu0
        %4336 = vmatprep.mubr.f32.mxu0 %v3535
        %4337 = vmatmul.mubr.f32.gmra.mxu0 %v3534
        %v4338 = vpop.f32.mrf.mxu0
        %v4339 = vadd.f32 %v4239, %v4338
        %v4340 = vpop.f32.mrf.mxu0
        %4341 = vmatprep.mubr.f32.mxu0 %v3539
        %4342 = vmatmul.mubr.f32.gmra.mxu0 %v3538
        %v4343 = vpop.f32.mrf.mxu0
        %v4344 = vadd.f32 %v4244, %v4343
        %v4345 = vpop.f32.mrf.mxu0
        %4346 = vmatprep.mubr.f32.mxu0 %v3543
        %4347 = vmatmul.mubr.f32.gmra.mxu0 %v3542
        %v4348 = vpop.f32.mrf.mxu0
        %v4349 = vadd.f32 %v4249, %v4348
        %v4350 = vpop.f32.mrf.mxu0
        %4351 = vdwg.mxu0
        %v4352 = vld [vmem:[%s745 + $0x40] sm:$0xff]
        %v4353 = vld [vmem:[%s745 + $0x48] sm:$0xff]
        %v4354 = vld [vmem:[%s745 + $0x50] sm:$0xff]
        %v4355 = vld [vmem:[%s745 + $0x58] sm:$0xff]
        %v4356 = vld [vmem:[%s745 + $0xc0] sm:$0xff]
        %v4357 = vld [vmem:[%s745 + $0xc8] sm:$0xff]
        %v4358 = vld [vmem:[%s745 + $0xd0] sm:$0xff]
        %v4359 = vld [vmem:[%s745 + $0xd8] sm:$0xff]
        %v4360 = vld [vmem:[%s745 + $0x140] sm:$0xff]
        %v4361 = vld [vmem:[%s745 + $0x148] sm:$0xff]
        %v4362 = vld [vmem:[%s745 + $0x150] sm:$0xff]
        %v4363 = vld [vmem:[%s745 + $0x158] sm:$0xff]
        %v4364 = vld [vmem:[%s745 + $0x1c0] sm:$0xff]
        %v4365 = vld [vmem:[%s745 + $0x1c8] sm:$0xff]
        %v4366 = vld [vmem:[%s745 + $0x1d0] sm:$0xff]
        %v4367 = vld [vmem:[%s745 + $0x1d8] sm:$0xff]
        %v4368 = vld [vmem:[%s749 + $0x8] sm:$0xf]
        %v4370 = vlaneseq
        %v4371 = vshrl.u32 %v4370, 7
        %v4372 = vsub.s32 0, %v4371
        %v4373 = vrot.slane %v4368, %v4372
        %v4374 = vlaneseq
        %v4375 = vshrl.u32 %v4374, 7
        %v4376 = vsub.s32 1, %v4375
        %v4377 = vrot.slane %v4368, %v4376
        %v4378 = vlaneseq
        %v4379 = vshrl.u32 %v4378, 7
        %v4380 = vsub.s32 2, %v4379
        %v4381 = vrot.slane %v4368, %v4380
        %v4382 = vlaneseq
        %v4383 = vshrl.u32 %v4382, 7
        %v4384 = vsub.s32 3, %v4383
        %v4385 = vrot.slane %v4368, %v4384
        %4390 = vmatprep.subr.mxu0 0.0
        %4391 = vmatpush1.msra.mxu0 0.0
        %4392 = vmatprep.subr.mxu0 0.0
        %4393 = vmatpush1.msra.mxu0 0.0
        %4394 = vmatprep.subr.mxu0 0.0
        %4395 = vmatpush1.msra.mxu0 0.0
        %4396 = vmatprep.subr.mxu0 0.0
        %4397 = vmatpush1.msra.mxu0 0.0
        %4398 = vmatprep.subr.mxu0 0.0
        %4399 = vmatpush1.msra.mxu0 0.0
        %4400 = vmatprep.subr.mxu0 0.0
        %4401 = vmatpush1.msra.mxu0 0.0
        %4402 = vmatprep.subr.mxu0 0.0
        %4403 = vmatpush1.msra.mxu0 0.0
        %4404 = vmatprep.subr.mxu0 0.0
        %4405 = vmatpush1.msra.mxu0 0.0
        %4406 = vmatprep.subr.mxu0 0.0
        %4407 = vmatpush1.msra.mxu0 0.0
        %4408 = vmatprep.subr.mxu0 0.0
        %4409 = vmatpush1.msra.mxu0 0.0
        %4410 = vmatprep.subr.mxu0 0.0
        %4411 = vmatpush1.msra.mxu0 0.0
        %4412 = vmatprep.subr.mxu0 0.0
        %4413 = vmatpush1.msra.mxu0 0.0
        %4414 = vmatprep.subr.mxu0 %v4365
        %4415 = vmatpush1.msra.mxu0 %v4364
        %4416 = vmatprep.subr.mxu0 %v4361
        %4417 = vmatpush1.msra.mxu0 %v4360
        %4418 = vmatprep.subr.mxu0 %v4357
        %4419 = vmatpush1.msra.mxu0 %v4356
        %4420 = vmatprep.subr.mxu0 %v4353
        %4421 = vmatpush1.msra.mxu0 %v4352
        %4422 = vmatprep.subr.mxu0 0.0
        %4423 = vmatpush2.msra.mxu0 0.0
        %4424 = vmatprep.subr.mxu0 0.0
        %4425 = vmatpush2.msra.mxu0 0.0
        %4426 = vmatprep.subr.mxu0 0.0
        %4427 = vmatpush2.msra.mxu0 0.0
        %4428 = vmatprep.subr.mxu0 0.0
        %4429 = vmatpush2.msra.mxu0 0.0
        %4430 = vmatprep.subr.mxu0 0.0
        %4431 = vmatpush2.msra.mxu0 0.0
        %4432 = vmatprep.subr.mxu0 0.0
        %4433 = vmatpush2.msra.mxu0 0.0
        %4434 = vmatprep.subr.mxu0 0.0
        %4435 = vmatpush2.msra.mxu0 0.0
        %4436 = vmatprep.subr.mxu0 0.0
        %4437 = vmatpush2.msra.mxu0 0.0
        %4438 = vmatprep.subr.mxu0 0.0
        %4439 = vmatpush2.msra.mxu0 0.0
        %4440 = vmatprep.subr.mxu0 0.0
        %4441 = vmatpush2.msra.mxu0 0.0
        %4442 = vmatprep.subr.mxu0 0.0
        %4443 = vmatpush2.msra.mxu0 0.0
        %4444 = vmatprep.subr.mxu0 0.0
        %4445 = vmatpush2.msra.mxu0 0.0
        %4446 = vmatprep.subr.mxu0 0.0
        %4447 = vmatpush2.msra.mxu0 0.0
        %4448 = vmatprep.subr.mxu0 0.0
        %4449 = vmatpush2.msra.mxu0 0.0
        %4450 = vmatprep.subr.mxu0 0.0
        %4451 = vmatpush2.msra.mxu0 0.0
        %4452 = vmatprep.subr.mxu0 0.0
        %4453 = vmatpush2.msra.mxu0 0.0
        %4454 = vmatprep.mubr.f32.mxu0 0.0
        %4455 = vmatmul.mubr.f32.gmra.mxu0 %v3282
        %v4456 = vpop.f32.mrf.mxu0
        %v4457 = vadd.f32 %v4373, %v4456
        %v4458 = vpop.f32.mrf.mxu0
        %v4459 = vadd.f32 %v4377, %v4458
        %4460 = vmatprep.mubr.f32.mxu0 0.0
        %4461 = vmatmul.mubr.f32.gmra.mxu0 %v3285
        %v4462 = vpop.f32.mrf.mxu0
        %v4463 = vadd.f32 %v4373, %v4462
        %v4464 = vpop.f32.mrf.mxu0
        %v4465 = vadd.f32 %v4377, %v4464
        %4466 = vmatprep.mubr.f32.mxu0 0.0
        %4467 = vmatmul.mubr.f32.gmra.mxu0 %v3288
        %v4468 = vpop.f32.mrf.mxu0
        %v4469 = vadd.f32 %v4373, %v4468
        %v4470 = vpop.f32.mrf.mxu0
        %v4471 = vadd.f32 %v4377, %v4470
        %4472 = vmatprep.mubr.f32.mxu0 0.0
        %4473 = vmatmul.mubr.f32.gmra.mxu0 %v3291
        %v4474 = vpop.f32.mrf.mxu0
        %v4475 = vadd.f32 %v4373, %v4474
        %v4476 = vpop.f32.mrf.mxu0
        %v4477 = vadd.f32 %v4377, %v4476
        %4478 = vmatprep.mubr.f32.mxu0 0.0
        %4479 = vmatmul.mubr.f32.gmra.mxu0 %v3294
        %v4480 = vpop.f32.mrf.mxu0
        %v4481 = vadd.f32 %v4373, %v4480
        %v4482 = vpop.f32.mrf.mxu0
        %v4483 = vadd.f32 %v4377, %v4482
        %4484 = vmatprep.mubr.f32.mxu0 0.0
        %4485 = vmatmul.mubr.f32.gmra.mxu0 %v3297
        %v4486 = vpop.f32.mrf.mxu0
        %v4487 = vadd.f32 %v4373, %v4486
        %v4488 = vpop.f32.mrf.mxu0
        %v4489 = vadd.f32 %v4377, %v4488
        %4490 = vmatprep.mubr.f32.mxu0 0.0
        %4491 = vmatmul.mubr.f32.gmra.mxu0 %v3300
        %v4492 = vpop.f32.mrf.mxu0
        %v4493 = vadd.f32 %v4373, %v4492
        %v4494 = vpop.f32.mrf.mxu0
        %v4495 = vadd.f32 %v4377, %v4494
        %4496 = vdwg.mxu0
        %4497 = vmatprep.subr.mxu0 0.0
        %4498 = vmatpush1.msra.mxu0 0.0
        %4499 = vmatprep.subr.mxu0 0.0
        %4500 = vmatpush1.msra.mxu0 0.0
        %4501 = vmatprep.subr.mxu0 0.0
        %4502 = vmatpush1.msra.mxu0 0.0
        %4503 = vmatprep.subr.mxu0 0.0
        %4504 = vmatpush1.msra.mxu0 0.0
        %4505 = vmatprep.subr.mxu0 0.0
        %4506 = vmatpush1.msra.mxu0 0.0
        %4507 = vmatprep.subr.mxu0 0.0
        %4508 = vmatpush1.msra.mxu0 0.0
        %4509 = vmatprep.subr.mxu0 0.0
        %4510 = vmatpush1.msra.mxu0 0.0
        %4511 = vmatprep.subr.mxu0 0.0
        %4512 = vmatpush1.msra.mxu0 0.0
        %4513 = vmatprep.subr.mxu0 0.0
        %4514 = vmatpush1.msra.mxu0 0.0
        %4515 = vmatprep.subr.mxu0 0.0
        %4516 = vmatpush1.msra.mxu0 0.0
        %4517 = vmatprep.subr.mxu0 0.0
        %4518 = vmatpush1.msra.mxu0 0.0
        %4519 = vmatprep.subr.mxu0 0.0
        %4520 = vmatpush1.msra.mxu0 0.0
        %4521 = vmatprep.subr.mxu0 %v4367
        %4522 = vmatpush1.msra.mxu0 %v4366
        %4523 = vmatprep.subr.mxu0 %v4363
        %4524 = vmatpush1.msra.mxu0 %v4362
        %4525 = vmatprep.subr.mxu0 %v4359
        %4526 = vmatpush1.msra.mxu0 %v4358
        %4527 = vmatprep.subr.mxu0 %v4355
        %4528 = vmatpush1.msra.mxu0 %v4354
        %4529 = vmatprep.subr.mxu0 0.0
        %4530 = vmatpush2.msra.mxu0 0.0
        %4531 = vmatprep.subr.mxu0 0.0
        %4532 = vmatpush2.msra.mxu0 0.0
        %4533 = vmatprep.subr.mxu0 0.0
        %4534 = vmatpush2.msra.mxu0 0.0
        %4535 = vmatprep.subr.mxu0 0.0
        %4536 = vmatpush2.msra.mxu0 0.0
        %4537 = vmatprep.subr.mxu0 0.0
        %4538 = vmatpush2.msra.mxu0 0.0
        %4539 = vmatprep.subr.mxu0 0.0
        %4540 = vmatpush2.msra.mxu0 0.0
        %4541 = vmatprep.subr.mxu0 0.0
        %4542 = vmatpush2.msra.mxu0 0.0
        %4543 = vmatprep.subr.mxu0 0.0
        %4544 = vmatpush2.msra.mxu0 0.0
        %4545 = vmatprep.subr.mxu0 0.0
        %4546 = vmatpush2.msra.mxu0 0.0
        %4547 = vmatprep.subr.mxu0 0.0
        %4548 = vmatpush2.msra.mxu0 0.0
        %4549 = vmatprep.subr.mxu0 0.0
        %4550 = vmatpush2.msra.mxu0 0.0
        %4551 = vmatprep.subr.mxu0 0.0
        %4552 = vmatpush2.msra.mxu0 0.0
        %4553 = vmatprep.subr.mxu0 0.0
        %4554 = vmatpush2.msra.mxu0 0.0
        %4555 = vmatprep.subr.mxu0 0.0
        %4556 = vmatpush2.msra.mxu0 0.0
        %4557 = vmatprep.subr.mxu0 0.0
        %4558 = vmatpush2.msra.mxu0 0.0
        %4559 = vmatprep.subr.mxu0 0.0
        %4560 = vmatpush2.msra.mxu0 0.0
        %4561 = vmatprep.mubr.f32.mxu0 0.0
        %4562 = vmatmul.mubr.f32.gmra.mxu0 %v3282
        %v4563 = vpop.f32.mrf.mxu0
        %v4564 = vadd.f32 %v4381, %v4563
        %v4565 = vpop.f32.mrf.mxu0
        %v4566 = vadd.f32 %v4385, %v4565
        %4567 = vmatprep.mubr.f32.mxu0 0.0
        %4568 = vmatmul.mubr.f32.gmra.mxu0 %v3285
        %v4569 = vpop.f32.mrf.mxu0
        %v4570 = vadd.f32 %v4381, %v4569
        %v4571 = vpop.f32.mrf.mxu0
        %v4572 = vadd.f32 %v4385, %v4571
        %4573 = vmatprep.mubr.f32.mxu0 0.0
        %4574 = vmatmul.mubr.f32.gmra.mxu0 %v3288
        %v4575 = vpop.f32.mrf.mxu0
        %v4576 = vadd.f32 %v4381, %v4575
        %v4577 = vpop.f32.mrf.mxu0
        %v4578 = vadd.f32 %v4385, %v4577
        %4579 = vmatprep.mubr.f32.mxu0 0.0
        %4580 = vmatmul.mubr.f32.gmra.mxu0 %v3291
        %v4581 = vpop.f32.mrf.mxu0
        %v4582 = vadd.f32 %v4381, %v4581
        %v4583 = vpop.f32.mrf.mxu0
        %v4584 = vadd.f32 %v4385, %v4583
        %4585 = vmatprep.mubr.f32.mxu0 0.0
        %4586 = vmatmul.mubr.f32.gmra.mxu0 %v3294
        %v4587 = vpop.f32.mrf.mxu0
        %v4588 = vadd.f32 %v4381, %v4587
        %v4589 = vpop.f32.mrf.mxu0
        %v4590 = vadd.f32 %v4385, %v4589
        %4591 = vmatprep.mubr.f32.mxu0 0.0
        %4592 = vmatmul.mubr.f32.gmra.mxu0 %v3297
        %v4593 = vpop.f32.mrf.mxu0
        %v4594 = vadd.f32 %v4381, %v4593
        %v4595 = vpop.f32.mrf.mxu0
        %v4596 = vadd.f32 %v4385, %v4595
        %4597 = vmatprep.mubr.f32.mxu0 0.0
        %4598 = vmatmul.mubr.f32.gmra.mxu0 %v3300
        %v4599 = vpop.f32.mrf.mxu0
        %v4600 = vadd.f32 %v4381, %v4599
        %v4601 = vpop.f32.mrf.mxu0
        %v4602 = vadd.f32 %v4385, %v4601
        %4603 = vdwg.mxu0
        %v4604 = vmax.f32 %v4457, 0.0
        %v4605 = vmax.f32 %v4459, 0.0
        %v4606 = vmax.f32 %v4564, 0.0
        %v4607 = vmax.f32 %v4566, 0.0
        %v4608 = vmax.f32 %v4463, 0.0
        %v4609 = vmax.f32 %v4465, 0.0
        %v4610 = vmax.f32 %v4570, 0.0
        %v4611 = vmax.f32 %v4572, 0.0
        %v4612 = vmax.f32 %v4469, 0.0
        %v4613 = vmax.f32 %v4471, 0.0
        %v4614 = vmax.f32 %v4576, 0.0
        %v4615 = vmax.f32 %v4578, 0.0
        %v4616 = vmax.f32 %v4475, 0.0
        %v4617 = vmax.f32 %v4477, 0.0
        %v4618 = vmax.f32 %v4582, 0.0
        %v4619 = vmax.f32 %v4584, 0.0
        %v4620 = vmax.f32 %v4481, 0.0
        %v4621 = vmax.f32 %v4483, 0.0
        %v4622 = vmax.f32 %v4588, 0.0
        %v4623 = vmax.f32 %v4590, 0.0
        %v4624 = vmax.f32 %v4487, 0.0
        %v4625 = vmax.f32 %v4489, 0.0
        %v4626 = vmax.f32 %v4594, 0.0
        %v4627 = vmax.f32 %v4596, 0.0
        %v4628 = vmax.f32 %v4493, 0.0
        %v4629 = vmax.f32 %v4495, 0.0
        %v4630 = vmax.f32 %v4600, 0.0
        %v4631 = vmax.f32 %v4602, 0.0
        %v4632 = vld [vmem:[%s754 + $0x400] sm:$0xff]
        %v4633 = vld [vmem:[%s754 + $0x408] sm:$0xff]
        %v4634 = vld [vmem:[%s754 + $0x410] sm:$0xff]
        %v4635 = vld [vmem:[%s754 + $0x418] sm:$0xff]
        %v4636 = vld [vmem:[%s754 + $0x420] sm:$0xff]
        %v4637 = vld [vmem:[%s754 + $0x428] sm:$0xff]
        %v4638 = vld [vmem:[%s754 + $0x430] sm:$0xff]
        %v4639 = vld [vmem:[%s754 + $0x438] sm:$0xff]
        %v4640 = vld [vmem:[%s754 + $0x440] sm:$0xff]
        %v4641 = vld [vmem:[%s754 + $0x448] sm:$0xff]
        %v4642 = vld [vmem:[%s754 + $0x450] sm:$0xff]
        %v4643 = vld [vmem:[%s754 + $0x458] sm:$0xff]
        %v4644 = vld [vmem:[%s754 + $0x460] sm:$0xff]
        %v4645 = vld [vmem:[%s754 + $0x468] sm:$0xff]
        %v4646 = vld [vmem:[%s754 + $0x470] sm:$0xff]
        %v4647 = vld [vmem:[%s754 + $0x478] sm:$0xff]
        %v4648 = vld [vmem:[%s754 + $0x480] sm:$0xff]
        %v4649 = vld [vmem:[%s754 + $0x488] sm:$0xff]
        %v4650 = vld [vmem:[%s754 + $0x490] sm:$0xff]
        %v4651 = vld [vmem:[%s754 + $0x498] sm:$0xff]
        %v4652 = vld [vmem:[%s754 + $0x4a0] sm:$0xff]
        %v4653 = vld [vmem:[%s754 + $0x4a8] sm:$0xff]
        %v4654 = vld [vmem:[%s754 + $0x4b0] sm:$0xff]
        %v4655 = vld [vmem:[%s754 + $0x4b8] sm:$0xff]
        %v4656 = vld [vmem:[%s754 + $0x4c0] sm:$0xff]
        %v4657 = vld [vmem:[%s754 + $0x4c8] sm:$0xff]
        %v4658 = vld [vmem:[%s754 + $0x4d0] sm:$0xff]
        %v4659 = vld [vmem:[%s754 + $0x4d8] sm:$0xff]
        %v4660 = vld [vmem:[%s754 + $0x4e0] sm:$0xff]
        %v4661 = vld [vmem:[%s754 + $0x4e8] sm:$0xff]
        %v4662 = vld [vmem:[%s754 + $0x4f0] sm:$0xff]
        %v4663 = vld [vmem:[%s754 + $0x4f8] sm:$0xff]
        %v4664 = vld [vmem:[%s754 + $0x500] sm:$0xff]
        %v4665 = vld [vmem:[%s754 + $0x508] sm:$0xff]
        %v4666 = vld [vmem:[%s754 + $0x510] sm:$0xff]
        %v4667 = vld [vmem:[%s754 + $0x518] sm:$0xff]
        %v4668 = vld [vmem:[%s754 + $0x520] sm:$0xff]
        %v4669 = vld [vmem:[%s754 + $0x528] sm:$0xff]
        %v4670 = vld [vmem:[%s754 + $0x530] sm:$0xff]
        %v4671 = vld [vmem:[%s754 + $0x538] sm:$0xff]
        %v4672 = vld [vmem:[%s754 + $0x540] sm:$0xff]
        %v4673 = vld [vmem:[%s754 + $0x548] sm:$0xff]
        %v4674 = vld [vmem:[%s754 + $0x550] sm:$0xff]
        %v4675 = vld [vmem:[%s754 + $0x558] sm:$0xff]
        %v4676 = vld [vmem:[%s754 + $0x560] sm:$0xff]
        %v4677 = vld [vmem:[%s754 + $0x568] sm:$0xff]
        %v4678 = vld [vmem:[%s754 + $0x570] sm:$0xff]
        %v4679 = vld [vmem:[%s754 + $0x578] sm:$0xff]
        %v4680 = vld [vmem:[%s754 + $0x580] sm:$0xff]
        %v4681 = vld [vmem:[%s754 + $0x588] sm:$0xff]
        %v4682 = vld [vmem:[%s754 + $0x590] sm:$0xff]
        %v4683 = vld [vmem:[%s754 + $0x598] sm:$0xff]
        %v4684 = vld [vmem:[%s754 + $0x5a0] sm:$0xff]
        %v4685 = vld [vmem:[%s754 + $0x5a8] sm:$0xff]
        %v4686 = vld [vmem:[%s754 + $0x5b0] sm:$0xff]
        %v4687 = vld [vmem:[%s754 + $0x5b8] sm:$0xff]
        %v4688 = vld [vmem:[%s754 + $0x5c0] sm:$0xff]
        %v4689 = vld [vmem:[%s754 + $0x5c8] sm:$0xff]
        %v4690 = vld [vmem:[%s754 + $0x5d0] sm:$0xff]
        %v4691 = vld [vmem:[%s754 + $0x5d8] sm:$0xff]
        %v4692 = vld [vmem:[%s754 + $0x5e0] sm:$0xff]
        %v4693 = vld [vmem:[%s754 + $0x5e8] sm:$0xff]
        %v4694 = vld [vmem:[%s754 + $0x5f0] sm:$0xff]
        %v4695 = vld [vmem:[%s754 + $0x5f8] sm:$0xff]
        %4696 = vmatprep.subr.mxu0 0.0
        %4697 = vmatpush1.msra.mxu0 %v4647
        %4698 = vmatprep.subr.mxu0 0.0
        %4699 = vmatpush1.msra.mxu0 %v4646
        %4700 = vmatprep.subr.mxu0 0.0
        %4701 = vmatpush1.msra.mxu0 %v4645
        %4702 = vmatprep.subr.mxu0 0.0
        %4703 = vmatpush1.msra.mxu0 %v4644
        %4704 = vmatprep.subr.mxu0 0.0
        %4705 = vmatpush1.msra.mxu0 %v4643
        %4706 = vmatprep.subr.mxu0 0.0
        %4707 = vmatpush1.msra.mxu0 %v4642
        %4708 = vmatprep.subr.mxu0 0.0
        %4709 = vmatpush1.msra.mxu0 %v4641
        %4710 = vmatprep.subr.mxu0 0.0
        %4711 = vmatpush1.msra.mxu0 %v4640
        %4712 = vmatprep.subr.mxu0 0.0
        %4713 = vmatpush1.msra.mxu0 %v4639
        %4714 = vmatprep.subr.mxu0 0.0
        %4715 = vmatpush1.msra.mxu0 %v4638
        %4716 = vmatprep.subr.mxu0 0.0
        %4717 = vmatpush1.msra.mxu0 %v4637
        %4718 = vmatprep.subr.mxu0 0.0
        %4719 = vmatpush1.msra.mxu0 %v4636
        %4720 = vmatprep.subr.mxu0 0.0
        %4721 = vmatpush1.msra.mxu0 %v4635
        %4722 = vmatprep.subr.mxu0 0.0
        %4723 = vmatpush1.msra.mxu0 %v4634
        %4724 = vmatprep.subr.mxu0 0.0
        %4725 = vmatpush1.msra.mxu0 %v4633
        %4726 = vmatprep.subr.mxu0 0.0
        %4727 = vmatpush1.msra.mxu0 %v4632
        %4728 = vmatprep.subr.mxu0 0.0
        %4729 = vmatpush2.msra.mxu0 %v4663
        %4730 = vmatprep.subr.mxu0 0.0
        %4731 = vmatpush2.msra.mxu0 %v4662
        %4732 = vmatprep.subr.mxu0 0.0
        %4733 = vmatpush2.msra.mxu0 %v4661
        %4734 = vmatprep.subr.mxu0 0.0
        %4735 = vmatpush2.msra.mxu0 %v4660
        %4736 = vmatprep.subr.mxu0 0.0
        %4737 = vmatpush2.msra.mxu0 %v4659
        %4738 = vmatprep.subr.mxu0 0.0
        %4739 = vmatpush2.msra.mxu0 %v4658
        %4740 = vmatprep.subr.mxu0 0.0
        %4741 = vmatpush2.msra.mxu0 %v4657
        %4742 = vmatprep.subr.mxu0 0.0
        %4743 = vmatpush2.msra.mxu0 %v4656
        %4744 = vmatprep.subr.mxu0 0.0
        %4745 = vmatpush2.msra.mxu0 %v4655
        %4746 = vmatprep.subr.mxu0 0.0
        %4747 = vmatpush2.msra.mxu0 %v4654
        %4748 = vmatprep.subr.mxu0 0.0
        %4749 = vmatpush2.msra.mxu0 %v4653
        %4750 = vmatprep.subr.mxu0 0.0
        %4751 = vmatpush2.msra.mxu0 %v4652
        %4752 = vmatprep.subr.mxu0 0.0
        %4753 = vmatpush2.msra.mxu0 %v4651
        %4754 = vmatprep.subr.mxu0 0.0
        %4755 = vmatpush2.msra.mxu0 %v4650
        %4756 = vmatprep.subr.mxu0 0.0
        %4757 = vmatpush2.msra.mxu0 %v4649
        %4758 = vmatprep.subr.mxu0 0.0
        %4759 = vmatpush2.msra.mxu0 %v4648
        %4760 = vmatprep.mubr.f32.mxu0 %v4605
        %4761 = vmatmul.mubr.f32.gmra.mxu0 %v4604
        %v4762 = vpop.f32.mrf.mxu0
        %v4763 = vadd.f32 0.0, %v4762
        %v4764 = vpop.f32.mrf.mxu0
        %4765 = vmatprep.mubr.f32.mxu0 %v4609
        %4766 = vmatmul.mubr.f32.gmra.mxu0 %v4608
        %v4767 = vpop.f32.mrf.mxu0
        %v4768 = vadd.f32 0.0, %v4767
        %v4769 = vpop.f32.mrf.mxu0
        %4770 = vmatprep.mubr.f32.mxu0 %v4613
        %4771 = vmatmul.mubr.f32.gmra.mxu0 %v4612
        %v4772 = vpop.f32.mrf.mxu0
        %v4773 = vadd.f32 0.0, %v4772
        %v4774 = vpop.f32.mrf.mxu0
        %4775 = vmatprep.mubr.f32.mxu0 %v4617
        %4776 = vmatmul.mubr.f32.gmra.mxu0 %v4616
        %v4777 = vpop.f32.mrf.mxu0
        %v4778 = vadd.f32 0.0, %v4777
        %v4779 = vpop.f32.mrf.mxu0
        %4780 = vmatprep.mubr.f32.mxu0 %v4621
        %4781 = vmatmul.mubr.f32.gmra.mxu0 %v4620
        %v4782 = vpop.f32.mrf.mxu0
        %v4783 = vadd.f32 0.0, %v4782
        %v4784 = vpop.f32.mrf.mxu0
        %4785 = vmatprep.mubr.f32.mxu0 %v4625
        %4786 = vmatmul.mubr.f32.gmra.mxu0 %v4624
        %v4787 = vpop.f32.mrf.mxu0
        %v4788 = vadd.f32 0.0, %v4787
        %v4789 = vpop.f32.mrf.mxu0
        %4790 = vmatprep.mubr.f32.mxu0 %v4629
        %4791 = vmatmul.mubr.f32.gmra.mxu0 %v4628
        %v4792 = vpop.f32.mrf.mxu0
        %v4793 = vadd.f32 0.0, %v4792
        %v4794 = vpop.f32.mrf.mxu0
        %4795 = vdwg.mxu0
        %4796 = vmatprep.subr.mxu0 0.0
        %4797 = vmatpush1.msra.mxu0 %v4679
        %4798 = vmatprep.subr.mxu0 0.0
        %4799 = vmatpush1.msra.mxu0 %v4678
        %4800 = vmatprep.subr.mxu0 0.0
        %4801 = vmatpush1.msra.mxu0 %v4677
        %4802 = vmatprep.subr.mxu0 0.0
        %4803 = vmatpush1.msra.mxu0 %v4676
        %4804 = vmatprep.subr.mxu0 0.0
        %4805 = vmatpush1.msra.mxu0 %v4675
        %4806 = vmatprep.subr.mxu0 0.0
        %4807 = vmatpush1.msra.mxu0 %v4674
        %4808 = vmatprep.subr.mxu0 0.0
        %4809 = vmatpush1.msra.mxu0 %v4673
        %4810 = vmatprep.subr.mxu0 0.0
        %4811 = vmatpush1.msra.mxu0 %v4672
        %4812 = vmatprep.subr.mxu0 0.0
        %4813 = vmatpush1.msra.mxu0 %v4671
        %4814 = vmatprep.subr.mxu0 0.0
        %4815 = vmatpush1.msra.mxu0 %v4670
        %4816 = vmatprep.subr.mxu0 0.0
        %4817 = vmatpush1.msra.mxu0 %v4669
        %4818 = vmatprep.subr.mxu0 0.0
        %4819 = vmatpush1.msra.mxu0 %v4668
        %4820 = vmatprep.subr.mxu0 0.0
        %4821 = vmatpush1.msra.mxu0 %v4667
        %4822 = vmatprep.subr.mxu0 0.0
        %4823 = vmatpush1.msra.mxu0 %v4666
        %4824 = vmatprep.subr.mxu0 0.0
        %4825 = vmatpush1.msra.mxu0 %v4665
        %4826 = vmatprep.subr.mxu0 0.0
        %4827 = vmatpush1.msra.mxu0 %v4664
        %4828 = vmatprep.subr.mxu0 0.0
        %4829 = vmatpush2.msra.mxu0 %v4695
        %4830 = vmatprep.subr.mxu0 0.0
        %4831 = vmatpush2.msra.mxu0 %v4694
        %4832 = vmatprep.subr.mxu0 0.0
        %4833 = vmatpush2.msra.mxu0 %v4693
        %4834 = vmatprep.subr.mxu0 0.0
        %4835 = vmatpush2.msra.mxu0 %v4692
        %4836 = vmatprep.subr.mxu0 0.0
        %4837 = vmatpush2.msra.mxu0 %v4691
        %4838 = vmatprep.subr.mxu0 0.0
        %4839 = vmatpush2.msra.mxu0 %v4690
        %4840 = vmatprep.subr.mxu0 0.0
        %4841 = vmatpush2.msra.mxu0 %v4689
        %4842 = vmatprep.subr.mxu0 0.0
        %4843 = vmatpush2.msra.mxu0 %v4688
        %4844 = vmatprep.subr.mxu0 0.0
        %4845 = vmatpush2.msra.mxu0 %v4687
        %4846 = vmatprep.subr.mxu0 0.0
        %4847 = vmatpush2.msra.mxu0 %v4686
        %4848 = vmatprep.subr.mxu0 0.0
        %4849 = vmatpush2.msra.mxu0 %v4685
        %4850 = vmatprep.subr.mxu0 0.0
        %4851 = vmatpush2.msra.mxu0 %v4684
        %4852 = vmatprep.subr.mxu0 0.0
        %4853 = vmatpush2.msra.mxu0 %v4683
        %4854 = vmatprep.subr.mxu0 0.0
        %4855 = vmatpush2.msra.mxu0 %v4682
        %4856 = vmatprep.subr.mxu0 0.0
        %4857 = vmatpush2.msra.mxu0 %v4681
        %4858 = vmatprep.subr.mxu0 0.0
        %4859 = vmatpush2.msra.mxu0 %v4680
        %4860 = vmatprep.mubr.f32.mxu0 %v4607
        %4861 = vmatmul.mubr.f32.gmra.mxu0 %v4606
        %v4862 = vpop.f32.mrf.mxu0
        %v4863 = vadd.f32 %v4763, %v4862
        %v4864 = vpop.f32.mrf.mxu0
        %4865 = vmatprep.mubr.f32.mxu0 %v4611
        %4866 = vmatmul.mubr.f32.gmra.mxu0 %v4610
        %v4867 = vpop.f32.mrf.mxu0
        %v4868 = vadd.f32 %v4768, %v4867
        %v4869 = vpop.f32.mrf.mxu0
        %4870 = vmatprep.mubr.f32.mxu0 %v4615
        %4871 = vmatmul.mubr.f32.gmra.mxu0 %v4614
        %v4872 = vpop.f32.mrf.mxu0
        %v4873 = vadd.f32 %v4773, %v4872
        %v4874 = vpop.f32.mrf.mxu0
        %4875 = vmatprep.mubr.f32.mxu0 %v4619
        %4876 = vmatmul.mubr.f32.gmra.mxu0 %v4618
        %v4877 = vpop.f32.mrf.mxu0
        %v4878 = vadd.f32 %v4778, %v4877
        %v4879 = vpop.f32.mrf.mxu0
        %4880 = vmatprep.mubr.f32.mxu0 %v4623
        %4881 = vmatmul.mubr.f32.gmra.mxu0 %v4622
        %v4882 = vpop.f32.mrf.mxu0
        %v4883 = vadd.f32 %v4783, %v4882
        %v4884 = vpop.f32.mrf.mxu0
        %4885 = vmatprep.mubr.f32.mxu0 %v4627
        %4886 = vmatmul.mubr.f32.gmra.mxu0 %v4626
        %v4887 = vpop.f32.mrf.mxu0
        %v4888 = vadd.f32 %v4788, %v4887
        %v4889 = vpop.f32.mrf.mxu0
        %4890 = vmatprep.mubr.f32.mxu0 %v4631
        %4891 = vmatmul.mubr.f32.gmra.mxu0 %v4630
        %v4892 = vpop.f32.mrf.mxu0
        %v4893 = vadd.f32 %v4793, %v4892
        %v4894 = vpop.f32.mrf.mxu0
        %4895 = vdwg.mxu0
        %v4896 = vadd.f32 %v4319, %v4863
        %v4897 = vadd.f32 %v4324, %v4868
        %v4898 = vadd.f32 %v4329, %v4873
        %v4899 = vadd.f32 %v4334, %v4878
        %v4900 = vadd.f32 %v4339, %v4883
        %v4901 = vadd.f32 %v4344, %v4888
        %v4902 = vadd.f32 %v4349, %v4893
        %v4903 = vld [vmem:[%s745 + $0x60] sm:$0xff]
        %v4904 = vld [vmem:[%s745 + $0x68] sm:$0xff]
        %v4905 = vld [vmem:[%s745 + $0x70] sm:$0xff]
        %v4906 = vld [vmem:[%s745 + $0x78] sm:$0xff]
        %v4907 = vld [vmem:[%s745 + $0xe0] sm:$0xff]
        %v4908 = vld [vmem:[%s745 + $0xe8] sm:$0xff]
        %v4909 = vld [vmem:[%s745 + $0xf0] sm:$0xff]
        %v4910 = vld [vmem:[%s745 + $0xf8] sm:$0xff]
        %v4911 = vld [vmem:[%s745 + $0x160] sm:$0xff]
        %v4912 = vld [vmem:[%s745 + $0x168] sm:$0xff]
        %v4913 = vld [vmem:[%s745 + $0x170] sm:$0xff]
        %v4914 = vld [vmem:[%s745 + $0x178] sm:$0xff]
        %v4915 = vld [vmem:[%s745 + $0x1e0] sm:$0xff]
        %v4916 = vld [vmem:[%s745 + $0x1e8] sm:$0xff]
        %v4917 = vld [vmem:[%s745 + $0x1f0] sm:$0xff]
        %v4918 = vld [vmem:[%s745 + $0x1f8] sm:$0xff]
        %v4919 = vld [vmem:[%s749 + $0xc] sm:$0xf]
        %v4921 = vlaneseq
        %v4922 = vshrl.u32 %v4921, 7
        %v4923 = vsub.s32 0, %v4922
        %v4924 = vrot.slane %v4919, %v4923
        %v4925 = vlaneseq
        %v4926 = vshrl.u32 %v4925, 7
        %v4927 = vsub.s32 1, %v4926
        %v4928 = vrot.slane %v4919, %v4927
        %v4929 = vlaneseq
        %v4930 = vshrl.u32 %v4929, 7
        %v4931 = vsub.s32 2, %v4930
        %v4932 = vrot.slane %v4919, %v4931
        %v4933 = vlaneseq
        %v4934 = vshrl.u32 %v4933, 7
        %v4935 = vsub.s32 3, %v4934
        %v4936 = vrot.slane %v4919, %v4935
        %4941 = vmatprep.subr.mxu0 0.0
        %4942 = vmatpush1.msra.mxu0 0.0
        %4943 = vmatprep.subr.mxu0 0.0
        %4944 = vmatpush1.msra.mxu0 0.0
        %4945 = vmatprep.subr.mxu0 0.0
        %4946 = vmatpush1.msra.mxu0 0.0
        %4947 = vmatprep.subr.mxu0 0.0
        %4948 = vmatpush1.msra.mxu0 0.0
        %4949 = vmatprep.subr.mxu0 0.0
        %4950 = vmatpush1.msra.mxu0 0.0
        %4951 = vmatprep.subr.mxu0 0.0
        %4952 = vmatpush1.msra.mxu0 0.0
        %4953 = vmatprep.subr.mxu0 0.0
        %4954 = vmatpush1.msra.mxu0 0.0
        %4955 = vmatprep.subr.mxu0 0.0
        %4956 = vmatpush1.msra.mxu0 0.0
        %4957 = vmatprep.subr.mxu0 0.0
        %4958 = vmatpush1.msra.mxu0 0.0
        %4959 = vmatprep.subr.mxu0 0.0
        %4960 = vmatpush1.msra.mxu0 0.0
        %4961 = vmatprep.subr.mxu0 0.0
        %4962 = vmatpush1.msra.mxu0 0.0
        %4963 = vmatprep.subr.mxu0 0.0
        %4964 = vmatpush1.msra.mxu0 0.0
        %4965 = vmatprep.subr.mxu0 %v4916
        %4966 = vmatpush1.msra.mxu0 %v4915
        %4967 = vmatprep.subr.mxu0 %v4912
        %4968 = vmatpush1.msra.mxu0 %v4911
        %4969 = vmatprep.subr.mxu0 %v4908
        %4970 = vmatpush1.msra.mxu0 %v4907
        %4971 = vmatprep.subr.mxu0 %v4904
        %4972 = vmatpush1.msra.mxu0 %v4903
        %4973 = vmatprep.subr.mxu0 0.0
        %4974 = vmatpush2.msra.mxu0 0.0
        %4975 = vmatprep.subr.mxu0 0.0
        %4976 = vmatpush2.msra.mxu0 0.0
        %4977 = vmatprep.subr.mxu0 0.0
        %4978 = vmatpush2.msra.mxu0 0.0
        %4979 = vmatprep.subr.mxu0 0.0
        %4980 = vmatpush2.msra.mxu0 0.0
        %4981 = vmatprep.subr.mxu0 0.0
        %4982 = vmatpush2.msra.mxu0 0.0
        %4983 = vmatprep.subr.mxu0 0.0
        %4984 = vmatpush2.msra.mxu0 0.0
        %4985 = vmatprep.subr.mxu0 0.0
        %4986 = vmatpush2.msra.mxu0 0.0
        %4987 = vmatprep.subr.mxu0 0.0
        %4988 = vmatpush2.msra.mxu0 0.0
        %4989 = vmatprep.subr.mxu0 0.0
        %4990 = vmatpush2.msra.mxu0 0.0
        %4991 = vmatprep.subr.mxu0 0.0
        %4992 = vmatpush2.msra.mxu0 0.0
        %4993 = vmatprep.subr.mxu0 0.0
        %4994 = vmatpush2.msra.mxu0 0.0
        %4995 = vmatprep.subr.mxu0 0.0
        %4996 = vmatpush2.msra.mxu0 0.0
        %4997 = vmatprep.subr.mxu0 0.0
        %4998 = vmatpush2.msra.mxu0 0.0
        %4999 = vmatprep.subr.mxu0 0.0
        %5000 = vmatpush2.msra.mxu0 0.0
        %5001 = vmatprep.subr.mxu0 0.0
        %5002 = vmatpush2.msra.mxu0 0.0
        %5003 = vmatprep.subr.mxu0 0.0
        %5004 = vmatpush2.msra.mxu0 0.0
        %5005 = vmatprep.mubr.f32.mxu0 0.0
        %5006 = vmatmul.mubr.f32.gmra.mxu0 %v3282
        %v5007 = vpop.f32.mrf.mxu0
        %v5008 = vadd.f32 %v4924, %v5007
        %v5009 = vpop.f32.mrf.mxu0
        %v5010 = vadd.f32 %v4928, %v5009
        %5011 = vmatprep.mubr.f32.mxu0 0.0
        %5012 = vmatmul.mubr.f32.gmra.mxu0 %v3285
        %v5013 = vpop.f32.mrf.mxu0
        %v5014 = vadd.f32 %v4924, %v5013
        %v5015 = vpop.f32.mrf.mxu0
        %v5016 = vadd.f32 %v4928, %v5015
        %5017 = vmatprep.mubr.f32.mxu0 0.0
        %5018 = vmatmul.mubr.f32.gmra.mxu0 %v3288
        %v5019 = vpop.f32.mrf.mxu0
        %v5020 = vadd.f32 %v4924, %v5019
        %v5021 = vpop.f32.mrf.mxu0
        %v5022 = vadd.f32 %v4928, %v5021
        %5023 = vmatprep.mubr.f32.mxu0 0.0
        %5024 = vmatmul.mubr.f32.gmra.mxu0 %v3291
        %v5025 = vpop.f32.mrf.mxu0
        %v5026 = vadd.f32 %v4924, %v5025
        %v5027 = vpop.f32.mrf.mxu0
        %v5028 = vadd.f32 %v4928, %v5027
        %5029 = vmatprep.mubr.f32.mxu0 0.0
        %5030 = vmatmul.mubr.f32.gmra.mxu0 %v3294
        %v5031 = vpop.f32.mrf.mxu0
        %v5032 = vadd.f32 %v4924, %v5031
        %v5033 = vpop.f32.mrf.mxu0
        %v5034 = vadd.f32 %v4928, %v5033
        %5035 = vmatprep.mubr.f32.mxu0 0.0
        %5036 = vmatmul.mubr.f32.gmra.mxu0 %v3297
        %v5037 = vpop.f32.mrf.mxu0
        %v5038 = vadd.f32 %v4924, %v5037
        %v5039 = vpop.f32.mrf.mxu0
        %v5040 = vadd.f32 %v4928, %v5039
        %5041 = vmatprep.mubr.f32.mxu0 0.0
        %5042 = vmatmul.mubr.f32.gmra.mxu0 %v3300
        %v5043 = vpop.f32.mrf.mxu0
        %v5044 = vadd.f32 %v4924, %v5043
        %v5045 = vpop.f32.mrf.mxu0
        %v5046 = vadd.f32 %v4928, %v5045
        %5047 = vdwg.mxu0
        %5048 = vmatprep.subr.mxu0 0.0
        %5049 = vmatpush1.msra.mxu0 0.0
        %5050 = vmatprep.subr.mxu0 0.0
        %5051 = vmatpush1.msra.mxu0 0.0
        %5052 = vmatprep.subr.mxu0 0.0
        %5053 = vmatpush1.msra.mxu0 0.0
        %5054 = vmatprep.subr.mxu0 0.0
        %5055 = vmatpush1.msra.mxu0 0.0
        %5056 = vmatprep.subr.mxu0 0.0
        %5057 = vmatpush1.msra.mxu0 0.0
        %5058 = vmatprep.subr.mxu0 0.0
        %5059 = vmatpush1.msra.mxu0 0.0
        %5060 = vmatprep.subr.mxu0 0.0
        %5061 = vmatpush1.msra.mxu0 0.0
        %5062 = vmatprep.subr.mxu0 0.0
        %5063 = vmatpush1.msra.mxu0 0.0
        %5064 = vmatprep.subr.mxu0 0.0
        %5065 = vmatpush1.msra.mxu0 0.0
        %5066 = vmatprep.subr.mxu0 0.0
        %5067 = vmatpush1.msra.mxu0 0.0
        %5068 = vmatprep.subr.mxu0 0.0
        %5069 = vmatpush1.msra.mxu0 0.0
        %5070 = vmatprep.subr.mxu0 0.0
        %5071 = vmatpush1.msra.mxu0 0.0
        %5072 = vmatprep.subr.mxu0 %v4918
        %5073 = vmatpush1.msra.mxu0 %v4917
        %5074 = vmatprep.subr.mxu0 %v4914
        %5075 = vmatpush1.msra.mxu0 %v4913
        %5076 = vmatprep.subr.mxu0 %v4910
        %5077 = vmatpush1.msra.mxu0 %v4909
        %5078 = vmatprep.subr.mxu0 %v4906
        %5079 = vmatpush1.msra.mxu0 %v4905
        %5080 = vmatprep.subr.mxu0 0.0
        %5081 = vmatpush2.msra.mxu0 0.0
        %5082 = vmatprep.subr.mxu0 0.0
        %5083 = vmatpush2.msra.mxu0 0.0
        %5084 = vmatprep.subr.mxu0 0.0
        %5085 = vmatpush2.msra.mxu0 0.0
        %5086 = vmatprep.subr.mxu0 0.0
        %5087 = vmatpush2.msra.mxu0 0.0
        %5088 = vmatprep.subr.mxu0 0.0
        %5089 = vmatpush2.msra.mxu0 0.0
        %5090 = vmatprep.subr.mxu0 0.0
        %5091 = vmatpush2.msra.mxu0 0.0
        %5092 = vmatprep.subr.mxu0 0.0
        %5093 = vmatpush2.msra.mxu0 0.0
        %5094 = vmatprep.subr.mxu0 0.0
        %5095 = vmatpush2.msra.mxu0 0.0
        %5096 = vmatprep.subr.mxu0 0.0
        %5097 = vmatpush2.msra.mxu0 0.0
        %5098 = vmatprep.subr.mxu0 0.0
        %5099 = vmatpush2.msra.mxu0 0.0
        %5100 = vmatprep.subr.mxu0 0.0
        %5101 = vmatpush2.msra.mxu0 0.0
        %5102 = vmatprep.subr.mxu0 0.0
        %5103 = vmatpush2.msra.mxu0 0.0
        %5104 = vmatprep.subr.mxu0 0.0
        %5105 = vmatpush2.msra.mxu0 0.0
        %5106 = vmatprep.subr.mxu0 0.0
        %5107 = vmatpush2.msra.mxu0 0.0
        %5108 = vmatprep.subr.mxu0 0.0
        %5109 = vmatpush2.msra.mxu0 0.0
        %5110 = vmatprep.subr.mxu0 0.0
        %5111 = vmatpush2.msra.mxu0 0.0
        %5112 = vmatprep.mubr.f32.mxu0 0.0
        %5113 = vmatmul.mubr.f32.gmra.mxu0 %v3282
        %v5114 = vpop.f32.mrf.mxu0
        %v5115 = vadd.f32 %v4932, %v5114
        %v5116 = vpop.f32.mrf.mxu0
        %v5117 = vadd.f32 %v4936, %v5116
        %5118 = vmatprep.mubr.f32.mxu0 0.0
        %5119 = vmatmul.mubr.f32.gmra.mxu0 %v3285
        %v5120 = vpop.f32.mrf.mxu0
        %v5121 = vadd.f32 %v4932, %v5120
        %v5122 = vpop.f32.mrf.mxu0
        %v5123 = vadd.f32 %v4936, %v5122
        %5124 = vmatprep.mubr.f32.mxu0 0.0
        %5125 = vmatmul.mubr.f32.gmra.mxu0 %v3288
        %v5126 = vpop.f32.mrf.mxu0
        %v5127 = vadd.f32 %v4932, %v5126
        %v5128 = vpop.f32.mrf.mxu0
        %v5129 = vadd.f32 %v4936, %v5128
        %5130 = vmatprep.mubr.f32.mxu0 0.0
        %5131 = vmatmul.mubr.f32.gmra.mxu0 %v3291
        %v5132 = vpop.f32.mrf.mxu0
        %v5133 = vadd.f32 %v4932, %v5132
        %v5134 = vpop.f32.mrf.mxu0
        %v5135 = vadd.f32 %v4936, %v5134
        %5136 = vmatprep.mubr.f32.mxu0 0.0
        %5137 = vmatmul.mubr.f32.gmra.mxu0 %v3294
        %v5138 = vpop.f32.mrf.mxu0
        %v5139 = vadd.f32 %v4932, %v5138
        %v5140 = vpop.f32.mrf.mxu0
        %v5141 = vadd.f32 %v4936, %v5140
        %5142 = vmatprep.mubr.f32.mxu0 0.0
        %5143 = vmatmul.mubr.f32.gmra.mxu0 %v3297
        %v5144 = vpop.f32.mrf.mxu0
        %v5145 = vadd.f32 %v4932, %v5144
        %v5146 = vpop.f32.mrf.mxu0
        %v5147 = vadd.f32 %v4936, %v5146
        %5148 = vmatprep.mubr.f32.mxu0 0.0
        %5149 = vmatmul.mubr.f32.gmra.mxu0 %v3300
        %v5150 = vpop.f32.mrf.mxu0
        %v5151 = vadd.f32 %v4932, %v5150
        %v5152 = vpop.f32.mrf.mxu0
        %v5153 = vadd.f32 %v4936, %v5152
        %5154 = vdwg.mxu0
        %v5155 = vmax.f32 %v5008, 0.0
        %v5156 = vmax.f32 %v5010, 0.0
        %v5157 = vmax.f32 %v5115, 0.0
        %v5158 = vmax.f32 %v5117, 0.0
        %v5159 = vmax.f32 %v5014, 0.0
        %v5160 = vmax.f32 %v5016, 0.0
        %v5161 = vmax.f32 %v5121, 0.0
        %v5162 = vmax.f32 %v5123, 0.0
        %v5163 = vmax.f32 %v5020, 0.0
        %v5164 = vmax.f32 %v5022, 0.0
        %v5165 = vmax.f32 %v5127, 0.0
        %v5166 = vmax.f32 %v5129, 0.0
        %v5167 = vmax.f32 %v5026, 0.0
        %v5168 = vmax.f32 %v5028, 0.0
        %v5169 = vmax.f32 %v5133, 0.0
        %v5170 = vmax.f32 %v5135, 0.0
        %v5171 = vmax.f32 %v5032, 0.0
        %v5172 = vmax.f32 %v5034, 0.0
        %v5173 = vmax.f32 %v5139, 0.0
        %v5174 = vmax.f32 %v5141, 0.0
        %v5175 = vmax.f32 %v5038, 0.0
        %v5176 = vmax.f32 %v5040, 0.0
        %v5177 = vmax.f32 %v5145, 0.0
        %v5178 = vmax.f32 %v5147, 0.0
        %v5179 = vmax.f32 %v5044, 0.0
        %v5180 = vmax.f32 %v5046, 0.0
        %v5181 = vmax.f32 %v5151, 0.0
        %v5182 = vmax.f32 %v5153, 0.0
        %v5183 = vld [vmem:[%s754 + $0x600] sm:$0xff]
        %v5184 = vld [vmem:[%s754 + $0x608] sm:$0xff]
        %v5185 = vld [vmem:[%s754 + $0x610] sm:$0xff]
        %v5186 = vld [vmem:[%s754 + $0x618] sm:$0xff]
        %v5187 = vld [vmem:[%s754 + $0x620] sm:$0xff]
        %v5188 = vld [vmem:[%s754 + $0x628] sm:$0xff]
        %v5189 = vld [vmem:[%s754 + $0x630] sm:$0xff]
        %v5190 = vld [vmem:[%s754 + $0x638] sm:$0xff]
        %v5191 = vld [vmem:[%s754 + $0x640] sm:$0xff]
        %v5192 = vld [vmem:[%s754 + $0x648] sm:$0xff]
        %v5193 = vld [vmem:[%s754 + $0x650] sm:$0xff]
        %v5194 = vld [vmem:[%s754 + $0x658] sm:$0xff]
        %v5195 = vld [vmem:[%s754 + $0x660] sm:$0xff]
        %v5196 = vld [vmem:[%s754 + $0x668] sm:$0xff]
        %v5197 = vld [vmem:[%s754 + $0x670] sm:$0xff]
        %v5198 = vld [vmem:[%s754 + $0x678] sm:$0xff]
        %v5199 = vld [vmem:[%s754 + $0x680] sm:$0xff]
        %v5200 = vld [vmem:[%s754 + $0x688] sm:$0xff]
        %v5201 = vld [vmem:[%s754 + $0x690] sm:$0xff]
        %v5202 = vld [vmem:[%s754 + $0x698] sm:$0xff]
        %v5203 = vld [vmem:[%s754 + $0x6a0] sm:$0xff]
        %v5204 = vld [vmem:[%s754 + $0x6a8] sm:$0xff]
        %v5205 = vld [vmem:[%s754 + $0x6b0] sm:$0xff]
        %v5206 = vld [vmem:[%s754 + $0x6b8] sm:$0xff]
        %v5207 = vld [vmem:[%s754 + $0x6c0] sm:$0xff]
        %v5208 = vld [vmem:[%s754 + $0x6c8] sm:$0xff]
        %v5209 = vld [vmem:[%s754 + $0x6d0] sm:$0xff]
        %v5210 = vld [vmem:[%s754 + $0x6d8] sm:$0xff]
        %v5211 = vld [vmem:[%s754 + $0x6e0] sm:$0xff]
        %v5212 = vld [vmem:[%s754 + $0x6e8] sm:$0xff]
        %v5213 = vld [vmem:[%s754 + $0x6f0] sm:$0xff]
        %v5214 = vld [vmem:[%s754 + $0x6f8] sm:$0xff]
        %v5215 = vld [vmem:[%s754 + $0x700] sm:$0xff]
        %v5216 = vld [vmem:[%s754 + $0x708] sm:$0xff]
        %v5217 = vld [vmem:[%s754 + $0x710] sm:$0xff]
        %v5218 = vld [vmem:[%s754 + $0x718] sm:$0xff]
        %v5219 = vld [vmem:[%s754 + $0x720] sm:$0xff]
        %v5220 = vld [vmem:[%s754 + $0x728] sm:$0xff]
        %v5221 = vld [vmem:[%s754 + $0x730] sm:$0xff]
        %v5222 = vld [vmem:[%s754 + $0x738] sm:$0xff]
        %v5223 = vld [vmem:[%s754 + $0x740] sm:$0xff]
        %v5224 = vld [vmem:[%s754 + $0x748] sm:$0xff]
        %v5225 = vld [vmem:[%s754 + $0x750] sm:$0xff]
        %v5226 = vld [vmem:[%s754 + $0x758] sm:$0xff]
        %v5227 = vld [vmem:[%s754 + $0x760] sm:$0xff]
        %v5228 = vld [vmem:[%s754 + $0x768] sm:$0xff]
        %v5229 = vld [vmem:[%s754 + $0x770] sm:$0xff]
        %v5230 = vld [vmem:[%s754 + $0x778] sm:$0xff]
        %v5231 = vld [vmem:[%s754 + $0x780] sm:$0xff]
        %v5232 = vld [vmem:[%s754 + $0x788] sm:$0xff]
        %v5233 = vld [vmem:[%s754 + $0x790] sm:$0xff]
        %v5234 = vld [vmem:[%s754 + $0x798] sm:$0xff]
        %v5235 = vld [vmem:[%s754 + $0x7a0] sm:$0xff]
        %v5236 = vld [vmem:[%s754 + $0x7a8] sm:$0xff]
        %v5237 = vld [vmem:[%s754 + $0x7b0] sm:$0xff]
        %v5238 = vld [vmem:[%s754 + $0x7b8] sm:$0xff]
        %v5239 = vld [vmem:[%s754 + $0x7c0] sm:$0xff]
        %v5240 = vld [vmem:[%s754 + $0x7c8] sm:$0xff]
        %v5241 = vld [vmem:[%s754 + $0x7d0] sm:$0xff]
        %v5242 = vld [vmem:[%s754 + $0x7d8] sm:$0xff]
        %v5243 = vld [vmem:[%s754 + $0x7e0] sm:$0xff]
        %v5244 = vld [vmem:[%s754 + $0x7e8] sm:$0xff]
        %v5245 = vld [vmem:[%s754 + $0x7f0] sm:$0xff]
        %v5246 = vld [vmem:[%s754 + $0x7f8] sm:$0xff]
        %5247 = vmatprep.subr.mxu0 0.0
        %5248 = vmatpush1.msra.mxu0 %v5198
        %5249 = vmatprep.subr.mxu0 0.0
        %5250 = vmatpush1.msra.mxu0 %v5197
        %5251 = vmatprep.subr.mxu0 0.0
        %5252 = vmatpush1.msra.mxu0 %v5196
        %5253 = vmatprep.subr.mxu0 0.0
        %5254 = vmatpush1.msra.mxu0 %v5195
        %5255 = vmatprep.subr.mxu0 0.0
        %5256 = vmatpush1.msra.mxu0 %v5194
        %5257 = vmatprep.subr.mxu0 0.0
        %5258 = vmatpush1.msra.mxu0 %v5193
        %5259 = vmatprep.subr.mxu0 0.0
        %5260 = vmatpush1.msra.mxu0 %v5192
        %5261 = vmatprep.subr.mxu0 0.0
        %5262 = vmatpush1.msra.mxu0 %v5191
        %5263 = vmatprep.subr.mxu0 0.0
        %5264 = vmatpush1.msra.mxu0 %v5190
        %5265 = vmatprep.subr.mxu0 0.0
        %5266 = vmatpush1.msra.mxu0 %v5189
        %5267 = vmatprep.subr.mxu0 0.0
        %5268 = vmatpush1.msra.mxu0 %v5188
        %5269 = vmatprep.subr.mxu0 0.0
        %5270 = vmatpush1.msra.mxu0 %v5187
        %5271 = vmatprep.subr.mxu0 0.0
        %5272 = vmatpush1.msra.mxu0 %v5186
        %5273 = vmatprep.subr.mxu0 0.0
        %5274 = vmatpush1.msra.mxu0 %v5185
        %5275 = vmatprep.subr.mxu0 0.0
        %5276 = vmatpush1.msra.mxu0 %v5184
        %5277 = vmatprep.subr.mxu0 0.0
        %5278 = vmatpush1.msra.mxu0 %v5183
        %5279 = vmatprep.subr.mxu0 0.0
        %5280 = vmatpush2.msra.mxu0 %v5214
        %5281 = vmatprep.subr.mxu0 0.0
        %5282 = vmatpush2.msra.mxu0 %v5213
        %5283 = vmatprep.subr.mxu0 0.0
        %5284 = vmatpush2.msra.mxu0 %v5212
        %5285 = vmatprep.subr.mxu0 0.0
        %5286 = vmatpush2.msra.mxu0 %v5211
        %5287 = vmatprep.subr.mxu0 0.0
        %5288 = vmatpush2.msra.mxu0 %v5210
        %5289 = vmatprep.subr.mxu0 0.0
        %5290 = vmatpush2.msra.mxu0 %v5209
        %5291 = vmatprep.subr.mxu0 0.0
        %5292 = vmatpush2.msra.mxu0 %v5208
        %5293 = vmatprep.subr.mxu0 0.0
        %5294 = vmatpush2.msra.mxu0 %v5207
        %5295 = vmatprep.subr.mxu0 0.0
        %5296 = vmatpush2.msra.mxu0 %v5206
        %5297 = vmatprep.subr.mxu0 0.0
        %5298 = vmatpush2.msra.mxu0 %v5205
        %5299 = vmatprep.subr.mxu0 0.0
        %5300 = vmatpush2.msra.mxu0 %v5204
        %5301 = vmatprep.subr.mxu0 0.0
        %5302 = vmatpush2.msra.mxu0 %v5203
        %5303 = vmatprep.subr.mxu0 0.0
        %5304 = vmatpush2.msra.mxu0 %v5202
        %5305 = vmatprep.subr.mxu0 0.0
        %5306 = vmatpush2.msra.mxu0 %v5201
        %5307 = vmatprep.subr.mxu0 0.0
        %5308 = vmatpush2.msra.mxu0 %v5200
        %5309 = vmatprep.subr.mxu0 0.0
        %5310 = vmatpush2.msra.mxu0 %v5199
        %5311 = vmatprep.mubr.f32.mxu0 %v5156
        %5312 = vmatmul.mubr.f32.gmra.mxu0 %v5155
        %v5313 = vpop.f32.mrf.mxu0
        %v5314 = vadd.f32 0.0, %v5313
        %v5315 = vpop.f32.mrf.mxu0
        %5316 = vmatprep.mubr.f32.mxu0 %v5160
        %5317 = vmatmul.mubr.f32.gmra.mxu0 %v5159
        %v5318 = vpop.f32.mrf.mxu0
        %v5319 = vadd.f32 0.0, %v5318
        %v5320 = vpop.f32.mrf.mxu0
        %5321 = vmatprep.mubr.f32.mxu0 %v5164
        %5322 = vmatmul.mubr.f32.gmra.mxu0 %v5163
        %v5323 = vpop.f32.mrf.mxu0
        %v5324 = vadd.f32 0.0, %v5323
        %v5325 = vpop.f32.mrf.mxu0
        %5326 = vmatprep.mubr.f32.mxu0 %v5168
        %5327 = vmatmul.mubr.f32.gmra.mxu0 %v5167
        %v5328 = vpop.f32.mrf.mxu0
        %v5329 = vadd.f32 0.0, %v5328
        %v5330 = vpop.f32.mrf.mxu0
        %5331 = vmatprep.mubr.f32.mxu0 %v5172
        %5332 = vmatmul.mubr.f32.gmra.mxu0 %v5171
        %v5333 = vpop.f32.mrf.mxu0
        %v5334 = vadd.f32 0.0, %v5333
        %v5335 = vpop.f32.mrf.mxu0
        %5336 = vmatprep.mubr.f32.mxu0 %v5176
        %5337 = vmatmul.mubr.f32.gmra.mxu0 %v5175
        %v5338 = vpop.f32.mrf.mxu0
        %v5339 = vadd.f32 0.0, %v5338
        %v5340 = vpop.f32.mrf.mxu0
        %5341 = vmatprep.mubr.f32.mxu0 %v5180
        %5342 = vmatmul.mubr.f32.gmra.mxu0 %v5179
        %v5343 = vpop.f32.mrf.mxu0
        %v5344 = vadd.f32 0.0, %v5343
        %v5345 = vpop.f32.mrf.mxu0
        %5346 = vdwg.mxu0
        %5347 = vmatprep.subr.mxu0 0.0
        %5348 = vmatpush1.msra.mxu0 %v5230
        %5349 = vmatprep.subr.mxu0 0.0
        %5350 = vmatpush1.msra.mxu0 %v5229
        %5351 = vmatprep.subr.mxu0 0.0
        %5352 = vmatpush1.msra.mxu0 %v5228
        %5353 = vmatprep.subr.mxu0 0.0
        %5354 = vmatpush1.msra.mxu0 %v5227
        %5355 = vmatprep.subr.mxu0 0.0
        %5356 = vmatpush1.msra.mxu0 %v5226
        %5357 = vmatprep.subr.mxu0 0.0
        %5358 = vmatpush1.msra.mxu0 %v5225
        %5359 = vmatprep.subr.mxu0 0.0
        %5360 = vmatpush1.msra.mxu0 %v5224
        %5361 = vmatprep.subr.mxu0 0.0
        %5362 = vmatpush1.msra.mxu0 %v5223
        %5363 = vmatprep.subr.mxu0 0.0
        %5364 = vmatpush1.msra.mxu0 %v5222
        %5365 = vmatprep.subr.mxu0 0.0
        %5366 = vmatpush1.msra.mxu0 %v5221
        %5367 = vmatprep.subr.mxu0 0.0
        %5368 = vmatpush1.msra.mxu0 %v5220
        %5369 = vmatprep.subr.mxu0 0.0
        %5370 = vmatpush1.msra.mxu0 %v5219
        %5371 = vmatprep.subr.mxu0 0.0
        %5372 = vmatpush1.msra.mxu0 %v5218
        %5373 = vmatprep.subr.mxu0 0.0
        %5374 = vmatpush1.msra.mxu0 %v5217
        %5375 = vmatprep.subr.mxu0 0.0
        %5376 = vmatpush1.msra.mxu0 %v5216
        %5377 = vmatprep.subr.mxu0 0.0
        %5378 = vmatpush1.msra.mxu0 %v5215
        %5379 = vmatprep.subr.mxu0 0.0
        %5380 = vmatpush2.msra.mxu0 %v5246
        %5381 = vmatprep.subr.mxu0 0.0
        %5382 = vmatpush2.msra.mxu0 %v5245
        %5383 = vmatprep.subr.mxu0 0.0
        %5384 = vmatpush2.msra.mxu0 %v5244
        %5385 = vmatprep.subr.mxu0 0.0
        %5386 = vmatpush2.msra.mxu0 %v5243
        %5387 = vmatprep.subr.mxu0 0.0
        %5388 = vmatpush2.msra.mxu0 %v5242
        %5389 = vmatprep.subr.mxu0 0.0
        %5390 = vmatpush2.msra.mxu0 %v5241
        %5391 = vmatprep.subr.mxu0 0.0
        %5392 = vmatpush2.msra.mxu0 %v5240
        %5393 = vmatprep.subr.mxu0 0.0
        %5394 = vmatpush2.msra.mxu0 %v5239
        %5395 = vmatprep.subr.mxu0 0.0
        %5396 = vmatpush2.msra.mxu0 %v5238
        %5397 = vmatprep.subr.mxu0 0.0
        %5398 = vmatpush2.msra.mxu0 %v5237
        %5399 = vmatprep.subr.mxu0 0.0
        %5400 = vmatpush2.msra.mxu0 %v5236
        %5401 = vmatprep.subr.mxu0 0.0
        %5402 = vmatpush2.msra.mxu0 %v5235
        %5403 = vmatprep.subr.mxu0 0.0
        %5404 = vmatpush2.msra.mxu0 %v5234
        %5405 = vmatprep.subr.mxu0 0.0
        %5406 = vmatpush2.msra.mxu0 %v5233
        %5407 = vmatprep.subr.mxu0 0.0
        %5408 = vmatpush2.msra.mxu0 %v5232
        %5409 = vmatprep.subr.mxu0 0.0
        %5410 = vmatpush2.msra.mxu0 %v5231
        %5411 = vmatprep.mubr.f32.mxu0 %v5158
        %5412 = vmatmul.mubr.f32.gmra.mxu0 %v5157
        %v5413 = vpop.f32.mrf.mxu0
        %v5414 = vadd.f32 %v5314, %v5413
        %v5415 = vpop.f32.mrf.mxu0
        %5416 = vmatprep.mubr.f32.mxu0 %v5162
        %5417 = vmatmul.mubr.f32.gmra.mxu0 %v5161
        %v5418 = vpop.f32.mrf.mxu0
        %v5419 = vadd.f32 %v5319, %v5418
        %v5420 = vpop.f32.mrf.mxu0
        %5421 = vmatprep.mubr.f32.mxu0 %v5166
        %5422 = vmatmul.mubr.f32.gmra.mxu0 %v5165
        %v5423 = vpop.f32.mrf.mxu0
        %v5424 = vadd.f32 %v5324, %v5423
        %v5425 = vpop.f32.mrf.mxu0
        %5426 = vmatprep.mubr.f32.mxu0 %v5170
        %5427 = vmatmul.mubr.f32.gmra.mxu0 %v5169
        %v5428 = vpop.f32.mrf.mxu0
        %v5429 = vadd.f32 %v5329, %v5428
        %v5430 = vpop.f32.mrf.mxu0
        %5431 = vmatprep.mubr.f32.mxu0 %v5174
        %5432 = vmatmul.mubr.f32.gmra.mxu0 %v5173
        %v5433 = vpop.f32.mrf.mxu0
        %v5434 = vadd.f32 %v5334, %v5433
        %v5435 = vpop.f32.mrf.mxu0
        %5436 = vmatprep.mubr.f32.mxu0 %v5178
        %5437 = vmatmul.mubr.f32.gmra.mxu0 %v5177
        %v5438 = vpop.f32.mrf.mxu0
        %v5439 = vadd.f32 %v5339, %v5438
        %v5440 = vpop.f32.mrf.mxu0
        %5441 = vmatprep.mubr.f32.mxu0 %v5182
        %5442 = vmatmul.mubr.f32.gmra.mxu0 %v5181
        %v5443 = vpop.f32.mrf.mxu0
        %v5444 = vadd.f32 %v5344, %v5443
        %v5445 = vpop.f32.mrf.mxu0
        %5446 = vdwg.mxu0
        %v5447 = vadd.f32 %v4896, %v5414
        %v5448 = vadd.f32 %v4897, %v5419
        %v5449 = vadd.f32 %v4898, %v5424
        %v5450 = vadd.f32 %v4899, %v5429
        %v5451 = vadd.f32 %v4900, %v5434
        %v5452 = vadd.f32 %v4901, %v5439
        %v5453 = vadd.f32 %v4902, %v5444
        %v5454 = vld [vmem:[%s757] sm:$0x1]
        %v5456 = vlaneseq
        %v5457 = vshrl.u32 %v5456, 7
        %v5458 = vsub.s32 0, %v5457
        %v5459 = vrot.slane %v5454, %v5458
        %v5461 = vadd.f32 %v5447, %v5459
        %v5462 = vadd.f32 %v5448, %v5459
        %v5463 = vadd.f32 %v5449, %v5459
        %v5464 = vadd.f32 %v5450, %v5459
        %v5465 = vadd.f32 %v5451, %v5459
        %v5466 = vadd.f32 %v5452, %v5459
        %v5467 = vadd.f32 %v5453, %v5459
        %v5468 = vadd.f32 %v3236, %v5461
        %v5469 = vadd.f32 %v3237, %v5462
        %v5470 = vadd.f32 %v3238, %v5463
        %v5471 = vadd.f32 %v3239, %v5464
        %v5472 = vadd.f32 %v3240, %v5465
        %v5473 = vadd.f32 %v3241, %v5466
        %v5474 = vadd.f32 %v3242, %v5467
        %v5475 = vld [vmem:[%s760] sm:$0x1]
        %v5476 = vld [vmem:[%s763] sm:$0x1]
        %v5477 = vsel %vm962, %v5468, 0.0
        %5478 = vadd.xlane.f32.xlu0 %v5477
        %v5479 = vpop.xlane.xlu0 %5478
        %v5480 = vsel %vm962, %v5469, 0.0
        %5481 = vadd.xlane.f32.xlu0 %v5480
        %v5482 = vpop.xlane.xlu0 %5481
        %v5483 = vsel %vm962, %v5470, 0.0
        %5484 = vadd.xlane.f32.xlu0 %v5483
        %v5485 = vpop.xlane.xlu0 %5484
        %v5486 = vsel %vm962, %v5471, 0.0
        %5487 = vadd.xlane.f32.xlu0 %v5486
        %v5488 = vpop.xlane.xlu0 %5487
        %v5489 = vsel %vm962, %v5472, 0.0
        %5490 = vadd.xlane.f32.xlu0 %v5489
        %v5491 = vpop.xlane.xlu0 %5490
        %v5492 = vsel %vm962, %v5473, 0.0
        %5493 = vadd.xlane.f32.xlu0 %v5492
        %v5494 = vpop.xlane.xlu0 %5493
        %v5495 = vsel %vm3142, %v5474, 0.0
        %5496 = vadd.xlane.f32.xlu0 %v5495
        %v5497 = vpop.xlane.xlu0 %5496
        %v5498 = vmul.f32 %v5479, %v3146
        %v5499 = vmul.f32 %v5482, %v3146
        %v5500 = vmul.f32 %v5485, %v3146
        %v5501 = vmul.f32 %v5488, %v3146
        %v5502 = vmul.f32 %v5491, %v3146
        %v5503 = vmul.f32 %v5494, %v3146
        %v5504 = vmul.f32 %v5497, %v3146
        %v5505 = vsub.f32 %v5468, %v5498
        %v5506 = vsub.f32 %v5469, %v5499
        %v5507 = vsub.f32 %v5470, %v5500
        %v5508 = vsub.f32 %v5471, %v5501
        %v5509 = vsub.f32 %v5472, %v5502
        %v5510 = vsub.f32 %v5473, %v5503
        %v5511 = vsub.f32 %v5474, %v5504
        %v5512 = vmul.f32 %v5505, %v5505
        %v5513 = vmul.f32 %v5506, %v5506
        %v5514 = vmul.f32 %v5507, %v5507
        %v5515 = vmul.f32 %v5508, %v5508
        %v5516 = vmul.f32 %v5509, %v5509
        %v5517 = vmul.f32 %v5510, %v5510
        %v5518 = vmul.f32 %v5511, %v5511
        %v5519 = vsel %vm962, %v5512, 0.0
        %5520 = vadd.xlane.f32.xlu0 %v5519
        %v5521 = vpop.xlane.xlu0 %5520
        %v5522 = vsel %vm962, %v5513, 0.0
        %5523 = vadd.xlane.f32.xlu0 %v5522
        %v5524 = vpop.xlane.xlu0 %5523
        %v5525 = vsel %vm962, %v5514, 0.0
        %5526 = vadd.xlane.f32.xlu0 %v5525
        %v5527 = vpop.xlane.xlu0 %5526
        %v5528 = vsel %vm962, %v5515, 0.0
        %5529 = vadd.xlane.f32.xlu0 %v5528
        %v5530 = vpop.xlane.xlu0 %5529
        %v5531 = vsel %vm962, %v5516, 0.0
        %5532 = vadd.xlane.f32.xlu0 %v5531
        %v5533 = vpop.xlane.xlu0 %5532
        %v5534 = vsel %vm962, %v5517, 0.0
        %5535 = vadd.xlane.f32.xlu0 %v5534
        %v5536 = vpop.xlane.xlu0 %5535
        %v5537 = vsel %vm3142, %v5518, 0.0
        %5538 = vadd.xlane.f32.xlu0 %v5537
        %v5539 = vpop.xlane.xlu0 %5538
        %v5540 = vmul.f32 %v5521, %v3146
        %v5541 = vmul.f32 %v5524, %v3146
        %v5542 = vmul.f32 %v5527, %v3146
        %v5543 = vmul.f32 %v5530, %v3146
        %v5544 = vmul.f32 %v5533, %v3146
        %v5545 = vmul.f32 %v5536, %v3146
        %v5546 = vmul.f32 %v5539, %v3146
        %v5547 = vadd.f32 %v5540, 1e-05
        %v5548 = vadd.f32 %v5541, 1e-05
        %v5549 = vadd.f32 %v5542, 1e-05
        %v5550 = vadd.f32 %v5543, 1e-05
        %v5551 = vadd.f32 %v5544, 1e-05
        %v5552 = vadd.f32 %v5545, 1e-05
        %v5553 = vadd.f32 %v5546, 1e-05
        %v5554 = vrsqrt.pop %v5547
        %v5555 = vrsqrt.pop %v5548
        %v5556 = vrsqrt.pop %v5549
        %v5557 = vrsqrt.pop %v5550
        %v5558 = vrsqrt.pop %v5551
        %v5559 = vrsqrt.pop %v5552
        %v5560 = vrsqrt.pop %v5553
        %v5561 = vmul.f32 %v5505, %v5554
        %v5562 = vmul.f32 %v5506, %v5555
        %v5563 = vmul.f32 %v5507, %v5556
        %v5564 = vmul.f32 %v5508, %v5557
        %v5565 = vmul.f32 %v5509, %v5558
        %v5566 = vmul.f32 %v5510, %v5559
        %v5567 = vmul.f32 %v5511, %v5560
        %v5569 = vlaneseq
        %v5570 = vshrl.u32 %v5569, 7
        %v5571 = vsub.s32 0, %v5570
        %v5572 = vrot.slane %v5475, %v5571
        %v5574 = vmul.f32 %v5561, %v5572
        %v5575 = vmul.f32 %v5562, %v5572
        %v5576 = vmul.f32 %v5563, %v5572
        %v5577 = vmul.f32 %v5564, %v5572
        %v5578 = vmul.f32 %v5565, %v5572
        %v5579 = vmul.f32 %v5566, %v5572
        %v5580 = vmul.f32 %v5567, %v5572
        %v5582 = vlaneseq
        %v5583 = vshrl.u32 %v5582, 7
        %v5584 = vsub.s32 0, %v5583
        %v5585 = vrot.slane %v5476, %v5584
        %v5587 = vadd.f32 %v5574, %v5585
        %v5588 = vadd.f32 %v5575, %v5585
        %v5589 = vadd.f32 %v5576, %v5585
        %v5590 = vadd.f32 %v5577, %v5585
        %v5591 = vadd.f32 %v5578, %v5585
        %v5592 = vadd.f32 %v5579, %v5585
        %v5593 = vadd.f32 %v5580, %v5585
        %5594 = vst.msk [vmem:[#allocation2] sm:$0xff] %vm962, %v5587
        %5595 = vst.msk [vmem:[#allocation2 + $0x8] sm:$0xff] %vm962, %v5588
        %5596 = vst.msk [vmem:[#allocation2 + $0x10] sm:$0xff] %vm962, %v5589
        %5597 = vst.msk [vmem:[#allocation2 + $0x18] sm:$0xff] %vm962, %v5590
        %5598 = vst.msk [vmem:[#allocation2 + $0x20] sm:$0xff] %vm962, %v5591
        %5599 = vst.msk [vmem:[#allocation2 + $0x28] sm:$0xff] %vm962, %v5592
        %5600 = vst.msk [vmem:[#allocation2 + $0x30] sm:$0x3] %vm3142, %v5593
        %p5601 = scmp.eq.s32.totalorder %s31, 1
        // Predicated region
        $region101: #{transformer_forward.1} parent=95 // pred_check
          %p5602 = pneg %p5601
        $region102: #{transformer_forward.1} parent=95 // pred_check_branch
          %5604 = sbr.rel (%p5602) target = $region104
        $region103: #{transformer_forward.1} parent=95 // pred_region
          %v5605 = vld [vmem:[%s17] sm:$0xff]
          %v5606 = vld [vmem:[%s17 + $0x8] sm:$0xff]
          %v5607 = vld [vmem:[%s17 + $0x10] sm:$0xff]
          %v5608 = vld [vmem:[%s17 + $0x18] sm:$0xff]
          %v5609 = vld [vmem:[%s17 + $0x20] sm:$0xff]
          %v5610 = vld [vmem:[%s17 + $0x28] sm:$0xff]
          %v5611 = vld [vmem:[%s17 + $0x30] sm:$0x3]
          %v5612 = vld [vmem:[%s17 + $0x38] sm:$0xff]
          %v5613 = vld [vmem:[%s17 + $0x40] sm:$0xff]
          %v5614 = vld [vmem:[%s17 + $0x48] sm:$0xff]
          %v5615 = vld [vmem:[%s17 + $0x50] sm:$0xff]
          %v5616 = vld [vmem:[%s17 + $0x58] sm:$0xff]
          %v5617 = vld [vmem:[%s17 + $0x60] sm:$0xff]
          %v5618 = vld [vmem:[%s17 + $0x68] sm:$0x3]
          %v5619 = vld [vmem:[%s17 + $0x70] sm:$0xff]
          %v5620 = vld [vmem:[%s17 + $0x78] sm:$0xff]
          %v5621 = vld [vmem:[%s17 + $0x80] sm:$0xff]
          %v5622 = vld [vmem:[%s17 + $0x88] sm:$0xff]
          %v5623 = vld [vmem:[%s17 + $0x90] sm:$0xff]
          %v5624 = vld [vmem:[%s17 + $0x98] sm:$0xff]
          %v5625 = vld [vmem:[%s17 + $0xa0] sm:$0x3]
          %v5626 = vld [vmem:[%s17 + $0xa8] sm:$0xff]
          %v5627 = vld [vmem:[%s17 + $0xb0] sm:$0xff]
          %v5628 = vld [vmem:[%s17 + $0xb8] sm:$0xff]
          %v5629 = vld [vmem:[%s17 + $0xc0] sm:$0xff]
          %v5630 = vld [vmem:[%s17 + $0xc8] sm:$0xff]
          %v5631 = vld [vmem:[%s17 + $0xd0] sm:$0xff]
          %v5632 = vld [vmem:[%s17 + $0xd8] sm:$0x3]
          %v5633 = vld [vmem:[%s17 + $0xe0] sm:$0xff]
          %v5634 = vld [vmem:[%s17 + $0xe8] sm:$0xff]
          %v5635 = vld [vmem:[%s17 + $0xf0] sm:$0xff]
          %v5636 = vld [vmem:[%s17 + $0xf8] sm:$0xff]
          %v5637 = vld [vmem:[%s17 + $0x100] sm:$0xff]
          %v5638 = vld [vmem:[%s17 + $0x108] sm:$0xff]
          %v5639 = vld [vmem:[%s17 + $0x110] sm:$0x3]
          %v5640 = vld [vmem:[%s17 + $0x118] sm:$0xff]
          %v5641 = vld [vmem:[%s17 + $0x120] sm:$0xff]
          %v5642 = vld [vmem:[%s17 + $0x128] sm:$0xff]
          %v5643 = vld [vmem:[%s17 + $0x130] sm:$0xff]
          %v5644 = vld [vmem:[%s17 + $0x138] sm:$0xff]
          %v5645 = vld [vmem:[%s17 + $0x140] sm:$0xff]
          %v5646 = vld [vmem:[%s17 + $0x148] sm:$0x3]
          %v5647 = vld [vmem:[%s17 + $0x150] sm:$0xff]
          %v5648 = vld [vmem:[%s17 + $0x158] sm:$0xff]
          %v5649 = vld [vmem:[%s17 + $0x160] sm:$0xff]
          %v5650 = vld [vmem:[%s17 + $0x168] sm:$0xff]
          %v5651 = vld [vmem:[%s17 + $0x170] sm:$0xff]
          %v5652 = vld [vmem:[%s17 + $0x178] sm:$0xff]
          %v5653 = vld [vmem:[%s17 + $0x180] sm:$0x3]
          %v5654 = vld [vmem:[%s17 + $0x188] sm:$0xff]
          %v5655 = vld [vmem:[%s17 + $0x190] sm:$0xff]
          %v5656 = vld [vmem:[%s17 + $0x198] sm:$0xff]
          %v5657 = vld [vmem:[%s17 + $0x1a0] sm:$0xff]
          %v5658 = vld [vmem:[%s17 + $0x1a8] sm:$0xff]
          %v5659 = vld [vmem:[%s17 + $0x1b0] sm:$0xff]
          %v5660 = vld [vmem:[%s17 + $0x1b8] sm:$0x3]
          %v5661 = vld [vmem:[%s17 + $0x1c0] sm:$0xff]
          %v5662 = vld [vmem:[%s17 + $0x1c8] sm:$0xff]
          %v5663 = vld [vmem:[%s17 + $0x1d0] sm:$0xff]
          %v5664 = vld [vmem:[%s17 + $0x1d8] sm:$0xff]
          %v5665 = vld [vmem:[%s17 + $0x1e0] sm:$0xff]
          %v5666 = vld [vmem:[%s17 + $0x1e8] sm:$0xff]
          %v5667 = vld [vmem:[%s17 + $0x1f0] sm:$0x3]
          %v5668 = vld [vmem:[%s17 + $0x1f8] sm:$0xff]
          %v5669 = vld [vmem:[%s17 + $0x200] sm:$0xff]
          %v5670 = vld [vmem:[%s17 + $0x208] sm:$0xff]
          %v5671 = vld [vmem:[%s17 + $0x210] sm:$0xff]
          %v5672 = vld [vmem:[%s17 + $0x218] sm:$0xff]
          %v5673 = vld [vmem:[%s17 + $0x220] sm:$0xff]
          %v5674 = vld [vmem:[%s17 + $0x228] sm:$0x3]
          %v5675 = vld [vmem:[%s17 + $0x230] sm:$0xff]
          %v5676 = vld [vmem:[%s17 + $0x238] sm:$0xff]
          %v5677 = vld [vmem:[%s17 + $0x240] sm:$0xff]
          %v5678 = vld [vmem:[%s17 + $0x248] sm:$0xff]
          %v5679 = vld [vmem:[%s17 + $0x250] sm:$0xff]
          %v5680 = vld [vmem:[%s17 + $0x258] sm:$0xff]
          %v5681 = vld [vmem:[%s17 + $0x260] sm:$0x3]
          %v5682 = vld [vmem:[%s17 + $0x268] sm:$0xff]
          %v5683 = vld [vmem:[%s17 + $0x270] sm:$0xff]
          %v5684 = vld [vmem:[%s17 + $0x278] sm:$0xff]
          %v5685 = vld [vmem:[%s17 + $0x280] sm:$0xff]
          %v5686 = vld [vmem:[%s17 + $0x288] sm:$0xff]
          %v5687 = vld [vmem:[%s17 + $0x290] sm:$0xff]
          %v5688 = vld [vmem:[%s17 + $0x298] sm:$0x3]
          %v5689 = vld [vmem:[%s17 + $0x2a0] sm:$0xff]
          %v5690 = vld [vmem:[%s17 + $0x2a8] sm:$0xff]
          %v5691 = vld [vmem:[%s17 + $0x2b0] sm:$0xff]
          %v5692 = vld [vmem:[%s17 + $0x2b8] sm:$0xff]
          %v5693 = vld [vmem:[%s17 + $0x2c0] sm:$0xff]
          %v5694 = vld [vmem:[%s17 + $0x2c8] sm:$0xff]
          %v5695 = vld [vmem:[%s17 + $0x2d0] sm:$0x3]
          %v5696 = vld [vmem:[%s17 + $0x2d8] sm:$0xff]
          %v5697 = vld [vmem:[%s17 + $0x2e0] sm:$0xff]
          %v5698 = vld [vmem:[%s17 + $0x2e8] sm:$0xff]
          %v5699 = vld [vmem:[%s17 + $0x2f0] sm:$0xff]
          %v5700 = vld [vmem:[%s17 + $0x2f8] sm:$0xff]
          %v5701 = vld [vmem:[%s17 + $0x300] sm:$0xff]
          %v5702 = vld [vmem:[%s17 + $0x308] sm:$0x3]
          %v5703 = vld [vmem:[%s17 + $0x310] sm:$0xff]
          %v5704 = vld [vmem:[%s17 + $0x318] sm:$0xff]
          %v5705 = vld [vmem:[%s17 + $0x320] sm:$0xff]
          %v5706 = vld [vmem:[%s17 + $0x328] sm:$0xff]
          %v5707 = vld [vmem:[%s17 + $0x330] sm:$0xff]
          %v5708 = vld [vmem:[%s17 + $0x338] sm:$0xff]
          %v5709 = vld [vmem:[%s17 + $0x340] sm:$0x3]
          %v5710 = vld [vmem:[%s17 + $0x348] sm:$0xff]
          %v5711 = vld [vmem:[%s17 + $0x350] sm:$0xff]
          %v5712 = vld [vmem:[%s17 + $0x358] sm:$0xff]
          %v5713 = vld [vmem:[%s17 + $0x360] sm:$0xff]
          %v5714 = vld [vmem:[%s17 + $0x368] sm:$0xff]
          %v5715 = vld [vmem:[%s17 + $0x370] sm:$0xff]
          %v5716 = vld [vmem:[%s17 + $0x378] sm:$0x3]
          %v5717 = vmul.f32 %v5587, %v5605
          %v5718 = vmul.f32 %v5588, %v5606
          %v5719 = vmul.f32 %v5589, %v5607
          %v5720 = vmul.f32 %v5590, %v5608
          %v5721 = vmul.f32 %v5591, %v5609
          %v5722 = vmul.f32 %v5592, %v5610
          %v5723 = vmul.f32 %v5593, %v5611
          %v5724 = vmul.f32 %v5587, %v5612
          %v5725 = vmul.f32 %v5588, %v5613
          %v5726 = vmul.f32 %v5589, %v5614
          %v5727 = vmul.f32 %v5590, %v5615
          %v5728 = vmul.f32 %v5591, %v5616
          %v5729 = vmul.f32 %v5592, %v5617
          %v5730 = vmul.f32 %v5593, %v5618
          %v5731 = vmul.f32 %v5587, %v5619
          %v5732 = vmul.f32 %v5588, %v5620
          %v5733 = vmul.f32 %v5589, %v5621
          %v5734 = vmul.f32 %v5590, %v5622
          %v5735 = vmul.f32 %v5591, %v5623
          %v5736 = vmul.f32 %v5592, %v5624
          %v5737 = vmul.f32 %v5593, %v5625
          %v5738 = vmul.f32 %v5587, %v5626
          %v5739 = vmul.f32 %v5588, %v5627
          %v5740 = vmul.f32 %v5589, %v5628
          %v5741 = vmul.f32 %v5590, %v5629
          %v5742 = vmul.f32 %v5591, %v5630
          %v5743 = vmul.f32 %v5592, %v5631
          %v5744 = vmul.f32 %v5593, %v5632
          %v5745 = vmul.f32 %v5587, %v5633
          %v5746 = vmul.f32 %v5588, %v5634
          %v5747 = vmul.f32 %v5589, %v5635
          %v5748 = vmul.f32 %v5590, %v5636
          %v5749 = vmul.f32 %v5591, %v5637
          %v5750 = vmul.f32 %v5592, %v5638
          %v5751 = vmul.f32 %v5593, %v5639
          %v5752 = vmul.f32 %v5587, %v5640
          %v5753 = vmul.f32 %v5588, %v5641
          %v5754 = vmul.f32 %v5589, %v5642
          %v5755 = vmul.f32 %v5590, %v5643
          %v5756 = vmul.f32 %v5591, %v5644
          %v5757 = vmul.f32 %v5592, %v5645
          %v5758 = vmul.f32 %v5593, %v5646
          %v5759 = vmul.f32 %v5587, %v5647
          %v5760 = vmul.f32 %v5588, %v5648
          %v5761 = vmul.f32 %v5589, %v5649
          %v5762 = vmul.f32 %v5590, %v5650
          %v5763 = vmul.f32 %v5591, %v5651
          %v5764 = vmul.f32 %v5592, %v5652
          %v5765 = vmul.f32 %v5593, %v5653
          %v5766 = vmul.f32 %v5587, %v5654
          %v5767 = vmul.f32 %v5588, %v5655
          %v5768 = vmul.f32 %v5589, %v5656
          %v5769 = vmul.f32 %v5590, %v5657
          %v5770 = vmul.f32 %v5591, %v5658
          %v5771 = vmul.f32 %v5592, %v5659
          %v5772 = vmul.f32 %v5593, %v5660
          %v5773 = vmul.f32 %v5587, %v5661
          %v5774 = vmul.f32 %v5588, %v5662
          %v5775 = vmul.f32 %v5589, %v5663
          %v5776 = vmul.f32 %v5590, %v5664
          %v5777 = vmul.f32 %v5591, %v5665
          %v5778 = vmul.f32 %v5592, %v5666
          %v5779 = vmul.f32 %v5593, %v5667
          %v5780 = vmul.f32 %v5587, %v5668
          %v5781 = vmul.f32 %v5588, %v5669
          %v5782 = vmul.f32 %v5589, %v5670
          %v5783 = vmul.f32 %v5590, %v5671
          %v5784 = vmul.f32 %v5591, %v5672
          %v5785 = vmul.f32 %v5592, %v5673
          %v5786 = vmul.f32 %v5593, %v5674
          %v5787 = vmul.f32 %v5587, %v5675
          %v5788 = vmul.f32 %v5588, %v5676
          %v5789 = vmul.f32 %v5589, %v5677
          %v5790 = vmul.f32 %v5590, %v5678
          %v5791 = vmul.f32 %v5591, %v5679
          %v5792 = vmul.f32 %v5592, %v5680
          %v5793 = vmul.f32 %v5593, %v5681
          %v5794 = vmul.f32 %v5587, %v5682
          %v5795 = vmul.f32 %v5588, %v5683
          %v5796 = vmul.f32 %v5589, %v5684
          %v5797 = vmul.f32 %v5590, %v5685
          %v5798 = vmul.f32 %v5591, %v5686
          %v5799 = vmul.f32 %v5592, %v5687
          %v5800 = vmul.f32 %v5593, %v5688
          %v5801 = vmul.f32 %v5587, %v5689
          %v5802 = vmul.f32 %v5588, %v5690
          %v5803 = vmul.f32 %v5589, %v5691
          %v5804 = vmul.f32 %v5590, %v5692
          %v5805 = vmul.f32 %v5591, %v5693
          %v5806 = vmul.f32 %v5592, %v5694
          %v5807 = vmul.f32 %v5593, %v5695
          %v5808 = vmul.f32 %v5587, %v5696
          %v5809 = vmul.f32 %v5588, %v5697
          %v5810 = vmul.f32 %v5589, %v5698
          %v5811 = vmul.f32 %v5590, %v5699
          %v5812 = vmul.f32 %v5591, %v5700
          %v5813 = vmul.f32 %v5592, %v5701
          %v5814 = vmul.f32 %v5593, %v5702
          %v5815 = vmul.f32 %v5587, %v5703
          %v5816 = vmul.f32 %v5588, %v5704
          %v5817 = vmul.f32 %v5589, %v5705
          %v5818 = vmul.f32 %v5590, %v5706
          %v5819 = vmul.f32 %v5591, %v5707
          %v5820 = vmul.f32 %v5592, %v5708
          %v5821 = vmul.f32 %v5593, %v5709
          %v5822 = vmul.f32 %v5587, %v5710
          %v5823 = vmul.f32 %v5588, %v5711
          %v5824 = vmul.f32 %v5589, %v5712
          %v5825 = vmul.f32 %v5590, %v5713
          %v5826 = vmul.f32 %v5591, %v5714
          %v5827 = vmul.f32 %v5592, %v5715
          %v5828 = vmul.f32 %v5593, %v5716
          %v5829 = vsel %vm962, %v5717, 0.0
          %5830 = vadd.xlane.f32.xlu0 %v5829
          %v5831 = vpop.xlane.xlu0 %5830
          %v5832 = vsel %vm962, %v5718, 0.0
          %5833 = vadd.xlane.f32.xlu0 %v5832
          %v5834 = vpop.xlane.xlu0 %5833
          %v5835 = vsel %vm962, %v5719, 0.0
          %5836 = vadd.xlane.f32.xlu0 %v5835
          %v5837 = vpop.xlane.xlu0 %5836
          %v5838 = vsel %vm962, %v5720, 0.0
          %5839 = vadd.xlane.f32.xlu0 %v5838
          %v5840 = vpop.xlane.xlu0 %5839
          %v5841 = vsel %vm962, %v5721, 0.0
          %5842 = vadd.xlane.f32.xlu0 %v5841
          %v5843 = vpop.xlane.xlu0 %5842
          %v5844 = vsel %vm962, %v5722, 0.0
          %5845 = vadd.xlane.f32.xlu0 %v5844
          %v5846 = vpop.xlane.xlu0 %5845
          %v5847 = vsel %vm3142, %v5723, 0.0
          %5848 = vadd.xlane.f32.xlu0 %v5847
          %v5849 = vpop.xlane.xlu0 %5848
          %v5850 = vsel %vm962, %v5724, 0.0
          %5851 = vadd.xlane.f32.xlu0 %v5850
          %v5852 = vpop.xlane.xlu0 %5851
          %v5853 = vsel %vm962, %v5725, 0.0
          %5854 = vadd.xlane.f32.xlu0 %v5853
          %v5855 = vpop.xlane.xlu0 %5854
          %v5856 = vsel %vm962, %v5726, 0.0
          %5857 = vadd.xlane.f32.xlu0 %v5856
          %v5858 = vpop.xlane.xlu0 %5857
          %v5859 = vsel %vm962, %v5727, 0.0
          %5860 = vadd.xlane.f32.xlu0 %v5859
          %v5861 = vpop.xlane.xlu0 %5860
          %v5862 = vsel %vm962, %v5728, 0.0
          %5863 = vadd.xlane.f32.xlu0 %v5862
          %v5864 = vpop.xlane.xlu0 %5863
          %v5865 = vsel %vm962, %v5729, 0.0
          %5866 = vadd.xlane.f32.xlu0 %v5865
          %v5867 = vpop.xlane.xlu0 %5866
          %v5868 = vsel %vm3142, %v5730, 0.0
          %5869 = vadd.xlane.f32.xlu0 %v5868
          %v5870 = vpop.xlane.xlu0 %5869
          %v5871 = vsel %vm962, %v5731, 0.0
          %5872 = vadd.xlane.f32.xlu0 %v5871
          %v5873 = vpop.xlane.xlu0 %5872
          %v5874 = vsel %vm962, %v5732, 0.0
          %5875 = vadd.xlane.f32.xlu0 %v5874
          %v5876 = vpop.xlane.xlu0 %5875
          %v5877 = vsel %vm962, %v5733, 0.0
          %5878 = vadd.xlane.f32.xlu0 %v5877
          %v5879 = vpop.xlane.xlu0 %5878
          %v5880 = vsel %vm962, %v5734, 0.0
          %5881 = vadd.xlane.f32.xlu0 %v5880
          %v5882 = vpop.xlane.xlu0 %5881
          %v5883 = vsel %vm962, %v5735, 0.0
          %5884 = vadd.xlane.f32.xlu0 %v5883
          %v5885 = vpop.xlane.xlu0 %5884
          %v5886 = vsel %vm962, %v5736, 0.0
          %5887 = vadd.xlane.f32.xlu0 %v5886
          %v5888 = vpop.xlane.xlu0 %5887
          %v5889 = vsel %vm3142, %v5737, 0.0
          %5890 = vadd.xlane.f32.xlu0 %v5889
          %v5891 = vpop.xlane.xlu0 %5890
          %v5892 = vsel %vm962, %v5738, 0.0
          %5893 = vadd.xlane.f32.xlu0 %v5892
          %v5894 = vpop.xlane.xlu0 %5893
          %v5895 = vsel %vm962, %v5739, 0.0
          %5896 = vadd.xlane.f32.xlu0 %v5895
          %v5897 = vpop.xlane.xlu0 %5896
          %v5898 = vsel %vm962, %v5740, 0.0
          %5899 = vadd.xlane.f32.xlu0 %v5898
          %v5900 = vpop.xlane.xlu0 %5899
          %v5901 = vsel %vm962, %v5741, 0.0
          %5902 = vadd.xlane.f32.xlu0 %v5901
          %v5903 = vpop.xlane.xlu0 %5902
          %v5904 = vsel %vm962, %v5742, 0.0
          %5905 = vadd.xlane.f32.xlu0 %v5904
          %v5906 = vpop.xlane.xlu0 %5905
          %v5907 = vsel %vm962, %v5743, 0.0
          %5908 = vadd.xlane.f32.xlu0 %v5907
          %v5909 = vpop.xlane.xlu0 %5908
          %v5910 = vsel %vm3142, %v5744, 0.0
          %5911 = vadd.xlane.f32.xlu0 %v5910
          %v5912 = vpop.xlane.xlu0 %5911
          %v5913 = vsel %vm962, %v5745, 0.0
          %5914 = vadd.xlane.f32.xlu0 %v5913
          %v5915 = vpop.xlane.xlu0 %5914
          %v5916 = vsel %vm962, %v5746, 0.0
          %5917 = vadd.xlane.f32.xlu0 %v5916
          %v5918 = vpop.xlane.xlu0 %5917
          %v5919 = vsel %vm962, %v5747, 0.0
          %5920 = vadd.xlane.f32.xlu0 %v5919
          %v5921 = vpop.xlane.xlu0 %5920
          %v5922 = vsel %vm962, %v5748, 0.0
          %5923 = vadd.xlane.f32.xlu0 %v5922
          %v5924 = vpop.xlane.xlu0 %5923
          %v5925 = vsel %vm962, %v5749, 0.0
          %5926 = vadd.xlane.f32.xlu0 %v5925
          %v5927 = vpop.xlane.xlu0 %5926
          %v5928 = vsel %vm962, %v5750, 0.0
          %5929 = vadd.xlane.f32.xlu0 %v5928
          %v5930 = vpop.xlane.xlu0 %5929
          %v5931 = vsel %vm3142, %v5751, 0.0
          %5932 = vadd.xlane.f32.xlu0 %v5931
          %v5933 = vpop.xlane.xlu0 %5932
          %v5934 = vsel %vm962, %v5752, 0.0
          %5935 = vadd.xlane.f32.xlu0 %v5934
          %v5936 = vpop.xlane.xlu0 %5935
          %v5937 = vsel %vm962, %v5753, 0.0
          %5938 = vadd.xlane.f32.xlu0 %v5937
          %v5939 = vpop.xlane.xlu0 %5938
          %v5940 = vsel %vm962, %v5754, 0.0
          %5941 = vadd.xlane.f32.xlu0 %v5940
          %v5942 = vpop.xlane.xlu0 %5941
          %v5943 = vsel %vm962, %v5755, 0.0
          %5944 = vadd.xlane.f32.xlu0 %v5943
          %v5945 = vpop.xlane.xlu0 %5944
          %v5946 = vsel %vm962, %v5756, 0.0
          %5947 = vadd.xlane.f32.xlu0 %v5946
          %v5948 = vpop.xlane.xlu0 %5947
          %v5949 = vsel %vm962, %v5757, 0.0
          %5950 = vadd.xlane.f32.xlu0 %v5949
          %v5951 = vpop.xlane.xlu0 %5950
          %v5952 = vsel %vm3142, %v5758, 0.0
          %5953 = vadd.xlane.f32.xlu0 %v5952
          %v5954 = vpop.xlane.xlu0 %5953
          %v5955 = vsel %vm962, %v5759, 0.0
          %5956 = vadd.xlane.f32.xlu0 %v5955
          %v5957 = vpop.xlane.xlu0 %5956
          %v5958 = vsel %vm962, %v5760, 0.0
          %5959 = vadd.xlane.f32.xlu0 %v5958
          %v5960 = vpop.xlane.xlu0 %5959
          %v5961 = vsel %vm962, %v5761, 0.0
          %5962 = vadd.xlane.f32.xlu0 %v5961
          %v5963 = vpop.xlane.xlu0 %5962
          %v5964 = vsel %vm962, %v5762, 0.0
          %5965 = vadd.xlane.f32.xlu0 %v5964
          %v5966 = vpop.xlane.xlu0 %5965
          %v5967 = vsel %vm962, %v5763, 0.0
          %5968 = vadd.xlane.f32.xlu0 %v5967
          %v5969 = vpop.xlane.xlu0 %5968
          %v5970 = vsel %vm962, %v5764, 0.0
          %5971 = vadd.xlane.f32.xlu0 %v5970
          %v5972 = vpop.xlane.xlu0 %5971
          %v5973 = vsel %vm3142, %v5765, 0.0
          %5974 = vadd.xlane.f32.xlu0 %v5973
          %v5975 = vpop.xlane.xlu0 %5974
          %v5976 = vsel %vm962, %v5766, 0.0
          %5977 = vadd.xlane.f32.xlu0 %v5976
          %v5978 = vpop.xlane.xlu0 %5977
          %v5979 = vsel %vm962, %v5767, 0.0
          %5980 = vadd.xlane.f32.xlu0 %v5979
          %v5981 = vpop.xlane.xlu0 %5980
          %v5982 = vsel %vm962, %v5768, 0.0
          %5983 = vadd.xlane.f32.xlu0 %v5982
          %v5984 = vpop.xlane.xlu0 %5983
          %v5985 = vsel %vm962, %v5769, 0.0
          %5986 = vadd.xlane.f32.xlu0 %v5985
          %v5987 = vpop.xlane.xlu0 %5986
          %v5988 = vsel %vm962, %v5770, 0.0
          %5989 = vadd.xlane.f32.xlu0 %v5988
          %v5990 = vpop.xlane.xlu0 %5989
          %v5991 = vsel %vm962, %v5771, 0.0
          %5992 = vadd.xlane.f32.xlu0 %v5991
          %v5993 = vpop.xlane.xlu0 %5992
          %v5994 = vsel %vm3142, %v5772, 0.0
          %5995 = vadd.xlane.f32.xlu0 %v5994
          %v5996 = vpop.xlane.xlu0 %5995
          %v5997 = vsel %vm962, %v5773, 0.0
          %5998 = vadd.xlane.f32.xlu0 %v5997
          %v5999 = vpop.xlane.xlu0 %5998
          %v6000 = vsel %vm962, %v5774, 0.0
          %6001 = vadd.xlane.f32.xlu0 %v6000
          %v6002 = vpop.xlane.xlu0 %6001
          %v6003 = vsel %vm962, %v5775, 0.0
          %6004 = vadd.xlane.f32.xlu0 %v6003
          %v6005 = vpop.xlane.xlu0 %6004
          %v6006 = vsel %vm962, %v5776, 0.0
          %6007 = vadd.xlane.f32.xlu0 %v6006
          %v6008 = vpop.xlane.xlu0 %6007
          %v6009 = vsel %vm962, %v5777, 0.0
          %6010 = vadd.xlane.f32.xlu0 %v6009
          %v6011 = vpop.xlane.xlu0 %6010
          %v6012 = vsel %vm962, %v5778, 0.0
          %6013 = vadd.xlane.f32.xlu0 %v6012
          %v6014 = vpop.xlane.xlu0 %6013
          %v6015 = vsel %vm3142, %v5779, 0.0
          %6016 = vadd.xlane.f32.xlu0 %v6015
          %v6017 = vpop.xlane.xlu0 %6016
          %v6018 = vsel %vm962, %v5780, 0.0
          %6019 = vadd.xlane.f32.xlu0 %v6018
          %v6020 = vpop.xlane.xlu0 %6019
          %v6021 = vsel %vm962, %v5781, 0.0
          %6022 = vadd.xlane.f32.xlu0 %v6021
          %v6023 = vpop.xlane.xlu0 %6022
          %v6024 = vsel %vm962, %v5782, 0.0
          %6025 = vadd.xlane.f32.xlu0 %v6024
          %v6026 = vpop.xlane.xlu0 %6025
          %v6027 = vsel %vm962, %v5783, 0.0
          %6028 = vadd.xlane.f32.xlu0 %v6027
          %v6029 = vpop.xlane.xlu0 %6028
          %v6030 = vsel %vm962, %v5784, 0.0
          %6031 = vadd.xlane.f32.xlu0 %v6030
          %v6032 = vpop.xlane.xlu0 %6031
          %v6033 = vsel %vm962, %v5785, 0.0
          %6034 = vadd.xlane.f32.xlu0 %v6033
          %v6035 = vpop.xlane.xlu0 %6034
          %v6036 = vsel %vm3142, %v5786, 0.0
          %6037 = vadd.xlane.f32.xlu0 %v6036
          %v6038 = vpop.xlane.xlu0 %6037
          %v6039 = vsel %vm962, %v5787, 0.0
          %6040 = vadd.xlane.f32.xlu0 %v6039
          %v6041 = vpop.xlane.xlu0 %6040
          %v6042 = vsel %vm962, %v5788, 0.0
          %6043 = vadd.xlane.f32.xlu0 %v6042
          %v6044 = vpop.xlane.xlu0 %6043
          %v6045 = vsel %vm962, %v5789, 0.0
          %6046 = vadd.xlane.f32.xlu0 %v6045
          %v6047 = vpop.xlane.xlu0 %6046
          %v6048 = vsel %vm962, %v5790, 0.0
          %6049 = vadd.xlane.f32.xlu0 %v6048
          %v6050 = vpop.xlane.xlu0 %6049
          %v6051 = vsel %vm962, %v5791, 0.0
          %6052 = vadd.xlane.f32.xlu0 %v6051
          %v6053 = vpop.xlane.xlu0 %6052
          %v6054 = vsel %vm962, %v5792, 0.0
          %6055 = vadd.xlane.f32.xlu0 %v6054
          %v6056 = vpop.xlane.xlu0 %6055
          %v6057 = vsel %vm3142, %v5793, 0.0
          %6058 = vadd.xlane.f32.xlu0 %v6057
          %v6059 = vpop.xlane.xlu0 %6058
          %v6060 = vsel %vm962, %v5794, 0.0
          %6061 = vadd.xlane.f32.xlu0 %v6060
          %v6062 = vpop.xlane.xlu0 %6061
          %v6063 = vsel %vm962, %v5795, 0.0
          %6064 = vadd.xlane.f32.xlu0 %v6063
          %v6065 = vpop.xlane.xlu0 %6064
          %v6066 = vsel %vm962, %v5796, 0.0
          %6067 = vadd.xlane.f32.xlu0 %v6066
          %v6068 = vpop.xlane.xlu0 %6067
          %v6069 = vsel %vm962, %v5797, 0.0
          %6070 = vadd.xlane.f32.xlu0 %v6069
          %v6071 = vpop.xlane.xlu0 %6070
          %v6072 = vsel %vm962, %v5798, 0.0
          %6073 = vadd.xlane.f32.xlu0 %v6072
          %v6074 = vpop.xlane.xlu0 %6073
          %v6075 = vsel %vm962, %v5799, 0.0
          %6076 = vadd.xlane.f32.xlu0 %v6075
          %v6077 = vpop.xlane.xlu0 %6076
          %v6078 = vsel %vm3142, %v5800, 0.0
          %6079 = vadd.xlane.f32.xlu0 %v6078
          %v6080 = vpop.xlane.xlu0 %6079
          %v6081 = vsel %vm962, %v5801, 0.0
          %6082 = vadd.xlane.f32.xlu0 %v6081
          %v6083 = vpop.xlane.xlu0 %6082
          %v6084 = vsel %vm962, %v5802, 0.0
          %6085 = vadd.xlane.f32.xlu0 %v6084
          %v6086 = vpop.xlane.xlu0 %6085
          %v6087 = vsel %vm962, %v5803, 0.0
          %6088 = vadd.xlane.f32.xlu0 %v6087
          %v6089 = vpop.xlane.xlu0 %6088
          %v6090 = vsel %vm962, %v5804, 0.0
          %6091 = vadd.xlane.f32.xlu0 %v6090
          %v6092 = vpop.xlane.xlu0 %6091
          %v6093 = vsel %vm962, %v5805, 0.0
          %6094 = vadd.xlane.f32.xlu0 %v6093
          %v6095 = vpop.xlane.xlu0 %6094
          %v6096 = vsel %vm962, %v5806, 0.0
          %6097 = vadd.xlane.f32.xlu0 %v6096
          %v6098 = vpop.xlane.xlu0 %6097
          %v6099 = vsel %vm3142, %v5807, 0.0
          %6100 = vadd.xlane.f32.xlu0 %v6099
          %v6101 = vpop.xlane.xlu0 %6100
          %v6102 = vsel %vm962, %v5808, 0.0
          %6103 = vadd.xlane.f32.xlu0 %v6102
          %v6104 = vpop.xlane.xlu0 %6103
          %v6105 = vsel %vm962, %v5809, 0.0
          %6106 = vadd.xlane.f32.xlu0 %v6105
          %v6107 = vpop.xlane.xlu0 %6106
          %v6108 = vsel %vm962, %v5810, 0.0
          %6109 = vadd.xlane.f32.xlu0 %v6108
          %v6110 = vpop.xlane.xlu0 %6109
          %v6111 = vsel %vm962, %v5811, 0.0
          %6112 = vadd.xlane.f32.xlu0 %v6111
          %v6113 = vpop.xlane.xlu0 %6112
          %v6114 = vsel %vm962, %v5812, 0.0
          %6115 = vadd.xlane.f32.xlu0 %v6114
          %v6116 = vpop.xlane.xlu0 %6115
          %v6117 = vsel %vm962, %v5813, 0.0
          %6118 = vadd.xlane.f32.xlu0 %v6117
          %v6119 = vpop.xlane.xlu0 %6118
          %v6120 = vsel %vm3142, %v5814, 0.0
          %6121 = vadd.xlane.f32.xlu0 %v6120
          %v6122 = vpop.xlane.xlu0 %6121
          %v6123 = vsel %vm962, %v5815, 0.0
          %6124 = vadd.xlane.f32.xlu0 %v6123
          %v6125 = vpop.xlane.xlu0 %6124
          %v6126 = vsel %vm962, %v5816, 0.0
          %6127 = vadd.xlane.f32.xlu0 %v6126
          %v6128 = vpop.xlane.xlu0 %6127
          %v6129 = vsel %vm962, %v5817, 0.0
          %6130 = vadd.xlane.f32.xlu0 %v6129
          %v6131 = vpop.xlane.xlu0 %6130
          %v6132 = vsel %vm962, %v5818, 0.0
          %6133 = vadd.xlane.f32.xlu0 %v6132
          %v6134 = vpop.xlane.xlu0 %6133
          %v6135 = vsel %vm962, %v5819, 0.0
          %6136 = vadd.xlane.f32.xlu0 %v6135
          %v6137 = vpop.xlane.xlu0 %6136
          %v6138 = vsel %vm962, %v5820, 0.0
          %6139 = vadd.xlane.f32.xlu0 %v6138
          %v6140 = vpop.xlane.xlu0 %6139
          %v6141 = vsel %vm3142, %v5821, 0.0
          %6142 = vadd.xlane.f32.xlu0 %v6141
          %v6143 = vpop.xlane.xlu0 %6142
          %v6144 = vsel %vm962, %v5822, 0.0
          %6145 = vadd.xlane.f32.xlu0 %v6144
          %v6146 = vpop.xlane.xlu0 %6145
          %v6147 = vsel %vm962, %v5823, 0.0
          %6148 = vadd.xlane.f32.xlu0 %v6147
          %v6149 = vpop.xlane.xlu0 %6148
          %v6150 = vsel %vm962, %v5824, 0.0
          %6151 = vadd.xlane.f32.xlu0 %v6150
          %v6152 = vpop.xlane.xlu0 %6151
          %v6153 = vsel %vm962, %v5825, 0.0
          %6154 = vadd.xlane.f32.xlu0 %v6153
          %v6155 = vpop.xlane.xlu0 %6154
          %v6156 = vsel %vm962, %v5826, 0.0
          %6157 = vadd.xlane.f32.xlu0 %v6156
          %v6158 = vpop.xlane.xlu0 %6157
          %v6159 = vsel %vm962, %v5827, 0.0
          %6160 = vadd.xlane.f32.xlu0 %v6159
          %v6161 = vpop.xlane.xlu0 %6160
          %v6162 = vsel %vm3142, %v5828, 0.0
          %6163 = vadd.xlane.f32.xlu0 %v6162
          %v6164 = vpop.xlane.xlu0 %6163
          %v6165 = vld [vmem:[%s2] sm:$0x3]
          %v6166 = vld [vmem:[%s18] sm:$0x1]
          %v6168 = vlaneseq
          %v6169 = vshrl.u32 %v6168, 7
          %v6170 = vsub.s32 0, %v6169
          %v6171 = vrot.slane %v6166, %v6170
          %v6285 = vlaneseq
          %v6286 = vand.u32 %v6285, 127
          %v6287 = vlaneseq
          %v6288 = vshrl.u32 %v6287, 7
          %v6289 = vsub.s32 %v6286, %v6288
          %v6290 = vrot.slane %v5831, %v6289
          %v6291 = vadd.s32 %v6286, 4294967288
          %v6292 = vlaneseq
          %v6293 = vshrl.u32 %v6292, 7
          %v6294 = vsub.s32 %v6291, %v6293
          %v6295 = vrot.slane %v5834, %v6294
          %vm6296 = vcmask 130112
          %v6297 = vsel %vm6296, %v6295, %v6290
          %v6298 = vadd.s32 %v6286, 4294967280
          %v6299 = vlaneseq
          %v6300 = vshrl.u32 %v6299, 7
          %v6301 = vsub.s32 %v6298, %v6300
          %v6302 = vrot.slane %v5837, %v6301
          %vm6303 = vcmask 195712
          %v6304 = vsel %vm6303, %v6302, %v6297
          %v6305 = vadd.s32 %v6286, 4294967272
          %v6306 = vlaneseq
          %v6307 = vshrl.u32 %v6306, 7
          %v6308 = vsub.s32 %v6305, %v6307
          %v6309 = vrot.slane %v5840, %v6308
          %vm6310 = vcmask 261312
          %v6311 = vsel %vm6310, %v6309, %v6304
          %v6312 = vadd.s32 %v6286, 4294967264
          %v6313 = vlaneseq
          %v6314 = vshrl.u32 %v6313, 7
          %v6315 = vsub.s32 %v6312, %v6314
          %v6316 = vrot.slane %v5843, %v6315
          %vm6317 = vcmask 326912
          %v6318 = vsel %vm6317, %v6316, %v6311
          %v6319 = vadd.s32 %v6286, 4294967256
          %v6320 = vlaneseq
          %v6321 = vshrl.u32 %v6320, 7
          %v6322 = vsub.s32 %v6319, %v6321
          %v6323 = vrot.slane %v5846, %v6322
          %vm6324 = vcmask 392512
          %v6325 = vsel %vm6324, %v6323, %v6318
          %v6326 = vadd.s32 %v6286, 4294967248
          %v6327 = vlaneseq
          %v6328 = vshrl.u32 %v6327, 7
          %v6329 = vsub.s32 %v6326, %v6328
          %v6330 = vrot.slane %v5849, %v6329
          %vm6331 = vcmask 458112
          %v6332 = vsel %vm6331, %v6330, %v6325
          %v6333 = vlaneseq
          %v6334 = vshrl.u32 %v6333, 7
          %v6335 = vsub.s32 %v6286, %v6334
          %v6336 = vrot.slane %v5852, %v6335
          %v6337 = vlaneseq
          %v6338 = vshrl.u32 %v6337, 7
          %v6339 = vsub.s32 %v6291, %v6338
          %v6340 = vrot.slane %v5855, %v6339
          %v6341 = vsel %vm6296, %v6340, %v6336
          %v6342 = vlaneseq
          %v6343 = vshrl.u32 %v6342, 7
          %v6344 = vsub.s32 %v6298, %v6343
          %v6345 = vrot.slane %v5858, %v6344
          %v6346 = vsel %vm6303, %v6345, %v6341
          %v6347 = vlaneseq
          %v6348 = vshrl.u32 %v6347, 7
          %v6349 = vsub.s32 %v6305, %v6348
          %v6350 = vrot.slane %v5861, %v6349
          %v6351 = vsel %vm6310, %v6350, %v6346
          %v6352 = vlaneseq
          %v6353 = vshrl.u32 %v6352, 7
          %v6354 = vsub.s32 %v6312, %v6353
          %v6355 = vrot.slane %v5864, %v6354
          %v6356 = vsel %vm6317, %v6355, %v6351
          %v6357 = vlaneseq
          %v6358 = vshrl.u32 %v6357, 7
          %v6359 = vsub.s32 %v6319, %v6358
          %v6360 = vrot.slane %v5867, %v6359
          %v6361 = vsel %vm6324, %v6360, %v6356
          %v6362 = vlaneseq
          %v6363 = vshrl.u32 %v6362, 7
          %v6364 = vsub.s32 %v6326, %v6363
          %v6365 = vrot.slane %v5870, %v6364
          %v6366 = vsel %vm6331, %v6365, %v6361
          %v6367 = vlaneseq
          %v6368 = vshrl.u32 %v6367, 7
          %v6369 = vsub.s32 %v6286, %v6368
          %v6370 = vrot.slane %v5873, %v6369
          %v6371 = vlaneseq
          %v6372 = vshrl.u32 %v6371, 7
          %v6373 = vsub.s32 %v6291, %v6372
          %v6374 = vrot.slane %v5876, %v6373
          %v6375 = vsel %vm6296, %v6374, %v6370
          %v6376 = vlaneseq
          %v6377 = vshrl.u32 %v6376, 7
          %v6378 = vsub.s32 %v6298, %v6377
          %v6379 = vrot.slane %v5879, %v6378
          %v6380 = vsel %vm6303, %v6379, %v6375
          %v6381 = vlaneseq
          %v6382 = vshrl.u32 %v6381, 7
          %v6383 = vsub.s32 %v6305, %v6382
          %v6384 = vrot.slane %v5882, %v6383
          %v6385 = vsel %vm6310, %v6384, %v6380
          %v6386 = vlaneseq
          %v6387 = vshrl.u32 %v6386, 7
          %v6388 = vsub.s32 %v6312, %v6387
          %v6389 = vrot.slane %v5885, %v6388
          %v6390 = vsel %vm6317, %v6389, %v6385
          %v6391 = vlaneseq
          %v6392 = vshrl.u32 %v6391, 7
          %v6393 = vsub.s32 %v6319, %v6392
          %v6394 = vrot.slane %v5888, %v6393
          %v6395 = vsel %vm6324, %v6394, %v6390
          %v6396 = vlaneseq
          %v6397 = vshrl.u32 %v6396, 7
          %v6398 = vsub.s32 %v6326, %v6397
          %v6399 = vrot.slane %v5891, %v6398
          %v6400 = vsel %vm6331, %v6399, %v6395
          %v6401 = vlaneseq
          %v6402 = vshrl.u32 %v6401, 7
          %v6403 = vsub.s32 %v6286, %v6402
          %v6404 = vrot.slane %v5894, %v6403
          %v6405 = vlaneseq
          %v6406 = vshrl.u32 %v6405, 7
          %v6407 = vsub.s32 %v6291, %v6406
          %v6408 = vrot.slane %v5897, %v6407
          %v6409 = vsel %vm6296, %v6408, %v6404
          %v6410 = vlaneseq
          %v6411 = vshrl.u32 %v6410, 7
          %v6412 = vsub.s32 %v6298, %v6411
          %v6413 = vrot.slane %v5900, %v6412
          %v6414 = vsel %vm6303, %v6413, %v6409
          %v6415 = vlaneseq
          %v6416 = vshrl.u32 %v6415, 7
          %v6417 = vsub.s32 %v6305, %v6416
          %v6418 = vrot.slane %v5903, %v6417
          %v6419 = vsel %vm6310, %v6418, %v6414
          %v6420 = vlaneseq
          %v6421 = vshrl.u32 %v6420, 7
          %v6422 = vsub.s32 %v6312, %v6421
          %v6423 = vrot.slane %v5906, %v6422
          %v6424 = vsel %vm6317, %v6423, %v6419
          %v6425 = vlaneseq
          %v6426 = vshrl.u32 %v6425, 7
          %v6427 = vsub.s32 %v6319, %v6426
          %v6428 = vrot.slane %v5909, %v6427
          %v6429 = vsel %vm6324, %v6428, %v6424
          %v6430 = vlaneseq
          %v6431 = vshrl.u32 %v6430, 7
          %v6432 = vsub.s32 %v6326, %v6431
          %v6433 = vrot.slane %v5912, %v6432
          %v6434 = vsel %vm6331, %v6433, %v6429
          %v6435 = vlaneseq
          %v6436 = vshrl.u32 %v6435, 7
          %v6437 = vsub.s32 %v6286, %v6436
          %v6438 = vrot.slane %v5915, %v6437
          %v6439 = vlaneseq
          %v6440 = vshrl.u32 %v6439, 7
          %v6441 = vsub.s32 %v6291, %v6440
          %v6442 = vrot.slane %v5918, %v6441
          %v6443 = vsel %vm6296, %v6442, %v6438
          %v6444 = vlaneseq
          %v6445 = vshrl.u32 %v6444, 7
          %v6446 = vsub.s32 %v6298, %v6445
          %v6447 = vrot.slane %v5921, %v6446
          %v6448 = vsel %vm6303, %v6447, %v6443
          %v6449 = vlaneseq
          %v6450 = vshrl.u32 %v6449, 7
          %v6451 = vsub.s32 %v6305, %v6450
          %v6452 = vrot.slane %v5924, %v6451
          %v6453 = vsel %vm6310, %v6452, %v6448
          %v6454 = vlaneseq
          %v6455 = vshrl.u32 %v6454, 7
          %v6456 = vsub.s32 %v6312, %v6455
          %v6457 = vrot.slane %v5927, %v6456
          %v6458 = vsel %vm6317, %v6457, %v6453
          %v6459 = vlaneseq
          %v6460 = vshrl.u32 %v6459, 7
          %v6461 = vsub.s32 %v6319, %v6460
          %v6462 = vrot.slane %v5930, %v6461
          %v6463 = vsel %vm6324, %v6462, %v6458
          %v6464 = vlaneseq
          %v6465 = vshrl.u32 %v6464, 7
          %v6466 = vsub.s32 %v6326, %v6465
          %v6467 = vrot.slane %v5933, %v6466
          %v6468 = vsel %vm6331, %v6467, %v6463
          %v6469 = vlaneseq
          %v6470 = vshrl.u32 %v6469, 7
          %v6471 = vsub.s32 %v6286, %v6470
          %v6472 = vrot.slane %v5936, %v6471
          %v6473 = vlaneseq
          %v6474 = vshrl.u32 %v6473, 7
          %v6475 = vsub.s32 %v6291, %v6474
          %v6476 = vrot.slane %v5939, %v6475
          %v6477 = vsel %vm6296, %v6476, %v6472
          %v6478 = vlaneseq
          %v6479 = vshrl.u32 %v6478, 7
          %v6480 = vsub.s32 %v6298, %v6479
          %v6481 = vrot.slane %v5942, %v6480
          %v6482 = vsel %vm6303, %v6481, %v6477
          %v6483 = vlaneseq
          %v6484 = vshrl.u32 %v6483, 7
          %v6485 = vsub.s32 %v6305, %v6484
          %v6486 = vrot.slane %v5945, %v6485
          %v6487 = vsel %vm6310, %v6486, %v6482
          %v6488 = vlaneseq
          %v6489 = vshrl.u32 %v6488, 7
          %v6490 = vsub.s32 %v6312, %v6489
          %v6491 = vrot.slane %v5948, %v6490
          %v6492 = vsel %vm6317, %v6491, %v6487
          %v6493 = vlaneseq
          %v6494 = vshrl.u32 %v6493, 7
          %v6495 = vsub.s32 %v6319, %v6494
          %v6496 = vrot.slane %v5951, %v6495
          %v6497 = vsel %vm6324, %v6496, %v6492
          %v6498 = vlaneseq
          %v6499 = vshrl.u32 %v6498, 7
          %v6500 = vsub.s32 %v6326, %v6499
          %v6501 = vrot.slane %v5954, %v6500
          %v6502 = vsel %vm6331, %v6501, %v6497
          %v6503 = vlaneseq
          %v6504 = vshrl.u32 %v6503, 7
          %v6505 = vsub.s32 %v6286, %v6504
          %v6506 = vrot.slane %v5957, %v6505
          %v6507 = vlaneseq
          %v6508 = vshrl.u32 %v6507, 7
          %v6509 = vsub.s32 %v6291, %v6508
          %v6510 = vrot.slane %v5960, %v6509
          %v6511 = vsel %vm6296, %v6510, %v6506
          %v6512 = vlaneseq
          %v6513 = vshrl.u32 %v6512, 7
          %v6514 = vsub.s32 %v6298, %v6513
          %v6515 = vrot.slane %v5963, %v6514
          %v6516 = vsel %vm6303, %v6515, %v6511
          %v6517 = vlaneseq
          %v6518 = vshrl.u32 %v6517, 7
          %v6519 = vsub.s32 %v6305, %v6518
          %v6520 = vrot.slane %v5966, %v6519
          %v6521 = vsel %vm6310, %v6520, %v6516
          %v6522 = vlaneseq
          %v6523 = vshrl.u32 %v6522, 7
          %v6524 = vsub.s32 %v6312, %v6523
          %v6525 = vrot.slane %v5969, %v6524
          %v6526 = vsel %vm6317, %v6525, %v6521
          %v6527 = vlaneseq
          %v6528 = vshrl.u32 %v6527, 7
          %v6529 = vsub.s32 %v6319, %v6528
          %v6530 = vrot.slane %v5972, %v6529
          %v6531 = vsel %vm6324, %v6530, %v6526
          %v6532 = vlaneseq
          %v6533 = vshrl.u32 %v6532, 7
          %v6534 = vsub.s32 %v6326, %v6533
          %v6535 = vrot.slane %v5975, %v6534
          %v6536 = vsel %vm6331, %v6535, %v6531
          %v6537 = vlaneseq
          %v6538 = vshrl.u32 %v6537, 7
          %v6539 = vsub.s32 %v6286, %v6538
          %v6540 = vrot.slane %v5978, %v6539
          %v6541 = vlaneseq
          %v6542 = vshrl.u32 %v6541, 7
          %v6543 = vsub.s32 %v6291, %v6542
          %v6544 = vrot.slane %v5981, %v6543
          %v6545 = vsel %vm6296, %v6544, %v6540
          %v6546 = vlaneseq
          %v6547 = vshrl.u32 %v6546, 7
          %v6548 = vsub.s32 %v6298, %v6547
          %v6549 = vrot.slane %v5984, %v6548
          %v6550 = vsel %vm6303, %v6549, %v6545
          %v6551 = vlaneseq
          %v6552 = vshrl.u32 %v6551, 7
          %v6553 = vsub.s32 %v6305, %v6552
          %v6554 = vrot.slane %v5987, %v6553
          %v6555 = vsel %vm6310, %v6554, %v6550
          %v6556 = vlaneseq
          %v6557 = vshrl.u32 %v6556, 7
          %v6558 = vsub.s32 %v6312, %v6557
          %v6559 = vrot.slane %v5990, %v6558
          %v6560 = vsel %vm6317, %v6559, %v6555
          %v6561 = vlaneseq
          %v6562 = vshrl.u32 %v6561, 7
          %v6563 = vsub.s32 %v6319, %v6562
          %v6564 = vrot.slane %v5993, %v6563
          %v6565 = vsel %vm6324, %v6564, %v6560
          %v6566 = vlaneseq
          %v6567 = vshrl.u32 %v6566, 7
          %v6568 = vsub.s32 %v6326, %v6567
          %v6569 = vrot.slane %v5996, %v6568
          %v6570 = vsel %vm6331, %v6569, %v6565
          %v6571 = vlaneseq
          %v6572 = vshrl.u32 %v6571, 7
          %v6573 = vsub.s32 %v6286, %v6572
          %v6574 = vrot.slane %v5999, %v6573
          %v6575 = vlaneseq
          %v6576 = vshrl.u32 %v6575, 7
          %v6577 = vsub.s32 %v6291, %v6576
          %v6578 = vrot.slane %v6002, %v6577
          %v6579 = vsel %vm6296, %v6578, %v6574
          %v6580 = vlaneseq
          %v6581 = vshrl.u32 %v6580, 7
          %v6582 = vsub.s32 %v6298, %v6581
          %v6583 = vrot.slane %v6005, %v6582
          %v6584 = vsel %vm6303, %v6583, %v6579
          %v6585 = vlaneseq
          %v6586 = vshrl.u32 %v6585, 7
          %v6587 = vsub.s32 %v6305, %v6586
          %v6588 = vrot.slane %v6008, %v6587
          %v6589 = vsel %vm6310, %v6588, %v6584
          %v6590 = vlaneseq
          %v6591 = vshrl.u32 %v6590, 7
          %v6592 = vsub.s32 %v6312, %v6591
          %v6593 = vrot.slane %v6011, %v6592
          %v6594 = vsel %vm6317, %v6593, %v6589
          %v6595 = vlaneseq
          %v6596 = vshrl.u32 %v6595, 7
          %v6597 = vsub.s32 %v6319, %v6596
          %v6598 = vrot.slane %v6014, %v6597
          %v6599 = vsel %vm6324, %v6598, %v6594
          %v6600 = vlaneseq
          %v6601 = vshrl.u32 %v6600, 7
          %v6602 = vsub.s32 %v6326, %v6601
          %v6603 = vrot.slane %v6017, %v6602
          %v6604 = vsel %vm6331, %v6603, %v6599
          %v6605 = vlaneseq
          %v6606 = vshrl.u32 %v6605, 7
          %v6607 = vsub.s32 %v6286, %v6606
          %v6608 = vrot.slane %v6020, %v6607
          %v6609 = vlaneseq
          %v6610 = vshrl.u32 %v6609, 7
          %v6611 = vsub.s32 %v6291, %v6610
          %v6612 = vrot.slane %v6023, %v6611
          %v6613 = vsel %vm6296, %v6612, %v6608
          %v6614 = vlaneseq
          %v6615 = vshrl.u32 %v6614, 7
          %v6616 = vsub.s32 %v6298, %v6615
          %v6617 = vrot.slane %v6026, %v6616
          %v6618 = vsel %vm6303, %v6617, %v6613
          %v6619 = vlaneseq
          %v6620 = vshrl.u32 %v6619, 7
          %v6621 = vsub.s32 %v6305, %v6620
          %v6622 = vrot.slane %v6029, %v6621
          %v6623 = vsel %vm6310, %v6622, %v6618
          %v6624 = vlaneseq
          %v6625 = vshrl.u32 %v6624, 7
          %v6626 = vsub.s32 %v6312, %v6625
          %v6627 = vrot.slane %v6032, %v6626
          %v6628 = vsel %vm6317, %v6627, %v6623
          %v6629 = vlaneseq
          %v6630 = vshrl.u32 %v6629, 7
          %v6631 = vsub.s32 %v6319, %v6630
          %v6632 = vrot.slane %v6035, %v6631
          %v6633 = vsel %vm6324, %v6632, %v6628
          %v6634 = vlaneseq
          %v6635 = vshrl.u32 %v6634, 7
          %v6636 = vsub.s32 %v6326, %v6635
          %v6637 = vrot.slane %v6038, %v6636
          %v6638 = vsel %vm6331, %v6637, %v6633
          %v6639 = vlaneseq
          %v6640 = vshrl.u32 %v6639, 7
          %v6641 = vsub.s32 %v6286, %v6640
          %v6642 = vrot.slane %v6041, %v6641
          %v6643 = vlaneseq
          %v6644 = vshrl.u32 %v6643, 7
          %v6645 = vsub.s32 %v6291, %v6644
          %v6646 = vrot.slane %v6044, %v6645
          %v6647 = vsel %vm6296, %v6646, %v6642
          %v6648 = vlaneseq
          %v6649 = vshrl.u32 %v6648, 7
          %v6650 = vsub.s32 %v6298, %v6649
          %v6651 = vrot.slane %v6047, %v6650
          %v6652 = vsel %vm6303, %v6651, %v6647
          %v6653 = vlaneseq
          %v6654 = vshrl.u32 %v6653, 7
          %v6655 = vsub.s32 %v6305, %v6654
          %v6656 = vrot.slane %v6050, %v6655
          %v6657 = vsel %vm6310, %v6656, %v6652
          %v6658 = vlaneseq
          %v6659 = vshrl.u32 %v6658, 7
          %v6660 = vsub.s32 %v6312, %v6659
          %v6661 = vrot.slane %v6053, %v6660
          %v6662 = vsel %vm6317, %v6661, %v6657
          %v6663 = vlaneseq
          %v6664 = vshrl.u32 %v6663, 7
          %v6665 = vsub.s32 %v6319, %v6664
          %v6666 = vrot.slane %v6056, %v6665
          %v6667 = vsel %vm6324, %v6666, %v6662
          %v6668 = vlaneseq
          %v6669 = vshrl.u32 %v6668, 7
          %v6670 = vsub.s32 %v6326, %v6669
          %v6671 = vrot.slane %v6059, %v6670
          %v6672 = vsel %vm6331, %v6671, %v6667
          %v6673 = vlaneseq
          %v6674 = vshrl.u32 %v6673, 7
          %v6675 = vsub.s32 %v6286, %v6674
          %v6676 = vrot.slane %v6062, %v6675
          %v6677 = vlaneseq
          %v6678 = vshrl.u32 %v6677, 7
          %v6679 = vsub.s32 %v6291, %v6678
          %v6680 = vrot.slane %v6065, %v6679
          %v6681 = vsel %vm6296, %v6680, %v6676
          %v6682 = vlaneseq
          %v6683 = vshrl.u32 %v6682, 7
          %v6684 = vsub.s32 %v6298, %v6683
          %v6685 = vrot.slane %v6068, %v6684
          %v6686 = vsel %vm6303, %v6685, %v6681
          %v6687 = vlaneseq
          %v6688 = vshrl.u32 %v6687, 7
          %v6689 = vsub.s32 %v6305, %v6688
          %v6690 = vrot.slane %v6071, %v6689
          %v6691 = vsel %vm6310, %v6690, %v6686
          %v6692 = vlaneseq
          %v6693 = vshrl.u32 %v6692, 7
          %v6694 = vsub.s32 %v6312, %v6693
          %v6695 = vrot.slane %v6074, %v6694
          %v6696 = vsel %vm6317, %v6695, %v6691
          %v6697 = vlaneseq
          %v6698 = vshrl.u32 %v6697, 7
          %v6699 = vsub.s32 %v6319, %v6698
          %v6700 = vrot.slane %v6077, %v6699
          %v6701 = vsel %vm6324, %v6700, %v6696
          %v6702 = vlaneseq
          %v6703 = vshrl.u32 %v6702, 7
          %v6704 = vsub.s32 %v6326, %v6703
          %v6705 = vrot.slane %v6080, %v6704
          %v6706 = vsel %vm6331, %v6705, %v6701
          %v6707 = vlaneseq
          %v6708 = vshrl.u32 %v6707, 7
          %v6709 = vsub.s32 %v6286, %v6708
          %v6710 = vrot.slane %v6083, %v6709
          %v6711 = vlaneseq
          %v6712 = vshrl.u32 %v6711, 7
          %v6713 = vsub.s32 %v6291, %v6712
          %v6714 = vrot.slane %v6086, %v6713
          %v6715 = vsel %vm6296, %v6714, %v6710
          %v6716 = vlaneseq
          %v6717 = vshrl.u32 %v6716, 7
          %v6718 = vsub.s32 %v6298, %v6717
          %v6719 = vrot.slane %v6089, %v6718
          %v6720 = vsel %vm6303, %v6719, %v6715
          %v6721 = vlaneseq
          %v6722 = vshrl.u32 %v6721, 7
          %v6723 = vsub.s32 %v6305, %v6722
          %v6724 = vrot.slane %v6092, %v6723
          %v6725 = vsel %vm6310, %v6724, %v6720
          %v6726 = vlaneseq
          %v6727 = vshrl.u32 %v6726, 7
          %v6728 = vsub.s32 %v6312, %v6727
          %v6729 = vrot.slane %v6095, %v6728
          %v6730 = vsel %vm6317, %v6729, %v6725
          %v6731 = vlaneseq
          %v6732 = vshrl.u32 %v6731, 7
          %v6733 = vsub.s32 %v6319, %v6732
          %v6734 = vrot.slane %v6098, %v6733
          %v6735 = vsel %vm6324, %v6734, %v6730
          %v6736 = vlaneseq
          %v6737 = vshrl.u32 %v6736, 7
          %v6738 = vsub.s32 %v6326, %v6737
          %v6739 = vrot.slane %v6101, %v6738
          %v6740 = vsel %vm6331, %v6739, %v6735
          %v6741 = vlaneseq
          %v6742 = vshrl.u32 %v6741, 7
          %v6743 = vsub.s32 %v6286, %v6742
          %v6744 = vrot.slane %v6104, %v6743
          %v6745 = vlaneseq
          %v6746 = vshrl.u32 %v6745, 7
          %v6747 = vsub.s32 %v6291, %v6746
          %v6748 = vrot.slane %v6107, %v6747
          %v6749 = vsel %vm6296, %v6748, %v6744
          %v6750 = vlaneseq
          %v6751 = vshrl.u32 %v6750, 7
          %v6752 = vsub.s32 %v6298, %v6751
          %v6753 = vrot.slane %v6110, %v6752
          %v6754 = vsel %vm6303, %v6753, %v6749
          %v6755 = vlaneseq
          %v6756 = vshrl.u32 %v6755, 7
          %v6757 = vsub.s32 %v6305, %v6756
          %v6758 = vrot.slane %v6113, %v6757
          %v6759 = vsel %vm6310, %v6758, %v6754
          %v6760 = vlaneseq
          %v6761 = vshrl.u32 %v6760, 7
          %v6762 = vsub.s32 %v6312, %v6761
          %v6763 = vrot.slane %v6116, %v6762
          %v6764 = vsel %vm6317, %v6763, %v6759
          %v6765 = vlaneseq
          %v6766 = vshrl.u32 %v6765, 7
          %v6767 = vsub.s32 %v6319, %v6766
          %v6768 = vrot.slane %v6119, %v6767
          %v6769 = vsel %vm6324, %v6768, %v6764
          %v6770 = vlaneseq
          %v6771 = vshrl.u32 %v6770, 7
          %v6772 = vsub.s32 %v6326, %v6771
          %v6773 = vrot.slane %v6122, %v6772
          %v6774 = vsel %vm6331, %v6773, %v6769
          %v6775 = vlaneseq
          %v6776 = vshrl.u32 %v6775, 7
          %v6777 = vsub.s32 %v6286, %v6776
          %v6778 = vrot.slane %v6125, %v6777
          %v6779 = vlaneseq
          %v6780 = vshrl.u32 %v6779, 7
          %v6781 = vsub.s32 %v6291, %v6780
          %v6782 = vrot.slane %v6128, %v6781
          %v6783 = vsel %vm6296, %v6782, %v6778
          %v6784 = vlaneseq
          %v6785 = vshrl.u32 %v6784, 7
          %v6786 = vsub.s32 %v6298, %v6785
          %v6787 = vrot.slane %v6131, %v6786
          %v6788 = vsel %vm6303, %v6787, %v6783
          %v6789 = vlaneseq
          %v6790 = vshrl.u32 %v6789, 7
          %v6791 = vsub.s32 %v6305, %v6790
          %v6792 = vrot.slane %v6134, %v6791
          %v6793 = vsel %vm6310, %v6792, %v6788
          %v6794 = vlaneseq
          %v6795 = vshrl.u32 %v6794, 7
          %v6796 = vsub.s32 %v6312, %v6795
          %v6797 = vrot.slane %v6137, %v6796
          %v6798 = vsel %vm6317, %v6797, %v6793
          %v6799 = vlaneseq
          %v6800 = vshrl.u32 %v6799, 7
          %v6801 = vsub.s32 %v6319, %v6800
          %v6802 = vrot.slane %v6140, %v6801
          %v6803 = vsel %vm6324, %v6802, %v6798
          %v6804 = vlaneseq
          %v6805 = vshrl.u32 %v6804, 7
          %v6806 = vsub.s32 %v6326, %v6805
          %v6807 = vrot.slane %v6143, %v6806
          %v6808 = vsel %vm6331, %v6807, %v6803
          %v6809 = vlaneseq
          %v6810 = vshrl.u32 %v6809, 7
          %v6811 = vsub.s32 %v6286, %v6810
          %v6812 = vrot.slane %v6146, %v6811
          %v6813 = vlaneseq
          %v6814 = vshrl.u32 %v6813, 7
          %v6815 = vsub.s32 %v6291, %v6814
          %v6816 = vrot.slane %v6149, %v6815
          %v6817 = vsel %vm6296, %v6816, %v6812
          %v6818 = vlaneseq
          %v6819 = vshrl.u32 %v6818, 7
          %v6820 = vsub.s32 %v6298, %v6819
          %v6821 = vrot.slane %v6152, %v6820
          %v6822 = vsel %vm6303, %v6821, %v6817
          %v6823 = vlaneseq
          %v6824 = vshrl.u32 %v6823, 7
          %v6825 = vsub.s32 %v6305, %v6824
          %v6826 = vrot.slane %v6155, %v6825
          %v6827 = vsel %vm6310, %v6826, %v6822
          %v6828 = vlaneseq
          %v6829 = vshrl.u32 %v6828, 7
          %v6830 = vsub.s32 %v6312, %v6829
          %v6831 = vrot.slane %v6158, %v6830
          %v6832 = vsel %vm6317, %v6831, %v6827
          %v6833 = vlaneseq
          %v6834 = vshrl.u32 %v6833, 7
          %v6835 = vsub.s32 %v6319, %v6834
          %v6836 = vrot.slane %v6161, %v6835
          %v6837 = vsel %vm6324, %v6836, %v6832
          %v6838 = vlaneseq
          %v6839 = vshrl.u32 %v6838, 7
          %v6840 = vsub.s32 %v6326, %v6839
          %v6841 = vrot.slane %v6164, %v6840
          %v6842 = vsel %vm6331, %v6841, %v6837
          %vm6843 = vcmask 1041409
          %v6844 = vsel %vm6843, %v6366, %v6332
          %vm6845 = vcmask 1042434
          %v6846 = vsel %vm6845, %v6400, %v6844
          %vm6847 = vcmask 1043459
          %v6848 = vsel %vm6847, %v6434, %v6846
          %vm6849 = vcmask 1044484
          %v6850 = vsel %vm6849, %v6468, %v6848
          %vm6851 = vcmask 1045509
          %v6852 = vsel %vm6851, %v6502, %v6850
          %vm6853 = vcmask 1046534
          %v6854 = vsel %vm6853, %v6536, %v6852
          %vm6855 = vcmask 1047559
          %v6856 = vsel %vm6855, %v6570, %v6854
          %v6857 = vsel %vm6843, %v6638, %v6604
          %v6858 = vsel %vm6845, %v6672, %v6857
          %v6859 = vsel %vm6847, %v6706, %v6858
          %v6860 = vsel %vm6849, %v6740, %v6859
          %v6861 = vsel %vm6851, %v6774, %v6860
          %v6862 = vsel %vm6853, %v6808, %v6861
          %v6863 = vsel %vm6855, %v6842, %v6862
          %v6865 = vsel %vm1252, %v6165, 0
          %v6867 = vsel %vm1252, %v6856, 0
          %v6869 = vsel %vm1252, %v6863, 0
          %6871 = vmatprep.subr.mxu0 0.0
          %6872 = vmatpush1.xpose.msra.mxu0 0.0
          %6873 = vmatprep.subr.mxu0 0.0
          %6874 = vmatpush1.xpose.msra.mxu0 0.0
          %6875 = vmatprep.subr.mxu0 0.0
          %6876 = vmatpush1.xpose.msra.mxu0 0.0
          %6877 = vmatprep.subr.mxu0 0.0
          %6878 = vmatpush1.xpose.msra.mxu0 0.0
          %6879 = vmatprep.subr.mxu0 0.0
          %6880 = vmatpush1.xpose.msra.mxu0 0.0
          %6881 = vmatprep.subr.mxu0 0.0
          %6882 = vmatpush1.xpose.msra.mxu0 0.0
          %6883 = vmatprep.subr.mxu0 0.0
          %6884 = vmatpush1.xpose.msra.mxu0 0.0
          %6885 = vmatprep.subr.mxu0 0.0
          %6886 = vmatpush1.xpose.msra.mxu0 0.0
          %6887 = vmatprep.subr.mxu0 0.0
          %6888 = vmatpush1.xpose.msra.mxu0 0.0
          %6889 = vmatprep.subr.mxu0 0.0
          %6890 = vmatpush1.xpose.msra.mxu0 0.0
          %6891 = vmatprep.subr.mxu0 0.0
          %6892 = vmatpush1.xpose.msra.mxu0 0.0
          %6893 = vmatprep.subr.mxu0 0.0
          %6894 = vmatpush1.xpose.msra.mxu0 0.0
          %6895 = vmatprep.subr.mxu0 0.0
          %6896 = vmatpush1.xpose.msra.mxu0 0.0
          %6897 = vmatprep.subr.mxu0 0.0
          %6898 = vmatpush1.xpose.msra.mxu0 0.0
          %6899 = vmatprep.subr.mxu0 0.0
          %6900 = vmatpush1.xpose.msra.mxu0 %v6869
          %6901 = vmatprep.subr.mxu0 0.0
          %6902 = vmatpush1.xpose.msra.mxu0 %v6867
          %6903 = vmatprep.subr.mxu0 0.0
          %6904 = vmatpush2.xpose.msra.mxu0 0.0
          %6905 = vmatprep.subr.mxu0 0.0
          %6906 = vmatpush2.xpose.msra.mxu0 0.0
          %6907 = vmatprep.subr.mxu0 0.0
          %6908 = vmatpush2.xpose.msra.mxu0 0.0
          %6909 = vmatprep.subr.mxu0 0.0
          %6910 = vmatpush2.xpose.msra.mxu0 0.0
          %6911 = vmatprep.subr.mxu0 0.0
          %6912 = vmatpush2.xpose.msra.mxu0 0.0
          %6913 = vmatprep.subr.mxu0 0.0
          %6914 = vmatpush2.xpose.msra.mxu0 0.0
          %6915 = vmatprep.subr.mxu0 0.0
          %6916 = vmatpush2.xpose.msra.mxu0 0.0
          %6917 = vmatprep.subr.mxu0 0.0
          %6918 = vmatpush2.xpose.msra.mxu0 0.0
          %6919 = vmatprep.subr.mxu0 0.0
          %6920 = vmatpush2.xpose.msra.mxu0 0.0
          %6921 = vmatprep.subr.mxu0 0.0
          %6922 = vmatpush2.xpose.msra.mxu0 0.0
          %6923 = vmatprep.subr.mxu0 0.0
          %6924 = vmatpush2.xpose.msra.mxu0 0.0
          %6925 = vmatprep.subr.mxu0 0.0
          %6926 = vmatpush2.xpose.msra.mxu0 0.0
          %6927 = vmatprep.subr.mxu0 0.0
          %6928 = vmatpush2.xpose.msra.mxu0 0.0
          %6929 = vmatprep.subr.mxu0 0.0
          %6930 = vmatpush2.xpose.msra.mxu0 0.0
          %6931 = vmatprep.subr.mxu0 0.0
          %6932 = vmatpush2.xpose.msra.mxu0 0.0
          %6933 = vmatprep.subr.mxu0 0.0
          %6934 = vmatpush2.xpose.msra.mxu0 0.0
          %6935 = vmatprep.mubr.f32.mxu0 0.0
          %6936 = vmatmul.mubr.f32.gmra.mxu0 %v6865
          %v6937 = vpop.f32.mrf.mxu0
          %v6938 = vadd.f32 %v6171, %v6937
          %v6939 = vpop.f32.mrf.mxu0
          %6940 = vdwg.mxu0
          %vm6941 = vcmask 123904
          %6942 = vst.msk [vmem:[#allocation3] sm:$0x3] %vm6941, %v6938
        $region104: #{transformer_forward.1} parent=95 // pred_fallthru
          _
        // Predicated region
        $region105: #{transformer_forward.1} parent=95 // pred_check
          %p6943 = pneg %p503
        $region106: #{transformer_forward.1} parent=95 // pred_check_branch
          %6945 = sbr.rel (%p6943) target = $region108
        $region107: #{transformer_forward.1} parent=95 // pred_region
          %s6947 = ssub.s32 32, 32
          %6948 = vsyncadd [#allocation4], %s6947
          %s6950 = sshll.u32 [#allocation3], 4
          %s6951 = int_to_ptr.vmem [resolvable:$true] %s6950
          %6953 = dma.vmem_to_hbm [thread:$0]  %s6951, 32, %s19, [#allocation4]
        $region108: #{transformer_forward.1} parent=95 // pred_fallthru
          _
        // Predicated region
        $region109: #{transformer_forward.1} parent=95 // pred_check
          %p6954 = pneg %p503
        $region110: #{transformer_forward.1} parent=95 // pred_check_branch
          %6956 = sbr.rel (%p6954) target = $region112
        $region111: #{transformer_forward.1} parent=95 // pred_region
          %6957 = dma.done [#allocation4], 32
        $region112: #{transformer_forward.1} parent=95 // pred_fallthru
          _
      $region96: #{transformer_forward.1} parent=5 // pred_fallthru
        _
      %p6958 = scmp.le.s32.totalorder 2, %s26
      // Predicated region
      $region113: #{transformer_forward.1} parent=5 // pred_check
        %p6959 = pneg %p6958
      $region114: #{transformer_forward.1} parent=5 // pred_check_branch
        %6961 = sbr.rel (%p6959) target = $region116
      $region115: #{transformer_forward.1} parent=5 // pred_region
        %s6962 = ssub.s32 %s26, 2
      $region116: #{transformer_forward.1} parent=5 // pred_fallthru
        _
    $region6: #{transformer_forward.1} parent=1 // loop_footer
      %s30 = sadd.s32 1, %s26
    $region7: #{transformer_forward.1} parent=1 // loop_footer_branch
      %25 = sbr.rel target = $region3
    $region8: #{transformer_forward.1} parent=1 // loop_exit
      _
    %6963 = vsyncpa [#allocation4], 1
    %s6964 = scalar_lea.sflag [#allocation4], 1
    %6965 = vsyncpa %s6964, 1

</llo_original>
